<compile_context>
chip_gen: v6e
topology: v6e:2x2x1
jax: 0.10.0
libtpu: 0.0.40
codegen_flags: <defaults>
</compile_context>

<pallas_src>
import functools

import jax
import jax.numpy as jnp
import numpy as np
from jax.experimental import pallas as pl
from jax.experimental.pallas import tpu as pltpu

EPS = 1e-5

_COMPILER_PARAMS = pltpu.CompilerParams(
    dimension_semantics=("parallel",),   # batch / row-tile axis -> megacore sharding
    vmem_limit_bytes=64 * 1024 * 1024,
)


def _conv3x3_stats_kernel(fuse_in, x_ref, w_ref, *rest):
    """3x3 conv (stride 1, pad 1) over one NHWC sample + BN partial stats.

    Optionally fuses the previous BatchNorm (folded to per-channel scale/shift)
    and ReLU on the input.  The sample is staged once, in bf16, as three
    kw-shifted row-padded slabs stacked along the leading axis of a VMEM
    scratch; each of the 9 taps is then a contiguous leading-axis window fed
    straight to the MXU (bf16 x bf16 -> f32), accumulated in a local value.
    """
    if fuse_in:
        scale_ref, shift_ref, y_ref, sum_ref, sq_ref, s_ref = rest
    else:
        y_ref, sum_ref, sq_ref, s_ref = rest
        scale_ref = shift_ref = None

    _, H, W, Cin = x_ref.shape
    Cout = w_ref.shape[2]
    HW = H * W
    Hp = H + 2                      # row-padded height of each kw slab

    # Affine + ReLU + cast exactly once (taps re-read bf16 from the scratch).
    if fuse_in:
        xin = x_ref[0].astype(jnp.float32)
        xin = (xin * scale_ref[...].reshape(1, 1, Cin)
               + shift_ref[...].reshape(1, 1, Cin))
        xin = jnp.maximum(xin, 0.0).astype(jnp.bfloat16)
    else:
        xin = x_ref[0]              # already bf16

    # Stage 3 kw-shifted copies: slab kw occupies rows [kw*Hp, (kw+1)*Hp) and
    # holds X_padded(r, w + kw).  Only the halo rows/columns are zeroed.
    z_row = jnp.zeros((1, W, Cin), jnp.bfloat16)
    z_col = jnp.zeros((H, 1, Cin), jnp.bfloat16)
    for kw in range(3):
        base = kw * Hp
        s_ref[base:base + 1, :, :] = z_row                    # top padding row
        s_ref[base + H + 1:base + H + 2, :, :] = z_row        # bottom padding row
    s_ref[1:1 + H, 0:1, :] = z_col                            # kw=0: left pad column
    s_ref[1:1 + H, 1:W, :] = xin[:, 0:W - 1, :]               # kw=0 interior
    s_ref[Hp + 1:Hp + 1 + H, :, :] = xin                      # kw=1: aligned interior
    s_ref[2 * Hp + 1:2 * Hp + 1 + H, 0:W - 1, :] = xin[:, 1:W, :]   # kw=2 interior
    s_ref[2 * Hp + 1:2 * Hp + 1 + H, W - 1:W, :] = z_col      # kw=2: right pad column

    # 9 MXU matmuls over contiguous windows, accumulated locally in f32.
    # TODO(synk): pack the 3 kw taps into one K=3*Cin matmul per kh (and pad
    # channels to 128 lanes) for real ResNet channel counts.
    acc = None
    for kh in range(3):
        for kw in range(3):
            start = kw * Hp + kh
            lhs = s_ref[start:start + H, :, :].reshape(HW, Cin)
            part = jnp.dot(lhs, w_ref[kh * 3 + kw],
                           preferred_element_type=jnp.float32)
            acc = part if acc is None else acc + part

    # One-pass BN statistics while the f32 accumulator is live; store outputs once.
    sum_ref[...] = jnp.sum(acc, axis=0).reshape(1, 1, Cout)
    sq_ref[...] = jnp.sum(acc * acc, axis=0).reshape(1, 1, Cout)
    y_ref[...] = acc.reshape(1, H, W, Cout).astype(y_ref.dtype)


def _conv3x3_stats(x, w, scale=None, shift=None, *, out_dtype):
    """Batched 3x3 conv (+ optional fused input affine/ReLU) + BN partial stats."""
    N, H, W, Cin = x.shape
    Cout = w.shape[2]
    fuse_in = scale is not None

    in_specs = [
        pl.BlockSpec((1, H, W, Cin), lambda n: (n, 0, 0, 0)),
        pl.BlockSpec((9, Cin, Cout), lambda n: (0, 0, 0)),
    ]
    args = [x, w]
    if fuse_in:
        in_specs += [pl.BlockSpec((1, Cin), lambda n: (0, 0)),
                     pl.BlockSpec((1, Cin), lambda n: (0, 0))]
        args += [scale, shift]

    # TODO(synk): add a second "parallel" grid axis over H-tiles so small
    # batches still fill both v7x TensorCores and bound VMEM at real sizes.
    return pl.pallas_call(
        functools.partial(_conv3x3_stats_kernel, fuse_in),
        grid=(N,),
        in_specs=in_specs,
        out_specs=(
            pl.BlockSpec((1, H, W, Cout), lambda n: (n, 0, 0, 0)),
            pl.BlockSpec((1, 1, Cout), lambda n: (n, 0, 0)),
            pl.BlockSpec((1, 1, Cout), lambda n: (n, 0, 0)),
        ),
        out_shape=(
            jax.ShapeDtypeStruct((N, H, W, Cout), out_dtype),
            jax.ShapeDtypeStruct((N, 1, Cout), jnp.float32),
            jax.ShapeDtypeStruct((N, 1, Cout), jnp.float32),
        ),
        scratch_shapes=[
            # 3 kw-shifted, row-padded bf16 slabs stacked on the leading axis.
            pltpu.VMEM((3 * (H + 2), W, Cin), jnp.bfloat16),
        ],
        compiler_params=_COMPILER_PARAMS,
    )(*args)


def _bn_add_relu_kernel(y_ref, res_ref, scale_ref, shift_ref, out_ref):
    """Folded bn2 (scale/shift) + residual add + ReLU on lane-dense 2-D tiles."""
    out = y_ref[...].astype(jnp.float32) * scale_ref[...] + shift_ref[...]
    out = out + res_ref[...].astype(jnp.float32)
    out_ref[...] = jnp.maximum(out, 0.0)


def _fold_bn(sums, sumsqs, gamma, beta, count):
    """Training-mode BatchNorm (biased batch var) folded to per-channel scale/shift."""
    mean = jnp.sum(sums, axis=0) / count                   # (1, C)
    var = jnp.sum(sumsqs, axis=0) / count - mean * mean
    scale = gamma.reshape(1, -1).astype(jnp.float32) * jax.lax.rsqrt(var + EPS)
    shift = beta.reshape(1, -1).astype(jnp.float32) - mean * scale
    return scale, shift


def _row_block(rows, target=512):
    """Largest row tile that divides `rows` evenly and keeps (8,128) tiling legal."""
    if rows <= target:
        return rows
    for b in range(target - target % 8, 0, -8):
        if rows % b == 0:
            return b
    return rows


@jax.jit
def basic_block(x_nchw, w1_oihw, g1, b1, w2_oihw, g2, b2):
    """BasicBlock forward (stride=1, downsample=None): NCHW in, NCHW out."""
    N, Cin, H, W = x_nchw.shape
    Cmid = w1_oihw.shape[0]
    Cout = w2_oihw.shape[0]
    assert Cin == Cout, "residual add requires inplanes == planes (downsample=None)"

    # Single NHWC bf16 copy of the input: conv1 operand AND the residual stream.
    x_bf16 = jnp.transpose(x_nchw, (0, 2, 3, 1)).astype(jnp.bfloat16)
    # OIHW -> (kh, kw, cin, cout) -> (9, cin, cout) bf16 MXU operands.
    w1 = jnp.transpose(w1_oihw, (2, 3, 1, 0)).reshape(9, Cin, Cmid).astype(jnp.bfloat16)
    w2 = jnp.transpose(w2_oihw, (2, 3, 1, 0)).reshape(9, Cmid, Cout).astype(jnp.bfloat16)

    count = jnp.float32(N * H * W)

    # conv1 + BN1 statistics (pass 1 of BN1).
    y1, s1, ss1 = _conv3x3_stats(x_bf16, w1, out_dtype=jnp.bfloat16)
    scale1, shift1 = _fold_bn(s1, ss1, g1, b1, count)

    # BN1 affine + ReLU fused into conv2, + BN2 statistics (pass 1 of BN2).
    # y2 is written bf16: the BN2 stats already came from the f32 accumulator.
    y2, s2, ss2 = _conv3x3_stats(y1, w2, scale1, shift1, out_dtype=jnp.bfloat16)
    scale2, shift2 = _fold_bn(s2, ss2, g2, b2, count)

    # BN2 affine + residual add + ReLU on a lane-dense (N*H, W*C) view with
    # large row tiles; scale/shift pre-tiled to length W*C (index = w*C + c).
    NH, WC = N * H, W * Cout
    rows = _row_block(NH)
    y2_2d = y2.reshape(NH, WC)
    res_2d = x_bf16.reshape(NH, WC)
    scale2_t = jnp.tile(scale2.reshape(-1), W).reshape(1, WC)
    shift2_t = jnp.tile(shift2.reshape(-1), W).reshape(1, WC)

    out_2d = pl.pallas_call(
        _bn_add_relu_kernel,
        grid=(NH // rows,),
        in_specs=[pl.BlockSpec((rows, WC), lambda i: (i, 0)),
                  pl.BlockSpec((rows, WC), lambda i: (i, 0)),
                  pl.BlockSpec((1, WC), lambda i: (0, 0)),
                  pl.BlockSpec((1, WC), lambda i: (0, 0))],
        out_specs=pl.BlockSpec((rows, WC), lambda i: (i, 0)),
        out_shape=jax.ShapeDtypeStruct((NH, WC), jnp.float32),
        compiler_params=_COMPILER_PARAMS,
    )(y2_2d, res_2d, scale2_t, shift2_t)

    out_nhwc = out_2d.reshape(N, H, W, Cout)
    return jnp.transpose(out_nhwc, (0, 3, 1, 2))  # back to NCHW


def ref_basic_block(x, w1, g1, b1, w2, g2, b2):
    """Pure-JAX f32 reference (NCHW), matching PyTorch training-mode BN."""
    def conv(x, w):
        return jax.lax.conv_general_dilated(
            x, w, (1, 1), ((1, 1), (1, 1)),
            dimension_numbers=('NCHW', 'OIHW', 'NCHW'))

    def bn(x, g, b):
        mean = jnp.mean(x, axis=(0, 2, 3), keepdims=True)
        var = jnp.mean((x - mean) ** 2, axis=(0, 2, 3), keepdims=True)
        return ((x - mean) * jax.lax.rsqrt(var + EPS)
                * g.reshape(1, -1, 1, 1) + b.reshape(1, -1, 1, 1))

    out = jnp.maximum(bn(conv(x, w1), g1, b1), 0.0)
    out = bn(conv(out, w2), g2, b2)
    return jnp.maximum(out + x, 0.0)


if __name__ == "__main__":
    # Small shapes: batch=2, inplanes=planes=4, spatial 16x16, stride=1,
    # downsample=None (so residual shapes match).
    N, C, H, W = 2, 4, 16, 16
    planes = 4

    key = jax.random.PRNGKey(0)
    kx, kw1, kw2, kg1, kb1, kg2, kb2 = jax.random.split(key, 7)

    x = jax.random.normal(kx, (N, C, H, W), jnp.float32)
    w1 = 0.1 * jax.random.normal(kw1, (planes, C, 3, 3), jnp.float32)       # OIHW
    w2 = 0.1 * jax.random.normal(kw2, (planes, planes, 3, 3), jnp.float32)  # OIHW
    g1 = 1.0 + 0.1 * jax.random.normal(kg1, (planes,), jnp.float32)
    b1 = 0.1 * jax.random.normal(kb1, (planes,), jnp.float32)
    g2 = 1.0 + 0.1 * jax.random.normal(kg2, (planes,), jnp.float32)
    b2 = 0.1 * jax.random.normal(kb2, (planes,), jnp.float32)

    out = jax.block_until_ready(basic_block(x, w1, g1, b1, w2, g2, b2))
    ref = jax.block_until_ready(ref_basic_block(x, w1, g1, b1, w2, g2, b2))

    # bf16 MXU operands / bf16 residual (f32 accumulation) vs. all-f32 reference.
    np.testing.assert_allclose(np.asarray(out), np.asarray(ref), rtol=5e-2, atol=5e-2)
    print("KERNEL_OK")
</pallas_src>

<mosaic_0001>
module attributes {stable_mosaic.version = 11 : i64} {
  func.func @_conv3x3_stats_kernel(%arg0: i32, %arg1: memref<1x16x16x4xbf16, #tpu.memory_space<vmem>>, %arg2: memref<9x4x4xbf16, #tpu.memory_space<vmem>>, %arg3: memref<1x4xf32, #tpu.memory_space<vmem>>, %arg4: memref<1x4xf32, #tpu.memory_space<vmem>>, %arg5: memref<1x16x16x4xbf16, #tpu.memory_space<vmem>>, %arg6: memref<1x1x4xf32, #tpu.memory_space<vmem>>, %arg7: memref<1x1x4xf32, #tpu.memory_space<vmem>>, %arg8: memref<54x16x4xbf16, #tpu.memory_space<vmem>>) attributes {dimension_semantics = [#tpu.dimension_semantics<parallel>], iteration_bounds = array<i64: 2>, scalar_prefetch = 0 : i64, scratch_operands = 1 : i64, tpu.core_type = #tpu.core_type<tc>, window_params = [{transform_indices = @transform_0, window_bounds = array<i64: 1, 16, 16, 4>}, {pipeline_mode = #tpu.pipeline_mode<synchronous>, transform_indices = @transform_1, window_bounds = array<i64: 9, 4, 4>}, {pipeline_mode = #tpu.pipeline_mode<synchronous>, transform_indices = @transform_2, window_bounds = array<i64: 1, 4>}, {pipeline_mode = #tpu.pipeline_mode<synchronous>, transform_indices = @transform_3, window_bounds = array<i64: 1, 4>}, {transform_indices = @transform_4, window_bounds = array<i64: 1, 16, 16, 4>}, {transform_indices = @transform_5, window_bounds = array<i64: 1, 1, 4>}, {transform_indices = @transform_6, window_bounds = array<i64: 1, 1, 4>}]} {
    %c0 = arith.constant 0 : index
    %c0_0 = arith.constant 0 : index
    %c0_1 = arith.constant 0 : index
    %c0_2 = arith.constant 0 : index
    %0 = vector.load %arg1[%c0, %c0_0, %c0_1, %c0_2] : memref<1x16x16x4xbf16, #tpu.memory_space<vmem>>, vector<1x16x16x4xbf16>
    %1 = vector.shape_cast %0 : vector<1x16x16x4xbf16> to vector<16x16x4xbf16>
    %2 = arith.extf %1 : vector<16x16x4xbf16> to vector<16x16x4xf32>
    %c0_3 = arith.constant 0 : index
    %c0_4 = arith.constant 0 : index
    %3 = vector.load %arg3[%c0_3, %c0_4] : memref<1x4xf32, #tpu.memory_space<vmem>>, vector<1x4xf32>
    %4 = vector.shape_cast %3 : vector<1x4xf32> to vector<1x1x4xf32>
    %5 = vector.broadcast %4 : vector<1x1x4xf32> to vector<16x16x4xf32>
    %6 = arith.mulf %2, %5 : vector<16x16x4xf32>
    %c0_5 = arith.constant 0 : index
    %c0_6 = arith.constant 0 : index
    %7 = vector.load %arg4[%c0_5, %c0_6] : memref<1x4xf32, #tpu.memory_space<vmem>>, vector<1x4xf32>
    %8 = vector.shape_cast %7 : vector<1x4xf32> to vector<1x1x4xf32>
    %9 = vector.broadcast %8 : vector<1x1x4xf32> to vector<16x16x4xf32>
    %10 = arith.addf %6, %9 : vector<16x16x4xf32>
    %cst = arith.constant 0.000000e+00 : f32
    %11 = vector.broadcast %cst : f32 to vector<16x16x4xf32>
    %12 = arith.maximumf %10, %11 : vector<16x16x4xf32>
    %13 = arith.truncf %12 : vector<16x16x4xf32> to vector<16x16x4xbf16>
    %cst_7 = arith.constant 0.000000e+00 : bf16
    %14 = vector.broadcast %cst_7 : bf16 to vector<1x16x4xbf16>
    %cst_8 = arith.constant 0.000000e+00 : bf16
    %15 = vector.broadcast %cst_8 : bf16 to vector<16x1x4xbf16>
    %c0_9 = arith.constant 0 : index
    %c0_10 = arith.constant 0 : index
    %c0_11 = arith.constant 0 : index
    %16 = vector.load %arg8[%c0_9, %c0_10, %c0_11] : memref<54x16x4xbf16, #tpu.memory_space<vmem>>, vector<1x16x4xbf16>
    tpu.vector_store %arg8[%c0_9, %c0_10, %c0_11], %14 {strides = array<i32>} : memref<54x16x4xbf16, #tpu.memory_space<vmem>>, vector<1x16x4xbf16>,
    %c17 = arith.constant 17 : index
    %c0_12 = arith.constant 0 : index
    %c0_13 = arith.constant 0 : index
    %17 = vector.load %arg8[%c17, %c0_12, %c0_13] : memref<54x16x4xbf16, #tpu.memory_space<vmem>>, vector<1x16x4xbf16>
    tpu.vector_store %arg8[%c17, %c0_12, %c0_13], %14 {strides = array<i32>} : memref<54x16x4xbf16, #tpu.memory_space<vmem>>, vector<1x16x4xbf16>,
    %c18 = arith.constant 18 : index
    %c0_14 = arith.constant 0 : index
    %c0_15 = arith.constant 0 : index
    %18 = vector.load %arg8[%c18, %c0_14, %c0_15] : memref<54x16x4xbf16, #tpu.memory_space<vmem>>, vector<1x16x4xbf16>
    tpu.vector_store %arg8[%c18, %c0_14, %c0_15], %14 {strides = array<i32>} : memref<54x16x4xbf16, #tpu.memory_space<vmem>>, vector<1x16x4xbf16>,
    %c35 = arith.constant 35 : index
    %c0_16 = arith.constant 0 : index
    %c0_17 = arith.constant 0 : index
    %19 = vector.load %arg8[%c35, %c0_16, %c0_17] : memref<54x16x4xbf16, #tpu.memory_space<vmem>>, vector<1x16x4xbf16>
    tpu.vector_store %arg8[%c35, %c0_16, %c0_17], %14 {strides = array<i32>} : memref<54x16x4xbf16, #tpu.memory_space<vmem>>, vector<1x16x4xbf16>,
    %c36 = arith.constant 36 : index
    %c0_18 = arith.constant 0 : index
    %c0_19 = arith.constant 0 : index
    %20 = vector.load %arg8[%c36, %c0_18, %c0_19] : memref<54x16x4xbf16, #tpu.memory_space<vmem>>, vector<1x16x4xbf16>
    tpu.vector_store %arg8[%c36, %c0_18, %c0_19], %14 {strides = array<i32>} : memref<54x16x4xbf16, #tpu.memory_space<vmem>>, vector<1x16x4xbf16>,
    %c53 = arith.constant 53 : index
    %c0_20 = arith.constant 0 : index
    %c0_21 = arith.constant 0 : index
    %21 = vector.load %arg8[%c53, %c0_20, %c0_21] : memref<54x16x4xbf16, #tpu.memory_space<vmem>>, vector<1x16x4xbf16>
    tpu.vector_store %arg8[%c53, %c0_20, %c0_21], %14 {strides = array<i32>} : memref<54x16x4xbf16, #tpu.memory_space<vmem>>, vector<1x16x4xbf16>,
    %c1 = arith.constant 1 : index
    %c0_22 = arith.constant 0 : index
    %c0_23 = arith.constant 0 : index
    %22 = vector.load %arg8[%c1, %c0_22, %c0_23] : memref<54x16x4xbf16, #tpu.memory_space<vmem>>, vector<16x1x4xbf16>
    tpu.vector_store %arg8[%c1, %c0_22, %c0_23], %15 {strides = array<i32>} : memref<54x16x4xbf16, #tpu.memory_space<vmem>>, vector<16x1x4xbf16>,
    %23 = vector.extract_strided_slice %13 {offsets = [0, 0, 0], sizes = [16, 15, 4], strides = [1, 1, 1]} : vector<16x16x4xbf16> to vector<16x15x4xbf16>
    %c1_24 = arith.constant 1 : index
    %c1_25 = arith.constant 1 : index
    %c0_26 = arith.constant 0 : index
    %24 = vector.load %arg8[%c1_24, %c1_25, %c0_26] : memref<54x16x4xbf16, #tpu.memory_space<vmem>>, vector<16x15x4xbf16>
    tpu.vector_store %arg8[%c1_24, %c1_25, %c0_26], %23 {strides = array<i32>} : memref<54x16x4xbf16, #tpu.memory_space<vmem>>, vector<16x15x4xbf16>,
    %c19 = arith.constant 19 : index
    %c0_27 = arith.constant 0 : index
    %c0_28 = arith.constant 0 : index
    %25 = vector.load %arg8[%c19, %c0_27, %c0_28] : memref<54x16x4xbf16, #tpu.memory_space<vmem>>, vector<16x16x4xbf16>
    tpu.vector_store %arg8[%c19, %c0_27, %c0_28], %13 {strides = array<i32>} : memref<54x16x4xbf16, #tpu.memory_space<vmem>>, vector<16x16x4xbf16>,
    %26 = vector.extract_strided_slice %13 {offsets = [0, 1, 0], sizes = [16, 15, 4], strides = [1, 1, 1]} : vector<16x16x4xbf16> to vector<16x15x4xbf16>
    %c37 = arith.constant 37 : index
    %c0_29 = arith.constant 0 : index
    %c0_30 = arith.constant 0 : index
    %27 = vector.load %arg8[%c37, %c0_29, %c0_30] : memref<54x16x4xbf16, #tpu.memory_space<vmem>>, vector<16x15x4xbf16>
    tpu.vector_store %arg8[%c37, %c0_29, %c0_30], %26 {strides = array<i32>} : memref<54x16x4xbf16, #tpu.memory_space<vmem>>, vector<16x15x4xbf16>,
    %c37_31 = arith.constant 37 : index
    %c15 = arith.constant 15 : index
    %c0_32 = arith.constant 0 : index
    %28 = vector.load %arg8[%c37_31, %c15, %c0_32] : memref<54x16x4xbf16, #tpu.memory_space<vmem>>, vector<16x1x4xbf16>
    tpu.vector_store %arg8[%c37_31, %c15, %c0_32], %15 {strides = array<i32>} : memref<54x16x4xbf16, #tpu.memory_space<vmem>>, vector<16x1x4xbf16>,
    %c0_33 = arith.constant 0 : index
    %c0_34 = arith.constant 0 : index
    %c0_35 = arith.constant 0 : index
    %29 = vector.load %arg8[%c0_33, %c0_34, %c0_35] : memref<54x16x4xbf16, #tpu.memory_space<vmem>>, vector<16x16x4xbf16>
    %30 = vector.shape_cast %29 : vector<16x16x4xbf16> to vector<256x4xbf16>
    %c0_36 = arith.constant 0 : index
    %c0_37 = arith.constant 0 : index
    %c0_38 = arith.constant 0 : index
    %31 = vector.load %arg2[%c0_36, %c0_37, %c0_38] : memref<9x4x4xbf16, #tpu.memory_space<vmem>>, vector<1x4x4xbf16>
    %32 = vector.shape_cast %31 : vector<1x4x4xbf16> to vector<4x4xbf16>
    %cst_39 = arith.constant dense<0.000000e+00> : vector<256x4xf32>
    %33 = tpu.matmul %30, %32, %cst_39 {dimension_numbers = #tpu.dot_dimension_numbers<[1], [0], [0], [1], [0, 0, 1, 1], [], []>} : vector<256x4xbf16>, vector<4x4xbf16>, vector<256x4xf32> -> vector<256x4xf32>
    %c18_40 = arith.constant 18 : index
    %c0_41 = arith.constant 0 : index
    %c0_42 = arith.constant 0 : index
    %34 = vector.load %arg8[%c18_40, %c0_41, %c0_42] : memref<54x16x4xbf16, #tpu.memory_space<vmem>>, vector<16x16x4xbf16>
    %35 = vector.shape_cast %34 : vector<16x16x4xbf16> to vector<256x4xbf16>
    %c1_43 = arith.constant 1 : index
    %c0_44 = arith.constant 0 : index
    %c0_45 = arith.constant 0 : index
    %36 = vector.load %arg2[%c1_43, %c0_44, %c0_45] : memref<9x4x4xbf16, #tpu.memory_space<vmem>>, vector<1x4x4xbf16>
    %37 = vector.shape_cast %36 : vector<1x4x4xbf16> to vector<4x4xbf16>
    %cst_46 = arith.constant dense<0.000000e+00> : vector<256x4xf32>
    %38 = tpu.matmul %35, %37, %cst_46 {dimension_numbers = #tpu.dot_dimension_numbers<[1], [0], [0], [1], [0, 0, 1, 1], [], []>} : vector<256x4xbf16>, vector<4x4xbf16>, vector<256x4xf32> -> vector<256x4xf32>
    %39 = arith.addf %33, %38 : vector<256x4xf32>
    %c36_47 = arith.constant 36 : index
    %c0_48 = arith.constant 0 : index
    %c0_49 = arith.constant 0 : index
    %40 = vector.load %arg8[%c36_47, %c0_48, %c0_49] : memref<54x16x4xbf16, #tpu.memory_space<vmem>>, vector<16x16x4xbf16>
    %41 = vector.shape_cast %40 : vector<16x16x4xbf16> to vector<256x4xbf16>
    %c2 = arith.constant 2 : index
    %c0_50 = arith.constant 0 : index
    %c0_51 = arith.constant 0 : index
    %42 = vector.load %arg2[%c2, %c0_50, %c0_51] : memref<9x4x4xbf16, #tpu.memory_space<vmem>>, vector<1x4x4xbf16>
    %43 = vector.shape_cast %42 : vector<1x4x4xbf16> to vector<4x4xbf16>
    %cst_52 = arith.constant dense<0.000000e+00> : vector<256x4xf32>
    %44 = tpu.matmul %41, %43, %cst_52 {dimension_numbers = #tpu.dot_dimension_numbers<[1], [0], [0], [1], [0, 0, 1, 1], [], []>} : vector<256x4xbf16>, vector<4x4xbf16>, vector<256x4xf32> -> vector<256x4xf32>
    %45 = arith.addf %39, %44 : vector<256x4xf32>
    %c1_53 = arith.constant 1 : index
    %c0_54 = arith.constant 0 : index
    %c0_55 = arith.constant 0 : index
    %46 = vector.load %arg8[%c1_53, %c0_54, %c0_55] : memref<54x16x4xbf16, #tpu.memory_space<vmem>>, vector<16x16x4xbf16>
    %47 = vector.shape_cast %46 : vector<16x16x4xbf16> to vector<256x4xbf16>
    %c3 = arith.constant 3 : index
    %c0_56 = arith.constant 0 : index
    %c0_57 = arith.constant 0 : index
    %48 = vector.load %arg2[%c3, %c0_56, %c0_57] : memref<9x4x4xbf16, #tpu.memory_space<vmem>>, vector<1x4x4xbf16>
    %49 = vector.shape_cast %48 : vector<1x4x4xbf16> to vector<4x4xbf16>
    %cst_58 = arith.constant dense<0.000000e+00> : vector<256x4xf32>
    %50 = tpu.matmul %47, %49, %cst_58 {dimension_numbers = #tpu.dot_dimension_numbers<[1], [0], [0], [1], [0, 0, 1, 1], [], []>} : vector<256x4xbf16>, vector<4x4xbf16>, vector<256x4xf32> -> vector<256x4xf32>
    %51 = arith.addf %45, %50 : vector<256x4xf32>
    %c19_59 = arith.constant 19 : index
    %c0_60 = arith.constant 0 : index
    %c0_61 = arith.constant 0 : index
    %52 = vector.load %arg8[%c19_59, %c0_60, %c0_61] : memref<54x16x4xbf16, #tpu.memory_space<vmem>>, vector<16x16x4xbf16>
    %53 = vector.shape_cast %52 : vector<16x16x4xbf16> to vector<256x4xbf16>
    %c4 = arith.constant 4 : index
    %c0_62 = arith.constant 0 : index
    %c0_63 = arith.constant 0 : index
    %54 = vector.load %arg2[%c4, %c0_62, %c0_63] : memref<9x4x4xbf16, #tpu.memory_space<vmem>>, vector<1x4x4xbf16>
    %55 = vector.shape_cast %54 : vector<1x4x4xbf16> to vector<4x4xbf16>
    %cst_64 = arith.constant dense<0.000000e+00> : vector<256x4xf32>
    %56 = tpu.matmul %53, %55, %cst_64 {dimension_numbers = #tpu.dot_dimension_numbers<[1], [0], [0], [1], [0, 0, 1, 1], [], []>} : vector<256x4xbf16>, vector<4x4xbf16>, vector<256x4xf32> -> vector<256x4xf32>
    %57 = arith.addf %51, %56 : vector<256x4xf32>
    %c37_65 = arith.constant 37 : index
    %c0_66 = arith.constant 0 : index
    %c0_67 = arith.constant 0 : index
    %58 = vector.load %arg8[%c37_65, %c0_66, %c0_67] : memref<54x16x4xbf16, #tpu.memory_space<vmem>>, vector<16x16x4xbf16>
    %59 = vector.shape_cast %58 : vector<16x16x4xbf16> to vector<256x4xbf16>
    %c5 = arith.constant 5 : index
    %c0_68 = arith.constant 0 : index
    %c0_69 = arith.constant 0 : index
    %60 = vector.load %arg2[%c5, %c0_68, %c0_69] : memref<9x4x4xbf16, #tpu.memory_space<vmem>>, vector<1x4x4xbf16>
    %61 = vector.shape_cast %60 : vector<1x4x4xbf16> to vector<4x4xbf16>
    %cst_70 = arith.constant dense<0.000000e+00> : vector<256x4xf32>
    %62 = tpu.matmul %59, %61, %cst_70 {dimension_numbers = #tpu.dot_dimension_numbers<[1], [0], [0], [1], [0, 0, 1, 1], [], []>} : vector<256x4xbf16>, vector<4x4xbf16>, vector<256x4xf32> -> vector<256x4xf32>
    %63 = arith.addf %57, %62 : vector<256x4xf32>
    %c2_71 = arith.constant 2 : index
    %c0_72 = arith.constant 0 : index
    %c0_73 = arith.constant 0 : index
    %64 = vector.load %arg8[%c2_71, %c0_72, %c0_73] : memref<54x16x4xbf16, #tpu.memory_space<vmem>>, vector<16x16x4xbf16>
    %65 = vector.shape_cast %64 : vector<16x16x4xbf16> to vector<256x4xbf16>
    %c6 = arith.constant 6 : index
    %c0_74 = arith.constant 0 : index
    %c0_75 = arith.constant 0 : index
    %66 = vector.load %arg2[%c6, %c0_74, %c0_75] : memref<9x4x4xbf16, #tpu.memory_space<vmem>>, vector<1x4x4xbf16>
    %67 = vector.shape_cast %66 : vector<1x4x4xbf16> to vector<4x4xbf16>
    %cst_76 = arith.constant dense<0.000000e+00> : vector<256x4xf32>
    %68 = tpu.matmul %65, %67, %cst_76 {dimension_numbers = #tpu.dot_dimension_numbers<[1], [0], [0], [1], [0, 0, 1, 1], [], []>} : vector<256x4xbf16>, vector<4x4xbf16>, vector<256x4xf32> -> vector<256x4xf32>
    %69 = arith.addf %63, %68 : vector<256x4xf32>
    %c20 = arith.constant 20 : index
    %c0_77 = arith.constant 0 : index
    %c0_78 = arith.constant 0 : index
    %70 = vector.load %arg8[%c20, %c0_77, %c0_78] : memref<54x16x4xbf16, #tpu.memory_space<vmem>>, vector<16x16x4xbf16>
    %71 = vector.shape_cast %70 : vector<16x16x4xbf16> to vector<256x4xbf16>
    %c7 = arith.constant 7 : index
    %c0_79 = arith.constant 0 : index
    %c0_80 = arith.constant 0 : index
    %72 = vector.load %arg2[%c7, %c0_79, %c0_80] : memref<9x4x4xbf16, #tpu.memory_space<vmem>>, vector<1x4x4xbf16>
    %73 = vector.shape_cast %72 : vector<1x4x4xbf16> to vector<4x4xbf16>
    %cst_81 = arith.constant dense<0.000000e+00> : vector<256x4xf32>
    %74 = tpu.matmul %71, %73, %cst_81 {dimension_numbers = #tpu.dot_dimension_numbers<[1], [0], [0], [1], [0, 0, 1, 1], [], []>} : vector<256x4xbf16>, vector<4x4xbf16>, vector<256x4xf32> -> vector<256x4xf32>
    %75 = arith.addf %69, %74 : vector<256x4xf32>
    %c38 = arith.constant 38 : index
    %c0_82 = arith.constant 0 : index
    %c0_83 = arith.constant 0 : index
    %76 = vector.load %arg8[%c38, %c0_82, %c0_83] : memref<54x16x4xbf16, #tpu.memory_space<vmem>>, vector<16x16x4xbf16>
    %77 = vector.shape_cast %76 : vector<16x16x4xbf16> to vector<256x4xbf16>
    %c8 = arith.constant 8 : index
    %c0_84 = arith.constant 0 : index
    %c0_85 = arith.constant 0 : index
    %78 = vector.load %arg2[%c8, %c0_84, %c0_85] : memref<9x4x4xbf16, #tpu.memory_space<vmem>>, vector<1x4x4xbf16>
    %79 = vector.shape_cast %78 : vector<1x4x4xbf16> to vector<4x4xbf16>
    %cst_86 = arith.constant dense<0.000000e+00> : vector<256x4xf32>
    %80 = tpu.matmul %77, %79, %cst_86 {dimension_numbers = #tpu.dot_dimension_numbers<[1], [0], [0], [1], [0, 0, 1, 1], [], []>} : vector<256x4xbf16>, vector<4x4xbf16>, vector<256x4xf32> -> vector<256x4xf32>
    %81 = arith.addf %75, %80 : vector<256x4xf32>
    %cst_87 = arith.constant dense<0.000000e+00> : vector<4xf32>
    %82 = vector.multi_reduction <add>, %81, %cst_87 [0] : vector<256x4xf32> to vector<4xf32>
    %83 = vector.shape_cast %82 : vector<4xf32> to vector<1x1x4xf32>
    %c0_88 = arith.constant 0 : index
    %c0_89 = arith.constant 0 : index
    %c0_90 = arith.constant 0 : index
    %84 = vector.load %arg6[%c0_88, %c0_89, %c0_90] : memref<1x1x4xf32, #tpu.memory_space<vmem>>, vector<1x1x4xf32>
    tpu.vector_store %arg6[%c0_88, %c0_89, %c0_90], %83 {strides = array<i32>} : memref<1x1x4xf32, #tpu.memory_space<vmem>>, vector<1x1x4xf32>,
    %85 = arith.mulf %81, %81 : vector<256x4xf32>
    %cst_91 = arith.constant dense<0.000000e+00> : vector<4xf32>
    %86 = vector.multi_reduction <add>, %85, %cst_91 [0] : vector<256x4xf32> to vector<4xf32>
    %87 = vector.shape_cast %86 : vector<4xf32> to vector<1x1x4xf32>
    %c0_92 = arith.constant 0 : index
    %c0_93 = arith.constant 0 : index
    %c0_94 = arith.constant 0 : index
    %88 = vector.load %arg7[%c0_92, %c0_93, %c0_94] : memref<1x1x4xf32, #tpu.memory_space<vmem>>, vector<1x1x4xf32>
    tpu.vector_store %arg7[%c0_92, %c0_93, %c0_94], %87 {strides = array<i32>} : memref<1x1x4xf32, #tpu.memory_space<vmem>>, vector<1x1x4xf32>,
    %89 = vector.shape_cast %81 : vector<256x4xf32> to vector<1x16x16x4xf32>
    %90 = arith.truncf %89 : vector<1x16x16x4xf32> to vector<1x16x16x4xbf16>
    %c0_95 = arith.constant 0 : index
    %c0_96 = arith.constant 0 : index
    %c0_97 = arith.constant 0 : index
    %c0_98 = arith.constant 0 : index
    %91 = vector.load %arg5[%c0_95, %c0_96, %c0_97, %c0_98] : memref<1x16x16x4xbf16, #tpu.memory_space<vmem>>, vector<1x16x16x4xbf16>
    tpu.vector_store %arg5[%c0_95, %c0_96, %c0_97, %c0_98], %90 {strides = array<i32>} : memref<1x16x16x4xbf16, #tpu.memory_space<vmem>>, vector<1x16x16x4xbf16>,
    return
  }
  func.func @transform_0(%arg0: i32) -> (i32, i32, i32, i32) {
    %c0_i32 = arith.constant 0 : i32
    %c0_i32_0 = arith.constant 0 : i32
    %c0_i32_1 = arith.constant 0 : i32
    %c0_i32_2 = arith.constant 0 : i32
    return %arg0, %c0_i32, %c0_i32_0, %c0_i32_1 : i32, i32, i32, i32
  }
  func.func @transform_1(%arg0: i32) -> (i32, i32, i32) {
    %c0_i32 = arith.constant 0 : i32
    %c0_i32_0 = arith.constant 0 : i32
    %c0_i32_1 = arith.constant 0 : i32
    %c0_i32_2 = arith.constant 0 : i32
    return %c0_i32, %c0_i32_0, %c0_i32_1 : i32, i32, i32
  }
  func.func @transform_2(%arg0: i32) -> (i32, i32) {
    %c0_i32 = arith.constant 0 : i32
    %c0_i32_0 = arith.constant 0 : i32
    %c0_i32_1 = arith.constant 0 : i32
    return %c0_i32, %c0_i32_0 : i32, i32
  }
  func.func @transform_3(%arg0: i32) -> (i32, i32) {
    %c0_i32 = arith.constant 0 : i32
    %c0_i32_0 = arith.constant 0 : i32
    %c0_i32_1 = arith.constant 0 : i32
    return %c0_i32, %c0_i32_0 : i32, i32
  }
  func.func @transform_4(%arg0: i32) -> (i32, i32, i32, i32) {
    %c0_i32 = arith.constant 0 : i32
    %c0_i32_0 = arith.constant 0 : i32
    %c0_i32_1 = arith.constant 0 : i32
    %c0_i32_2 = arith.constant 0 : i32
    return %arg0, %c0_i32, %c0_i32_0, %c0_i32_1 : i32, i32, i32, i32
  }
  func.func @transform_5(%arg0: i32) -> (i32, i32, i32) {
    %c0_i32 = arith.constant 0 : i32
    %c0_i32_0 = arith.constant 0 : i32
    %c0_i32_1 = arith.constant 0 : i32
    return %arg0, %c0_i32, %c0_i32_0 : i32, i32, i32
  }
  func.func @transform_6(%arg0: i32) -> (i32, i32, i32) {
    %c0_i32 = arith.constant 0 : i32
    %c0_i32_0 = arith.constant 0 : i32
    %c0_i32_1 = arith.constant 0 : i32
    return %arg0, %c0_i32, %c0_i32_0 : i32, i32, i32
  }
}

module attributes {stable_mosaic.version = 11 : i64} {
  func.func @_conv3x3_stats_kernel(%arg0: i32, %arg1: memref<1x16x16x4xbf16, #tpu.memory_space<vmem>>, %arg2: memref<9x4x4xbf16, #tpu.memory_space<vmem>>, %arg3: memref<1x16x16x4xbf16, #tpu.memory_space<vmem>>, %arg4: memref<1x1x4xf32, #tpu.memory_space<vmem>>, %arg5: memref<1x1x4xf32, #tpu.memory_space<vmem>>, %arg6: memref<54x16x4xbf16, #tpu.memory_space<vmem>>) attributes {dimension_semantics = [#tpu.dimension_semantics<parallel>], iteration_bounds = array<i64: 2>, scalar_prefetch = 0 : i64, scratch_operands = 1 : i64, tpu.core_type = #tpu.core_type<tc>, window_params = [{transform_indices = @transform_0, window_bounds = array<i64: 1, 16, 16, 4>}, {pipeline_mode = #tpu.pipeline_mode<synchronous>, transform_indices = @transform_1, window_bounds = array<i64: 9, 4, 4>}, {transform_indices = @transform_2, window_bounds = array<i64: 1, 16, 16, 4>}, {transform_indices = @transform_3, window_bounds = array<i64: 1, 1, 4>}, {transform_indices = @transform_4, window_bounds = array<i64: 1, 1, 4>}]} {
    %c0 = arith.constant 0 : index
    %c0_0 = arith.constant 0 : index
    %c0_1 = arith.constant 0 : index
    %c0_2 = arith.constant 0 : index
    %0 = vector.load %arg1[%c0, %c0_0, %c0_1, %c0_2] : memref<1x16x16x4xbf16, #tpu.memory_space<vmem>>, vector<1x16x16x4xbf16>
    %1 = vector.shape_cast %0 : vector<1x16x16x4xbf16> to vector<16x16x4xbf16>
    %cst = arith.constant 0.000000e+00 : bf16
    %2 = vector.broadcast %cst : bf16 to vector<1x16x4xbf16>
    %cst_3 = arith.constant 0.000000e+00 : bf16
    %3 = vector.broadcast %cst_3 : bf16 to vector<16x1x4xbf16>
    %c0_4 = arith.constant 0 : index
    %c0_5 = arith.constant 0 : index
    %c0_6 = arith.constant 0 : index
    %4 = vector.load %arg6[%c0_4, %c0_5, %c0_6] : memref<54x16x4xbf16, #tpu.memory_space<vmem>>, vector<1x16x4xbf16>
    tpu.vector_store %arg6[%c0_4, %c0_5, %c0_6], %2 {strides = array<i32>} : memref<54x16x4xbf16, #tpu.memory_space<vmem>>, vector<1x16x4xbf16>,
    %c17 = arith.constant 17 : index
    %c0_7 = arith.constant 0 : index
    %c0_8 = arith.constant 0 : index
    %5 = vector.load %arg6[%c17, %c0_7, %c0_8] : memref<54x16x4xbf16, #tpu.memory_space<vmem>>, vector<1x16x4xbf16>
    tpu.vector_store %arg6[%c17, %c0_7, %c0_8], %2 {strides = array<i32>} : memref<54x16x4xbf16, #tpu.memory_space<vmem>>, vector<1x16x4xbf16>,
    %c18 = arith.constant 18 : index
    %c0_9 = arith.constant 0 : index
    %c0_10 = arith.constant 0 : index
    %6 = vector.load %arg6[%c18, %c0_9, %c0_10] : memref<54x16x4xbf16, #tpu.memory_space<vmem>>, vector<1x16x4xbf16>
    tpu.vector_store %arg6[%c18, %c0_9, %c0_10], %2 {strides = array<i32>} : memref<54x16x4xbf16, #tpu.memory_space<vmem>>, vector<1x16x4xbf16>,
    %c35 = arith.constant 35 : index
    %c0_11 = arith.constant 0 : index
    %c0_12 = arith.constant 0 : index
    %7 = vector.load %arg6[%c35, %c0_11, %c0_12] : memref<54x16x4xbf16, #tpu.memory_space<vmem>>, vector<1x16x4xbf16>
    tpu.vector_store %arg6[%c35, %c0_11, %c0_12], %2 {strides = array<i32>} : memref<54x16x4xbf16, #tpu.memory_space<vmem>>, vector<1x16x4xbf16>,
    %c36 = arith.constant 36 : index
    %c0_13 = arith.constant 0 : index
    %c0_14 = arith.constant 0 : index
    %8 = vector.load %arg6[%c36, %c0_13, %c0_14] : memref<54x16x4xbf16, #tpu.memory_space<vmem>>, vector<1x16x4xbf16>
    tpu.vector_store %arg6[%c36, %c0_13, %c0_14], %2 {strides = array<i32>} : memref<54x16x4xbf16, #tpu.memory_space<vmem>>, vector<1x16x4xbf16>,
    %c53 = arith.constant 53 : index
    %c0_15 = arith.constant 0 : index
    %c0_16 = arith.constant 0 : index
    %9 = vector.load %arg6[%c53, %c0_15, %c0_16] : memref<54x16x4xbf16, #tpu.memory_space<vmem>>, vector<1x16x4xbf16>
    tpu.vector_store %arg6[%c53, %c0_15, %c0_16], %2 {strides = array<i32>} : memref<54x16x4xbf16, #tpu.memory_space<vmem>>, vector<1x16x4xbf16>,
    %c1 = arith.constant 1 : index
    %c0_17 = arith.constant 0 : index
    %c0_18 = arith.constant 0 : index
    %10 = vector.load %arg6[%c1, %c0_17, %c0_18] : memref<54x16x4xbf16, #tpu.memory_space<vmem>>, vector<16x1x4xbf16>
    tpu.vector_store %arg6[%c1, %c0_17, %c0_18], %3 {strides = array<i32>} : memref<54x16x4xbf16, #tpu.memory_space<vmem>>, vector<16x1x4xbf16>,
    %11 = vector.extract_strided_slice %1 {offsets = [0, 0, 0], sizes = [16, 15, 4], strides = [1, 1, 1]} : vector<16x16x4xbf16> to vector<16x15x4xbf16>
    %c1_19 = arith.constant 1 : index
    %c1_20 = arith.constant 1 : index
    %c0_21 = arith.constant 0 : index
    %12 = vector.load %arg6[%c1_19, %c1_20, %c0_21] : memref<54x16x4xbf16, #tpu.memory_space<vmem>>, vector<16x15x4xbf16>
    tpu.vector_store %arg6[%c1_19, %c1_20, %c0_21], %11 {strides = array<i32>} : memref<54x16x4xbf16, #tpu.memory_space<vmem>>, vector<16x15x4xbf16>,
    %c19 = arith.constant 19 : index
    %c0_22 = arith.constant 0 : index
    %c0_23 = arith.constant 0 : index
    %13 = vector.load %arg6[%c19, %c0_22, %c0_23] : memref<54x16x4xbf16, #tpu.memory_space<vmem>>, vector<16x16x4xbf16>
    tpu.vector_store %arg6[%c19, %c0_22, %c0_23], %1 {strides = array<i32>} : memref<54x16x4xbf16, #tpu.memory_space<vmem>>, vector<16x16x4xbf16>,
    %14 = vector.extract_strided_slice %1 {offsets = [0, 1, 0], sizes = [16, 15, 4], strides = [1, 1, 1]} : vector<16x16x4xbf16> to vector<16x15x4xbf16>
    %c37 = arith.constant 37 : index
    %c0_24 = arith.constant 0 : index
    %c0_25 = arith.constant 0 : index
    %15 = vector.load %arg6[%c37, %c0_24, %c0_25] : memref<54x16x4xbf16, #tpu.memory_space<vmem>>, vector<16x15x4xbf16>
    tpu.vector_store %arg6[%c37, %c0_24, %c0_25], %14 {strides = array<i32>} : memref<54x16x4xbf16, #tpu.memory_space<vmem>>, vector<16x15x4xbf16>,
    %c37_26 = arith.constant 37 : index
    %c15 = arith.constant 15 : index
    %c0_27 = arith.constant 0 : index
    %16 = vector.load %arg6[%c37_26, %c15, %c0_27] : memref<54x16x4xbf16, #tpu.memory_space<vmem>>, vector<16x1x4xbf16>
    tpu.vector_store %arg6[%c37_26, %c15, %c0_27], %3 {strides = array<i32>} : memref<54x16x4xbf16, #tpu.memory_space<vmem>>, vector<16x1x4xbf16>,
    %c0_28 = arith.constant 0 : index
    %c0_29 = arith.constant 0 : index
    %c0_30 = arith.constant 0 : index
    %17 = vector.load %arg6[%c0_28, %c0_29, %c0_30] : memref<54x16x4xbf16, #tpu.memory_space<vmem>>, vector<16x16x4xbf16>
    %18 = vector.shape_cast %17 : vector<16x16x4xbf16> to vector<256x4xbf16>
    %c0_31 = arith.constant 0 : index
    %c0_32 = arith.constant 0 : index
    %c0_33 = arith.constant 0 : index
    %19 = vector.load %arg2[%c0_31, %c0_32, %c0_33] : memref<9x4x4xbf16, #tpu.memory_space<vmem>>, vector<1x4x4xbf16>
    %20 = vector.shape_cast %19 : vector<1x4x4xbf16> to vector<4x4xbf16>
    %cst_34 = arith.constant dense<0.000000e+00> : vector<256x4xf32>
    %21 = tpu.matmul %18, %20, %cst_34 {dimension_numbers = #tpu.dot_dimension_numbers<[1], [0], [0], [1], [0, 0, 1, 1], [], []>} : vector<256x4xbf16>, vector<4x4xbf16>, vector<256x4xf32> -> vector<256x4xf32>
    %c18_35 = arith.constant 18 : index
    %c0_36 = arith.constant 0 : index
    %c0_37 = arith.constant 0 : index
    %22 = vector.load %arg6[%c18_35, %c0_36, %c0_37] : memref<54x16x4xbf16, #tpu.memory_space<vmem>>, vector<16x16x4xbf16>
    %23 = vector.shape_cast %22 : vector<16x16x4xbf16> to vector<256x4xbf16>
    %c1_38 = arith.constant 1 : index
    %c0_39 = arith.constant 0 : index
    %c0_40 = arith.constant 0 : index
    %24 = vector.load %arg2[%c1_38, %c0_39, %c0_40] : memref<9x4x4xbf16, #tpu.memory_space<vmem>>, vector<1x4x4xbf16>
    %25 = vector.shape_cast %24 : vector<1x4x4xbf16> to vector<4x4xbf16>
    %cst_41 = arith.constant dense<0.000000e+00> : vector<256x4xf32>
    %26 = tpu.matmul %23, %25, %cst_41 {dimension_numbers = #tpu.dot_dimension_numbers<[1], [0], [0], [1], [0, 0, 1, 1], [], []>} : vector<256x4xbf16>, vector<4x4xbf16>, vector<256x4xf32> -> vector<256x4xf32>
    %27 = arith.addf %21, %26 : vector<256x4xf32>
    %c36_42 = arith.constant 36 : index
    %c0_43 = arith.constant 0 : index
    %c0_44 = arith.constant 0 : index
    %28 = vector.load %arg6[%c36_42, %c0_43, %c0_44] : memref<54x16x4xbf16, #tpu.memory_space<vmem>>, vector<16x16x4xbf16>
    %29 = vector.shape_cast %28 : vector<16x16x4xbf16> to vector<256x4xbf16>
    %c2 = arith.constant 2 : index
    %c0_45 = arith.constant 0 : index
    %c0_46 = arith.constant 0 : index
    %30 = vector.load %arg2[%c2, %c0_45, %c0_46] : memref<9x4x4xbf16, #tpu.memory_space<vmem>>, vector<1x4x4xbf16>
    %31 = vector.shape_cast %30 : vector<1x4x4xbf16> to vector<4x4xbf16>
    %cst_47 = arith.constant dense<0.000000e+00> : vector<256x4xf32>
    %32 = tpu.matmul %29, %31, %cst_47 {dimension_numbers = #tpu.dot_dimension_numbers<[1], [0], [0], [1], [0, 0, 1, 1], [], []>} : vector<256x4xbf16>, vector<4x4xbf16>, vector<256x4xf32> -> vector<256x4xf32>
    %33 = arith.addf %27, %32 : vector<256x4xf32>
    %c1_48 = arith.constant 1 : index
    %c0_49 = arith.constant 0 : index
    %c0_50 = arith.constant 0 : index
    %34 = vector.load %arg6[%c1_48, %c0_49, %c0_50] : memref<54x16x4xbf16, #tpu.memory_space<vmem>>, vector<16x16x4xbf16>
    %35 = vector.shape_cast %34 : vector<16x16x4xbf16> to vector<256x4xbf16>
    %c3 = arith.constant 3 : index
    %c0_51 = arith.constant 0 : index
    %c0_52 = arith.constant 0 : index
    %36 = vector.load %arg2[%c3, %c0_51, %c0_52] : memref<9x4x4xbf16, #tpu.memory_space<vmem>>, vector<1x4x4xbf16>
    %37 = vector.shape_cast %36 : vector<1x4x4xbf16> to vector<4x4xbf16>
    %cst_53 = arith.constant dense<0.000000e+00> : vector<256x4xf32>
    %38 = tpu.matmul %35, %37, %cst_53 {dimension_numbers = #tpu.dot_dimension_numbers<[1], [0], [0], [1], [0, 0, 1, 1], [], []>} : vector<256x4xbf16>, vector<4x4xbf16>, vector<256x4xf32> -> vector<256x4xf32>
    %39 = arith.addf %33, %38 : vector<256x4xf32>
    %c19_54 = arith.constant 19 : index
    %c0_55 = arith.constant 0 : index
    %c0_56 = arith.constant 0 : index
    %40 = vector.load %arg6[%c19_54, %c0_55, %c0_56] : memref<54x16x4xbf16, #tpu.memory_space<vmem>>, vector<16x16x4xbf16>
    %41 = vector.shape_cast %40 : vector<16x16x4xbf16> to vector<256x4xbf16>
    %c4 = arith.constant 4 : index
    %c0_57 = arith.constant 0 : index
    %c0_58 = arith.constant 0 : index
    %42 = vector.load %arg2[%c4, %c0_57, %c0_58] : memref<9x4x4xbf16, #tpu.memory_space<vmem>>, vector<1x4x4xbf16>
    %43 = vector.shape_cast %42 : vector<1x4x4xbf16> to vector<4x4xbf16>
    %cst_59 = arith.constant dense<0.000000e+00> : vector<256x4xf32>
    %44 = tpu.matmul %41, %43, %cst_59 {dimension_numbers = #tpu.dot_dimension_numbers<[1], [0], [0], [1], [0, 0, 1, 1], [], []>} : vector<256x4xbf16>, vector<4x4xbf16>, vector<256x4xf32> -> vector<256x4xf32>
    %45 = arith.addf %39, %44 : vector<256x4xf32>
    %c37_60 = arith.constant 37 : index
    %c0_61 = arith.constant 0 : index
    %c0_62 = arith.constant 0 : index
    %46 = vector.load %arg6[%c37_60, %c0_61, %c0_62] : memref<54x16x4xbf16, #tpu.memory_space<vmem>>, vector<16x16x4xbf16>
    %47 = vector.shape_cast %46 : vector<16x16x4xbf16> to vector<256x4xbf16>
    %c5 = arith.constant 5 : index
    %c0_63 = arith.constant 0 : index
    %c0_64 = arith.constant 0 : index
    %48 = vector.load %arg2[%c5, %c0_63, %c0_64] : memref<9x4x4xbf16, #tpu.memory_space<vmem>>, vector<1x4x4xbf16>
    %49 = vector.shape_cast %48 : vector<1x4x4xbf16> to vector<4x4xbf16>
    %cst_65 = arith.constant dense<0.000000e+00> : vector<256x4xf32>
    %50 = tpu.matmul %47, %49, %cst_65 {dimension_numbers = #tpu.dot_dimension_numbers<[1], [0], [0], [1], [0, 0, 1, 1], [], []>} : vector<256x4xbf16>, vector<4x4xbf16>, vector<256x4xf32> -> vector<256x4xf32>
    %51 = arith.addf %45, %50 : vector<256x4xf32>
    %c2_66 = arith.constant 2 : index
    %c0_67 = arith.constant 0 : index
    %c0_68 = arith.constant 0 : index
    %52 = vector.load %arg6[%c2_66, %c0_67, %c0_68] : memref<54x16x4xbf16, #tpu.memory_space<vmem>>, vector<16x16x4xbf16>
    %53 = vector.shape_cast %52 : vector<16x16x4xbf16> to vector<256x4xbf16>
    %c6 = arith.constant 6 : index
    %c0_69 = arith.constant 0 : index
    %c0_70 = arith.constant 0 : index
    %54 = vector.load %arg2[%c6, %c0_69, %c0_70] : memref<9x4x4xbf16, #tpu.memory_space<vmem>>, vector<1x4x4xbf16>
    %55 = vector.shape_cast %54 : vector<1x4x4xbf16> to vector<4x4xbf16>
    %cst_71 = arith.constant dense<0.000000e+00> : vector<256x4xf32>
    %56 = tpu.matmul %53, %55, %cst_71 {dimension_numbers = #tpu.dot_dimension_numbers<[1], [0], [0], [1], [0, 0, 1, 1], [], []>} : vector<256x4xbf16>, vector<4x4xbf16>, vector<256x4xf32> -> vector<256x4xf32>
    %57 = arith.addf %51, %56 : vector<256x4xf32>
    %c20 = arith.constant 20 : index
    %c0_72 = arith.constant 0 : index
    %c0_73 = arith.constant 0 : index
    %58 = vector.load %arg6[%c20, %c0_72, %c0_73] : memref<54x16x4xbf16, #tpu.memory_space<vmem>>, vector<16x16x4xbf16>
    %59 = vector.shape_cast %58 : vector<16x16x4xbf16> to vector<256x4xbf16>
    %c7 = arith.constant 7 : index
    %c0_74 = arith.constant 0 : index
    %c0_75 = arith.constant 0 : index
    %60 = vector.load %arg2[%c7, %c0_74, %c0_75] : memref<9x4x4xbf16, #tpu.memory_space<vmem>>, vector<1x4x4xbf16>
    %61 = vector.shape_cast %60 : vector<1x4x4xbf16> to vector<4x4xbf16>
    %cst_76 = arith.constant dense<0.000000e+00> : vector<256x4xf32>
    %62 = tpu.matmul %59, %61, %cst_76 {dimension_numbers = #tpu.dot_dimension_numbers<[1], [0], [0], [1], [0, 0, 1, 1], [], []>} : vector<256x4xbf16>, vector<4x4xbf16>, vector<256x4xf32> -> vector<256x4xf32>
    %63 = arith.addf %57, %62 : vector<256x4xf32>
    %c38 = arith.constant 38 : index
    %c0_77 = arith.constant 0 : index
    %c0_78 = arith.constant 0 : index
    %64 = vector.load %arg6[%c38, %c0_77, %c0_78] : memref<54x16x4xbf16, #tpu.memory_space<vmem>>, vector<16x16x4xbf16>
    %65 = vector.shape_cast %64 : vector<16x16x4xbf16> to vector<256x4xbf16>
    %c8 = arith.constant 8 : index
    %c0_79 = arith.constant 0 : index
    %c0_80 = arith.constant 0 : index
    %66 = vector.load %arg2[%c8, %c0_79, %c0_80] : memref<9x4x4xbf16, #tpu.memory_space<vmem>>, vector<1x4x4xbf16>
    %67 = vector.shape_cast %66 : vector<1x4x4xbf16> to vector<4x4xbf16>
    %cst_81 = arith.constant dense<0.000000e+00> : vector<256x4xf32>
    %68 = tpu.matmul %65, %67, %cst_81 {dimension_numbers = #tpu.dot_dimension_numbers<[1], [0], [0], [1], [0, 0, 1, 1], [], []>} : vector<256x4xbf16>, vector<4x4xbf16>, vector<256x4xf32> -> vector<256x4xf32>
    %69 = arith.addf %63, %68 : vector<256x4xf32>
    %cst_82 = arith.constant dense<0.000000e+00> : vector<4xf32>
    %70 = vector.multi_reduction <add>, %69, %cst_82 [0] : vector<256x4xf32> to vector<4xf32>
    %71 = vector.shape_cast %70 : vector<4xf32> to vector<1x1x4xf32>
    %c0_83 = arith.constant 0 : index
    %c0_84 = arith.constant 0 : index
    %c0_85 = arith.constant 0 : index
    %72 = vector.load %arg4[%c0_83, %c0_84, %c0_85] : memref<1x1x4xf32, #tpu.memory_space<vmem>>, vector<1x1x4xf32>
    tpu.vector_store %arg4[%c0_83, %c0_84, %c0_85], %71 {strides = array<i32>} : memref<1x1x4xf32, #tpu.memory_space<vmem>>, vector<1x1x4xf32>,
    %73 = arith.mulf %69, %69 : vector<256x4xf32>
    %cst_86 = arith.constant dense<0.000000e+00> : vector<4xf32>
    %74 = vector.multi_reduction <add>, %73, %cst_86 [0] : vector<256x4xf32> to vector<4xf32>
    %75 = vector.shape_cast %74 : vector<4xf32> to vector<1x1x4xf32>
    %c0_87 = arith.constant 0 : index
    %c0_88 = arith.constant 0 : index
    %c0_89 = arith.constant 0 : index
    %76 = vector.load %arg5[%c0_87, %c0_88, %c0_89] : memref<1x1x4xf32, #tpu.memory_space<vmem>>, vector<1x1x4xf32>
    tpu.vector_store %arg5[%c0_87, %c0_88, %c0_89], %75 {strides = array<i32>} : memref<1x1x4xf32, #tpu.memory_space<vmem>>, vector<1x1x4xf32>,
    %77 = vector.shape_cast %69 : vector<256x4xf32> to vector<1x16x16x4xf32>
    %78 = arith.truncf %77 : vector<1x16x16x4xf32> to vector<1x16x16x4xbf16>
    %c0_90 = arith.constant 0 : index
    %c0_91 = arith.constant 0 : index
    %c0_92 = arith.constant 0 : index
    %c0_93 = arith.constant 0 : index
    %79 = vector.load %arg3[%c0_90, %c0_91, %c0_92, %c0_93] : memref<1x16x16x4xbf16, #tpu.memory_space<vmem>>, vector<1x16x16x4xbf16>
    tpu.vector_store %arg3[%c0_90, %c0_91, %c0_92, %c0_93], %78 {strides = array<i32>} : memref<1x16x16x4xbf16, #tpu.memory_space<vmem>>, vector<1x16x16x4xbf16>,
    return
  }
  func.func @transform_0(%arg0: i32) -> (i32, i32, i32, i32) {
    %c0_i32 = arith.constant 0 : i32
    %c0_i32_0 = arith.constant 0 : i32
    %c0_i32_1 = arith.constant 0 : i32
    %c0_i32_2 = arith.constant 0 : i32
    return %arg0, %c0_i32, %c0_i32_0, %c0_i32_1 : i32, i32, i32, i32
  }
  func.func @transform_1(%arg0: i32) -> (i32, i32, i32) {
    %c0_i32 = arith.constant 0 : i32
    %c0_i32_0 = arith.constant 0 : i32
    %c0_i32_1 = arith.constant 0 : i32
    %c0_i32_2 = arith.constant 0 : i32
    return %c0_i32, %c0_i32_0, %c0_i32_1 : i32, i32, i32
  }
  func.func @transform_2(%arg0: i32) -> (i32, i32, i32, i32) {
    %c0_i32 = arith.constant 0 : i32
    %c0_i32_0 = arith.constant 0 : i32
    %c0_i32_1 = arith.constant 0 : i32
    %c0_i32_2 = arith.constant 0 : i32
    return %arg0, %c0_i32, %c0_i32_0, %c0_i32_1 : i32, i32, i32, i32
  }
  func.func @transform_3(%arg0: i32) -> (i32, i32, i32) {
    %c0_i32 = arith.constant 0 : i32
    %c0_i32_0 = arith.constant 0 : i32
    %c0_i32_1 = arith.constant 0 : i32
    return %arg0, %c0_i32, %c0_i32_0 : i32, i32, i32
  }
  func.func @transform_4(%arg0: i32) -> (i32, i32, i32) {
    %c0_i32 = arith.constant 0 : i32
    %c0_i32_0 = arith.constant 0 : i32
    %c0_i32_1 = arith.constant 0 : i32
    return %arg0, %c0_i32, %c0_i32_0 : i32, i32, i32
  }
}

module attributes {stable_mosaic.version = 11 : i64} {
  func.func @_bn_add_relu_kernel(%arg0: i32, %arg1: memref<32x64xbf16, #tpu.memory_space<vmem>>, %arg2: memref<32x64xbf16, #tpu.memory_space<vmem>>, %arg3: memref<1x64xf32, #tpu.memory_space<vmem>>, %arg4: memref<1x64xf32, #tpu.memory_space<vmem>>, %arg5: memref<32x64xf32, #tpu.memory_space<vmem>>) attributes {dimension_semantics = [#tpu.dimension_semantics<parallel>], iteration_bounds = array<i64: 1>, scalar_prefetch = 0 : i64, scratch_operands = 0 : i64, tpu.core_type = #tpu.core_type<tc>, window_params = [{transform_indices = @transform_0, window_bounds = array<i64: 32, 64>}, {transform_indices = @transform_1, window_bounds = array<i64: 32, 64>}, {pipeline_mode = #tpu.pipeline_mode<synchronous>, transform_indices = @transform_2, window_bounds = array<i64: 1, 64>}, {pipeline_mode = #tpu.pipeline_mode<synchronous>, transform_indices = @transform_3, window_bounds = array<i64: 1, 64>}, {transform_indices = @transform_4, window_bounds = array<i64: 32, 64>}]} {
    %c0 = arith.constant 0 : index
    %c0_0 = arith.constant 0 : index
    %0 = vector.load %arg1[%c0, %c0_0] : memref<32x64xbf16, #tpu.memory_space<vmem>>, vector<32x64xbf16>
    %1 = arith.extf %0 : vector<32x64xbf16> to vector<32x64xf32>
    %c0_1 = arith.constant 0 : index
    %c0_2 = arith.constant 0 : index
    %2 = vector.load %arg3[%c0_1, %c0_2] : memref<1x64xf32, #tpu.memory_space<vmem>>, vector<1x64xf32>
    %3 = vector.broadcast %2 : vector<1x64xf32> to vector<32x64xf32>
    %4 = arith.mulf %1, %3 : vector<32x64xf32>
    %c0_3 = arith.constant 0 : index
    %c0_4 = arith.constant 0 : index
    %5 = vector.load %arg4[%c0_3, %c0_4] : memref<1x64xf32, #tpu.memory_space<vmem>>, vector<1x64xf32>
    %6 = vector.broadcast %5 : vector<1x64xf32> to vector<32x64xf32>
    %7 = arith.addf %4, %6 : vector<32x64xf32>
    %c0_5 = arith.constant 0 : index
    %c0_6 = arith.constant 0 : index
    %8 = vector.load %arg2[%c0_5, %c0_6] : memref<32x64xbf16, #tpu.memory_space<vmem>>, vector<32x64xbf16>
    %9 = arith.extf %8 : vector<32x64xbf16> to vector<32x64xf32>
    %10 = arith.addf %7, %9 : vector<32x64xf32>
    %cst = arith.constant 0.000000e+00 : f32
    %11 = vector.broadcast %cst : f32 to vector<32x64xf32>
    %12 = arith.maximumf %10, %11 : vector<32x64xf32>
    %c0_7 = arith.constant 0 : index
    %c0_8 = arith.constant 0 : index
    %13 = vector.load %arg5[%c0_7, %c0_8] : memref<32x64xf32, #tpu.memory_space<vmem>>, vector<32x64xf32>
    tpu.vector_store %arg5[%c0_7, %c0_8], %12 {strides = array<i32>} : memref<32x64xf32, #tpu.memory_space<vmem>>, vector<32x64xf32>,
    return
  }
  func.func @transform_0(%arg0: i32) -> (i32, i32) {
    %c0_i32 = arith.constant 0 : i32
    %c0_i32_0 = arith.constant 0 : i32
    return %arg0, %c0_i32 : i32, i32
  }
  func.func @transform_1(%arg0: i32) -> (i32, i32) {
    %c0_i32 = arith.constant 0 : i32
    %c0_i32_0 = arith.constant 0 : i32
    return %arg0, %c0_i32 : i32, i32
  }
  func.func @transform_2(%arg0: i32) -> (i32, i32) {
    %c0_i32 = arith.constant 0 : i32
    %c0_i32_0 = arith.constant 0 : i32
    %c0_i32_1 = arith.constant 0 : i32
    return %c0_i32, %c0_i32_0 : i32, i32
  }
  func.func @transform_3(%arg0: i32) -> (i32, i32) {
    %c0_i32 = arith.constant 0 : i32
    %c0_i32_0 = arith.constant 0 : i32
    %c0_i32_1 = arith.constant 0 : i32
    return %c0_i32, %c0_i32_0 : i32, i32
  }
  func.func @transform_4(%arg0: i32) -> (i32, i32) {
    %c0_i32 = arith.constant 0 : i32
    %c0_i32_0 = arith.constant 0 : i32
    return %arg0, %c0_i32 : i32, i32
  }
}

</mosaic_0001>

<llo_original>
// kernel: tile.10
$region0: #{tile.10}
  #allocation0 [shape = 's32[1]{0}', space=sflag, size = 0x4, scoped, tag = 'scoped memory for tile.10']
  %s0 = inlined_call_operand.vmem [shape: f32[4], index: 0, kind: input, shape index: {}]
  %s1 = inlined_call_operand.vmem [shape: f32[16,4], index: 1, kind: output, shape index: {}]
  // Predicated region
  $region2: #{tile.10} parent=0 // pred_check
    _
  $region3: #{tile.10} parent=0 // pred_check_branch
    %3 = sbr.rel (0) target = $region5
  $region4: #{tile.10} parent=0 // pred_region
    _
  $region5: #{tile.10} parent=0 // pred_fallthru
    _
  %v4 = vld [vmem:[%s0] ss:$0 sm:$0xff]
  %5 = vst [vmem:[%s1] sm:$0xff] %v4
  %s6 = scalar_lea.vmem %s1, 8
  %7 = vst [vmem:[%s6] sm:$0xff] %v4

// kernel: tile.11
$region0: #{tile.11}
  %s0 = inlined_call_operand.vmem [shape: f32[16,4], index: 0, kind: input, shape index: {}]
  %s1 = inlined_call_operand.vmem [shape: f32[1,64], index: 1, kind: output, shape index: {}]
  $region1: #{tile.11} parent=0
    #allocation0 [shape = 'u8[4096]{0}', space=vmem, size = 0x1000, scoped, tag = 'scoped mem for output reshape']
    %v2 = vld [vmem:[%s0] sm:$0x1]
    %vm3 = vcmask 31744
    %4 = vst.msk [vmem:[#allocation0] sm:$0x1] %vm3, %v2
    %s5 = scalar_lea.vmem %s0, 15
    %v6 = vld [vmem:[%s5] sm:$0x1]
    %7 = vrot.lane.b32.xlu0 %v6, 60
    %v8 = vpop.permute.xlu0 %7
    %vm9 = vcmask 523744
    %10 = vst.msk [vmem:[#allocation0] sm:$0x1] %vm9, %v8
    %s11 = scalar_lea.vmem %s0, 14
    %v12 = vld [vmem:[%s11] sm:$0x1]
    %13 = vrot.lane.b32.xlu0 %v12, 56
    %v14 = vpop.permute.xlu0 %13
    %vm15 = vcmask 490944
    %16 = vst.msk [vmem:[#allocation0] sm:$0x1] %vm15, %v14
    %s17 = scalar_lea.vmem %s0, 13
    %v18 = vld [vmem:[%s17] sm:$0x1]
    %19 = vrot.lane.b32.xlu0 %v18, 52
    %v20 = vpop.permute.xlu0 %19
    %vm21 = vcmask 458144
    %22 = vst.msk [vmem:[#allocation0] sm:$0x1] %vm21, %v20
    %s23 = scalar_lea.vmem %s0, 12
    %v24 = vld [vmem:[%s23] sm:$0x1]
    %25 = vrot.lane.b32.xlu0 %v24, 48
    %v26 = vpop.permute.xlu0 %25
    %vm27 = vcmask 425344
    %28 = vst.msk [vmem:[#allocation0] sm:$0x1] %vm27, %v26
    %s29 = scalar_lea.vmem %s0, 11
    %v30 = vld [vmem:[%s29] sm:$0x1]
    %31 = vrot.lane.b32.xlu0 %v30, 44
    %v32 = vpop.permute.xlu0 %31
    %vm33 = vcmask 392544
    %34 = vst.msk [vmem:[#allocation0] sm:$0x1] %vm33, %v32
    %s35 = scalar_lea.vmem %s0, 10
    %v36 = vld [vmem:[%s35] sm:$0x1]
    %37 = vrot.lane.b32.xlu0 %v36, 40
    %v38 = vpop.permute.xlu0 %37
    %vm39 = vcmask 359744
    %40 = vst.msk [vmem:[#allocation0] sm:$0x1] %vm39, %v38
    %s41 = scalar_lea.vmem %s0, 9
    %v42 = vld [vmem:[%s41] sm:$0x1]
    %43 = vrot.lane.b32.xlu0 %v42, 36
    %v44 = vpop.permute.xlu0 %43
    %vm45 = vcmask 326944
    %46 = vst.msk [vmem:[#allocation0] sm:$0x1] %vm45, %v44
    %s47 = scalar_lea.vmem %s0, 8
    %v48 = vld [vmem:[%s47] sm:$0x1]
    %49 = vrot.lane.b32.xlu0 %v48, 32
    %v50 = vpop.permute.xlu0 %49
    %vm51 = vcmask 294144
    %52 = vst.msk [vmem:[#allocation0] sm:$0x1] %vm51, %v50
    %s53 = scalar_lea.vmem %s0, 7
    %v54 = vld [vmem:[%s53] sm:$0x1]
    %55 = vrot.lane.b32.xlu0 %v54, 28
    %v56 = vpop.permute.xlu0 %55
    %vm57 = vcmask 261344
    %58 = vst.msk [vmem:[#allocation0] sm:$0x1] %vm57, %v56
    %s59 = scalar_lea.vmem %s0, 6
    %v60 = vld [vmem:[%s59] sm:$0x1]
    %61 = vrot.lane.b32.xlu0 %v60, 24
    %v62 = vpop.permute.xlu0 %61
    %vm63 = vcmask 228544
    %64 = vst.msk [vmem:[#allocation0] sm:$0x1] %vm63, %v62
    %s65 = scalar_lea.vmem %s0, 5
    %v66 = vld [vmem:[%s65] sm:$0x1]
    %67 = vrot.lane.b32.xlu0 %v66, 20
    %v68 = vpop.permute.xlu0 %67
    %vm69 = vcmask 195744
    %70 = vst.msk [vmem:[#allocation0] sm:$0x1] %vm69, %v68
    %s71 = scalar_lea.vmem %s0, 4
    %v72 = vld [vmem:[%s71] sm:$0x1]
    %73 = vrot.lane.b32.xlu0 %v72, 16
    %v74 = vpop.permute.xlu0 %73
    %vm75 = vcmask 162944
    %76 = vst.msk [vmem:[#allocation0] sm:$0x1] %vm75, %v74
    %s77 = scalar_lea.vmem %s0, 3
    %v78 = vld [vmem:[%s77] sm:$0x1]
    %79 = vrot.lane.b32.xlu0 %v78, 12
    %v80 = vpop.permute.xlu0 %79
    %vm81 = vcmask 130144
    %82 = vst.msk [vmem:[#allocation0] sm:$0x1] %vm81, %v80
    %s83 = scalar_lea.vmem %s0, 2
    %v84 = vld [vmem:[%s83] sm:$0x1]
    %85 = vrot.lane.b32.xlu0 %v84, 8
    %v86 = vpop.permute.xlu0 %85
    %vm87 = vcmask 97344
    %88 = vst.msk [vmem:[#allocation0] sm:$0x1] %vm87, %v86
    %s89 = scalar_lea.vmem %s0, 1
    %v90 = vld [vmem:[%s89] sm:$0x1]
    %91 = vrot.lane.b32.xlu0 %v90, 4
    %v92 = vpop.permute.xlu0 %91
    %vm93 = vcmask 64544
    %94 = vst.msk [vmem:[#allocation0] sm:$0x1] %vm93, %v92
    %s96 = sshll.u32 1, 1
    %s97 = ssub.s32 %s96, 1
    %v99 = vld [vmem:[#allocation0] sm:%s97]
    %s100 = sshll.u32 1, 1
    %s101 = ssub.s32 %s100, 1
    %102 = vst [vmem:[%s1] sm:%s101] %v99

// kernel: basic_block.5
$region0: #{basic_block.5}
  #allocation0 [shape = 'u32[]', space=smem, size = 0x4, offset = 0x4, fixed_abs, tag = 'smem constant byte address 0x4 - core index']
  #allocation1 [shape = 'u32[144,128]{1,0:T(1,128)}', space=vmem, size = 0x12000, scoped, tag = 'internal scratch']
  %s0 = inlined_call_operand.vmem [shape: bf16[32,64], index: 0, kind: input, shape index: {}]
  %s1 = inlined_call_operand.vmem [shape: bf16[32,64], index: 1, kind: input, shape index: {}]
  %s2 = inlined_call_operand.vmem [shape: f32[1,64], index: 2, kind: input, shape index: {}]
  %s3 = inlined_call_operand.vmem [shape: f32[1,64], index: 3, kind: input, shape index: {}]
  %s4 = inlined_call_operand.vmem [shape: f32[32,64], index: 4, kind: output, shape index: {}]
  %s5 = sld [smem:[#allocation0]]
  $region26: #{basic_block.5} parent=0
    _
  %s7 = ssub.s32 1, %s5
  %s8 = scalar_select 0, %s7, %s5
  // Predicated region
  $region2: #{basic_block.5} parent=0 // pred_check
    _
  $region3: #{basic_block.5} parent=0 // pred_check_branch
    %10 = sbr.rel (0) target = $region5
  $region4: #{basic_block.5} parent=0 // pred_region
    _
  $region5: #{basic_block.5} parent=0 // pred_fallthru
    _
  // Predicated region
  $region6: #{basic_block.5} parent=0 // pred_check
    _
  $region7: #{basic_block.5} parent=0 // pred_check_branch
    %12 = sbr.rel (0) target = $region9
  $region8: #{basic_block.5} parent=0 // pred_region
    _
  $region9: #{basic_block.5} parent=0 // pred_fallthru
    _
  // Predicated region
  $region10: #{basic_block.5} parent=0 // pred_check
    _
  $region11: #{basic_block.5} parent=0 // pred_check_branch
    %14 = sbr.rel (0) target = $region13
  $region12: #{basic_block.5} parent=0 // pred_region
    _
  $region13: #{basic_block.5} parent=0 // pred_fallthru
    _
  // Predicated region
  $region14: #{basic_block.5} parent=0 // pred_check
    _
  $region15: #{basic_block.5} parent=0 // pred_check_branch
    %16 = sbr.rel (0) target = $region17
  $region16: #{basic_block.5} parent=0 // pred_region
    _
  $region17: #{basic_block.5} parent=0 // pred_fallthru
    _
  %v17 = vld [vmem:[%s0] sm:$0xf]
  %v18 = vld [vmem:[%s0 + $0x4] sm:$0xf]
  %v19 = vld [vmem:[%s0 + $0x8] sm:$0xf]
  %v20 = vld [vmem:[%s0 + $0xc] sm:$0xf]
  %v21 = vunpack.c.l.bf16 %v17
  %v22 = vunpack.c.l.bf16 %v18
  %v23 = vunpack.c.l.bf16 %v19
  %v24 = vunpack.c.l.bf16 %v20
  %v25 = vld [vmem:[%s2] sm:$0x1]
  %v27 = vlaneseq
  %v28 = vshrl.u32 %v27, 7
  %v29 = vsub.s32 0, %v28
  %v30 = vrot.slane %v25, %v29
  %v32 = vmul.f32 %v21, %v30
  %v33 = vmul.f32 %v22, %v30
  %v34 = vmul.f32 %v23, %v30
  %v35 = vmul.f32 %v24, %v30
  %v36 = vld [vmem:[%s3] sm:$0x1]
  %v38 = vlaneseq
  %v39 = vshrl.u32 %v38, 7
  %v40 = vsub.s32 0, %v39
  %v41 = vrot.slane %v36, %v40
  %v43 = vadd.f32 %v32, %v41
  %v44 = vadd.f32 %v33, %v41
  %v45 = vadd.f32 %v34, %v41
  %v46 = vadd.f32 %v35, %v41
  %v47 = vld [vmem:[%s1] sm:$0xf]
  %v48 = vld [vmem:[%s1 + $0x4] sm:$0xf]
  %v49 = vld [vmem:[%s1 + $0x8] sm:$0xf]
  %v50 = vld [vmem:[%s1 + $0xc] sm:$0xf]
  %v51 = vunpack.c.l.bf16 %v47
  %v52 = vunpack.c.l.bf16 %v48
  %v53 = vunpack.c.l.bf16 %v49
  %v54 = vunpack.c.l.bf16 %v50
  %v55 = vadd.f32 %v43, %v51
  %v56 = vadd.f32 %v44, %v52
  %v57 = vadd.f32 %v45, %v53
  %v58 = vadd.f32 %v46, %v54
  %v59 = vmax.f32 %v55, 0.0
  %v60 = vmax.f32 %v56, 0.0
  %v61 = vmax.f32 %v57, 0.0
  %v62 = vmax.f32 %v58, 0.0
  %vm63 = vcmask 523264
  %64 = vst.msk [vmem:[%s4] sm:$0xff] %vm63, %v59
  %65 = vst.msk [vmem:[%s4 + $0x8] sm:$0xff] %vm63, %v60
  %66 = vst.msk [vmem:[%s4 + $0x10] sm:$0xff] %vm63, %v61
  %67 = vst.msk [vmem:[%s4 + $0x18] sm:$0xff] %vm63, %v62
  // Predicated region
  $region18: #{basic_block.5} parent=0 // pred_check
    _
  $region19: #{basic_block.5} parent=0 // pred_check_branch
    %69 = sbr.rel (0) target = $region21
  $region20: #{basic_block.5} parent=0 // pred_region
    _
  $region21: #{basic_block.5} parent=0 // pred_fallthru
    _
  // Predicated region
  $region22: #{basic_block.5} parent=0 // pred_check
    _
  $region23: #{basic_block.5} parent=0 // pred_check_branch
    %71 = sbr.rel (0) target = $region25
  $region24: #{basic_block.5} parent=0 // pred_region
    _
  $region25: #{basic_block.5} parent=0 // pred_fallthru
    _

// kernel: basic_block.3
$region0: #{basic_block.3}
  #allocation0 [shape = 'u32[]', space=smem, size = 0x4, offset = 0x4, fixed_abs, tag = 'smem constant byte address 0x4 - core index']
  #allocation1 [shape = 'u32[144,128]{1,0:T(1,128)}', space=vmem, size = 0x12000, scoped, tag = 'internal scratch']
  #allocation2 [shape = 'bf16[54,16,4]{2,1,0:T(8,128)(2,1)}', space=vmem, size = 0x36000, scoped, tag = 'scratch operand']
  %s0 = inlined_call_operand.vmem [shape: bf16[2,16,16,4], index: 0, kind: input, shape index: {}]
  %s1 = inlined_call_operand.vmem [shape: bf16[9,4,4], index: 1, kind: input, shape index: {}]
  %s2 = inlined_call_operand.vmem [shape: bf16[2,16,16,4], index: 2, kind: output, shape index: {0}]
  %s3 = inlined_call_operand.vmem [shape: f32[2,1,4], index: 3, kind: output, shape index: {1}]
  %s4 = inlined_call_operand.vmem [shape: f32[2,1,4], index: 4, kind: output, shape index: {2}]
  %5 = xla_tuple %s2, %s3, %s4
  %s6 = sld [smem:[#allocation0]]
  $region57: #{basic_block.3} parent=0
    _
  %s8 = ssub.s32 1, %s6
  %s9 = scalar_select 0, %s8, %s6
  loop: start=0, step=1, limit=4
  $region2: #{basic_block.3} parent=0 // loop_pre_header
    _
  $region3: #{basic_block.3} parent=0 // loop_header
    %s11 = sphi 0, %s15
    %p12 = scmp.ge.s32.totalorder %s11, 4
    %s21 = sphi 0, %s23
    %s24 = sphi 0, %s21
    %s25 = sphi 0, %s24
    %s41 = sphi 0, %s25
    %s45 = sphi 0, %s45
    %s47 = sphi 0, %s45
    %s48 = sphi 0, %s47
    %s62 = sphi 0, %s48
    %s68 = sphi 0, %s70
    %s71 = sphi 0, %s68
    %s72 = sphi 0, %s71
    %s88 = sphi 0, %s72
    %s94 = sphi 0, %s96
    %s97 = sphi 0, %s94
    %s98 = sphi 0, %s97
    %s114 = sphi 0, %s98
    %s120 = sphi 0, %s122
    %s123 = sphi 0, %s120
    %s124 = sphi 0, %s123
    %s140 = sphi 0, %s124
  $region4: #{basic_block.3} parent=0 // loop_header_branch
    %14 = sbr.rel (%p12) target = $region8
  $region5: #{basic_block.3} parent=0 // loop_body
    %s16 = ssub.s32 %s11, 1
    %s17 = ssub.s32 %s11, 2
    %s18 = sadd.s32 %s11, 1
    %s19 = ssub.s32 %s11, %s18
    %p20 = scmp.eq.s32.totalorder %s19, 0
    %s22 = sadd.s32 %s21, 1
    %s23 = scalar_select %p20, %s21, %s22
    %p26 = pneg %p20
    %p27 = scmp.eq.s32.totalorder %s11, 1
    %p28 = por %p26, %p27
    %p29 = scmp.ne.s32.totalorder %s21, %s24
    %p30 = scmp.eq.s32.totalorder %s11, 0
    %p31 = por %p29, %p30
    %p32 = scmp.ne.s32.totalorder %s21, %s24
    %p33 = scmp.eq.s32.totalorder %s16, 1
    %p34 = por %p32, %p33
    %p35 = scmp.ne.s32.totalorder %s24, %s25
    %p36 = scmp.eq.s32.totalorder %s16, 0
    %p37 = por %p35, %p36
    %p38 = scmp.ne.s32.totalorder %s24, %s25
    %p39 = scmp.eq.s32.totalorder %s17, 1
    %p40 = por %p38, %p39
    %p42 = scmp.ne.s32.totalorder %s25, %s41
    %p43 = scmp.eq.s32.totalorder %s17, 0
    %p44 = por %p42, %p43
    %s46 = sadd.s32 %s45, 1
    %p49 = scmp.eq.s32.totalorder %s11, 1
    %p50 = scmp.ne.s32.totalorder %s45, %s47
    %p51 = scmp.eq.s32.totalorder %s11, 0
    %p52 = por %p50, %p51
    %p53 = scmp.ne.s32.totalorder %s45, %s47
    %p54 = scmp.eq.s32.totalorder %s16, 1
    %p55 = por %p53, %p54
    %p56 = scmp.ne.s32.totalorder %s47, %s48
    %p57 = scmp.eq.s32.totalorder %s16, 0
    %p58 = por %p56, %p57
    %p59 = scmp.ne.s32.totalorder %s47, %s48
    %p60 = scmp.eq.s32.totalorder %s17, 1
    %p61 = por %p59, %p60
    %p63 = scmp.ne.s32.totalorder %s48, %s62
    %p64 = scmp.eq.s32.totalorder %s17, 0
    %p65 = por %p63, %p64
    %s66 = ssub.s32 %s11, %s18
    %p67 = scmp.eq.s32.totalorder %s66, 0
    %s69 = sadd.s32 %s68, 1
    %s70 = scalar_select %p67, %s68, %s69
    %p73 = pneg %p67
    %p74 = scmp.eq.s32.totalorder %s11, 1
    %p75 = por %p73, %p74
    %p76 = scmp.ne.s32.totalorder %s68, %s71
    %p77 = scmp.eq.s32.totalorder %s11, 0
    %p78 = por %p76, %p77
    %p79 = scmp.ne.s32.totalorder %s68, %s71
    %p80 = scmp.eq.s32.totalorder %s16, 1
    %p81 = por %p79, %p80
    %p82 = scmp.ne.s32.totalorder %s71, %s72
    %p83 = scmp.eq.s32.totalorder %s16, 0
    %p84 = por %p82, %p83
    %p85 = scmp.ne.s32.totalorder %s71, %s72
    %p86 = scmp.eq.s32.totalorder %s17, 1
    %p87 = por %p85, %p86
    %p89 = scmp.ne.s32.totalorder %s72, %s88
    %p90 = scmp.eq.s32.totalorder %s17, 0
    %p91 = por %p89, %p90
    %s92 = ssub.s32 %s11, %s18
    %p93 = scmp.eq.s32.totalorder %s92, 0
    %s95 = sadd.s32 %s94, 1
    %s96 = scalar_select %p93, %s94, %s95
    %p99 = pneg %p93
    %p100 = scmp.eq.s32.totalorder %s11, 1
    %p101 = por %p99, %p100
    %p102 = scmp.ne.s32.totalorder %s94, %s97
    %p103 = scmp.eq.s32.totalorder %s11, 0
    %p104 = por %p102, %p103
    %p105 = scmp.ne.s32.totalorder %s94, %s97
    %p106 = scmp.eq.s32.totalorder %s16, 1
    %p107 = por %p105, %p106
    %p108 = scmp.ne.s32.totalorder %s97, %s98
    %p109 = scmp.eq.s32.totalorder %s16, 0
    %p110 = por %p108, %p109
    %p111 = scmp.ne.s32.totalorder %s97, %s98
    %p112 = scmp.eq.s32.totalorder %s17, 1
    %p113 = por %p111, %p112
    %p115 = scmp.ne.s32.totalorder %s98, %s114
    %p116 = scmp.eq.s32.totalorder %s17, 0
    %p117 = por %p115, %p116
    %s118 = ssub.s32 %s11, %s18
    %p119 = scmp.eq.s32.totalorder %s118, 0
    %s121 = sadd.s32 %s120, 1
    %s122 = scalar_select %p119, %s120, %s121
    %p125 = pneg %p119
    %p126 = scmp.eq.s32.totalorder %s11, 1
    %p127 = por %p125, %p126
    %p128 = scmp.ne.s32.totalorder %s120, %s123
    %p129 = scmp.eq.s32.totalorder %s11, 0
    %p130 = por %p128, %p129
    %p131 = scmp.ne.s32.totalorder %s120, %s123
    %p132 = scmp.eq.s32.totalorder %s16, 1
    %p133 = por %p131, %p132
    %p134 = scmp.ne.s32.totalorder %s123, %s124
    %p135 = scmp.eq.s32.totalorder %s16, 0
    %p136 = por %p134, %p135
    %p137 = scmp.ne.s32.totalorder %s123, %s124
    %p138 = scmp.eq.s32.totalorder %s17, 1
    %p139 = por %p137, %p138
    %p141 = scmp.ne.s32.totalorder %s124, %s140
    %p142 = scmp.eq.s32.totalorder %s17, 0
    %p143 = por %p141, %p142
    %p144 = scmp.le.s32.totalorder 1, %s11
    %p145 = scmp.lt.s32.totalorder %s11, 3
    %p146 = pnand %p144, %p145
    %p147 = pneg %p146
    // Predicated region
    $region9: #{basic_block.3} parent=5 // pred_check
      _
    $region10: #{basic_block.3} parent=5 // pred_check_branch
      %149 = sbr.rel (%p146) target = $region12
    $region11: #{basic_block.3} parent=5 // pred_region
      %s150 = ssub.s32 %s11, 1
      // Predicated region
      $region13: #{basic_block.3} parent=11 // pred_check
        %p151 = pneg %p58
      $region14: #{basic_block.3} parent=11 // pred_check_branch
        %153 = sbr.rel (%p151) target = $region16
      $region15: #{basic_block.3} parent=11 // pred_region
        _
      $region16: #{basic_block.3} parent=11 // pred_fallthru
        _
    $region12: #{basic_block.3} parent=5 // pred_fallthru
      _
    %p154 = scmp.lt.s32.totalorder %s11, 2
    // Predicated region
    $region17: #{basic_block.3} parent=5 // pred_check
      %p155 = pneg %p154
    $region18: #{basic_block.3} parent=5 // pred_check_branch
      %157 = sbr.rel (%p155) target = $region20
    $region19: #{basic_block.3} parent=5 // pred_region
      // Predicated region
      $region21: #{basic_block.3} parent=19 // pred_check
        %p158 = pneg %p31
      $region22: #{basic_block.3} parent=19 // pred_check_branch
        %160 = sbr.rel (%p158) target = $region24
      $region23: #{basic_block.3} parent=19 // pred_region
        %p161 = scmp.lt.s32.totalorder %s11, 1
        %s162 = scalar_select %p161, %s11, 1
        %s163 = smul.addr %s162, 32
        %s164 = smul.addr %s163, 4
        %s165 = scalar_lea.vmem %s0, %s164
      $region24: #{basic_block.3} parent=19 // pred_fallthru
        _
    $region20: #{basic_block.3} parent=5 // pred_fallthru
      _
    %p166 = scmp.le.s32.totalorder 1, %s11
    %p167 = scmp.lt.s32.totalorder %s11, 3
    %p168 = pnand %p166, %p167
    %p169 = pneg %p168
    // Predicated region
    $region25: #{basic_block.3} parent=5 // pred_check
      _
    $region26: #{basic_block.3} parent=5 // pred_check_branch
      %171 = sbr.rel (%p168) target = $region28
    $region27: #{basic_block.3} parent=5 // pred_region
      %s172 = ssub.s32 %s11, 1
      %p173 = scmp.lt.s32.totalorder %s16, 1
      %s174 = scalar_select %p173, %s16, 1
      %s175 = smul.addr %s174, 32
      %s176 = smul.addr %s175, 4
      %s177 = scalar_lea.vmem %s0, %s176
      %p178 = pneg %p37
      %p179 = pneg %p34
      %p180 = pneg %p58
      %p181 = pneg %p55
      %p182 = pneg %p84
      %p183 = pneg %p81
      %p184 = scmp.lt.s32.totalorder %s16, 1
      %s185 = scalar_select %p184, %s16, 1
      %s186 = smul.addr %s185, 32
      %s187 = smul.addr %s186, 4
      %s188 = scalar_lea.vmem %s2, %s187
      %p189 = pneg %p110
      %p190 = pneg %p107
      %p191 = scmp.lt.s32.totalorder %s16, 1
      %s192 = scalar_select %p191, %s16, 1
      %s193 = scalar_lea.vmem %s3, %s192
      %p194 = pneg %p136
      %p195 = pneg %p133
      %p196 = scmp.lt.s32.totalorder %s16, 1
      %s197 = scalar_select %p196, %s16, 1
      %s198 = scalar_lea.vmem %s4, %s197
      %p199 = scmp.lt.s32.totalorder %s16, 1
      %s200 = scalar_select %p199, %s16, 1
      %s201 = smul.addr %s200, 32
      %s202 = smul.addr %s201, 4
      %s203 = scalar_lea.vmem %s0, %s202
      %p204 = scmp.lt.s32.totalorder %s16, 1
      %s205 = scalar_select %p204, %s16, 1
      %s206 = smul.addr %s205, 32
      %s207 = smul.addr %s206, 4
      %s208 = scalar_lea.vmem %s2, %s207
      %p209 = scmp.lt.s32.totalorder %s16, 1
      %s210 = scalar_select %p209, %s16, 1
      %s211 = scalar_lea.vmem %s3, %s210
      %p212 = scmp.lt.s32.totalorder %s16, 1
      %s213 = scalar_select %p212, %s16, 1
      %s214 = scalar_lea.vmem %s4, %s213
      %v216 = vld [vmem:[%s203] sm:$0xf]
      %v217 = vld [vmem:[%s203 + $0x4] sm:$0xf]
      %v218 = vld [vmem:[%s203 + $0x8] sm:$0xf]
      %v219 = vld [vmem:[%s203 + $0xc] sm:$0xf]
      %v220 = vld [vmem:[%s203 + $0x10] sm:$0xf]
      %v221 = vld [vmem:[%s203 + $0x14] sm:$0xf]
      %v222 = vld [vmem:[%s203 + $0x18] sm:$0xf]
      %v223 = vld [vmem:[%s203 + $0x1c] sm:$0xf]
      %v224 = vld [vmem:[%s203 + $0x20] sm:$0xf]
      %v225 = vld [vmem:[%s203 + $0x24] sm:$0xf]
      %v226 = vld [vmem:[%s203 + $0x28] sm:$0xf]
      %v227 = vld [vmem:[%s203 + $0x2c] sm:$0xf]
      %v228 = vld [vmem:[%s203 + $0x30] sm:$0xf]
      %v229 = vld [vmem:[%s203 + $0x34] sm:$0xf]
      %v230 = vld [vmem:[%s203 + $0x38] sm:$0xf]
      %v231 = vld [vmem:[%s203 + $0x3c] sm:$0xf]
      %v232 = vld [vmem:[%s203 + $0x40] sm:$0xf]
      %v233 = vld [vmem:[%s203 + $0x44] sm:$0xf]
      %v234 = vld [vmem:[%s203 + $0x48] sm:$0xf]
      %v235 = vld [vmem:[%s203 + $0x4c] sm:$0xf]
      %v236 = vld [vmem:[%s203 + $0x50] sm:$0xf]
      %v237 = vld [vmem:[%s203 + $0x54] sm:$0xf]
      %v238 = vld [vmem:[%s203 + $0x58] sm:$0xf]
      %v239 = vld [vmem:[%s203 + $0x5c] sm:$0xf]
      %v240 = vld [vmem:[%s203 + $0x60] sm:$0xf]
      %v241 = vld [vmem:[%s203 + $0x64] sm:$0xf]
      %v242 = vld [vmem:[%s203 + $0x68] sm:$0xf]
      %v243 = vld [vmem:[%s203 + $0x6c] sm:$0xf]
      %v244 = vld [vmem:[%s203 + $0x70] sm:$0xf]
      %v245 = vld [vmem:[%s203 + $0x74] sm:$0xf]
      %v246 = vld [vmem:[%s203 + $0x78] sm:$0xf]
      %v247 = vld [vmem:[%s203 + $0x7c] sm:$0xf]
      %vm248 = vcmask 27648
      %249 = vst.msk [vmem:[#allocation2] sm:$0xf] %vm248, 0
      %250 = vst.msk [vmem:[#allocation2 + $0x4] sm:$0xf] %vm248, 0
      %s251 = scalar_lea.vmem [#allocation2], 136
      %252 = vst.msk [vmem:[%s251] sm:$0xf] %vm248, 0
      %253 = vst.msk [vmem:[%s251 + $0x4] sm:$0xf] %vm248, 0
      %s254 = scalar_lea.vmem [#allocation2], 144
      %255 = vst.msk [vmem:[%s254] sm:$0xf] %vm248, 0
      %256 = vst.msk [vmem:[%s254 + $0x4] sm:$0xf] %vm248, 0
      %s257 = scalar_lea.vmem [#allocation2], 280
      %258 = vst.msk [vmem:[%s257] sm:$0xf] %vm248, 0
      %259 = vst.msk [vmem:[%s257 + $0x4] sm:$0xf] %vm248, 0
      %s260 = scalar_lea.vmem [#allocation2], 288
      %261 = vst.msk [vmem:[%s260] sm:$0xf] %vm248, 0
      %262 = vst.msk [vmem:[%s260 + $0x4] sm:$0xf] %vm248, 0
      %s263 = scalar_lea.vmem [#allocation2], 424
      %264 = vst.msk [vmem:[%s263] sm:$0xf] %vm248, 0
      %265 = vst.msk [vmem:[%s263 + $0x4] sm:$0xf] %vm248, 0
      %s266 = scalar_lea.vmem [#allocation2], 8
      %vm267 = vcmask 24576
      %vm268 = vsmask.f32 256
      %vm269 = vmand %vm267, %vm268
      %v270 = vld [vmem:[%s266] sm:$0x1]
      %v271 = vsel %vm269, 0, %v270
      %272 = vst [vmem:[%s266] sm:$0x1] %v271
      %v273 = vld [vmem:[%s266 + $0x8] sm:$0x1]
      %v274 = vsel %vm269, 0, %v273
      %275 = vst [vmem:[%s266 + $0x8] sm:$0x1] %v274
      %v276 = vld [vmem:[%s266 + $0x10] sm:$0x1]
      %v277 = vsel %vm269, 0, %v276
      %278 = vst [vmem:[%s266 + $0x10] sm:$0x1] %v277
      %v279 = vld [vmem:[%s266 + $0x18] sm:$0x1]
      %v280 = vsel %vm269, 0, %v279
      %281 = vst [vmem:[%s266 + $0x18] sm:$0x1] %v280
      %v282 = vld [vmem:[%s266 + $0x20] sm:$0x1]
      %v283 = vsel %vm269, 0, %v282
      %284 = vst [vmem:[%s266 + $0x20] sm:$0x1] %v283
      %v285 = vld [vmem:[%s266 + $0x28] sm:$0x1]
      %v286 = vsel %vm269, 0, %v285
      %287 = vst [vmem:[%s266 + $0x28] sm:$0x1] %v286
      %v288 = vld [vmem:[%s266 + $0x30] sm:$0x1]
      %v289 = vsel %vm269, 0, %v288
      %290 = vst [vmem:[%s266 + $0x30] sm:$0x1] %v289
      %v291 = vld [vmem:[%s266 + $0x38] sm:$0x1]
      %v292 = vsel %vm269, 0, %v291
      %293 = vst [vmem:[%s266 + $0x38] sm:$0x1] %v292
      %v294 = vld [vmem:[%s266 + $0x40] sm:$0x1]
      %v295 = vsel %vm269, 0, %v294
      %296 = vst [vmem:[%s266 + $0x40] sm:$0x1] %v295
      %v297 = vld [vmem:[%s266 + $0x48] sm:$0x1]
      %v298 = vsel %vm269, 0, %v297
      %299 = vst [vmem:[%s266 + $0x48] sm:$0x1] %v298
      %v300 = vld [vmem:[%s266 + $0x50] sm:$0x1]
      %v301 = vsel %vm269, 0, %v300
      %302 = vst [vmem:[%s266 + $0x50] sm:$0x1] %v301
      %v303 = vld [vmem:[%s266 + $0x58] sm:$0x1]
      %v304 = vsel %vm269, 0, %v303
      %305 = vst [vmem:[%s266 + $0x58] sm:$0x1] %v304
      %v306 = vld [vmem:[%s266 + $0x60] sm:$0x1]
      %v307 = vsel %vm269, 0, %v306
      %308 = vst [vmem:[%s266 + $0x60] sm:$0x1] %v307
      %v309 = vld [vmem:[%s266 + $0x68] sm:$0x1]
      %v310 = vsel %vm269, 0, %v309
      %311 = vst [vmem:[%s266 + $0x68] sm:$0x1] %v310
      %v312 = vld [vmem:[%s266 + $0x70] sm:$0x1]
      %v313 = vsel %vm269, 0, %v312
      %314 = vst [vmem:[%s266 + $0x70] sm:$0x1] %v313
      %v315 = vld [vmem:[%s266 + $0x78] sm:$0x1]
      %v316 = vsel %vm269, 0, %v315
      %317 = vst [vmem:[%s266 + $0x78] sm:$0x1] %v316
      %vm318 = vsmask.f32 4368
      %vm319 = vmor %vm268, %vm318
      %v321 = vshrl.u32 %v216, 16
      %v323 = vrot.slane %v321, 7
      %v324 = vshll.u32 %v216, 16
      %v326 = vor.u32 %v323, %v324
      %v327 = vrot.slane %v323, 4
      %v329 = vshrl.u32 %v217, 16
      %v331 = vrot.slane %v329, 7
      %v332 = vshll.u32 %v217, 16
      %v334 = vor.u32 %v331, %v332
      %v335 = vsel %vm319, %v327, %v334
      %v337 = vshrl.u32 %v218, 16
      %v339 = vrot.slane %v337, 7
      %v340 = vshll.u32 %v218, 16
      %v342 = vor.u32 %v339, %v340
      %v343 = vrot.slane %v339, 4
      %v345 = vshrl.u32 %v219, 16
      %v347 = vrot.slane %v345, 7
      %v348 = vshll.u32 %v219, 16
      %v350 = vor.u32 %v347, %v348
      %v351 = vsel %vm319, %v343, %v350
      %v353 = vshrl.u32 %v220, 16
      %v355 = vrot.slane %v353, 7
      %v356 = vshll.u32 %v220, 16
      %v358 = vor.u32 %v355, %v356
      %v359 = vrot.slane %v355, 4
      %v361 = vshrl.u32 %v221, 16
      %v363 = vrot.slane %v361, 7
      %v364 = vshll.u32 %v221, 16
      %v366 = vor.u32 %v363, %v364
      %v367 = vsel %vm319, %v359, %v366
      %v369 = vshrl.u32 %v222, 16
      %v371 = vrot.slane %v369, 7
      %v372 = vshll.u32 %v222, 16
      %v374 = vor.u32 %v371, %v372
      %v375 = vrot.slane %v371, 4
      %v377 = vshrl.u32 %v223, 16
      %v379 = vrot.slane %v377, 7
      %v380 = vshll.u32 %v223, 16
      %v382 = vor.u32 %v379, %v380
      %v383 = vsel %vm319, %v375, %v382
      %v385 = vshrl.u32 %v224, 16
      %v387 = vrot.slane %v385, 7
      %v388 = vshll.u32 %v224, 16
      %v390 = vor.u32 %v387, %v388
      %v391 = vrot.slane %v387, 4
      %v393 = vshrl.u32 %v225, 16
      %v395 = vrot.slane %v393, 7
      %v396 = vshll.u32 %v225, 16
      %v398 = vor.u32 %v395, %v396
      %v399 = vsel %vm319, %v391, %v398
      %v401 = vshrl.u32 %v226, 16
      %v403 = vrot.slane %v401, 7
      %v404 = vshll.u32 %v226, 16
      %v406 = vor.u32 %v403, %v404
      %v407 = vrot.slane %v403, 4
      %v409 = vshrl.u32 %v227, 16
      %v411 = vrot.slane %v409, 7
      %v412 = vshll.u32 %v227, 16
      %v414 = vor.u32 %v411, %v412
      %v415 = vsel %vm319, %v407, %v414
      %v417 = vshrl.u32 %v228, 16
      %v419 = vrot.slane %v417, 7
      %v420 = vshll.u32 %v228, 16
      %v422 = vor.u32 %v419, %v420
      %v423 = vrot.slane %v419, 4
      %v425 = vshrl.u32 %v229, 16
      %v427 = vrot.slane %v425, 7
      %v428 = vshll.u32 %v229, 16
      %v430 = vor.u32 %v427, %v428
      %v431 = vsel %vm319, %v423, %v430
      %v433 = vshrl.u32 %v230, 16
      %v435 = vrot.slane %v433, 7
      %v436 = vshll.u32 %v230, 16
      %v438 = vor.u32 %v435, %v436
      %v439 = vrot.slane %v435, 4
      %v441 = vshrl.u32 %v231, 16
      %v443 = vrot.slane %v441, 7
      %v444 = vshll.u32 %v231, 16
      %v446 = vor.u32 %v443, %v444
      %v447 = vsel %vm319, %v439, %v446
      %v449 = vshrl.u32 %v232, 16
      %v451 = vrot.slane %v449, 7
      %v452 = vshll.u32 %v232, 16
      %v454 = vor.u32 %v451, %v452
      %v455 = vrot.slane %v451, 4
      %v457 = vshrl.u32 %v233, 16
      %v459 = vrot.slane %v457, 7
      %v460 = vshll.u32 %v233, 16
      %v462 = vor.u32 %v459, %v460
      %v463 = vsel %vm319, %v455, %v462
      %v465 = vshrl.u32 %v234, 16
      %v467 = vrot.slane %v465, 7
      %v468 = vshll.u32 %v234, 16
      %v470 = vor.u32 %v467, %v468
      %v471 = vrot.slane %v467, 4
      %v473 = vshrl.u32 %v235, 16
      %v475 = vrot.slane %v473, 7
      %v476 = vshll.u32 %v235, 16
      %v478 = vor.u32 %v475, %v476
      %v479 = vsel %vm319, %v471, %v478
      %v481 = vshrl.u32 %v236, 16
      %v483 = vrot.slane %v481, 7
      %v484 = vshll.u32 %v236, 16
      %v486 = vor.u32 %v483, %v484
      %v487 = vrot.slane %v483, 4
      %v489 = vshrl.u32 %v237, 16
      %v491 = vrot.slane %v489, 7
      %v492 = vshll.u32 %v237, 16
      %v494 = vor.u32 %v491, %v492
      %v495 = vsel %vm319, %v487, %v494
      %v497 = vshrl.u32 %v238, 16
      %v499 = vrot.slane %v497, 7
      %v500 = vshll.u32 %v238, 16
      %v502 = vor.u32 %v499, %v500
      %v503 = vrot.slane %v499, 4
      %v505 = vshrl.u32 %v239, 16
      %v507 = vrot.slane %v505, 7
      %v508 = vshll.u32 %v239, 16
      %v510 = vor.u32 %v507, %v508
      %v511 = vsel %vm319, %v503, %v510
      %v513 = vshrl.u32 %v240, 16
      %v515 = vrot.slane %v513, 7
      %v516 = vshll.u32 %v240, 16
      %v518 = vor.u32 %v515, %v516
      %v519 = vrot.slane %v515, 4
      %v521 = vshrl.u32 %v241, 16
      %v523 = vrot.slane %v521, 7
      %v524 = vshll.u32 %v241, 16
      %v526 = vor.u32 %v523, %v524
      %v527 = vsel %vm319, %v519, %v526
      %v529 = vshrl.u32 %v242, 16
      %v531 = vrot.slane %v529, 7
      %v532 = vshll.u32 %v242, 16
      %v534 = vor.u32 %v531, %v532
      %v535 = vrot.slane %v531, 4
      %v537 = vshrl.u32 %v243, 16
      %v539 = vrot.slane %v537, 7
      %v540 = vshll.u32 %v243, 16
      %v542 = vor.u32 %v539, %v540
      %v543 = vsel %vm319, %v535, %v542
      %v545 = vshrl.u32 %v244, 16
      %v547 = vrot.slane %v545, 7
      %v548 = vshll.u32 %v244, 16
      %v550 = vor.u32 %v547, %v548
      %v551 = vrot.slane %v547, 4
      %v553 = vshrl.u32 %v245, 16
      %v555 = vrot.slane %v553, 7
      %v556 = vshll.u32 %v245, 16
      %v558 = vor.u32 %v555, %v556
      %v559 = vsel %vm319, %v551, %v558
      %v561 = vshrl.u32 %v246, 16
      %v563 = vrot.slane %v561, 7
      %v564 = vshll.u32 %v246, 16
      %v566 = vor.u32 %v563, %v564
      %v567 = vrot.slane %v563, 4
      %v569 = vshrl.u32 %v247, 16
      %v571 = vrot.slane %v569, 7
      %v572 = vshll.u32 %v247, 16
      %v574 = vor.u32 %v571, %v572
      %v575 = vsel %vm319, %v567, %v574
      %vm608 = vcmask 27648
      %vm609 = vsmask.f32 7938
      %vm610 = vmand %vm608, %vm609
      %v611 = vld [vmem:[%s266] sm:$0xf]
      %v612 = vsel %vm610, %v326, %v611
      %613 = vst [vmem:[%s266] sm:$0xf] %v612
      %614 = vst.msk [vmem:[%s266 + $0x4] sm:$0xf] %vm248, %v335
      %v615 = vld [vmem:[%s266 + $0x8] sm:$0xf]
      %v616 = vsel %vm610, %v342, %v615
      %617 = vst [vmem:[%s266 + $0x8] sm:$0xf] %v616
      %618 = vst.msk [vmem:[%s266 + $0xc] sm:$0xf] %vm248, %v351
      %v619 = vld [vmem:[%s266 + $0x10] sm:$0xf]
      %v620 = vsel %vm610, %v358, %v619
      %621 = vst [vmem:[%s266 + $0x10] sm:$0xf] %v620
      %622 = vst.msk [vmem:[%s266 + $0x14] sm:$0xf] %vm248, %v367
      %v623 = vld [vmem:[%s266 + $0x18] sm:$0xf]
      %v624 = vsel %vm610, %v374, %v623
      %625 = vst [vmem:[%s266 + $0x18] sm:$0xf] %v624
      %626 = vst.msk [vmem:[%s266 + $0x1c] sm:$0xf] %vm248, %v383
      %v627 = vld [vmem:[%s266 + $0x20] sm:$0xf]
      %v628 = vsel %vm610, %v390, %v627
      %629 = vst [vmem:[%s266 + $0x20] sm:$0xf] %v628
      %630 = vst.msk [vmem:[%s266 + $0x24] sm:$0xf] %vm248, %v399
      %v631 = vld [vmem:[%s266 + $0x28] sm:$0xf]
      %v632 = vsel %vm610, %v406, %v631
      %633 = vst [vmem:[%s266 + $0x28] sm:$0xf] %v632
      %634 = vst.msk [vmem:[%s266 + $0x2c] sm:$0xf] %vm248, %v415
      %v635 = vld [vmem:[%s266 + $0x30] sm:$0xf]
      %v636 = vsel %vm610, %v422, %v635
      %637 = vst [vmem:[%s266 + $0x30] sm:$0xf] %v636
      %638 = vst.msk [vmem:[%s266 + $0x34] sm:$0xf] %vm248, %v431
      %v639 = vld [vmem:[%s266 + $0x38] sm:$0xf]
      %v640 = vsel %vm610, %v438, %v639
      %641 = vst [vmem:[%s266 + $0x38] sm:$0xf] %v640
      %642 = vst.msk [vmem:[%s266 + $0x3c] sm:$0xf] %vm248, %v447
      %v643 = vld [vmem:[%s266 + $0x40] sm:$0xf]
      %v644 = vsel %vm610, %v454, %v643
      %645 = vst [vmem:[%s266 + $0x40] sm:$0xf] %v644
      %646 = vst.msk [vmem:[%s266 + $0x44] sm:$0xf] %vm248, %v463
      %v647 = vld [vmem:[%s266 + $0x48] sm:$0xf]
      %v648 = vsel %vm610, %v470, %v647
      %649 = vst [vmem:[%s266 + $0x48] sm:$0xf] %v648
      %650 = vst.msk [vmem:[%s266 + $0x4c] sm:$0xf] %vm248, %v479
      %v651 = vld [vmem:[%s266 + $0x50] sm:$0xf]
      %v652 = vsel %vm610, %v486, %v651
      %653 = vst [vmem:[%s266 + $0x50] sm:$0xf] %v652
      %654 = vst.msk [vmem:[%s266 + $0x54] sm:$0xf] %vm248, %v495
      %v655 = vld [vmem:[%s266 + $0x58] sm:$0xf]
      %v656 = vsel %vm610, %v502, %v655
      %657 = vst [vmem:[%s266 + $0x58] sm:$0xf] %v656
      %658 = vst.msk [vmem:[%s266 + $0x5c] sm:$0xf] %vm248, %v511
      %v659 = vld [vmem:[%s266 + $0x60] sm:$0xf]
      %v660 = vsel %vm610, %v518, %v659
      %661 = vst [vmem:[%s266 + $0x60] sm:$0xf] %v660
      %662 = vst.msk [vmem:[%s266 + $0x64] sm:$0xf] %vm248, %v527
      %v663 = vld [vmem:[%s266 + $0x68] sm:$0xf]
      %v664 = vsel %vm610, %v534, %v663
      %665 = vst [vmem:[%s266 + $0x68] sm:$0xf] %v664
      %666 = vst.msk [vmem:[%s266 + $0x6c] sm:$0xf] %vm248, %v543
      %v667 = vld [vmem:[%s266 + $0x70] sm:$0xf]
      %v668 = vsel %vm610, %v550, %v667
      %669 = vst [vmem:[%s266 + $0x70] sm:$0xf] %v668
      %670 = vst.msk [vmem:[%s266 + $0x74] sm:$0xf] %vm248, %v559
      %v671 = vld [vmem:[%s266 + $0x78] sm:$0xf]
      %v672 = vsel %vm610, %v566, %v671
      %673 = vst [vmem:[%s266 + $0x78] sm:$0xf] %v672
      %674 = vst.msk [vmem:[%s266 + $0x7c] sm:$0xf] %vm248, %v575
      %s675 = scalar_lea.vmem [#allocation2], 152
      %676 = vst.msk [vmem:[%s675] sm:$0xf] %vm248, %v216
      %677 = vst.msk [vmem:[%s675 + $0x4] sm:$0xf] %vm248, %v217
      %678 = vst.msk [vmem:[%s675 + $0x8] sm:$0xf] %vm248, %v218
      %679 = vst.msk [vmem:[%s675 + $0xc] sm:$0xf] %vm248, %v219
      %680 = vst.msk [vmem:[%s675 + $0x10] sm:$0xf] %vm248, %v220
      %681 = vst.msk [vmem:[%s675 + $0x14] sm:$0xf] %vm248, %v221
      %682 = vst.msk [vmem:[%s675 + $0x18] sm:$0xf] %vm248, %v222
      %683 = vst.msk [vmem:[%s675 + $0x1c] sm:$0xf] %vm248, %v223
      %684 = vst.msk [vmem:[%s675 + $0x20] sm:$0xf] %vm248, %v224
      %685 = vst.msk [vmem:[%s675 + $0x24] sm:$0xf] %vm248, %v225
      %686 = vst.msk [vmem:[%s675 + $0x28] sm:$0xf] %vm248, %v226
      %687 = vst.msk [vmem:[%s675 + $0x2c] sm:$0xf] %vm248, %v227
      %688 = vst.msk [vmem:[%s675 + $0x30] sm:$0xf] %vm248, %v228
      %689 = vst.msk [vmem:[%s675 + $0x34] sm:$0xf] %vm248, %v229
      %690 = vst.msk [vmem:[%s675 + $0x38] sm:$0xf] %vm248, %v230
      %691 = vst.msk [vmem:[%s675 + $0x3c] sm:$0xf] %vm248, %v231
      %692 = vst.msk [vmem:[%s675 + $0x40] sm:$0xf] %vm248, %v232
      %693 = vst.msk [vmem:[%s675 + $0x44] sm:$0xf] %vm248, %v233
      %694 = vst.msk [vmem:[%s675 + $0x48] sm:$0xf] %vm248, %v234
      %695 = vst.msk [vmem:[%s675 + $0x4c] sm:$0xf] %vm248, %v235
      %696 = vst.msk [vmem:[%s675 + $0x50] sm:$0xf] %vm248, %v236
      %697 = vst.msk [vmem:[%s675 + $0x54] sm:$0xf] %vm248, %v237
      %698 = vst.msk [vmem:[%s675 + $0x58] sm:$0xf] %vm248, %v238
      %699 = vst.msk [vmem:[%s675 + $0x5c] sm:$0xf] %vm248, %v239
      %700 = vst.msk [vmem:[%s675 + $0x60] sm:$0xf] %vm248, %v240
      %701 = vst.msk [vmem:[%s675 + $0x64] sm:$0xf] %vm248, %v241
      %702 = vst.msk [vmem:[%s675 + $0x68] sm:$0xf] %vm248, %v242
      %703 = vst.msk [vmem:[%s675 + $0x6c] sm:$0xf] %vm248, %v243
      %704 = vst.msk [vmem:[%s675 + $0x70] sm:$0xf] %vm248, %v244
      %705 = vst.msk [vmem:[%s675 + $0x74] sm:$0xf] %vm248, %v245
      %706 = vst.msk [vmem:[%s675 + $0x78] sm:$0xf] %vm248, %v246
      %707 = vst.msk [vmem:[%s675 + $0x7c] sm:$0xf] %vm248, %v247
      %vm708 = vsmask.f32 3328
      %vm709 = vsmask.f32 7440
      %vm710 = vmor %vm708, %vm709
      %v711 = vrot.slane %v321, 4
      %v712 = vrot.slane %v324, 5
      %v713 = vor.u32 %v711, %v712
      %v714 = vrot.slane %v713, 4
      %v715 = vrot.slane %v332, 5
      %v716 = vsel %vm710, %v714, %v715
      %v717 = vrot.slane %v329, 4
      %v718 = vor.u32 %v717, %v715
      %v719 = vrot.slane %v718, 4
      %v720 = vrot.slane %v337, 4
      %v721 = vrot.slane %v340, 5
      %v722 = vor.u32 %v720, %v721
      %v723 = vrot.slane %v722, 4
      %v724 = vrot.slane %v348, 5
      %v725 = vsel %vm710, %v723, %v724
      %v726 = vrot.slane %v345, 4
      %v727 = vor.u32 %v726, %v724
      %v728 = vrot.slane %v727, 4
      %v729 = vrot.slane %v353, 4
      %v730 = vrot.slane %v356, 5
      %v731 = vor.u32 %v729, %v730
      %v732 = vrot.slane %v731, 4
      %v733 = vrot.slane %v364, 5
      %v734 = vsel %vm710, %v732, %v733
      %v735 = vrot.slane %v361, 4
      %v736 = vor.u32 %v735, %v733
      %v737 = vrot.slane %v736, 4
      %v738 = vrot.slane %v369, 4
      %v739 = vrot.slane %v372, 5
      %v740 = vor.u32 %v738, %v739
      %v741 = vrot.slane %v740, 4
      %v742 = vrot.slane %v380, 5
      %v743 = vsel %vm710, %v741, %v742
      %v744 = vrot.slane %v377, 4
      %v745 = vor.u32 %v744, %v742
      %v746 = vrot.slane %v745, 4
      %v747 = vrot.slane %v385, 4
      %v748 = vrot.slane %v388, 5
      %v749 = vor.u32 %v747, %v748
      %v750 = vrot.slane %v749, 4
      %v751 = vrot.slane %v396, 5
      %v752 = vsel %vm710, %v750, %v751
      %v753 = vrot.slane %v393, 4
      %v754 = vor.u32 %v753, %v751
      %v755 = vrot.slane %v754, 4
      %v756 = vrot.slane %v401, 4
      %v757 = vrot.slane %v404, 5
      %v758 = vor.u32 %v756, %v757
      %v759 = vrot.slane %v758, 4
      %v760 = vrot.slane %v412, 5
      %v761 = vsel %vm710, %v759, %v760
      %v762 = vrot.slane %v409, 4
      %v763 = vor.u32 %v762, %v760
      %v764 = vrot.slane %v763, 4
      %v765 = vrot.slane %v417, 4
      %v766 = vrot.slane %v420, 5
      %v767 = vor.u32 %v765, %v766
      %v768 = vrot.slane %v767, 4
      %v769 = vrot.slane %v428, 5
      %v770 = vsel %vm710, %v768, %v769
      %v771 = vrot.slane %v425, 4
      %v772 = vor.u32 %v771, %v769
      %v773 = vrot.slane %v772, 4
      %v774 = vrot.slane %v433, 4
      %v775 = vrot.slane %v436, 5
      %v776 = vor.u32 %v774, %v775
      %v777 = vrot.slane %v776, 4
      %v778 = vrot.slane %v444, 5
      %v779 = vsel %vm710, %v777, %v778
      %v780 = vrot.slane %v441, 4
      %v781 = vor.u32 %v780, %v778
      %v782 = vrot.slane %v781, 4
      %v783 = vrot.slane %v449, 4
      %v784 = vrot.slane %v452, 5
      %v785 = vor.u32 %v783, %v784
      %v786 = vrot.slane %v785, 4
      %v787 = vrot.slane %v460, 5
      %v788 = vsel %vm710, %v786, %v787
      %v789 = vrot.slane %v457, 4
      %v790 = vor.u32 %v789, %v787
      %v791 = vrot.slane %v790, 4
      %v792 = vrot.slane %v465, 4
      %v793 = vrot.slane %v468, 5
      %v794 = vor.u32 %v792, %v793
      %v795 = vrot.slane %v794, 4
      %v796 = vrot.slane %v476, 5
      %v797 = vsel %vm710, %v795, %v796
      %v798 = vrot.slane %v473, 4
      %v799 = vor.u32 %v798, %v796
      %v800 = vrot.slane %v799, 4
      %v801 = vrot.slane %v481, 4
      %v802 = vrot.slane %v484, 5
      %v803 = vor.u32 %v801, %v802
      %v804 = vrot.slane %v803, 4
      %v805 = vrot.slane %v492, 5
      %v806 = vsel %vm710, %v804, %v805
      %v807 = vrot.slane %v489, 4
      %v808 = vor.u32 %v807, %v805
      %v809 = vrot.slane %v808, 4
      %v810 = vrot.slane %v497, 4
      %v811 = vrot.slane %v500, 5
      %v812 = vor.u32 %v810, %v811
      %v813 = vrot.slane %v812, 4
      %v814 = vrot.slane %v508, 5
      %v815 = vsel %vm710, %v813, %v814
      %v816 = vrot.slane %v505, 4
      %v817 = vor.u32 %v816, %v814
      %v818 = vrot.slane %v817, 4
      %v819 = vrot.slane %v513, 4
      %v820 = vrot.slane %v516, 5
      %v821 = vor.u32 %v819, %v820
      %v822 = vrot.slane %v821, 4
      %v823 = vrot.slane %v524, 5
      %v824 = vsel %vm710, %v822, %v823
      %v825 = vrot.slane %v521, 4
      %v826 = vor.u32 %v825, %v823
      %v827 = vrot.slane %v826, 4
      %v828 = vrot.slane %v529, 4
      %v829 = vrot.slane %v532, 5
      %v830 = vor.u32 %v828, %v829
      %v831 = vrot.slane %v830, 4
      %v832 = vrot.slane %v540, 5
      %v833 = vsel %vm710, %v831, %v832
      %v834 = vrot.slane %v537, 4
      %v835 = vor.u32 %v834, %v832
      %v836 = vrot.slane %v835, 4
      %v837 = vrot.slane %v545, 4
      %v838 = vrot.slane %v548, 5
      %v839 = vor.u32 %v837, %v838
      %v840 = vrot.slane %v839, 4
      %v841 = vrot.slane %v556, 5
      %v842 = vsel %vm710, %v840, %v841
      %v843 = vrot.slane %v553, 4
      %v844 = vor.u32 %v843, %v841
      %v845 = vrot.slane %v844, 4
      %v846 = vrot.slane %v561, 4
      %v847 = vrot.slane %v564, 5
      %v848 = vor.u32 %v846, %v847
      %v849 = vrot.slane %v848, 4
      %v850 = vrot.slane %v572, 5
      %v851 = vsel %vm710, %v849, %v850
      %v852 = vrot.slane %v569, 4
      %v853 = vor.u32 %v852, %v850
      %v854 = vrot.slane %v853, 4
      %s887 = scalar_lea.vmem [#allocation2], 296
      %888 = vst.msk [vmem:[%s887] sm:$0xf] %vm248, %v716
      %vm889 = vmand %vm608, %vm708
      %v890 = vld [vmem:[%s887 + $0x4] sm:$0xf]
      %v891 = vsel %vm889, %v719, %v890
      %892 = vst [vmem:[%s887 + $0x4] sm:$0xf] %v891
      %893 = vst.msk [vmem:[%s887 + $0x8] sm:$0xf] %vm248, %v725
      %v894 = vld [vmem:[%s887 + $0xc] sm:$0xf]
      %v895 = vsel %vm889, %v728, %v894
      %896 = vst [vmem:[%s887 + $0xc] sm:$0xf] %v895
      %897 = vst.msk [vmem:[%s887 + $0x10] sm:$0xf] %vm248, %v734
      %v898 = vld [vmem:[%s887 + $0x14] sm:$0xf]
      %v899 = vsel %vm889, %v737, %v898
      %900 = vst [vmem:[%s887 + $0x14] sm:$0xf] %v899
      %901 = vst.msk [vmem:[%s887 + $0x18] sm:$0xf] %vm248, %v743
      %v902 = vld [vmem:[%s887 + $0x1c] sm:$0xf]
      %v903 = vsel %vm889, %v746, %v902
      %904 = vst [vmem:[%s887 + $0x1c] sm:$0xf] %v903
      %905 = vst.msk [vmem:[%s887 + $0x20] sm:$0xf] %vm248, %v752
      %v906 = vld [vmem:[%s887 + $0x24] sm:$0xf]
      %v907 = vsel %vm889, %v755, %v906
      %908 = vst [vmem:[%s887 + $0x24] sm:$0xf] %v907
      %909 = vst.msk [vmem:[%s887 + $0x28] sm:$0xf] %vm248, %v761
      %v910 = vld [vmem:[%s887 + $0x2c] sm:$0xf]
      %v911 = vsel %vm889, %v764, %v910
      %912 = vst [vmem:[%s887 + $0x2c] sm:$0xf] %v911
      %913 = vst.msk [vmem:[%s887 + $0x30] sm:$0xf] %vm248, %v770
      %v914 = vld [vmem:[%s887 + $0x34] sm:$0xf]
      %v915 = vsel %vm889, %v773, %v914
      %916 = vst [vmem:[%s887 + $0x34] sm:$0xf] %v915
      %917 = vst.msk [vmem:[%s887 + $0x38] sm:$0xf] %vm248, %v779
      %v918 = vld [vmem:[%s887 + $0x3c] sm:$0xf]
      %v919 = vsel %vm889, %v782, %v918
      %920 = vst [vmem:[%s887 + $0x3c] sm:$0xf] %v919
      %921 = vst.msk [vmem:[%s887 + $0x40] sm:$0xf] %vm248, %v788
      %v922 = vld [vmem:[%s887 + $0x44] sm:$0xf]
      %v923 = vsel %vm889, %v791, %v922
      %924 = vst [vmem:[%s887 + $0x44] sm:$0xf] %v923
      %925 = vst.msk [vmem:[%s887 + $0x48] sm:$0xf] %vm248, %v797
      %v926 = vld [vmem:[%s887 + $0x4c] sm:$0xf]
      %v927 = vsel %vm889, %v800, %v926
      %928 = vst [vmem:[%s887 + $0x4c] sm:$0xf] %v927
      %929 = vst.msk [vmem:[%s887 + $0x50] sm:$0xf] %vm248, %v806
      %v930 = vld [vmem:[%s887 + $0x54] sm:$0xf]
      %v931 = vsel %vm889, %v809, %v930
      %932 = vst [vmem:[%s887 + $0x54] sm:$0xf] %v931
      %933 = vst.msk [vmem:[%s887 + $0x58] sm:$0xf] %vm248, %v815
      %v934 = vld [vmem:[%s887 + $0x5c] sm:$0xf]
      %v935 = vsel %vm889, %v818, %v934
      %936 = vst [vmem:[%s887 + $0x5c] sm:$0xf] %v935
      %937 = vst.msk [vmem:[%s887 + $0x60] sm:$0xf] %vm248, %v824
      %v938 = vld [vmem:[%s887 + $0x64] sm:$0xf]
      %v939 = vsel %vm889, %v827, %v938
      %940 = vst [vmem:[%s887 + $0x64] sm:$0xf] %v939
      %941 = vst.msk [vmem:[%s887 + $0x68] sm:$0xf] %vm248, %v833
      %v942 = vld [vmem:[%s887 + $0x6c] sm:$0xf]
      %v943 = vsel %vm889, %v836, %v942
      %944 = vst [vmem:[%s887 + $0x6c] sm:$0xf] %v943
      %945 = vst.msk [vmem:[%s887 + $0x70] sm:$0xf] %vm248, %v842
      %v946 = vld [vmem:[%s887 + $0x74] sm:$0xf]
      %v947 = vsel %vm889, %v845, %v946
      %948 = vst [vmem:[%s887 + $0x74] sm:$0xf] %v947
      %949 = vst.msk [vmem:[%s887 + $0x78] sm:$0xf] %vm248, %v851
      %v950 = vld [vmem:[%s887 + $0x7c] sm:$0xf]
      %v951 = vsel %vm889, %v854, %v950
      %952 = vst [vmem:[%s887 + $0x7c] sm:$0xf] %v951
      %vm953 = vcmask 27651
      %vm954 = vsmask.f32 7950
      %vm955 = vmand %vm953, %vm954
      %v956 = vld [vmem:[%s887 + $0x4] sm:$0x8]
      %v957 = vsel %vm955, 0, %v956
      %958 = vst [vmem:[%s887 + $0x4] sm:$0x8] %v957
      %v959 = vld [vmem:[%s887 + $0xc] sm:$0x8]
      %v960 = vsel %vm955, 0, %v959
      %961 = vst [vmem:[%s887 + $0xc] sm:$0x8] %v960
      %v962 = vld [vmem:[%s887 + $0x14] sm:$0x8]
      %v963 = vsel %vm955, 0, %v962
      %964 = vst [vmem:[%s887 + $0x14] sm:$0x8] %v963
      %v965 = vld [vmem:[%s887 + $0x1c] sm:$0x8]
      %v966 = vsel %vm955, 0, %v965
      %967 = vst [vmem:[%s887 + $0x1c] sm:$0x8] %v966
      %v968 = vld [vmem:[%s887 + $0x24] sm:$0x8]
      %v969 = vsel %vm955, 0, %v968
      %970 = vst [vmem:[%s887 + $0x24] sm:$0x8] %v969
      %v971 = vld [vmem:[%s887 + $0x2c] sm:$0x8]
      %v972 = vsel %vm955, 0, %v971
      %973 = vst [vmem:[%s887 + $0x2c] sm:$0x8] %v972
      %v974 = vld [vmem:[%s887 + $0x34] sm:$0x8]
      %v975 = vsel %vm955, 0, %v974
      %976 = vst [vmem:[%s887 + $0x34] sm:$0x8] %v975
      %v977 = vld [vmem:[%s887 + $0x3c] sm:$0x8]
      %v978 = vsel %vm955, 0, %v977
      %979 = vst [vmem:[%s887 + $0x3c] sm:$0x8] %v978
      %v980 = vld [vmem:[%s887 + $0x44] sm:$0x8]
      %v981 = vsel %vm955, 0, %v980
      %982 = vst [vmem:[%s887 + $0x44] sm:$0x8] %v981
      %v983 = vld [vmem:[%s887 + $0x4c] sm:$0x8]
      %v984 = vsel %vm955, 0, %v983
      %985 = vst [vmem:[%s887 + $0x4c] sm:$0x8] %v984
      %v986 = vld [vmem:[%s887 + $0x54] sm:$0x8]
      %v987 = vsel %vm955, 0, %v986
      %988 = vst [vmem:[%s887 + $0x54] sm:$0x8] %v987
      %v989 = vld [vmem:[%s887 + $0x5c] sm:$0x8]
      %v990 = vsel %vm955, 0, %v989
      %991 = vst [vmem:[%s887 + $0x5c] sm:$0x8] %v990
      %v992 = vld [vmem:[%s887 + $0x64] sm:$0x8]
      %v993 = vsel %vm955, 0, %v992
      %994 = vst [vmem:[%s887 + $0x64] sm:$0x8] %v993
      %v995 = vld [vmem:[%s887 + $0x6c] sm:$0x8]
      %v996 = vsel %vm955, 0, %v995
      %997 = vst [vmem:[%s887 + $0x6c] sm:$0x8] %v996
      %v998 = vld [vmem:[%s887 + $0x74] sm:$0x8]
      %v999 = vsel %vm955, 0, %v998
      %1000 = vst [vmem:[%s887 + $0x74] sm:$0x8] %v999
      %v1001 = vld [vmem:[%s887 + $0x7c] sm:$0x8]
      %v1002 = vsel %vm955, 0, %v1001
      %1003 = vst [vmem:[%s887 + $0x7c] sm:$0x8] %v1002
      %v1004 = vld [vmem:[#allocation2] sm:$0xf]
      %v1005 = vld [vmem:[#allocation2 + $0x4] sm:$0xf]
      %v1006 = vld [vmem:[#allocation2 + $0x8] sm:$0xf]
      %v1007 = vld [vmem:[#allocation2 + $0xc] sm:$0xf]
      %v1008 = vld [vmem:[#allocation2 + $0x10] sm:$0xf]
      %v1009 = vld [vmem:[#allocation2 + $0x14] sm:$0xf]
      %v1010 = vld [vmem:[#allocation2 + $0x18] sm:$0xf]
      %v1011 = vld [vmem:[#allocation2 + $0x1c] sm:$0xf]
      %v1012 = vld [vmem:[#allocation2 + $0x20] sm:$0xf]
      %v1013 = vld [vmem:[#allocation2 + $0x24] sm:$0xf]
      %v1014 = vld [vmem:[#allocation2 + $0x28] sm:$0xf]
      %v1015 = vld [vmem:[#allocation2 + $0x2c] sm:$0xf]
      %v1016 = vld [vmem:[#allocation2 + $0x30] sm:$0xf]
      %v1017 = vld [vmem:[#allocation2 + $0x34] sm:$0xf]
      %v1018 = vld [vmem:[#allocation2 + $0x38] sm:$0xf]
      %v1019 = vld [vmem:[#allocation2 + $0x3c] sm:$0xf]
      %v1020 = vld [vmem:[#allocation2 + $0x40] sm:$0xf]
      %v1021 = vld [vmem:[#allocation2 + $0x44] sm:$0xf]
      %v1022 = vld [vmem:[#allocation2 + $0x48] sm:$0xf]
      %v1023 = vld [vmem:[#allocation2 + $0x4c] sm:$0xf]
      %v1024 = vld [vmem:[#allocation2 + $0x50] sm:$0xf]
      %v1025 = vld [vmem:[#allocation2 + $0x54] sm:$0xf]
      %v1026 = vld [vmem:[#allocation2 + $0x58] sm:$0xf]
      %v1027 = vld [vmem:[#allocation2 + $0x5c] sm:$0xf]
      %v1028 = vld [vmem:[#allocation2 + $0x60] sm:$0xf]
      %v1029 = vld [vmem:[#allocation2 + $0x64] sm:$0xf]
      %v1030 = vld [vmem:[#allocation2 + $0x68] sm:$0xf]
      %v1031 = vld [vmem:[#allocation2 + $0x6c] sm:$0xf]
      %v1032 = vld [vmem:[#allocation2 + $0x70] sm:$0xf]
      %v1033 = vld [vmem:[#allocation2 + $0x74] sm:$0xf]
      %v1034 = vld [vmem:[#allocation2 + $0x78] sm:$0xf]
      %v1035 = vld [vmem:[#allocation2 + $0x7c] sm:$0xf]
      %v1036 = vld [vmem:[%s1] sm:$0x3]
      %v1037 = vld [vmem:[%s254] sm:$0xf]
      %v1038 = vld [vmem:[%s254 + $0x4] sm:$0xf]
      %v1039 = vld [vmem:[%s254 + $0x8] sm:$0xf]
      %v1040 = vld [vmem:[%s254 + $0xc] sm:$0xf]
      %v1041 = vld [vmem:[%s254 + $0x10] sm:$0xf]
      %v1042 = vld [vmem:[%s254 + $0x14] sm:$0xf]
      %v1043 = vld [vmem:[%s254 + $0x18] sm:$0xf]
      %v1044 = vld [vmem:[%s254 + $0x1c] sm:$0xf]
      %v1045 = vld [vmem:[%s254 + $0x20] sm:$0xf]
      %v1046 = vld [vmem:[%s254 + $0x24] sm:$0xf]
      %v1047 = vld [vmem:[%s254 + $0x28] sm:$0xf]
      %v1048 = vld [vmem:[%s254 + $0x2c] sm:$0xf]
      %v1049 = vld [vmem:[%s254 + $0x30] sm:$0xf]
      %v1050 = vld [vmem:[%s254 + $0x34] sm:$0xf]
      %v1051 = vld [vmem:[%s254 + $0x38] sm:$0xf]
      %v1052 = vld [vmem:[%s254 + $0x3c] sm:$0xf]
      %v1053 = vld [vmem:[%s254 + $0x40] sm:$0xf]
      %v1054 = vld [vmem:[%s254 + $0x44] sm:$0xf]
      %v1055 = vld [vmem:[%s254 + $0x48] sm:$0xf]
      %v1056 = vld [vmem:[%s254 + $0x4c] sm:$0xf]
      %v1057 = vld [vmem:[%s254 + $0x50] sm:$0xf]
      %v1058 = vld [vmem:[%s254 + $0x54] sm:$0xf]
      %v1059 = vld [vmem:[%s254 + $0x58] sm:$0xf]
      %v1060 = vld [vmem:[%s254 + $0x5c] sm:$0xf]
      %v1061 = vld [vmem:[%s254 + $0x60] sm:$0xf]
      %v1062 = vld [vmem:[%s254 + $0x64] sm:$0xf]
      %v1063 = vld [vmem:[%s254 + $0x68] sm:$0xf]
      %v1064 = vld [vmem:[%s254 + $0x6c] sm:$0xf]
      %v1065 = vld [vmem:[%s254 + $0x70] sm:$0xf]
      %v1066 = vld [vmem:[%s254 + $0x74] sm:$0xf]
      %v1067 = vld [vmem:[%s254 + $0x78] sm:$0xf]
      %v1068 = vld [vmem:[%s254 + $0x7c] sm:$0xf]
      %s1069 = scalar_lea.vmem %s1, 2
      %v1070 = vld [vmem:[%s1069] sm:$0x3]
      %v1103 = vunpack.c.l.b16 %v1037
      %v1104 = vunpack.c.l.b16 %v1038
      %v1105 = vunpack.c.l.b16 %v1039
      %v1106 = vunpack.c.l.b16 %v1040
      %v1107 = vunpack.c.l.b16 %v1041
      %v1108 = vunpack.c.l.b16 %v1042
      %v1109 = vunpack.c.l.b16 %v1043
      %v1110 = vunpack.c.l.b16 %v1044
      %v1111 = vunpack.c.l.b16 %v1045
      %v1112 = vunpack.c.l.b16 %v1046
      %v1113 = vunpack.c.l.b16 %v1047
      %v1114 = vunpack.c.l.b16 %v1048
      %v1115 = vunpack.c.l.b16 %v1049
      %v1116 = vunpack.c.l.b16 %v1050
      %v1117 = vunpack.c.l.b16 %v1051
      %v1118 = vunpack.c.l.b16 %v1052
      %v1119 = vunpack.c.l.b16 %v1053
      %v1120 = vunpack.c.l.b16 %v1054
      %v1121 = vunpack.c.l.b16 %v1055
      %v1122 = vunpack.c.l.b16 %v1056
      %v1123 = vunpack.c.l.b16 %v1057
      %v1124 = vunpack.c.l.b16 %v1058
      %v1125 = vunpack.c.l.b16 %v1059
      %v1126 = vunpack.c.l.b16 %v1060
      %v1127 = vunpack.c.l.b16 %v1061
      %v1128 = vunpack.c.l.b16 %v1062
      %v1129 = vunpack.c.l.b16 %v1063
      %v1130 = vunpack.c.l.b16 %v1064
      %v1131 = vunpack.c.l.b16 %v1065
      %v1132 = vunpack.c.l.b16 %v1066
      %v1133 = vunpack.c.l.b16 %v1067
      %v1134 = vunpack.c.l.b16 %v1068
      %v1135 = vpack.c.b16 %v1104, %v1103
      %v1136 = vpack.c.b16 %v1106, %v1105
      %v1137 = vpack.c.b16 %v1108, %v1107
      %v1138 = vpack.c.b16 %v1110, %v1109
      %v1139 = vpack.c.b16 %v1112, %v1111
      %v1140 = vpack.c.b16 %v1114, %v1113
      %v1141 = vpack.c.b16 %v1116, %v1115
      %v1142 = vpack.c.b16 %v1118, %v1117
      %v1143 = vpack.c.b16 %v1120, %v1119
      %v1144 = vpack.c.b16 %v1122, %v1121
      %v1145 = vpack.c.b16 %v1124, %v1123
      %v1146 = vpack.c.b16 %v1126, %v1125
      %v1147 = vpack.c.b16 %v1128, %v1127
      %v1148 = vpack.c.b16 %v1130, %v1129
      %v1149 = vpack.c.b16 %v1132, %v1131
      %v1150 = vpack.c.b16 %v1134, %v1133
      %vm1151 = vcmask 31744
      %v1153 = vsel %vm1151, %v1135, 0
      %v1156 = vsel %vm1151, %v1136, 0
      %v1159 = vsel %vm1151, %v1137, 0
      %v1162 = vsel %vm1151, %v1138, 0
      %v1165 = vsel %vm1151, %v1139, 0
      %v1168 = vsel %vm1151, %v1140, 0
      %v1171 = vsel %vm1151, %v1141, 0
      %v1174 = vsel %vm1151, %v1142, 0
      %v1177 = vsel %vm1151, %v1143, 0
      %v1180 = vsel %vm1151, %v1144, 0
      %v1183 = vsel %vm1151, %v1145, 0
      %v1186 = vsel %vm1151, %v1146, 0
      %v1189 = vsel %vm1151, %v1147, 0
      %v1192 = vsel %vm1151, %v1148, 0
      %v1195 = vsel %vm1151, %v1149, 0
      %v1198 = vsel %vm1151, %v1150, 0
      %vm1200 = vcmask 1041408
      %v1202 = vsel %vm1200, %v1070, 0
      %1204 = vmatprep.subr.bf16.mxu0 0
      %1205 = vmatpush1.bf16.msra.mxu0 0
      %1206 = vmatprep.subr.bf16.mxu0 0
      %1207 = vmatpush1.bf16.msra.mxu0 0
      %1208 = vmatprep.subr.bf16.mxu0 0
      %1209 = vmatpush1.bf16.msra.mxu0 0
      %1210 = vmatprep.subr.bf16.mxu0 0
      %1211 = vmatpush1.bf16.msra.mxu0 0
      %1212 = vmatprep.subr.bf16.mxu0 0
      %1213 = vmatpush1.bf16.msra.mxu0 0
      %1214 = vmatprep.subr.bf16.mxu0 0
      %1215 = vmatpush1.bf16.msra.mxu0 0
      %1216 = vmatprep.subr.bf16.mxu0 0
      %1217 = vmatpush1.bf16.msra.mxu0 0
      %1218 = vmatprep.subr.bf16.mxu0 0
      %1219 = vmatpush1.bf16.msra.mxu0 %v1202
      %1220 = vmatprep.subr.bf16.mxu0 0
      %1221 = vmatpush2.bf16.msra.mxu0 0
      %1222 = vmatprep.subr.bf16.mxu0 0
      %1223 = vmatpush2.bf16.msra.mxu0 0
      %1224 = vmatprep.subr.bf16.mxu0 0
      %1225 = vmatpush2.bf16.msra.mxu0 0
      %1226 = vmatprep.subr.bf16.mxu0 0
      %1227 = vmatpush2.bf16.msra.mxu0 0
      %1228 = vmatprep.subr.bf16.mxu0 0
      %1229 = vmatpush2.bf16.msra.mxu0 0
      %1230 = vmatprep.subr.bf16.mxu0 0
      %1231 = vmatpush2.bf16.msra.mxu0 0
      %1232 = vmatprep.subr.bf16.mxu0 0
      %1233 = vmatpush2.bf16.msra.mxu0 0
      %1234 = vmatprep.subr.bf16.mxu0 0
      %1235 = vmatpush2.bf16.msra.mxu0 0
      %1236 = vmatprep.mubr.bf16.mxu0 0
      %1237 = vmatmul.mubr.bf16.gmra.mxu0 %v1153
      %v1238 = vpop.f32.mrf.mxu0
      %v1239 = vadd.f32 0.0, %v1238
      %v1240 = vpop.f32.mrf.mxu0
      %v1241 = vpop.f32.mrf.mxu0
      %v1242 = vadd.f32 0.0, %v1241
      %v1243 = vpop.f32.mrf.mxu0
      %1244 = vmatprep.mubr.bf16.mxu0 0
      %1245 = vmatmul.mubr.bf16.gmra.mxu0 %v1156
      %v1246 = vpop.f32.mrf.mxu0
      %v1247 = vadd.f32 0.0, %v1246
      %v1248 = vpop.f32.mrf.mxu0
      %v1249 = vpop.f32.mrf.mxu0
      %v1250 = vadd.f32 0.0, %v1249
      %v1251 = vpop.f32.mrf.mxu0
      %1252 = vmatprep.mubr.bf16.mxu0 0
      %1253 = vmatmul.mubr.bf16.gmra.mxu0 %v1159
      %v1254 = vpop.f32.mrf.mxu0
      %v1255 = vadd.f32 0.0, %v1254
      %v1256 = vpop.f32.mrf.mxu0
      %v1257 = vpop.f32.mrf.mxu0
      %v1258 = vadd.f32 0.0, %v1257
      %v1259 = vpop.f32.mrf.mxu0
      %1260 = vmatprep.mubr.bf16.mxu0 0
      %1261 = vmatmul.mubr.bf16.gmra.mxu0 %v1162
      %v1262 = vpop.f32.mrf.mxu0
      %v1263 = vadd.f32 0.0, %v1262
      %v1264 = vpop.f32.mrf.mxu0
      %v1265 = vpop.f32.mrf.mxu0
      %v1266 = vadd.f32 0.0, %v1265
      %v1267 = vpop.f32.mrf.mxu0
      %1268 = vmatprep.mubr.bf16.mxu0 0
      %1269 = vmatmul.mubr.bf16.gmra.mxu0 %v1165
      %v1270 = vpop.f32.mrf.mxu0
      %v1271 = vadd.f32 0.0, %v1270
      %v1272 = vpop.f32.mrf.mxu0
      %v1273 = vpop.f32.mrf.mxu0
      %v1274 = vadd.f32 0.0, %v1273
      %v1275 = vpop.f32.mrf.mxu0
      %1276 = vmatprep.mubr.bf16.mxu0 0
      %1277 = vmatmul.mubr.bf16.gmra.mxu0 %v1168
      %v1278 = vpop.f32.mrf.mxu0
      %v1279 = vadd.f32 0.0, %v1278
      %v1280 = vpop.f32.mrf.mxu0
      %v1281 = vpop.f32.mrf.mxu0
      %v1282 = vadd.f32 0.0, %v1281
      %v1283 = vpop.f32.mrf.mxu0
      %1284 = vmatprep.mubr.bf16.mxu0 0
      %1285 = vmatmul.mubr.bf16.gmra.mxu0 %v1171
      %v1286 = vpop.f32.mrf.mxu0
      %v1287 = vadd.f32 0.0, %v1286
      %v1288 = vpop.f32.mrf.mxu0
      %v1289 = vpop.f32.mrf.mxu0
      %v1290 = vadd.f32 0.0, %v1289
      %v1291 = vpop.f32.mrf.mxu0
      %1292 = vmatprep.mubr.bf16.mxu0 0
      %1293 = vmatmul.mubr.bf16.gmra.mxu0 %v1174
      %v1294 = vpop.f32.mrf.mxu0
      %v1295 = vadd.f32 0.0, %v1294
      %v1296 = vpop.f32.mrf.mxu0
      %v1297 = vpop.f32.mrf.mxu0
      %v1298 = vadd.f32 0.0, %v1297
      %v1299 = vpop.f32.mrf.mxu0
      %1300 = vmatprep.mubr.bf16.mxu0 0
      %1301 = vmatmul.mubr.bf16.gmra.mxu0 %v1177
      %v1302 = vpop.f32.mrf.mxu0
      %v1303 = vadd.f32 0.0, %v1302
      %v1304 = vpop.f32.mrf.mxu0
      %v1305 = vpop.f32.mrf.mxu0
      %v1306 = vadd.f32 0.0, %v1305
      %v1307 = vpop.f32.mrf.mxu0
      %1308 = vmatprep.mubr.bf16.mxu0 0
      %1309 = vmatmul.mubr.bf16.gmra.mxu0 %v1180
      %v1310 = vpop.f32.mrf.mxu0
      %v1311 = vadd.f32 0.0, %v1310
      %v1312 = vpop.f32.mrf.mxu0
      %v1313 = vpop.f32.mrf.mxu0
      %v1314 = vadd.f32 0.0, %v1313
      %v1315 = vpop.f32.mrf.mxu0
      %1316 = vmatprep.mubr.bf16.mxu0 0
      %1317 = vmatmul.mubr.bf16.gmra.mxu0 %v1183
      %v1318 = vpop.f32.mrf.mxu0
      %v1319 = vadd.f32 0.0, %v1318
      %v1320 = vpop.f32.mrf.mxu0
      %v1321 = vpop.f32.mrf.mxu0
      %v1322 = vadd.f32 0.0, %v1321
      %v1323 = vpop.f32.mrf.mxu0
      %1324 = vmatprep.mubr.bf16.mxu0 0
      %1325 = vmatmul.mubr.bf16.gmra.mxu0 %v1186
      %v1326 = vpop.f32.mrf.mxu0
      %v1327 = vadd.f32 0.0, %v1326
      %v1328 = vpop.f32.mrf.mxu0
      %v1329 = vpop.f32.mrf.mxu0
      %v1330 = vadd.f32 0.0, %v1329
      %v1331 = vpop.f32.mrf.mxu0
      %1332 = vmatprep.mubr.bf16.mxu0 0
      %1333 = vmatmul.mubr.bf16.gmra.mxu0 %v1189
      %v1334 = vpop.f32.mrf.mxu0
      %v1335 = vadd.f32 0.0, %v1334
      %v1336 = vpop.f32.mrf.mxu0
      %v1337 = vpop.f32.mrf.mxu0
      %v1338 = vadd.f32 0.0, %v1337
      %v1339 = vpop.f32.mrf.mxu0
      %1340 = vmatprep.mubr.bf16.mxu0 0
      %1341 = vmatmul.mubr.bf16.gmra.mxu0 %v1192
      %v1342 = vpop.f32.mrf.mxu0
      %v1343 = vadd.f32 0.0, %v1342
      %v1344 = vpop.f32.mrf.mxu0
      %v1345 = vpop.f32.mrf.mxu0
      %v1346 = vadd.f32 0.0, %v1345
      %v1347 = vpop.f32.mrf.mxu0
      %1348 = vmatprep.mubr.bf16.mxu0 0
      %1349 = vmatmul.mubr.bf16.gmra.mxu0 %v1195
      %v1350 = vpop.f32.mrf.mxu0
      %v1351 = vadd.f32 0.0, %v1350
      %v1352 = vpop.f32.mrf.mxu0
      %v1353 = vpop.f32.mrf.mxu0
      %v1354 = vadd.f32 0.0, %v1353
      %v1355 = vpop.f32.mrf.mxu0
      %1356 = vmatprep.mubr.bf16.mxu0 0
      %1357 = vmatmul.mubr.bf16.gmra.mxu0 %v1198
      %v1358 = vpop.f32.mrf.mxu0
      %v1359 = vadd.f32 0.0, %v1358
      %v1360 = vpop.f32.mrf.mxu0
      %v1361 = vpop.f32.mrf.mxu0
      %v1362 = vadd.f32 0.0, %v1361
      %v1363 = vpop.f32.mrf.mxu0
      %1364 = vdwg.mxu0
      %v1397 = vunpack.c.l.b16 %v1004
      %v1398 = vunpack.c.l.b16 %v1005
      %v1399 = vunpack.c.l.b16 %v1006
      %v1400 = vunpack.c.l.b16 %v1007
      %v1401 = vunpack.c.l.b16 %v1008
      %v1402 = vunpack.c.l.b16 %v1009
      %v1403 = vunpack.c.l.b16 %v1010
      %v1404 = vunpack.c.l.b16 %v1011
      %v1405 = vunpack.c.l.b16 %v1012
      %v1406 = vunpack.c.l.b16 %v1013
      %v1407 = vunpack.c.l.b16 %v1014
      %v1408 = vunpack.c.l.b16 %v1015
      %v1409 = vunpack.c.l.b16 %v1016
      %v1410 = vunpack.c.l.b16 %v1017
      %v1411 = vunpack.c.l.b16 %v1018
      %v1412 = vunpack.c.l.b16 %v1019
      %v1413 = vunpack.c.l.b16 %v1020
      %v1414 = vunpack.c.l.b16 %v1021
      %v1415 = vunpack.c.l.b16 %v1022
      %v1416 = vunpack.c.l.b16 %v1023
      %v1417 = vunpack.c.l.b16 %v1024
      %v1418 = vunpack.c.l.b16 %v1025
      %v1419 = vunpack.c.l.b16 %v1026
      %v1420 = vunpack.c.l.b16 %v1027
      %v1421 = vunpack.c.l.b16 %v1028
      %v1422 = vunpack.c.l.b16 %v1029
      %v1423 = vunpack.c.l.b16 %v1030
      %v1424 = vunpack.c.l.b16 %v1031
      %v1425 = vunpack.c.l.b16 %v1032
      %v1426 = vunpack.c.l.b16 %v1033
      %v1427 = vunpack.c.l.b16 %v1034
      %v1428 = vunpack.c.l.b16 %v1035
      %v1429 = vpack.c.b16 %v1398, %v1397
      %v1430 = vpack.c.b16 %v1400, %v1399
      %v1431 = vpack.c.b16 %v1402, %v1401
      %v1432 = vpack.c.b16 %v1404, %v1403
      %v1433 = vpack.c.b16 %v1406, %v1405
      %v1434 = vpack.c.b16 %v1408, %v1407
      %v1435 = vpack.c.b16 %v1410, %v1409
      %v1436 = vpack.c.b16 %v1412, %v1411
      %v1437 = vpack.c.b16 %v1414, %v1413
      %v1438 = vpack.c.b16 %v1416, %v1415
      %v1439 = vpack.c.b16 %v1418, %v1417
      %v1440 = vpack.c.b16 %v1420, %v1419
      %v1441 = vpack.c.b16 %v1422, %v1421
      %v1442 = vpack.c.b16 %v1424, %v1423
      %v1443 = vpack.c.b16 %v1426, %v1425
      %v1444 = vpack.c.b16 %v1428, %v1427
      %v1446 = vsel %vm1151, %v1429, 0
      %v1449 = vsel %vm1151, %v1430, 0
      %v1452 = vsel %vm1151, %v1431, 0
      %v1455 = vsel %vm1151, %v1432, 0
      %v1458 = vsel %vm1151, %v1433, 0
      %v1461 = vsel %vm1151, %v1434, 0
      %v1464 = vsel %vm1151, %v1435, 0
      %v1467 = vsel %vm1151, %v1436, 0
      %v1470 = vsel %vm1151, %v1437, 0
      %v1473 = vsel %vm1151, %v1438, 0
      %v1476 = vsel %vm1151, %v1439, 0
      %v1479 = vsel %vm1151, %v1440, 0
      %v1482 = vsel %vm1151, %v1441, 0
      %v1485 = vsel %vm1151, %v1442, 0
      %v1488 = vsel %vm1151, %v1443, 0
      %v1491 = vsel %vm1151, %v1444, 0
      %v1494 = vsel %vm1200, %v1036, 0
      %1496 = vmatprep.subr.bf16.mxu0 0
      %1497 = vmatpush1.bf16.msra.mxu0 0
      %1498 = vmatprep.subr.bf16.mxu0 0
      %1499 = vmatpush1.bf16.msra.mxu0 0
      %1500 = vmatprep.subr.bf16.mxu0 0
      %1501 = vmatpush1.bf16.msra.mxu0 0
      %1502 = vmatprep.subr.bf16.mxu0 0
      %1503 = vmatpush1.bf16.msra.mxu0 0
      %1504 = vmatprep.subr.bf16.mxu0 0
      %1505 = vmatpush1.bf16.msra.mxu0 0
      %1506 = vmatprep.subr.bf16.mxu0 0
      %1507 = vmatpush1.bf16.msra.mxu0 0
      %1508 = vmatprep.subr.bf16.mxu0 0
      %1509 = vmatpush1.bf16.msra.mxu0 0
      %1510 = vmatprep.subr.bf16.mxu0 0
      %1511 = vmatpush1.bf16.msra.mxu0 %v1494
      %1512 = vmatprep.subr.bf16.mxu0 0
      %1513 = vmatpush2.bf16.msra.mxu0 0
      %1514 = vmatprep.subr.bf16.mxu0 0
      %1515 = vmatpush2.bf16.msra.mxu0 0
      %1516 = vmatprep.subr.bf16.mxu0 0
      %1517 = vmatpush2.bf16.msra.mxu0 0
      %1518 = vmatprep.subr.bf16.mxu0 0
      %1519 = vmatpush2.bf16.msra.mxu0 0
      %1520 = vmatprep.subr.bf16.mxu0 0
      %1521 = vmatpush2.bf16.msra.mxu0 0
      %1522 = vmatprep.subr.bf16.mxu0 0
      %1523 = vmatpush2.bf16.msra.mxu0 0
      %1524 = vmatprep.subr.bf16.mxu0 0
      %1525 = vmatpush2.bf16.msra.mxu0 0
      %1526 = vmatprep.subr.bf16.mxu0 0
      %1527 = vmatpush2.bf16.msra.mxu0 0
      %1528 = vmatprep.mubr.bf16.mxu0 0
      %1529 = vmatmul.mubr.bf16.gmra.mxu0 %v1446
      %v1530 = vpop.f32.mrf.mxu0
      %v1531 = vadd.f32 %v1239, %v1530
      %v1532 = vpop.f32.mrf.mxu0
      %v1533 = vpop.f32.mrf.mxu0
      %v1534 = vadd.f32 %v1242, %v1533
      %v1535 = vpop.f32.mrf.mxu0
      %1536 = vmatprep.mubr.bf16.mxu0 0
      %1537 = vmatmul.mubr.bf16.gmra.mxu0 %v1449
      %v1538 = vpop.f32.mrf.mxu0
      %v1539 = vadd.f32 %v1247, %v1538
      %v1540 = vpop.f32.mrf.mxu0
      %v1541 = vpop.f32.mrf.mxu0
      %v1542 = vadd.f32 %v1250, %v1541
      %v1543 = vpop.f32.mrf.mxu0
      %1544 = vmatprep.mubr.bf16.mxu0 0
      %1545 = vmatmul.mubr.bf16.gmra.mxu0 %v1452
      %v1546 = vpop.f32.mrf.mxu0
      %v1547 = vadd.f32 %v1255, %v1546
      %v1548 = vpop.f32.mrf.mxu0
      %v1549 = vpop.f32.mrf.mxu0
      %v1550 = vadd.f32 %v1258, %v1549
      %v1551 = vpop.f32.mrf.mxu0
      %1552 = vmatprep.mubr.bf16.mxu0 0
      %1553 = vmatmul.mubr.bf16.gmra.mxu0 %v1455
      %v1554 = vpop.f32.mrf.mxu0
      %v1555 = vadd.f32 %v1263, %v1554
      %v1556 = vpop.f32.mrf.mxu0
      %v1557 = vpop.f32.mrf.mxu0
      %v1558 = vadd.f32 %v1266, %v1557
      %v1559 = vpop.f32.mrf.mxu0
      %1560 = vmatprep.mubr.bf16.mxu0 0
      %1561 = vmatmul.mubr.bf16.gmra.mxu0 %v1458
      %v1562 = vpop.f32.mrf.mxu0
      %v1563 = vadd.f32 %v1271, %v1562
      %v1564 = vpop.f32.mrf.mxu0
      %v1565 = vpop.f32.mrf.mxu0
      %v1566 = vadd.f32 %v1274, %v1565
      %v1567 = vpop.f32.mrf.mxu0
      %1568 = vmatprep.mubr.bf16.mxu0 0
      %1569 = vmatmul.mubr.bf16.gmra.mxu0 %v1461
      %v1570 = vpop.f32.mrf.mxu0
      %v1571 = vadd.f32 %v1279, %v1570
      %v1572 = vpop.f32.mrf.mxu0
      %v1573 = vpop.f32.mrf.mxu0
      %v1574 = vadd.f32 %v1282, %v1573
      %v1575 = vpop.f32.mrf.mxu0
      %1576 = vmatprep.mubr.bf16.mxu0 0
      %1577 = vmatmul.mubr.bf16.gmra.mxu0 %v1464
      %v1578 = vpop.f32.mrf.mxu0
      %v1579 = vadd.f32 %v1287, %v1578
      %v1580 = vpop.f32.mrf.mxu0
      %v1581 = vpop.f32.mrf.mxu0
      %v1582 = vadd.f32 %v1290, %v1581
      %v1583 = vpop.f32.mrf.mxu0
      %1584 = vmatprep.mubr.bf16.mxu0 0
      %1585 = vmatmul.mubr.bf16.gmra.mxu0 %v1467
      %v1586 = vpop.f32.mrf.mxu0
      %v1587 = vadd.f32 %v1295, %v1586
      %v1588 = vpop.f32.mrf.mxu0
      %v1589 = vpop.f32.mrf.mxu0
      %v1590 = vadd.f32 %v1298, %v1589
      %v1591 = vpop.f32.mrf.mxu0
      %1592 = vmatprep.mubr.bf16.mxu0 0
      %1593 = vmatmul.mubr.bf16.gmra.mxu0 %v1470
      %v1594 = vpop.f32.mrf.mxu0
      %v1595 = vadd.f32 %v1303, %v1594
      %v1596 = vpop.f32.mrf.mxu0
      %v1597 = vpop.f32.mrf.mxu0
      %v1598 = vadd.f32 %v1306, %v1597
      %v1599 = vpop.f32.mrf.mxu0
      %1600 = vmatprep.mubr.bf16.mxu0 0
      %1601 = vmatmul.mubr.bf16.gmra.mxu0 %v1473
      %v1602 = vpop.f32.mrf.mxu0
      %v1603 = vadd.f32 %v1311, %v1602
      %v1604 = vpop.f32.mrf.mxu0
      %v1605 = vpop.f32.mrf.mxu0
      %v1606 = vadd.f32 %v1314, %v1605
      %v1607 = vpop.f32.mrf.mxu0
      %1608 = vmatprep.mubr.bf16.mxu0 0
      %1609 = vmatmul.mubr.bf16.gmra.mxu0 %v1476
      %v1610 = vpop.f32.mrf.mxu0
      %v1611 = vadd.f32 %v1319, %v1610
      %v1612 = vpop.f32.mrf.mxu0
      %v1613 = vpop.f32.mrf.mxu0
      %v1614 = vadd.f32 %v1322, %v1613
      %v1615 = vpop.f32.mrf.mxu0
      %1616 = vmatprep.mubr.bf16.mxu0 0
      %1617 = vmatmul.mubr.bf16.gmra.mxu0 %v1479
      %v1618 = vpop.f32.mrf.mxu0
      %v1619 = vadd.f32 %v1327, %v1618
      %v1620 = vpop.f32.mrf.mxu0
      %v1621 = vpop.f32.mrf.mxu0
      %v1622 = vadd.f32 %v1330, %v1621
      %v1623 = vpop.f32.mrf.mxu0
      %1624 = vmatprep.mubr.bf16.mxu0 0
      %1625 = vmatmul.mubr.bf16.gmra.mxu0 %v1482
      %v1626 = vpop.f32.mrf.mxu0
      %v1627 = vadd.f32 %v1335, %v1626
      %v1628 = vpop.f32.mrf.mxu0
      %v1629 = vpop.f32.mrf.mxu0
      %v1630 = vadd.f32 %v1338, %v1629
      %v1631 = vpop.f32.mrf.mxu0
      %1632 = vmatprep.mubr.bf16.mxu0 0
      %1633 = vmatmul.mubr.bf16.gmra.mxu0 %v1485
      %v1634 = vpop.f32.mrf.mxu0
      %v1635 = vadd.f32 %v1343, %v1634
      %v1636 = vpop.f32.mrf.mxu0
      %v1637 = vpop.f32.mrf.mxu0
      %v1638 = vadd.f32 %v1346, %v1637
      %v1639 = vpop.f32.mrf.mxu0
      %1640 = vmatprep.mubr.bf16.mxu0 0
      %1641 = vmatmul.mubr.bf16.gmra.mxu0 %v1488
      %v1642 = vpop.f32.mrf.mxu0
      %v1643 = vadd.f32 %v1351, %v1642
      %v1644 = vpop.f32.mrf.mxu0
      %v1645 = vpop.f32.mrf.mxu0
      %v1646 = vadd.f32 %v1354, %v1645
      %v1647 = vpop.f32.mrf.mxu0
      %1648 = vmatprep.mubr.bf16.mxu0 0
      %1649 = vmatmul.mubr.bf16.gmra.mxu0 %v1491
      %v1650 = vpop.f32.mrf.mxu0
      %v1651 = vadd.f32 %v1359, %v1650
      %v1652 = vpop.f32.mrf.mxu0
      %v1653 = vpop.f32.mrf.mxu0
      %v1654 = vadd.f32 %v1362, %v1653
      %v1655 = vpop.f32.mrf.mxu0
      %1656 = vdwg.mxu0
      %v1657 = vld [vmem:[%s260] sm:$0xf]
      %v1658 = vld [vmem:[%s260 + $0x4] sm:$0xf]
      %v1659 = vld [vmem:[%s260 + $0x8] sm:$0xf]
      %v1660 = vld [vmem:[%s260 + $0xc] sm:$0xf]
      %v1661 = vld [vmem:[%s260 + $0x10] sm:$0xf]
      %v1662 = vld [vmem:[%s260 + $0x14] sm:$0xf]
      %v1663 = vld [vmem:[%s260 + $0x18] sm:$0xf]
      %v1664 = vld [vmem:[%s260 + $0x1c] sm:$0xf]
      %v1665 = vld [vmem:[%s260 + $0x20] sm:$0xf]
      %v1666 = vld [vmem:[%s260 + $0x24] sm:$0xf]
      %v1667 = vld [vmem:[%s260 + $0x28] sm:$0xf]
      %v1668 = vld [vmem:[%s260 + $0x2c] sm:$0xf]
      %v1669 = vld [vmem:[%s260 + $0x30] sm:$0xf]
      %v1670 = vld [vmem:[%s260 + $0x34] sm:$0xf]
      %v1671 = vld [vmem:[%s260 + $0x38] sm:$0xf]
      %v1672 = vld [vmem:[%s260 + $0x3c] sm:$0xf]
      %v1673 = vld [vmem:[%s260 + $0x40] sm:$0xf]
      %v1674 = vld [vmem:[%s260 + $0x44] sm:$0xf]
      %v1675 = vld [vmem:[%s260 + $0x48] sm:$0xf]
      %v1676 = vld [vmem:[%s260 + $0x4c] sm:$0xf]
      %v1677 = vld [vmem:[%s260 + $0x50] sm:$0xf]
      %v1678 = vld [vmem:[%s260 + $0x54] sm:$0xf]
      %v1679 = vld [vmem:[%s260 + $0x58] sm:$0xf]
      %v1680 = vld [vmem:[%s260 + $0x5c] sm:$0xf]
      %v1681 = vld [vmem:[%s260 + $0x60] sm:$0xf]
      %v1682 = vld [vmem:[%s260 + $0x64] sm:$0xf]
      %v1683 = vld [vmem:[%s260 + $0x68] sm:$0xf]
      %v1684 = vld [vmem:[%s260 + $0x6c] sm:$0xf]
      %v1685 = vld [vmem:[%s260 + $0x70] sm:$0xf]
      %v1686 = vld [vmem:[%s260 + $0x74] sm:$0xf]
      %v1687 = vld [vmem:[%s260 + $0x78] sm:$0xf]
      %v1688 = vld [vmem:[%s260 + $0x7c] sm:$0xf]
      %s1689 = scalar_lea.vmem %s1, 4
      %v1690 = vld [vmem:[%s1689] sm:$0x3]
      %v1723 = vunpack.c.l.b16 %v1657
      %v1724 = vunpack.c.l.b16 %v1658
      %v1725 = vunpack.c.l.b16 %v1659
      %v1726 = vunpack.c.l.b16 %v1660
      %v1727 = vunpack.c.l.b16 %v1661
      %v1728 = vunpack.c.l.b16 %v1662
      %v1729 = vunpack.c.l.b16 %v1663
      %v1730 = vunpack.c.l.b16 %v1664
      %v1731 = vunpack.c.l.b16 %v1665
      %v1732 = vunpack.c.l.b16 %v1666
      %v1733 = vunpack.c.l.b16 %v1667
      %v1734 = vunpack.c.l.b16 %v1668
      %v1735 = vunpack.c.l.b16 %v1669
      %v1736 = vunpack.c.l.b16 %v1670
      %v1737 = vunpack.c.l.b16 %v1671
      %v1738 = vunpack.c.l.b16 %v1672
      %v1739 = vunpack.c.l.b16 %v1673
      %v1740 = vunpack.c.l.b16 %v1674
      %v1741 = vunpack.c.l.b16 %v1675
      %v1742 = vunpack.c.l.b16 %v1676
      %v1743 = vunpack.c.l.b16 %v1677
      %v1744 = vunpack.c.l.b16 %v1678
      %v1745 = vunpack.c.l.b16 %v1679
      %v1746 = vunpack.c.l.b16 %v1680
      %v1747 = vunpack.c.l.b16 %v1681
      %v1748 = vunpack.c.l.b16 %v1682
      %v1749 = vunpack.c.l.b16 %v1683
      %v1750 = vunpack.c.l.b16 %v1684
      %v1751 = vunpack.c.l.b16 %v1685
      %v1752 = vunpack.c.l.b16 %v1686
      %v1753 = vunpack.c.l.b16 %v1687
      %v1754 = vunpack.c.l.b16 %v1688
      %v1755 = vpack.c.b16 %v1724, %v1723
      %v1756 = vpack.c.b16 %v1726, %v1725
      %v1757 = vpack.c.b16 %v1728, %v1727
      %v1758 = vpack.c.b16 %v1730, %v1729
      %v1759 = vpack.c.b16 %v1732, %v1731
      %v1760 = vpack.c.b16 %v1734, %v1733
      %v1761 = vpack.c.b16 %v1736, %v1735
      %v1762 = vpack.c.b16 %v1738, %v1737
      %v1763 = vpack.c.b16 %v1740, %v1739
      %v1764 = vpack.c.b16 %v1742, %v1741
      %v1765 = vpack.c.b16 %v1744, %v1743
      %v1766 = vpack.c.b16 %v1746, %v1745
      %v1767 = vpack.c.b16 %v1748, %v1747
      %v1768 = vpack.c.b16 %v1750, %v1749
      %v1769 = vpack.c.b16 %v1752, %v1751
      %v1770 = vpack.c.b16 %v1754, %v1753
      %v1772 = vsel %vm1151, %v1755, 0
      %v1775 = vsel %vm1151, %v1756, 0
      %v1778 = vsel %vm1151, %v1757, 0
      %v1781 = vsel %vm1151, %v1758, 0
      %v1784 = vsel %vm1151, %v1759, 0
      %v1787 = vsel %vm1151, %v1760, 0
      %v1790 = vsel %vm1151, %v1761, 0
      %v1793 = vsel %vm1151, %v1762, 0
      %v1796 = vsel %vm1151, %v1763, 0
      %v1799 = vsel %vm1151, %v1764, 0
      %v1802 = vsel %vm1151, %v1765, 0
      %v1805 = vsel %vm1151, %v1766, 0
      %v1808 = vsel %vm1151, %v1767, 0
      %v1811 = vsel %vm1151, %v1768, 0
      %v1814 = vsel %vm1151, %v1769, 0
      %v1817 = vsel %vm1151, %v1770, 0
      %v1820 = vsel %vm1200, %v1690, 0
      %1822 = vmatprep.subr.bf16.mxu0 0
      %1823 = vmatpush1.bf16.msra.mxu0 0
      %1824 = vmatprep.subr.bf16.mxu0 0
      %1825 = vmatpush1.bf16.msra.mxu0 0
      %1826 = vmatprep.subr.bf16.mxu0 0
      %1827 = vmatpush1.bf16.msra.mxu0 0
      %1828 = vmatprep.subr.bf16.mxu0 0
      %1829 = vmatpush1.bf16.msra.mxu0 0
      %1830 = vmatprep.subr.bf16.mxu0 0
      %1831 = vmatpush1.bf16.msra.mxu0 0
      %1832 = vmatprep.subr.bf16.mxu0 0
      %1833 = vmatpush1.bf16.msra.mxu0 0
      %1834 = vmatprep.subr.bf16.mxu0 0
      %1835 = vmatpush1.bf16.msra.mxu0 0
      %1836 = vmatprep.subr.bf16.mxu0 0
      %1837 = vmatpush1.bf16.msra.mxu0 %v1820
      %1838 = vmatprep.subr.bf16.mxu0 0
      %1839 = vmatpush2.bf16.msra.mxu0 0
      %1840 = vmatprep.subr.bf16.mxu0 0
      %1841 = vmatpush2.bf16.msra.mxu0 0
      %1842 = vmatprep.subr.bf16.mxu0 0
      %1843 = vmatpush2.bf16.msra.mxu0 0
      %1844 = vmatprep.subr.bf16.mxu0 0
      %1845 = vmatpush2.bf16.msra.mxu0 0
      %1846 = vmatprep.subr.bf16.mxu0 0
      %1847 = vmatpush2.bf16.msra.mxu0 0
      %1848 = vmatprep.subr.bf16.mxu0 0
      %1849 = vmatpush2.bf16.msra.mxu0 0
      %1850 = vmatprep.subr.bf16.mxu0 0
      %1851 = vmatpush2.bf16.msra.mxu0 0
      %1852 = vmatprep.subr.bf16.mxu0 0
      %1853 = vmatpush2.bf16.msra.mxu0 0
      %1854 = vmatprep.mubr.bf16.mxu0 0
      %1855 = vmatmul.mubr.bf16.gmra.mxu0 %v1772
      %v1856 = vpop.f32.mrf.mxu0
      %v1857 = vadd.f32 0.0, %v1856
      %v1858 = vpop.f32.mrf.mxu0
      %v1859 = vpop.f32.mrf.mxu0
      %v1860 = vadd.f32 0.0, %v1859
      %v1861 = vpop.f32.mrf.mxu0
      %1862 = vmatprep.mubr.bf16.mxu0 0
      %1863 = vmatmul.mubr.bf16.gmra.mxu0 %v1775
      %v1864 = vpop.f32.mrf.mxu0
      %v1865 = vadd.f32 0.0, %v1864
      %v1866 = vpop.f32.mrf.mxu0
      %v1867 = vpop.f32.mrf.mxu0
      %v1868 = vadd.f32 0.0, %v1867
      %v1869 = vpop.f32.mrf.mxu0
      %1870 = vmatprep.mubr.bf16.mxu0 0
      %1871 = vmatmul.mubr.bf16.gmra.mxu0 %v1778
      %v1872 = vpop.f32.mrf.mxu0
      %v1873 = vadd.f32 0.0, %v1872
      %v1874 = vpop.f32.mrf.mxu0
      %v1875 = vpop.f32.mrf.mxu0
      %v1876 = vadd.f32 0.0, %v1875
      %v1877 = vpop.f32.mrf.mxu0
      %1878 = vmatprep.mubr.bf16.mxu0 0
      %1879 = vmatmul.mubr.bf16.gmra.mxu0 %v1781
      %v1880 = vpop.f32.mrf.mxu0
      %v1881 = vadd.f32 0.0, %v1880
      %v1882 = vpop.f32.mrf.mxu0
      %v1883 = vpop.f32.mrf.mxu0
      %v1884 = vadd.f32 0.0, %v1883
      %v1885 = vpop.f32.mrf.mxu0
      %1886 = vmatprep.mubr.bf16.mxu0 0
      %1887 = vmatmul.mubr.bf16.gmra.mxu0 %v1784
      %v1888 = vpop.f32.mrf.mxu0
      %v1889 = vadd.f32 0.0, %v1888
      %v1890 = vpop.f32.mrf.mxu0
      %v1891 = vpop.f32.mrf.mxu0
      %v1892 = vadd.f32 0.0, %v1891
      %v1893 = vpop.f32.mrf.mxu0
      %1894 = vmatprep.mubr.bf16.mxu0 0
      %1895 = vmatmul.mubr.bf16.gmra.mxu0 %v1787
      %v1896 = vpop.f32.mrf.mxu0
      %v1897 = vadd.f32 0.0, %v1896
      %v1898 = vpop.f32.mrf.mxu0
      %v1899 = vpop.f32.mrf.mxu0
      %v1900 = vadd.f32 0.0, %v1899
      %v1901 = vpop.f32.mrf.mxu0
      %1902 = vmatprep.mubr.bf16.mxu0 0
      %1903 = vmatmul.mubr.bf16.gmra.mxu0 %v1790
      %v1904 = vpop.f32.mrf.mxu0
      %v1905 = vadd.f32 0.0, %v1904
      %v1906 = vpop.f32.mrf.mxu0
      %v1907 = vpop.f32.mrf.mxu0
      %v1908 = vadd.f32 0.0, %v1907
      %v1909 = vpop.f32.mrf.mxu0
      %1910 = vmatprep.mubr.bf16.mxu0 0
      %1911 = vmatmul.mubr.bf16.gmra.mxu0 %v1793
      %v1912 = vpop.f32.mrf.mxu0
      %v1913 = vadd.f32 0.0, %v1912
      %v1914 = vpop.f32.mrf.mxu0
      %v1915 = vpop.f32.mrf.mxu0
      %v1916 = vadd.f32 0.0, %v1915
      %v1917 = vpop.f32.mrf.mxu0
      %1918 = vmatprep.mubr.bf16.mxu0 0
      %1919 = vmatmul.mubr.bf16.gmra.mxu0 %v1796
      %v1920 = vpop.f32.mrf.mxu0
      %v1921 = vadd.f32 0.0, %v1920
      %v1922 = vpop.f32.mrf.mxu0
      %v1923 = vpop.f32.mrf.mxu0
      %v1924 = vadd.f32 0.0, %v1923
      %v1925 = vpop.f32.mrf.mxu0
      %1926 = vmatprep.mubr.bf16.mxu0 0
      %1927 = vmatmul.mubr.bf16.gmra.mxu0 %v1799
      %v1928 = vpop.f32.mrf.mxu0
      %v1929 = vadd.f32 0.0, %v1928
      %v1930 = vpop.f32.mrf.mxu0
      %v1931 = vpop.f32.mrf.mxu0
      %v1932 = vadd.f32 0.0, %v1931
      %v1933 = vpop.f32.mrf.mxu0
      %1934 = vmatprep.mubr.bf16.mxu0 0
      %1935 = vmatmul.mubr.bf16.gmra.mxu0 %v1802
      %v1936 = vpop.f32.mrf.mxu0
      %v1937 = vadd.f32 0.0, %v1936
      %v1938 = vpop.f32.mrf.mxu0
      %v1939 = vpop.f32.mrf.mxu0
      %v1940 = vadd.f32 0.0, %v1939
      %v1941 = vpop.f32.mrf.mxu0
      %1942 = vmatprep.mubr.bf16.mxu0 0
      %1943 = vmatmul.mubr.bf16.gmra.mxu0 %v1805
      %v1944 = vpop.f32.mrf.mxu0
      %v1945 = vadd.f32 0.0, %v1944
      %v1946 = vpop.f32.mrf.mxu0
      %v1947 = vpop.f32.mrf.mxu0
      %v1948 = vadd.f32 0.0, %v1947
      %v1949 = vpop.f32.mrf.mxu0
      %1950 = vmatprep.mubr.bf16.mxu0 0
      %1951 = vmatmul.mubr.bf16.gmra.mxu0 %v1808
      %v1952 = vpop.f32.mrf.mxu0
      %v1953 = vadd.f32 0.0, %v1952
      %v1954 = vpop.f32.mrf.mxu0
      %v1955 = vpop.f32.mrf.mxu0
      %v1956 = vadd.f32 0.0, %v1955
      %v1957 = vpop.f32.mrf.mxu0
      %1958 = vmatprep.mubr.bf16.mxu0 0
      %1959 = vmatmul.mubr.bf16.gmra.mxu0 %v1811
      %v1960 = vpop.f32.mrf.mxu0
      %v1961 = vadd.f32 0.0, %v1960
      %v1962 = vpop.f32.mrf.mxu0
      %v1963 = vpop.f32.mrf.mxu0
      %v1964 = vadd.f32 0.0, %v1963
      %v1965 = vpop.f32.mrf.mxu0
      %1966 = vmatprep.mubr.bf16.mxu0 0
      %1967 = vmatmul.mubr.bf16.gmra.mxu0 %v1814
      %v1968 = vpop.f32.mrf.mxu0
      %v1969 = vadd.f32 0.0, %v1968
      %v1970 = vpop.f32.mrf.mxu0
      %v1971 = vpop.f32.mrf.mxu0
      %v1972 = vadd.f32 0.0, %v1971
      %v1973 = vpop.f32.mrf.mxu0
      %1974 = vmatprep.mubr.bf16.mxu0 0
      %1975 = vmatmul.mubr.bf16.gmra.mxu0 %v1817
      %v1976 = vpop.f32.mrf.mxu0
      %v1977 = vadd.f32 0.0, %v1976
      %v1978 = vpop.f32.mrf.mxu0
      %v1979 = vpop.f32.mrf.mxu0
      %v1980 = vadd.f32 0.0, %v1979
      %v1981 = vpop.f32.mrf.mxu0
      %1982 = vdwg.mxu0
      %v1983 = vadd.f32 %v1531, %v1857
      %v1984 = vadd.f32 %v1534, %v1860
      %v1985 = vadd.f32 %v1539, %v1865
      %v1986 = vadd.f32 %v1542, %v1868
      %v1987 = vadd.f32 %v1547, %v1873
      %v1988 = vadd.f32 %v1550, %v1876
      %v1989 = vadd.f32 %v1555, %v1881
      %v1990 = vadd.f32 %v1558, %v1884
      %v1991 = vadd.f32 %v1563, %v1889
      %v1992 = vadd.f32 %v1566, %v1892
      %v1993 = vadd.f32 %v1571, %v1897
      %v1994 = vadd.f32 %v1574, %v1900
      %v1995 = vadd.f32 %v1579, %v1905
      %v1996 = vadd.f32 %v1582, %v1908
      %v1997 = vadd.f32 %v1587, %v1913
      %v1998 = vadd.f32 %v1590, %v1916
      %v1999 = vadd.f32 %v1595, %v1921
      %v2000 = vadd.f32 %v1598, %v1924
      %v2001 = vadd.f32 %v1603, %v1929
      %v2002 = vadd.f32 %v1606, %v1932
      %v2003 = vadd.f32 %v1611, %v1937
      %v2004 = vadd.f32 %v1614, %v1940
      %v2005 = vadd.f32 %v1619, %v1945
      %v2006 = vadd.f32 %v1622, %v1948
      %v2007 = vadd.f32 %v1627, %v1953
      %v2008 = vadd.f32 %v1630, %v1956
      %v2009 = vadd.f32 %v1635, %v1961
      %v2010 = vadd.f32 %v1638, %v1964
      %v2011 = vadd.f32 %v1643, %v1969
      %v2012 = vadd.f32 %v1646, %v1972
      %v2013 = vadd.f32 %v1651, %v1977
      %v2014 = vadd.f32 %v1654, %v1980
      %v2015 = vld [vmem:[%s266] sm:$0xf]
      %v2016 = vld [vmem:[%s266 + $0x4] sm:$0xf]
      %v2017 = vld [vmem:[%s266 + $0x8] sm:$0xf]
      %v2018 = vld [vmem:[%s266 + $0xc] sm:$0xf]
      %v2019 = vld [vmem:[%s266 + $0x10] sm:$0xf]
      %v2020 = vld [vmem:[%s266 + $0x14] sm:$0xf]
      %v2021 = vld [vmem:[%s266 + $0x18] sm:$0xf]
      %v2022 = vld [vmem:[%s266 + $0x1c] sm:$0xf]
      %v2023 = vld [vmem:[%s266 + $0x20] sm:$0xf]
      %v2024 = vld [vmem:[%s266 + $0x24] sm:$0xf]
      %v2025 = vld [vmem:[%s266 + $0x28] sm:$0xf]
      %v2026 = vld [vmem:[%s266 + $0x2c] sm:$0xf]
      %v2027 = vld [vmem:[%s266 + $0x30] sm:$0xf]
      %v2028 = vld [vmem:[%s266 + $0x34] sm:$0xf]
      %v2029 = vld [vmem:[%s266 + $0x38] sm:$0xf]
      %v2030 = vld [vmem:[%s266 + $0x3c] sm:$0xf]
      %v2031 = vld [vmem:[%s266 + $0x40] sm:$0xf]
      %v2032 = vld [vmem:[%s266 + $0x44] sm:$0xf]
      %v2033 = vld [vmem:[%s266 + $0x48] sm:$0xf]
      %v2034 = vld [vmem:[%s266 + $0x4c] sm:$0xf]
      %v2035 = vld [vmem:[%s266 + $0x50] sm:$0xf]
      %v2036 = vld [vmem:[%s266 + $0x54] sm:$0xf]
      %v2037 = vld [vmem:[%s266 + $0x58] sm:$0xf]
      %v2038 = vld [vmem:[%s266 + $0x5c] sm:$0xf]
      %v2039 = vld [vmem:[%s266 + $0x60] sm:$0xf]
      %v2040 = vld [vmem:[%s266 + $0x64] sm:$0xf]
      %v2041 = vld [vmem:[%s266 + $0x68] sm:$0xf]
      %v2042 = vld [vmem:[%s266 + $0x6c] sm:$0xf]
      %v2043 = vld [vmem:[%s266 + $0x70] sm:$0xf]
      %v2044 = vld [vmem:[%s266 + $0x74] sm:$0xf]
      %v2045 = vld [vmem:[%s266 + $0x78] sm:$0xf]
      %v2046 = vld [vmem:[%s266 + $0x7c] sm:$0xf]
      %s2047 = scalar_lea.vmem %s1, 6
      %v2048 = vld [vmem:[%s2047] sm:$0x3]
      %v2081 = vunpack.c.l.b16 %v2015
      %v2082 = vunpack.c.l.b16 %v2016
      %v2083 = vunpack.c.l.b16 %v2017
      %v2084 = vunpack.c.l.b16 %v2018
      %v2085 = vunpack.c.l.b16 %v2019
      %v2086 = vunpack.c.l.b16 %v2020
      %v2087 = vunpack.c.l.b16 %v2021
      %v2088 = vunpack.c.l.b16 %v2022
      %v2089 = vunpack.c.l.b16 %v2023
      %v2090 = vunpack.c.l.b16 %v2024
      %v2091 = vunpack.c.l.b16 %v2025
      %v2092 = vunpack.c.l.b16 %v2026
      %v2093 = vunpack.c.l.b16 %v2027
      %v2094 = vunpack.c.l.b16 %v2028
      %v2095 = vunpack.c.l.b16 %v2029
      %v2096 = vunpack.c.l.b16 %v2030
      %v2097 = vunpack.c.l.b16 %v2031
      %v2098 = vunpack.c.l.b16 %v2032
      %v2099 = vunpack.c.l.b16 %v2033
      %v2100 = vunpack.c.l.b16 %v2034
      %v2101 = vunpack.c.l.b16 %v2035
      %v2102 = vunpack.c.l.b16 %v2036
      %v2103 = vunpack.c.l.b16 %v2037
      %v2104 = vunpack.c.l.b16 %v2038
      %v2105 = vunpack.c.l.b16 %v2039
      %v2106 = vunpack.c.l.b16 %v2040
      %v2107 = vunpack.c.l.b16 %v2041
      %v2108 = vunpack.c.l.b16 %v2042
      %v2109 = vunpack.c.l.b16 %v2043
      %v2110 = vunpack.c.l.b16 %v2044
      %v2111 = vunpack.c.l.b16 %v2045
      %v2112 = vunpack.c.l.b16 %v2046
      %v2113 = vpack.c.b16 %v2082, %v2081
      %v2114 = vpack.c.b16 %v2084, %v2083
      %v2115 = vpack.c.b16 %v2086, %v2085
      %v2116 = vpack.c.b16 %v2088, %v2087
      %v2117 = vpack.c.b16 %v2090, %v2089
      %v2118 = vpack.c.b16 %v2092, %v2091
      %v2119 = vpack.c.b16 %v2094, %v2093
      %v2120 = vpack.c.b16 %v2096, %v2095
      %v2121 = vpack.c.b16 %v2098, %v2097
      %v2122 = vpack.c.b16 %v2100, %v2099
      %v2123 = vpack.c.b16 %v2102, %v2101
      %v2124 = vpack.c.b16 %v2104, %v2103
      %v2125 = vpack.c.b16 %v2106, %v2105
      %v2126 = vpack.c.b16 %v2108, %v2107
      %v2127 = vpack.c.b16 %v2110, %v2109
      %v2128 = vpack.c.b16 %v2112, %v2111
      %v2130 = vsel %vm1151, %v2113, 0
      %v2133 = vsel %vm1151, %v2114, 0
      %v2136 = vsel %vm1151, %v2115, 0
      %v2139 = vsel %vm1151, %v2116, 0
      %v2142 = vsel %vm1151, %v2117, 0
      %v2145 = vsel %vm1151, %v2118, 0
      %v2148 = vsel %vm1151, %v2119, 0
      %v2151 = vsel %vm1151, %v2120, 0
      %v2154 = vsel %vm1151, %v2121, 0
      %v2157 = vsel %vm1151, %v2122, 0
      %v2160 = vsel %vm1151, %v2123, 0
      %v2163 = vsel %vm1151, %v2124, 0
      %v2166 = vsel %vm1151, %v2125, 0
      %v2169 = vsel %vm1151, %v2126, 0
      %v2172 = vsel %vm1151, %v2127, 0
      %v2175 = vsel %vm1151, %v2128, 0
      %v2178 = vsel %vm1200, %v2048, 0
      %2180 = vmatprep.subr.bf16.mxu0 0
      %2181 = vmatpush1.bf16.msra.mxu0 0
      %2182 = vmatprep.subr.bf16.mxu0 0
      %2183 = vmatpush1.bf16.msra.mxu0 0
      %2184 = vmatprep.subr.bf16.mxu0 0
      %2185 = vmatpush1.bf16.msra.mxu0 0
      %2186 = vmatprep.subr.bf16.mxu0 0
      %2187 = vmatpush1.bf16.msra.mxu0 0
      %2188 = vmatprep.subr.bf16.mxu0 0
      %2189 = vmatpush1.bf16.msra.mxu0 0
      %2190 = vmatprep.subr.bf16.mxu0 0
      %2191 = vmatpush1.bf16.msra.mxu0 0
      %2192 = vmatprep.subr.bf16.mxu0 0
      %2193 = vmatpush1.bf16.msra.mxu0 0
      %2194 = vmatprep.subr.bf16.mxu0 0
      %2195 = vmatpush1.bf16.msra.mxu0 %v2178
      %2196 = vmatprep.subr.bf16.mxu0 0
      %2197 = vmatpush2.bf16.msra.mxu0 0
      %2198 = vmatprep.subr.bf16.mxu0 0
      %2199 = vmatpush2.bf16.msra.mxu0 0
      %2200 = vmatprep.subr.bf16.mxu0 0
      %2201 = vmatpush2.bf16.msra.mxu0 0
      %2202 = vmatprep.subr.bf16.mxu0 0
      %2203 = vmatpush2.bf16.msra.mxu0 0
      %2204 = vmatprep.subr.bf16.mxu0 0
      %2205 = vmatpush2.bf16.msra.mxu0 0
      %2206 = vmatprep.subr.bf16.mxu0 0
      %2207 = vmatpush2.bf16.msra.mxu0 0
      %2208 = vmatprep.subr.bf16.mxu0 0
      %2209 = vmatpush2.bf16.msra.mxu0 0
      %2210 = vmatprep.subr.bf16.mxu0 0
      %2211 = vmatpush2.bf16.msra.mxu0 0
      %2212 = vmatprep.mubr.bf16.mxu0 0
      %2213 = vmatmul.mubr.bf16.gmra.mxu0 %v2130
      %v2214 = vpop.f32.mrf.mxu0
      %v2215 = vadd.f32 0.0, %v2214
      %v2216 = vpop.f32.mrf.mxu0
      %v2217 = vpop.f32.mrf.mxu0
      %v2218 = vadd.f32 0.0, %v2217
      %v2219 = vpop.f32.mrf.mxu0
      %2220 = vmatprep.mubr.bf16.mxu0 0
      %2221 = vmatmul.mubr.bf16.gmra.mxu0 %v2133
      %v2222 = vpop.f32.mrf.mxu0
      %v2223 = vadd.f32 0.0, %v2222
      %v2224 = vpop.f32.mrf.mxu0
      %v2225 = vpop.f32.mrf.mxu0
      %v2226 = vadd.f32 0.0, %v2225
      %v2227 = vpop.f32.mrf.mxu0
      %2228 = vmatprep.mubr.bf16.mxu0 0
      %2229 = vmatmul.mubr.bf16.gmra.mxu0 %v2136
      %v2230 = vpop.f32.mrf.mxu0
      %v2231 = vadd.f32 0.0, %v2230
      %v2232 = vpop.f32.mrf.mxu0
      %v2233 = vpop.f32.mrf.mxu0
      %v2234 = vadd.f32 0.0, %v2233
      %v2235 = vpop.f32.mrf.mxu0
      %2236 = vmatprep.mubr.bf16.mxu0 0
      %2237 = vmatmul.mubr.bf16.gmra.mxu0 %v2139
      %v2238 = vpop.f32.mrf.mxu0
      %v2239 = vadd.f32 0.0, %v2238
      %v2240 = vpop.f32.mrf.mxu0
      %v2241 = vpop.f32.mrf.mxu0
      %v2242 = vadd.f32 0.0, %v2241
      %v2243 = vpop.f32.mrf.mxu0
      %2244 = vmatprep.mubr.bf16.mxu0 0
      %2245 = vmatmul.mubr.bf16.gmra.mxu0 %v2142
      %v2246 = vpop.f32.mrf.mxu0
      %v2247 = vadd.f32 0.0, %v2246
      %v2248 = vpop.f32.mrf.mxu0
      %v2249 = vpop.f32.mrf.mxu0
      %v2250 = vadd.f32 0.0, %v2249
      %v2251 = vpop.f32.mrf.mxu0
      %2252 = vmatprep.mubr.bf16.mxu0 0
      %2253 = vmatmul.mubr.bf16.gmra.mxu0 %v2145
      %v2254 = vpop.f32.mrf.mxu0
      %v2255 = vadd.f32 0.0, %v2254
      %v2256 = vpop.f32.mrf.mxu0
      %v2257 = vpop.f32.mrf.mxu0
      %v2258 = vadd.f32 0.0, %v2257
      %v2259 = vpop.f32.mrf.mxu0
      %2260 = vmatprep.mubr.bf16.mxu0 0
      %2261 = vmatmul.mubr.bf16.gmra.mxu0 %v2148
      %v2262 = vpop.f32.mrf.mxu0
      %v2263 = vadd.f32 0.0, %v2262
      %v2264 = vpop.f32.mrf.mxu0
      %v2265 = vpop.f32.mrf.mxu0
      %v2266 = vadd.f32 0.0, %v2265
      %v2267 = vpop.f32.mrf.mxu0
      %2268 = vmatprep.mubr.bf16.mxu0 0
      %2269 = vmatmul.mubr.bf16.gmra.mxu0 %v2151
      %v2270 = vpop.f32.mrf.mxu0
      %v2271 = vadd.f32 0.0, %v2270
      %v2272 = vpop.f32.mrf.mxu0
      %v2273 = vpop.f32.mrf.mxu0
      %v2274 = vadd.f32 0.0, %v2273
      %v2275 = vpop.f32.mrf.mxu0
      %2276 = vmatprep.mubr.bf16.mxu0 0
      %2277 = vmatmul.mubr.bf16.gmra.mxu0 %v2154
      %v2278 = vpop.f32.mrf.mxu0
      %v2279 = vadd.f32 0.0, %v2278
      %v2280 = vpop.f32.mrf.mxu0
      %v2281 = vpop.f32.mrf.mxu0
      %v2282 = vadd.f32 0.0, %v2281
      %v2283 = vpop.f32.mrf.mxu0
      %2284 = vmatprep.mubr.bf16.mxu0 0
      %2285 = vmatmul.mubr.bf16.gmra.mxu0 %v2157
      %v2286 = vpop.f32.mrf.mxu0
      %v2287 = vadd.f32 0.0, %v2286
      %v2288 = vpop.f32.mrf.mxu0
      %v2289 = vpop.f32.mrf.mxu0
      %v2290 = vadd.f32 0.0, %v2289
      %v2291 = vpop.f32.mrf.mxu0
      %2292 = vmatprep.mubr.bf16.mxu0 0
      %2293 = vmatmul.mubr.bf16.gmra.mxu0 %v2160
      %v2294 = vpop.f32.mrf.mxu0
      %v2295 = vadd.f32 0.0, %v2294
      %v2296 = vpop.f32.mrf.mxu0
      %v2297 = vpop.f32.mrf.mxu0
      %v2298 = vadd.f32 0.0, %v2297
      %v2299 = vpop.f32.mrf.mxu0
      %2300 = vmatprep.mubr.bf16.mxu0 0
      %2301 = vmatmul.mubr.bf16.gmra.mxu0 %v2163
      %v2302 = vpop.f32.mrf.mxu0
      %v2303 = vadd.f32 0.0, %v2302
      %v2304 = vpop.f32.mrf.mxu0
      %v2305 = vpop.f32.mrf.mxu0
      %v2306 = vadd.f32 0.0, %v2305
      %v2307 = vpop.f32.mrf.mxu0
      %2308 = vmatprep.mubr.bf16.mxu0 0
      %2309 = vmatmul.mubr.bf16.gmra.mxu0 %v2166
      %v2310 = vpop.f32.mrf.mxu0
      %v2311 = vadd.f32 0.0, %v2310
      %v2312 = vpop.f32.mrf.mxu0
      %v2313 = vpop.f32.mrf.mxu0
      %v2314 = vadd.f32 0.0, %v2313
      %v2315 = vpop.f32.mrf.mxu0
      %2316 = vmatprep.mubr.bf16.mxu0 0
      %2317 = vmatmul.mubr.bf16.gmra.mxu0 %v2169
      %v2318 = vpop.f32.mrf.mxu0
      %v2319 = vadd.f32 0.0, %v2318
      %v2320 = vpop.f32.mrf.mxu0
      %v2321 = vpop.f32.mrf.mxu0
      %v2322 = vadd.f32 0.0, %v2321
      %v2323 = vpop.f32.mrf.mxu0
      %2324 = vmatprep.mubr.bf16.mxu0 0
      %2325 = vmatmul.mubr.bf16.gmra.mxu0 %v2172
      %v2326 = vpop.f32.mrf.mxu0
      %v2327 = vadd.f32 0.0, %v2326
      %v2328 = vpop.f32.mrf.mxu0
      %v2329 = vpop.f32.mrf.mxu0
      %v2330 = vadd.f32 0.0, %v2329
      %v2331 = vpop.f32.mrf.mxu0
      %2332 = vmatprep.mubr.bf16.mxu0 0
      %2333 = vmatmul.mubr.bf16.gmra.mxu0 %v2175
      %v2334 = vpop.f32.mrf.mxu0
      %v2335 = vadd.f32 0.0, %v2334
      %v2336 = vpop.f32.mrf.mxu0
      %v2337 = vpop.f32.mrf.mxu0
      %v2338 = vadd.f32 0.0, %v2337
      %v2339 = vpop.f32.mrf.mxu0
      %2340 = vdwg.mxu0
      %v2341 = vadd.f32 %v1983, %v2215
      %v2342 = vadd.f32 %v1984, %v2218
      %v2343 = vadd.f32 %v1985, %v2223
      %v2344 = vadd.f32 %v1986, %v2226
      %v2345 = vadd.f32 %v1987, %v2231
      %v2346 = vadd.f32 %v1988, %v2234
      %v2347 = vadd.f32 %v1989, %v2239
      %v2348 = vadd.f32 %v1990, %v2242
      %v2349 = vadd.f32 %v1991, %v2247
      %v2350 = vadd.f32 %v1992, %v2250
      %v2351 = vadd.f32 %v1993, %v2255
      %v2352 = vadd.f32 %v1994, %v2258
      %v2353 = vadd.f32 %v1995, %v2263
      %v2354 = vadd.f32 %v1996, %v2266
      %v2355 = vadd.f32 %v1997, %v2271
      %v2356 = vadd.f32 %v1998, %v2274
      %v2357 = vadd.f32 %v1999, %v2279
      %v2358 = vadd.f32 %v2000, %v2282
      %v2359 = vadd.f32 %v2001, %v2287
      %v2360 = vadd.f32 %v2002, %v2290
      %v2361 = vadd.f32 %v2003, %v2295
      %v2362 = vadd.f32 %v2004, %v2298
      %v2363 = vadd.f32 %v2005, %v2303
      %v2364 = vadd.f32 %v2006, %v2306
      %v2365 = vadd.f32 %v2007, %v2311
      %v2366 = vadd.f32 %v2008, %v2314
      %v2367 = vadd.f32 %v2009, %v2319
      %v2368 = vadd.f32 %v2010, %v2322
      %v2369 = vadd.f32 %v2011, %v2327
      %v2370 = vadd.f32 %v2012, %v2330
      %v2371 = vadd.f32 %v2013, %v2335
      %v2372 = vadd.f32 %v2014, %v2338
      %v2373 = vld [vmem:[%s675] sm:$0xf]
      %v2374 = vld [vmem:[%s675 + $0x4] sm:$0xf]
      %v2375 = vld [vmem:[%s675 + $0x8] sm:$0xf]
      %v2376 = vld [vmem:[%s675 + $0xc] sm:$0xf]
      %v2377 = vld [vmem:[%s675 + $0x10] sm:$0xf]
      %v2378 = vld [vmem:[%s675 + $0x14] sm:$0xf]
      %v2379 = vld [vmem:[%s675 + $0x18] sm:$0xf]
      %v2380 = vld [vmem:[%s675 + $0x1c] sm:$0xf]
      %v2381 = vld [vmem:[%s675 + $0x20] sm:$0xf]
      %v2382 = vld [vmem:[%s675 + $0x24] sm:$0xf]
      %v2383 = vld [vmem:[%s675 + $0x28] sm:$0xf]
      %v2384 = vld [vmem:[%s675 + $0x2c] sm:$0xf]
      %v2385 = vld [vmem:[%s675 + $0x30] sm:$0xf]
      %v2386 = vld [vmem:[%s675 + $0x34] sm:$0xf]
      %v2387 = vld [vmem:[%s675 + $0x38] sm:$0xf]
      %v2388 = vld [vmem:[%s675 + $0x3c] sm:$0xf]
      %v2389 = vld [vmem:[%s675 + $0x40] sm:$0xf]
      %v2390 = vld [vmem:[%s675 + $0x44] sm:$0xf]
      %v2391 = vld [vmem:[%s675 + $0x48] sm:$0xf]
      %v2392 = vld [vmem:[%s675 + $0x4c] sm:$0xf]
      %v2393 = vld [vmem:[%s675 + $0x50] sm:$0xf]
      %v2394 = vld [vmem:[%s675 + $0x54] sm:$0xf]
      %v2395 = vld [vmem:[%s675 + $0x58] sm:$0xf]
      %v2396 = vld [vmem:[%s675 + $0x5c] sm:$0xf]
      %v2397 = vld [vmem:[%s675 + $0x60] sm:$0xf]
      %v2398 = vld [vmem:[%s675 + $0x64] sm:$0xf]
      %v2399 = vld [vmem:[%s675 + $0x68] sm:$0xf]
      %v2400 = vld [vmem:[%s675 + $0x6c] sm:$0xf]
      %v2401 = vld [vmem:[%s675 + $0x70] sm:$0xf]
      %v2402 = vld [vmem:[%s675 + $0x74] sm:$0xf]
      %v2403 = vld [vmem:[%s675 + $0x78] sm:$0xf]
      %v2404 = vld [vmem:[%s675 + $0x7c] sm:$0xf]
      %s2405 = scalar_lea.vmem %s1, 8
      %v2406 = vld [vmem:[%s2405] sm:$0x3]
      %v2439 = vunpack.c.l.b16 %v2373
      %v2440 = vunpack.c.l.b16 %v2374
      %v2441 = vunpack.c.l.b16 %v2375
      %v2442 = vunpack.c.l.b16 %v2376
      %v2443 = vunpack.c.l.b16 %v2377
      %v2444 = vunpack.c.l.b16 %v2378
      %v2445 = vunpack.c.l.b16 %v2379
      %v2446 = vunpack.c.l.b16 %v2380
      %v2447 = vunpack.c.l.b16 %v2381
      %v2448 = vunpack.c.l.b16 %v2382
      %v2449 = vunpack.c.l.b16 %v2383
      %v2450 = vunpack.c.l.b16 %v2384
      %v2451 = vunpack.c.l.b16 %v2385
      %v2452 = vunpack.c.l.b16 %v2386
      %v2453 = vunpack.c.l.b16 %v2387
      %v2454 = vunpack.c.l.b16 %v2388
      %v2455 = vunpack.c.l.b16 %v2389
      %v2456 = vunpack.c.l.b16 %v2390
      %v2457 = vunpack.c.l.b16 %v2391
      %v2458 = vunpack.c.l.b16 %v2392
      %v2459 = vunpack.c.l.b16 %v2393
      %v2460 = vunpack.c.l.b16 %v2394
      %v2461 = vunpack.c.l.b16 %v2395
      %v2462 = vunpack.c.l.b16 %v2396
      %v2463 = vunpack.c.l.b16 %v2397
      %v2464 = vunpack.c.l.b16 %v2398
      %v2465 = vunpack.c.l.b16 %v2399
      %v2466 = vunpack.c.l.b16 %v2400
      %v2467 = vunpack.c.l.b16 %v2401
      %v2468 = vunpack.c.l.b16 %v2402
      %v2469 = vunpack.c.l.b16 %v2403
      %v2470 = vunpack.c.l.b16 %v2404
      %v2471 = vpack.c.b16 %v2440, %v2439
      %v2472 = vpack.c.b16 %v2442, %v2441
      %v2473 = vpack.c.b16 %v2444, %v2443
      %v2474 = vpack.c.b16 %v2446, %v2445
      %v2475 = vpack.c.b16 %v2448, %v2447
      %v2476 = vpack.c.b16 %v2450, %v2449
      %v2477 = vpack.c.b16 %v2452, %v2451
      %v2478 = vpack.c.b16 %v2454, %v2453
      %v2479 = vpack.c.b16 %v2456, %v2455
      %v2480 = vpack.c.b16 %v2458, %v2457
      %v2481 = vpack.c.b16 %v2460, %v2459
      %v2482 = vpack.c.b16 %v2462, %v2461
      %v2483 = vpack.c.b16 %v2464, %v2463
      %v2484 = vpack.c.b16 %v2466, %v2465
      %v2485 = vpack.c.b16 %v2468, %v2467
      %v2486 = vpack.c.b16 %v2470, %v2469
      %v2488 = vsel %vm1151, %v2471, 0
      %v2491 = vsel %vm1151, %v2472, 0
      %v2494 = vsel %vm1151, %v2473, 0
      %v2497 = vsel %vm1151, %v2474, 0
      %v2500 = vsel %vm1151, %v2475, 0
      %v2503 = vsel %vm1151, %v2476, 0
      %v2506 = vsel %vm1151, %v2477, 0
      %v2509 = vsel %vm1151, %v2478, 0
      %v2512 = vsel %vm1151, %v2479, 0
      %v2515 = vsel %vm1151, %v2480, 0
      %v2518 = vsel %vm1151, %v2481, 0
      %v2521 = vsel %vm1151, %v2482, 0
      %v2524 = vsel %vm1151, %v2483, 0
      %v2527 = vsel %vm1151, %v2484, 0
      %v2530 = vsel %vm1151, %v2485, 0
      %v2533 = vsel %vm1151, %v2486, 0
      %v2536 = vsel %vm1200, %v2406, 0
      %2538 = vmatprep.subr.bf16.mxu0 0
      %2539 = vmatpush1.bf16.msra.mxu0 0
      %2540 = vmatprep.subr.bf16.mxu0 0
      %2541 = vmatpush1.bf16.msra.mxu0 0
      %2542 = vmatprep.subr.bf16.mxu0 0
      %2543 = vmatpush1.bf16.msra.mxu0 0
      %2544 = vmatprep.subr.bf16.mxu0 0
      %2545 = vmatpush1.bf16.msra.mxu0 0
      %2546 = vmatprep.subr.bf16.mxu0 0
      %2547 = vmatpush1.bf16.msra.mxu0 0
      %2548 = vmatprep.subr.bf16.mxu0 0
      %2549 = vmatpush1.bf16.msra.mxu0 0
      %2550 = vmatprep.subr.bf16.mxu0 0
      %2551 = vmatpush1.bf16.msra.mxu0 0
      %2552 = vmatprep.subr.bf16.mxu0 0
      %2553 = vmatpush1.bf16.msra.mxu0 %v2536
      %2554 = vmatprep.subr.bf16.mxu0 0
      %2555 = vmatpush2.bf16.msra.mxu0 0
      %2556 = vmatprep.subr.bf16.mxu0 0
      %2557 = vmatpush2.bf16.msra.mxu0 0
      %2558 = vmatprep.subr.bf16.mxu0 0
      %2559 = vmatpush2.bf16.msra.mxu0 0
      %2560 = vmatprep.subr.bf16.mxu0 0
      %2561 = vmatpush2.bf16.msra.mxu0 0
      %2562 = vmatprep.subr.bf16.mxu0 0
      %2563 = vmatpush2.bf16.msra.mxu0 0
      %2564 = vmatprep.subr.bf16.mxu0 0
      %2565 = vmatpush2.bf16.msra.mxu0 0
      %2566 = vmatprep.subr.bf16.mxu0 0
      %2567 = vmatpush2.bf16.msra.mxu0 0
      %2568 = vmatprep.subr.bf16.mxu0 0
      %2569 = vmatpush2.bf16.msra.mxu0 0
      %2570 = vmatprep.mubr.bf16.mxu0 0
      %2571 = vmatmul.mubr.bf16.gmra.mxu0 %v2488
      %v2572 = vpop.f32.mrf.mxu0
      %v2573 = vadd.f32 0.0, %v2572
      %v2574 = vpop.f32.mrf.mxu0
      %v2575 = vpop.f32.mrf.mxu0
      %v2576 = vadd.f32 0.0, %v2575
      %v2577 = vpop.f32.mrf.mxu0
      %2578 = vmatprep.mubr.bf16.mxu0 0
      %2579 = vmatmul.mubr.bf16.gmra.mxu0 %v2491
      %v2580 = vpop.f32.mrf.mxu0
      %v2581 = vadd.f32 0.0, %v2580
      %v2582 = vpop.f32.mrf.mxu0
      %v2583 = vpop.f32.mrf.mxu0
      %v2584 = vadd.f32 0.0, %v2583
      %v2585 = vpop.f32.mrf.mxu0
      %2586 = vmatprep.mubr.bf16.mxu0 0
      %2587 = vmatmul.mubr.bf16.gmra.mxu0 %v2494
      %v2588 = vpop.f32.mrf.mxu0
      %v2589 = vadd.f32 0.0, %v2588
      %v2590 = vpop.f32.mrf.mxu0
      %v2591 = vpop.f32.mrf.mxu0
      %v2592 = vadd.f32 0.0, %v2591
      %v2593 = vpop.f32.mrf.mxu0
      %2594 = vmatprep.mubr.bf16.mxu0 0
      %2595 = vmatmul.mubr.bf16.gmra.mxu0 %v2497
      %v2596 = vpop.f32.mrf.mxu0
      %v2597 = vadd.f32 0.0, %v2596
      %v2598 = vpop.f32.mrf.mxu0
      %v2599 = vpop.f32.mrf.mxu0
      %v2600 = vadd.f32 0.0, %v2599
      %v2601 = vpop.f32.mrf.mxu0
      %2602 = vmatprep.mubr.bf16.mxu0 0
      %2603 = vmatmul.mubr.bf16.gmra.mxu0 %v2500
      %v2604 = vpop.f32.mrf.mxu0
      %v2605 = vadd.f32 0.0, %v2604
      %v2606 = vpop.f32.mrf.mxu0
      %v2607 = vpop.f32.mrf.mxu0
      %v2608 = vadd.f32 0.0, %v2607
      %v2609 = vpop.f32.mrf.mxu0
      %2610 = vmatprep.mubr.bf16.mxu0 0
      %2611 = vmatmul.mubr.bf16.gmra.mxu0 %v2503
      %v2612 = vpop.f32.mrf.mxu0
      %v2613 = vadd.f32 0.0, %v2612
      %v2614 = vpop.f32.mrf.mxu0
      %v2615 = vpop.f32.mrf.mxu0
      %v2616 = vadd.f32 0.0, %v2615
      %v2617 = vpop.f32.mrf.mxu0
      %2618 = vmatprep.mubr.bf16.mxu0 0
      %2619 = vmatmul.mubr.bf16.gmra.mxu0 %v2506
      %v2620 = vpop.f32.mrf.mxu0
      %v2621 = vadd.f32 0.0, %v2620
      %v2622 = vpop.f32.mrf.mxu0
      %v2623 = vpop.f32.mrf.mxu0
      %v2624 = vadd.f32 0.0, %v2623
      %v2625 = vpop.f32.mrf.mxu0
      %2626 = vmatprep.mubr.bf16.mxu0 0
      %2627 = vmatmul.mubr.bf16.gmra.mxu0 %v2509
      %v2628 = vpop.f32.mrf.mxu0
      %v2629 = vadd.f32 0.0, %v2628
      %v2630 = vpop.f32.mrf.mxu0
      %v2631 = vpop.f32.mrf.mxu0
      %v2632 = vadd.f32 0.0, %v2631
      %v2633 = vpop.f32.mrf.mxu0
      %2634 = vmatprep.mubr.bf16.mxu0 0
      %2635 = vmatmul.mubr.bf16.gmra.mxu0 %v2512
      %v2636 = vpop.f32.mrf.mxu0
      %v2637 = vadd.f32 0.0, %v2636
      %v2638 = vpop.f32.mrf.mxu0
      %v2639 = vpop.f32.mrf.mxu0
      %v2640 = vadd.f32 0.0, %v2639
      %v2641 = vpop.f32.mrf.mxu0
      %2642 = vmatprep.mubr.bf16.mxu0 0
      %2643 = vmatmul.mubr.bf16.gmra.mxu0 %v2515
      %v2644 = vpop.f32.mrf.mxu0
      %v2645 = vadd.f32 0.0, %v2644
      %v2646 = vpop.f32.mrf.mxu0
      %v2647 = vpop.f32.mrf.mxu0
      %v2648 = vadd.f32 0.0, %v2647
      %v2649 = vpop.f32.mrf.mxu0
      %2650 = vmatprep.mubr.bf16.mxu0 0
      %2651 = vmatmul.mubr.bf16.gmra.mxu0 %v2518
      %v2652 = vpop.f32.mrf.mxu0
      %v2653 = vadd.f32 0.0, %v2652
      %v2654 = vpop.f32.mrf.mxu0
      %v2655 = vpop.f32.mrf.mxu0
      %v2656 = vadd.f32 0.0, %v2655
      %v2657 = vpop.f32.mrf.mxu0
      %2658 = vmatprep.mubr.bf16.mxu0 0
      %2659 = vmatmul.mubr.bf16.gmra.mxu0 %v2521
      %v2660 = vpop.f32.mrf.mxu0
      %v2661 = vadd.f32 0.0, %v2660
      %v2662 = vpop.f32.mrf.mxu0
      %v2663 = vpop.f32.mrf.mxu0
      %v2664 = vadd.f32 0.0, %v2663
      %v2665 = vpop.f32.mrf.mxu0
      %2666 = vmatprep.mubr.bf16.mxu0 0
      %2667 = vmatmul.mubr.bf16.gmra.mxu0 %v2524
      %v2668 = vpop.f32.mrf.mxu0
      %v2669 = vadd.f32 0.0, %v2668
      %v2670 = vpop.f32.mrf.mxu0
      %v2671 = vpop.f32.mrf.mxu0
      %v2672 = vadd.f32 0.0, %v2671
      %v2673 = vpop.f32.mrf.mxu0
      %2674 = vmatprep.mubr.bf16.mxu0 0
      %2675 = vmatmul.mubr.bf16.gmra.mxu0 %v2527
      %v2676 = vpop.f32.mrf.mxu0
      %v2677 = vadd.f32 0.0, %v2676
      %v2678 = vpop.f32.mrf.mxu0
      %v2679 = vpop.f32.mrf.mxu0
      %v2680 = vadd.f32 0.0, %v2679
      %v2681 = vpop.f32.mrf.mxu0
      %2682 = vmatprep.mubr.bf16.mxu0 0
      %2683 = vmatmul.mubr.bf16.gmra.mxu0 %v2530
      %v2684 = vpop.f32.mrf.mxu0
      %v2685 = vadd.f32 0.0, %v2684
      %v2686 = vpop.f32.mrf.mxu0
      %v2687 = vpop.f32.mrf.mxu0
      %v2688 = vadd.f32 0.0, %v2687
      %v2689 = vpop.f32.mrf.mxu0
      %2690 = vmatprep.mubr.bf16.mxu0 0
      %2691 = vmatmul.mubr.bf16.gmra.mxu0 %v2533
      %v2692 = vpop.f32.mrf.mxu0
      %v2693 = vadd.f32 0.0, %v2692
      %v2694 = vpop.f32.mrf.mxu0
      %v2695 = vpop.f32.mrf.mxu0
      %v2696 = vadd.f32 0.0, %v2695
      %v2697 = vpop.f32.mrf.mxu0
      %2698 = vdwg.mxu0
      %v2699 = vadd.f32 %v2341, %v2573
      %v2700 = vadd.f32 %v2342, %v2576
      %v2701 = vadd.f32 %v2343, %v2581
      %v2702 = vadd.f32 %v2344, %v2584
      %v2703 = vadd.f32 %v2345, %v2589
      %v2704 = vadd.f32 %v2346, %v2592
      %v2705 = vadd.f32 %v2347, %v2597
      %v2706 = vadd.f32 %v2348, %v2600
      %v2707 = vadd.f32 %v2349, %v2605
      %v2708 = vadd.f32 %v2350, %v2608
      %v2709 = vadd.f32 %v2351, %v2613
      %v2710 = vadd.f32 %v2352, %v2616
      %v2711 = vadd.f32 %v2353, %v2621
      %v2712 = vadd.f32 %v2354, %v2624
      %v2713 = vadd.f32 %v2355, %v2629
      %v2714 = vadd.f32 %v2356, %v2632
      %v2715 = vadd.f32 %v2357, %v2637
      %v2716 = vadd.f32 %v2358, %v2640
      %v2717 = vadd.f32 %v2359, %v2645
      %v2718 = vadd.f32 %v2360, %v2648
      %v2719 = vadd.f32 %v2361, %v2653
      %v2720 = vadd.f32 %v2362, %v2656
      %v2721 = vadd.f32 %v2363, %v2661
      %v2722 = vadd.f32 %v2364, %v2664
      %v2723 = vadd.f32 %v2365, %v2669
      %v2724 = vadd.f32 %v2366, %v2672
      %v2725 = vadd.f32 %v2367, %v2677
      %v2726 = vadd.f32 %v2368, %v2680
      %v2727 = vadd.f32 %v2369, %v2685
      %v2728 = vadd.f32 %v2370, %v2688
      %v2729 = vadd.f32 %v2371, %v2693
      %v2730 = vadd.f32 %v2372, %v2696
      %v2731 = vld [vmem:[%s887] sm:$0xf]
      %v2732 = vld [vmem:[%s887 + $0x4] sm:$0xf]
      %v2733 = vld [vmem:[%s887 + $0x8] sm:$0xf]
      %v2734 = vld [vmem:[%s887 + $0xc] sm:$0xf]
      %v2735 = vld [vmem:[%s887 + $0x10] sm:$0xf]
      %v2736 = vld [vmem:[%s887 + $0x14] sm:$0xf]
      %v2737 = vld [vmem:[%s887 + $0x18] sm:$0xf]
      %v2738 = vld [vmem:[%s887 + $0x1c] sm:$0xf]
      %v2739 = vld [vmem:[%s887 + $0x20] sm:$0xf]
      %v2740 = vld [vmem:[%s887 + $0x24] sm:$0xf]
      %v2741 = vld [vmem:[%s887 + $0x28] sm:$0xf]
      %v2742 = vld [vmem:[%s887 + $0x2c] sm:$0xf]
      %v2743 = vld [vmem:[%s887 + $0x30] sm:$0xf]
      %v2744 = vld [vmem:[%s887 + $0x34] sm:$0xf]
      %v2745 = vld [vmem:[%s887 + $0x38] sm:$0xf]
      %v2746 = vld [vmem:[%s887 + $0x3c] sm:$0xf]
      %v2747 = vld [vmem:[%s887 + $0x40] sm:$0xf]
      %v2748 = vld [vmem:[%s887 + $0x44] sm:$0xf]
      %v2749 = vld [vmem:[%s887 + $0x48] sm:$0xf]
      %v2750 = vld [vmem:[%s887 + $0x4c] sm:$0xf]
      %v2751 = vld [vmem:[%s887 + $0x50] sm:$0xf]
      %v2752 = vld [vmem:[%s887 + $0x54] sm:$0xf]
      %v2753 = vld [vmem:[%s887 + $0x58] sm:$0xf]
      %v2754 = vld [vmem:[%s887 + $0x5c] sm:$0xf]
      %v2755 = vld [vmem:[%s887 + $0x60] sm:$0xf]
      %v2756 = vld [vmem:[%s887 + $0x64] sm:$0xf]
      %v2757 = vld [vmem:[%s887 + $0x68] sm:$0xf]
      %v2758 = vld [vmem:[%s887 + $0x6c] sm:$0xf]
      %v2759 = vld [vmem:[%s887 + $0x70] sm:$0xf]
      %v2760 = vld [vmem:[%s887 + $0x74] sm:$0xf]
      %v2761 = vld [vmem:[%s887 + $0x78] sm:$0xf]
      %v2762 = vld [vmem:[%s887 + $0x7c] sm:$0xf]
      %s2763 = scalar_lea.vmem %s1, 10
      %v2764 = vld [vmem:[%s2763] sm:$0x3]
      %v2797 = vunpack.c.l.b16 %v2731
      %v2798 = vunpack.c.l.b16 %v2732
      %v2799 = vunpack.c.l.b16 %v2733
      %v2800 = vunpack.c.l.b16 %v2734
      %v2801 = vunpack.c.l.b16 %v2735
      %v2802 = vunpack.c.l.b16 %v2736
      %v2803 = vunpack.c.l.b16 %v2737
      %v2804 = vunpack.c.l.b16 %v2738
      %v2805 = vunpack.c.l.b16 %v2739
      %v2806 = vunpack.c.l.b16 %v2740
      %v2807 = vunpack.c.l.b16 %v2741
      %v2808 = vunpack.c.l.b16 %v2742
      %v2809 = vunpack.c.l.b16 %v2743
      %v2810 = vunpack.c.l.b16 %v2744
      %v2811 = vunpack.c.l.b16 %v2745
      %v2812 = vunpack.c.l.b16 %v2746
      %v2813 = vunpack.c.l.b16 %v2747
      %v2814 = vunpack.c.l.b16 %v2748
      %v2815 = vunpack.c.l.b16 %v2749
      %v2816 = vunpack.c.l.b16 %v2750
      %v2817 = vunpack.c.l.b16 %v2751
      %v2818 = vunpack.c.l.b16 %v2752
      %v2819 = vunpack.c.l.b16 %v2753
      %v2820 = vunpack.c.l.b16 %v2754
      %v2821 = vunpack.c.l.b16 %v2755
      %v2822 = vunpack.c.l.b16 %v2756
      %v2823 = vunpack.c.l.b16 %v2757
      %v2824 = vunpack.c.l.b16 %v2758
      %v2825 = vunpack.c.l.b16 %v2759
      %v2826 = vunpack.c.l.b16 %v2760
      %v2827 = vunpack.c.l.b16 %v2761
      %v2828 = vunpack.c.l.b16 %v2762
      %v2829 = vpack.c.b16 %v2798, %v2797
      %v2830 = vpack.c.b16 %v2800, %v2799
      %v2831 = vpack.c.b16 %v2802, %v2801
      %v2832 = vpack.c.b16 %v2804, %v2803
      %v2833 = vpack.c.b16 %v2806, %v2805
      %v2834 = vpack.c.b16 %v2808, %v2807
      %v2835 = vpack.c.b16 %v2810, %v2809
      %v2836 = vpack.c.b16 %v2812, %v2811
      %v2837 = vpack.c.b16 %v2814, %v2813
      %v2838 = vpack.c.b16 %v2816, %v2815
      %v2839 = vpack.c.b16 %v2818, %v2817
      %v2840 = vpack.c.b16 %v2820, %v2819
      %v2841 = vpack.c.b16 %v2822, %v2821
      %v2842 = vpack.c.b16 %v2824, %v2823
      %v2843 = vpack.c.b16 %v2826, %v2825
      %v2844 = vpack.c.b16 %v2828, %v2827
      %v2846 = vsel %vm1151, %v2829, 0
      %v2849 = vsel %vm1151, %v2830, 0
      %v2852 = vsel %vm1151, %v2831, 0
      %v2855 = vsel %vm1151, %v2832, 0
      %v2858 = vsel %vm1151, %v2833, 0
      %v2861 = vsel %vm1151, %v2834, 0
      %v2864 = vsel %vm1151, %v2835, 0
      %v2867 = vsel %vm1151, %v2836, 0
      %v2870 = vsel %vm1151, %v2837, 0
      %v2873 = vsel %vm1151, %v2838, 0
      %v2876 = vsel %vm1151, %v2839, 0
      %v2879 = vsel %vm1151, %v2840, 0
      %v2882 = vsel %vm1151, %v2841, 0
      %v2885 = vsel %vm1151, %v2842, 0
      %v2888 = vsel %vm1151, %v2843, 0
      %v2891 = vsel %vm1151, %v2844, 0
      %v2894 = vsel %vm1200, %v2764, 0
      %2896 = vmatprep.subr.bf16.mxu0 0
      %2897 = vmatpush1.bf16.msra.mxu0 0
      %2898 = vmatprep.subr.bf16.mxu0 0
      %2899 = vmatpush1.bf16.msra.mxu0 0
      %2900 = vmatprep.subr.bf16.mxu0 0
      %2901 = vmatpush1.bf16.msra.mxu0 0
      %2902 = vmatprep.subr.bf16.mxu0 0
      %2903 = vmatpush1.bf16.msra.mxu0 0
      %2904 = vmatprep.subr.bf16.mxu0 0
      %2905 = vmatpush1.bf16.msra.mxu0 0
      %2906 = vmatprep.subr.bf16.mxu0 0
      %2907 = vmatpush1.bf16.msra.mxu0 0
      %2908 = vmatprep.subr.bf16.mxu0 0
      %2909 = vmatpush1.bf16.msra.mxu0 0
      %2910 = vmatprep.subr.bf16.mxu0 0
      %2911 = vmatpush1.bf16.msra.mxu0 %v2894
      %2912 = vmatprep.subr.bf16.mxu0 0
      %2913 = vmatpush2.bf16.msra.mxu0 0
      %2914 = vmatprep.subr.bf16.mxu0 0
      %2915 = vmatpush2.bf16.msra.mxu0 0
      %2916 = vmatprep.subr.bf16.mxu0 0
      %2917 = vmatpush2.bf16.msra.mxu0 0
      %2918 = vmatprep.subr.bf16.mxu0 0
      %2919 = vmatpush2.bf16.msra.mxu0 0
      %2920 = vmatprep.subr.bf16.mxu0 0
      %2921 = vmatpush2.bf16.msra.mxu0 0
      %2922 = vmatprep.subr.bf16.mxu0 0
      %2923 = vmatpush2.bf16.msra.mxu0 0
      %2924 = vmatprep.subr.bf16.mxu0 0
      %2925 = vmatpush2.bf16.msra.mxu0 0
      %2926 = vmatprep.subr.bf16.mxu0 0
      %2927 = vmatpush2.bf16.msra.mxu0 0
      %2928 = vmatprep.mubr.bf16.mxu0 0
      %2929 = vmatmul.mubr.bf16.gmra.mxu0 %v2846
      %v2930 = vpop.f32.mrf.mxu0
      %v2931 = vadd.f32 0.0, %v2930
      %v2932 = vpop.f32.mrf.mxu0
      %v2933 = vpop.f32.mrf.mxu0
      %v2934 = vadd.f32 0.0, %v2933
      %v2935 = vpop.f32.mrf.mxu0
      %2936 = vmatprep.mubr.bf16.mxu0 0
      %2937 = vmatmul.mubr.bf16.gmra.mxu0 %v2849
      %v2938 = vpop.f32.mrf.mxu0
      %v2939 = vadd.f32 0.0, %v2938
      %v2940 = vpop.f32.mrf.mxu0
      %v2941 = vpop.f32.mrf.mxu0
      %v2942 = vadd.f32 0.0, %v2941
      %v2943 = vpop.f32.mrf.mxu0
      %2944 = vmatprep.mubr.bf16.mxu0 0
      %2945 = vmatmul.mubr.bf16.gmra.mxu0 %v2852
      %v2946 = vpop.f32.mrf.mxu0
      %v2947 = vadd.f32 0.0, %v2946
      %v2948 = vpop.f32.mrf.mxu0
      %v2949 = vpop.f32.mrf.mxu0
      %v2950 = vadd.f32 0.0, %v2949
      %v2951 = vpop.f32.mrf.mxu0
      %2952 = vmatprep.mubr.bf16.mxu0 0
      %2953 = vmatmul.mubr.bf16.gmra.mxu0 %v2855
      %v2954 = vpop.f32.mrf.mxu0
      %v2955 = vadd.f32 0.0, %v2954
      %v2956 = vpop.f32.mrf.mxu0
      %v2957 = vpop.f32.mrf.mxu0
      %v2958 = vadd.f32 0.0, %v2957
      %v2959 = vpop.f32.mrf.mxu0
      %2960 = vmatprep.mubr.bf16.mxu0 0
      %2961 = vmatmul.mubr.bf16.gmra.mxu0 %v2858
      %v2962 = vpop.f32.mrf.mxu0
      %v2963 = vadd.f32 0.0, %v2962
      %v2964 = vpop.f32.mrf.mxu0
      %v2965 = vpop.f32.mrf.mxu0
      %v2966 = vadd.f32 0.0, %v2965
      %v2967 = vpop.f32.mrf.mxu0
      %2968 = vmatprep.mubr.bf16.mxu0 0
      %2969 = vmatmul.mubr.bf16.gmra.mxu0 %v2861
      %v2970 = vpop.f32.mrf.mxu0
      %v2971 = vadd.f32 0.0, %v2970
      %v2972 = vpop.f32.mrf.mxu0
      %v2973 = vpop.f32.mrf.mxu0
      %v2974 = vadd.f32 0.0, %v2973
      %v2975 = vpop.f32.mrf.mxu0
      %2976 = vmatprep.mubr.bf16.mxu0 0
      %2977 = vmatmul.mubr.bf16.gmra.mxu0 %v2864
      %v2978 = vpop.f32.mrf.mxu0
      %v2979 = vadd.f32 0.0, %v2978
      %v2980 = vpop.f32.mrf.mxu0
      %v2981 = vpop.f32.mrf.mxu0
      %v2982 = vadd.f32 0.0, %v2981
      %v2983 = vpop.f32.mrf.mxu0
      %2984 = vmatprep.mubr.bf16.mxu0 0
      %2985 = vmatmul.mubr.bf16.gmra.mxu0 %v2867
      %v2986 = vpop.f32.mrf.mxu0
      %v2987 = vadd.f32 0.0, %v2986
      %v2988 = vpop.f32.mrf.mxu0
      %v2989 = vpop.f32.mrf.mxu0
      %v2990 = vadd.f32 0.0, %v2989
      %v2991 = vpop.f32.mrf.mxu0
      %2992 = vmatprep.mubr.bf16.mxu0 0
      %2993 = vmatmul.mubr.bf16.gmra.mxu0 %v2870
      %v2994 = vpop.f32.mrf.mxu0
      %v2995 = vadd.f32 0.0, %v2994
      %v2996 = vpop.f32.mrf.mxu0
      %v2997 = vpop.f32.mrf.mxu0
      %v2998 = vadd.f32 0.0, %v2997
      %v2999 = vpop.f32.mrf.mxu0
      %3000 = vmatprep.mubr.bf16.mxu0 0
      %3001 = vmatmul.mubr.bf16.gmra.mxu0 %v2873
      %v3002 = vpop.f32.mrf.mxu0
      %v3003 = vadd.f32 0.0, %v3002
      %v3004 = vpop.f32.mrf.mxu0
      %v3005 = vpop.f32.mrf.mxu0
      %v3006 = vadd.f32 0.0, %v3005
      %v3007 = vpop.f32.mrf.mxu0
      %3008 = vmatprep.mubr.bf16.mxu0 0
      %3009 = vmatmul.mubr.bf16.gmra.mxu0 %v2876
      %v3010 = vpop.f32.mrf.mxu0
      %v3011 = vadd.f32 0.0, %v3010
      %v3012 = vpop.f32.mrf.mxu0
      %v3013 = vpop.f32.mrf.mxu0
      %v3014 = vadd.f32 0.0, %v3013
      %v3015 = vpop.f32.mrf.mxu0
      %3016 = vmatprep.mubr.bf16.mxu0 0
      %3017 = vmatmul.mubr.bf16.gmra.mxu0 %v2879
      %v3018 = vpop.f32.mrf.mxu0
      %v3019 = vadd.f32 0.0, %v3018
      %v3020 = vpop.f32.mrf.mxu0
      %v3021 = vpop.f32.mrf.mxu0
      %v3022 = vadd.f32 0.0, %v3021
      %v3023 = vpop.f32.mrf.mxu0
      %3024 = vmatprep.mubr.bf16.mxu0 0
      %3025 = vmatmul.mubr.bf16.gmra.mxu0 %v2882
      %v3026 = vpop.f32.mrf.mxu0
      %v3027 = vadd.f32 0.0, %v3026
      %v3028 = vpop.f32.mrf.mxu0
      %v3029 = vpop.f32.mrf.mxu0
      %v3030 = vadd.f32 0.0, %v3029
      %v3031 = vpop.f32.mrf.mxu0
      %3032 = vmatprep.mubr.bf16.mxu0 0
      %3033 = vmatmul.mubr.bf16.gmra.mxu0 %v2885
      %v3034 = vpop.f32.mrf.mxu0
      %v3035 = vadd.f32 0.0, %v3034
      %v3036 = vpop.f32.mrf.mxu0
      %v3037 = vpop.f32.mrf.mxu0
      %v3038 = vadd.f32 0.0, %v3037
      %v3039 = vpop.f32.mrf.mxu0
      %3040 = vmatprep.mubr.bf16.mxu0 0
      %3041 = vmatmul.mubr.bf16.gmra.mxu0 %v2888
      %v3042 = vpop.f32.mrf.mxu0
      %v3043 = vadd.f32 0.0, %v3042
      %v3044 = vpop.f32.mrf.mxu0
      %v3045 = vpop.f32.mrf.mxu0
      %v3046 = vadd.f32 0.0, %v3045
      %v3047 = vpop.f32.mrf.mxu0
      %3048 = vmatprep.mubr.bf16.mxu0 0
      %3049 = vmatmul.mubr.bf16.gmra.mxu0 %v2891
      %v3050 = vpop.f32.mrf.mxu0
      %v3051 = vadd.f32 0.0, %v3050
      %v3052 = vpop.f32.mrf.mxu0
      %v3053 = vpop.f32.mrf.mxu0
      %v3054 = vadd.f32 0.0, %v3053
      %v3055 = vpop.f32.mrf.mxu0
      %3056 = vdwg.mxu0
      %v3057 = vadd.f32 %v2699, %v2931
      %v3058 = vadd.f32 %v2700, %v2934
      %v3059 = vadd.f32 %v2701, %v2939
      %v3060 = vadd.f32 %v2702, %v2942
      %v3061 = vadd.f32 %v2703, %v2947
      %v3062 = vadd.f32 %v2704, %v2950
      %v3063 = vadd.f32 %v2705, %v2955
      %v3064 = vadd.f32 %v2706, %v2958
      %v3065 = vadd.f32 %v2707, %v2963
      %v3066 = vadd.f32 %v2708, %v2966
      %v3067 = vadd.f32 %v2709, %v2971
      %v3068 = vadd.f32 %v2710, %v2974
      %v3069 = vadd.f32 %v2711, %v2979
      %v3070 = vadd.f32 %v2712, %v2982
      %v3071 = vadd.f32 %v2713, %v2987
      %v3072 = vadd.f32 %v2714, %v2990
      %v3073 = vadd.f32 %v2715, %v2995
      %v3074 = vadd.f32 %v2716, %v2998
      %v3075 = vadd.f32 %v2717, %v3003
      %v3076 = vadd.f32 %v2718, %v3006
      %v3077 = vadd.f32 %v2719, %v3011
      %v3078 = vadd.f32 %v2720, %v3014
      %v3079 = vadd.f32 %v2721, %v3019
      %v3080 = vadd.f32 %v2722, %v3022
      %v3081 = vadd.f32 %v2723, %v3027
      %v3082 = vadd.f32 %v2724, %v3030
      %v3083 = vadd.f32 %v2725, %v3035
      %v3084 = vadd.f32 %v2726, %v3038
      %v3085 = vadd.f32 %v2727, %v3043
      %v3086 = vadd.f32 %v2728, %v3046
      %v3087 = vadd.f32 %v2729, %v3051
      %v3088 = vadd.f32 %v2730, %v3054
      %s3089 = scalar_lea.vmem [#allocation2], 16
      %v3090 = vld [vmem:[%s3089] sm:$0xf]
      %v3091 = vld [vmem:[%s3089 + $0x4] sm:$0xf]
      %v3092 = vld [vmem:[%s3089 + $0x8] sm:$0xf]
      %v3093 = vld [vmem:[%s3089 + $0xc] sm:$0xf]
      %v3094 = vld [vmem:[%s3089 + $0x10] sm:$0xf]
      %v3095 = vld [vmem:[%s3089 + $0x14] sm:$0xf]
      %v3096 = vld [vmem:[%s3089 + $0x18] sm:$0xf]
      %v3097 = vld [vmem:[%s3089 + $0x1c] sm:$0xf]
      %v3098 = vld [vmem:[%s3089 + $0x20] sm:$0xf]
      %v3099 = vld [vmem:[%s3089 + $0x24] sm:$0xf]
      %v3100 = vld [vmem:[%s3089 + $0x28] sm:$0xf]
      %v3101 = vld [vmem:[%s3089 + $0x2c] sm:$0xf]
      %v3102 = vld [vmem:[%s3089 + $0x30] sm:$0xf]
      %v3103 = vld [vmem:[%s3089 + $0x34] sm:$0xf]
      %v3104 = vld [vmem:[%s3089 + $0x38] sm:$0xf]
      %v3105 = vld [vmem:[%s3089 + $0x3c] sm:$0xf]
      %v3106 = vld [vmem:[%s3089 + $0x40] sm:$0xf]
      %v3107 = vld [vmem:[%s3089 + $0x44] sm:$0xf]
      %v3108 = vld [vmem:[%s3089 + $0x48] sm:$0xf]
      %v3109 = vld [vmem:[%s3089 + $0x4c] sm:$0xf]
      %v3110 = vld [vmem:[%s3089 + $0x50] sm:$0xf]
      %v3111 = vld [vmem:[%s3089 + $0x54] sm:$0xf]
      %v3112 = vld [vmem:[%s3089 + $0x58] sm:$0xf]
      %v3113 = vld [vmem:[%s3089 + $0x5c] sm:$0xf]
      %v3114 = vld [vmem:[%s3089 + $0x60] sm:$0xf]
      %v3115 = vld [vmem:[%s3089 + $0x64] sm:$0xf]
      %v3116 = vld [vmem:[%s3089 + $0x68] sm:$0xf]
      %v3117 = vld [vmem:[%s3089 + $0x6c] sm:$0xf]
      %v3118 = vld [vmem:[%s3089 + $0x70] sm:$0xf]
      %v3119 = vld [vmem:[%s3089 + $0x74] sm:$0xf]
      %v3120 = vld [vmem:[%s3089 + $0x78] sm:$0xf]
      %v3121 = vld [vmem:[%s3089 + $0x7c] sm:$0xf]
      %s3122 = scalar_lea.vmem %s1, 12
      %v3123 = vld [vmem:[%s3122] sm:$0x3]
      %v3156 = vunpack.c.l.b16 %v3090
      %v3157 = vunpack.c.l.b16 %v3091
      %v3158 = vunpack.c.l.b16 %v3092
      %v3159 = vunpack.c.l.b16 %v3093
      %v3160 = vunpack.c.l.b16 %v3094
      %v3161 = vunpack.c.l.b16 %v3095
      %v3162 = vunpack.c.l.b16 %v3096
      %v3163 = vunpack.c.l.b16 %v3097
      %v3164 = vunpack.c.l.b16 %v3098
      %v3165 = vunpack.c.l.b16 %v3099
      %v3166 = vunpack.c.l.b16 %v3100
      %v3167 = vunpack.c.l.b16 %v3101
      %v3168 = vunpack.c.l.b16 %v3102
      %v3169 = vunpack.c.l.b16 %v3103
      %v3170 = vunpack.c.l.b16 %v3104
      %v3171 = vunpack.c.l.b16 %v3105
      %v3172 = vunpack.c.l.b16 %v3106
      %v3173 = vunpack.c.l.b16 %v3107
      %v3174 = vunpack.c.l.b16 %v3108
      %v3175 = vunpack.c.l.b16 %v3109
      %v3176 = vunpack.c.l.b16 %v3110
      %v3177 = vunpack.c.l.b16 %v3111
      %v3178 = vunpack.c.l.b16 %v3112
      %v3179 = vunpack.c.l.b16 %v3113
      %v3180 = vunpack.c.l.b16 %v3114
      %v3181 = vunpack.c.l.b16 %v3115
      %v3182 = vunpack.c.l.b16 %v3116
      %v3183 = vunpack.c.l.b16 %v3117
      %v3184 = vunpack.c.l.b16 %v3118
      %v3185 = vunpack.c.l.b16 %v3119
      %v3186 = vunpack.c.l.b16 %v3120
      %v3187 = vunpack.c.l.b16 %v3121
      %v3188 = vpack.c.b16 %v3157, %v3156
      %v3189 = vpack.c.b16 %v3159, %v3158
      %v3190 = vpack.c.b16 %v3161, %v3160
      %v3191 = vpack.c.b16 %v3163, %v3162
      %v3192 = vpack.c.b16 %v3165, %v3164
      %v3193 = vpack.c.b16 %v3167, %v3166
      %v3194 = vpack.c.b16 %v3169, %v3168
      %v3195 = vpack.c.b16 %v3171, %v3170
      %v3196 = vpack.c.b16 %v3173, %v3172
      %v3197 = vpack.c.b16 %v3175, %v3174
      %v3198 = vpack.c.b16 %v3177, %v3176
      %v3199 = vpack.c.b16 %v3179, %v3178
      %v3200 = vpack.c.b16 %v3181, %v3180
      %v3201 = vpack.c.b16 %v3183, %v3182
      %v3202 = vpack.c.b16 %v3185, %v3184
      %v3203 = vpack.c.b16 %v3187, %v3186
      %v3205 = vsel %vm1151, %v3188, 0
      %v3208 = vsel %vm1151, %v3189, 0
      %v3211 = vsel %vm1151, %v3190, 0
      %v3214 = vsel %vm1151, %v3191, 0
      %v3217 = vsel %vm1151, %v3192, 0
      %v3220 = vsel %vm1151, %v3193, 0
      %v3223 = vsel %vm1151, %v3194, 0
      %v3226 = vsel %vm1151, %v3195, 0
      %v3229 = vsel %vm1151, %v3196, 0
      %v3232 = vsel %vm1151, %v3197, 0
      %v3235 = vsel %vm1151, %v3198, 0
      %v3238 = vsel %vm1151, %v3199, 0
      %v3241 = vsel %vm1151, %v3200, 0
      %v3244 = vsel %vm1151, %v3201, 0
      %v3247 = vsel %vm1151, %v3202, 0
      %v3250 = vsel %vm1151, %v3203, 0
      %v3253 = vsel %vm1200, %v3123, 0
      %3255 = vmatprep.subr.bf16.mxu0 0
      %3256 = vmatpush1.bf16.msra.mxu0 0
      %3257 = vmatprep.subr.bf16.mxu0 0
      %3258 = vmatpush1.bf16.msra.mxu0 0
      %3259 = vmatprep.subr.bf16.mxu0 0
      %3260 = vmatpush1.bf16.msra.mxu0 0
      %3261 = vmatprep.subr.bf16.mxu0 0
      %3262 = vmatpush1.bf16.msra.mxu0 0
      %3263 = vmatprep.subr.bf16.mxu0 0
      %3264 = vmatpush1.bf16.msra.mxu0 0
      %3265 = vmatprep.subr.bf16.mxu0 0
      %3266 = vmatpush1.bf16.msra.mxu0 0
      %3267 = vmatprep.subr.bf16.mxu0 0
      %3268 = vmatpush1.bf16.msra.mxu0 0
      %3269 = vmatprep.subr.bf16.mxu0 0
      %3270 = vmatpush1.bf16.msra.mxu0 %v3253
      %3271 = vmatprep.subr.bf16.mxu0 0
      %3272 = vmatpush2.bf16.msra.mxu0 0
      %3273 = vmatprep.subr.bf16.mxu0 0
      %3274 = vmatpush2.bf16.msra.mxu0 0
      %3275 = vmatprep.subr.bf16.mxu0 0
      %3276 = vmatpush2.bf16.msra.mxu0 0
      %3277 = vmatprep.subr.bf16.mxu0 0
      %3278 = vmatpush2.bf16.msra.mxu0 0
      %3279 = vmatprep.subr.bf16.mxu0 0
      %3280 = vmatpush2.bf16.msra.mxu0 0
      %3281 = vmatprep.subr.bf16.mxu0 0
      %3282 = vmatpush2.bf16.msra.mxu0 0
      %3283 = vmatprep.subr.bf16.mxu0 0
      %3284 = vmatpush2.bf16.msra.mxu0 0
      %3285 = vmatprep.subr.bf16.mxu0 0
      %3286 = vmatpush2.bf16.msra.mxu0 0
      %3287 = vmatprep.mubr.bf16.mxu0 0
      %3288 = vmatmul.mubr.bf16.gmra.mxu0 %v3205
      %v3289 = vpop.f32.mrf.mxu0
      %v3290 = vadd.f32 0.0, %v3289
      %v3291 = vpop.f32.mrf.mxu0
      %v3292 = vpop.f32.mrf.mxu0
      %v3293 = vadd.f32 0.0, %v3292
      %v3294 = vpop.f32.mrf.mxu0
      %3295 = vmatprep.mubr.bf16.mxu0 0
      %3296 = vmatmul.mubr.bf16.gmra.mxu0 %v3208
      %v3297 = vpop.f32.mrf.mxu0
      %v3298 = vadd.f32 0.0, %v3297
      %v3299 = vpop.f32.mrf.mxu0
      %v3300 = vpop.f32.mrf.mxu0
      %v3301 = vadd.f32 0.0, %v3300
      %v3302 = vpop.f32.mrf.mxu0
      %3303 = vmatprep.mubr.bf16.mxu0 0
      %3304 = vmatmul.mubr.bf16.gmra.mxu0 %v3211
      %v3305 = vpop.f32.mrf.mxu0
      %v3306 = vadd.f32 0.0, %v3305
      %v3307 = vpop.f32.mrf.mxu0
      %v3308 = vpop.f32.mrf.mxu0
      %v3309 = vadd.f32 0.0, %v3308
      %v3310 = vpop.f32.mrf.mxu0
      %3311 = vmatprep.mubr.bf16.mxu0 0
      %3312 = vmatmul.mubr.bf16.gmra.mxu0 %v3214
      %v3313 = vpop.f32.mrf.mxu0
      %v3314 = vadd.f32 0.0, %v3313
      %v3315 = vpop.f32.mrf.mxu0
      %v3316 = vpop.f32.mrf.mxu0
      %v3317 = vadd.f32 0.0, %v3316
      %v3318 = vpop.f32.mrf.mxu0
      %3319 = vmatprep.mubr.bf16.mxu0 0
      %3320 = vmatmul.mubr.bf16.gmra.mxu0 %v3217
      %v3321 = vpop.f32.mrf.mxu0
      %v3322 = vadd.f32 0.0, %v3321
      %v3323 = vpop.f32.mrf.mxu0
      %v3324 = vpop.f32.mrf.mxu0
      %v3325 = vadd.f32 0.0, %v3324
      %v3326 = vpop.f32.mrf.mxu0
      %3327 = vmatprep.mubr.bf16.mxu0 0
      %3328 = vmatmul.mubr.bf16.gmra.mxu0 %v3220
      %v3329 = vpop.f32.mrf.mxu0
      %v3330 = vadd.f32 0.0, %v3329
      %v3331 = vpop.f32.mrf.mxu0
      %v3332 = vpop.f32.mrf.mxu0
      %v3333 = vadd.f32 0.0, %v3332
      %v3334 = vpop.f32.mrf.mxu0
      %3335 = vmatprep.mubr.bf16.mxu0 0
      %3336 = vmatmul.mubr.bf16.gmra.mxu0 %v3223
      %v3337 = vpop.f32.mrf.mxu0
      %v3338 = vadd.f32 0.0, %v3337
      %v3339 = vpop.f32.mrf.mxu0
      %v3340 = vpop.f32.mrf.mxu0
      %v3341 = vadd.f32 0.0, %v3340
      %v3342 = vpop.f32.mrf.mxu0
      %3343 = vmatprep.mubr.bf16.mxu0 0
      %3344 = vmatmul.mubr.bf16.gmra.mxu0 %v3226
      %v3345 = vpop.f32.mrf.mxu0
      %v3346 = vadd.f32 0.0, %v3345
      %v3347 = vpop.f32.mrf.mxu0
      %v3348 = vpop.f32.mrf.mxu0
      %v3349 = vadd.f32 0.0, %v3348
      %v3350 = vpop.f32.mrf.mxu0
      %3351 = vmatprep.mubr.bf16.mxu0 0
      %3352 = vmatmul.mubr.bf16.gmra.mxu0 %v3229
      %v3353 = vpop.f32.mrf.mxu0
      %v3354 = vadd.f32 0.0, %v3353
      %v3355 = vpop.f32.mrf.mxu0
      %v3356 = vpop.f32.mrf.mxu0
      %v3357 = vadd.f32 0.0, %v3356
      %v3358 = vpop.f32.mrf.mxu0
      %3359 = vmatprep.mubr.bf16.mxu0 0
      %3360 = vmatmul.mubr.bf16.gmra.mxu0 %v3232
      %v3361 = vpop.f32.mrf.mxu0
      %v3362 = vadd.f32 0.0, %v3361
      %v3363 = vpop.f32.mrf.mxu0
      %v3364 = vpop.f32.mrf.mxu0
      %v3365 = vadd.f32 0.0, %v3364
      %v3366 = vpop.f32.mrf.mxu0
      %3367 = vmatprep.mubr.bf16.mxu0 0
      %3368 = vmatmul.mubr.bf16.gmra.mxu0 %v3235
      %v3369 = vpop.f32.mrf.mxu0
      %v3370 = vadd.f32 0.0, %v3369
      %v3371 = vpop.f32.mrf.mxu0
      %v3372 = vpop.f32.mrf.mxu0
      %v3373 = vadd.f32 0.0, %v3372
      %v3374 = vpop.f32.mrf.mxu0
      %3375 = vmatprep.mubr.bf16.mxu0 0
      %3376 = vmatmul.mubr.bf16.gmra.mxu0 %v3238
      %v3377 = vpop.f32.mrf.mxu0
      %v3378 = vadd.f32 0.0, %v3377
      %v3379 = vpop.f32.mrf.mxu0
      %v3380 = vpop.f32.mrf.mxu0
      %v3381 = vadd.f32 0.0, %v3380
      %v3382 = vpop.f32.mrf.mxu0
      %3383 = vmatprep.mubr.bf16.mxu0 0
      %3384 = vmatmul.mubr.bf16.gmra.mxu0 %v3241
      %v3385 = vpop.f32.mrf.mxu0
      %v3386 = vadd.f32 0.0, %v3385
      %v3387 = vpop.f32.mrf.mxu0
      %v3388 = vpop.f32.mrf.mxu0
      %v3389 = vadd.f32 0.0, %v3388
      %v3390 = vpop.f32.mrf.mxu0
      %3391 = vmatprep.mubr.bf16.mxu0 0
      %3392 = vmatmul.mubr.bf16.gmra.mxu0 %v3244
      %v3393 = vpop.f32.mrf.mxu0
      %v3394 = vadd.f32 0.0, %v3393
      %v3395 = vpop.f32.mrf.mxu0
      %v3396 = vpop.f32.mrf.mxu0
      %v3397 = vadd.f32 0.0, %v3396
      %v3398 = vpop.f32.mrf.mxu0
      %3399 = vmatprep.mubr.bf16.mxu0 0
      %3400 = vmatmul.mubr.bf16.gmra.mxu0 %v3247
      %v3401 = vpop.f32.mrf.mxu0
      %v3402 = vadd.f32 0.0, %v3401
      %v3403 = vpop.f32.mrf.mxu0
      %v3404 = vpop.f32.mrf.mxu0
      %v3405 = vadd.f32 0.0, %v3404
      %v3406 = vpop.f32.mrf.mxu0
      %3407 = vmatprep.mubr.bf16.mxu0 0
      %3408 = vmatmul.mubr.bf16.gmra.mxu0 %v3250
      %v3409 = vpop.f32.mrf.mxu0
      %v3410 = vadd.f32 0.0, %v3409
      %v3411 = vpop.f32.mrf.mxu0
      %v3412 = vpop.f32.mrf.mxu0
      %v3413 = vadd.f32 0.0, %v3412
      %v3414 = vpop.f32.mrf.mxu0
      %3415 = vdwg.mxu0
      %v3416 = vadd.f32 %v3057, %v3290
      %v3417 = vadd.f32 %v3058, %v3293
      %v3418 = vadd.f32 %v3059, %v3298
      %v3419 = vadd.f32 %v3060, %v3301
      %v3420 = vadd.f32 %v3061, %v3306
      %v3421 = vadd.f32 %v3062, %v3309
      %v3422 = vadd.f32 %v3063, %v3314
      %v3423 = vadd.f32 %v3064, %v3317
      %v3424 = vadd.f32 %v3065, %v3322
      %v3425 = vadd.f32 %v3066, %v3325
      %v3426 = vadd.f32 %v3067, %v3330
      %v3427 = vadd.f32 %v3068, %v3333
      %v3428 = vadd.f32 %v3069, %v3338
      %v3429 = vadd.f32 %v3070, %v3341
      %v3430 = vadd.f32 %v3071, %v3346
      %v3431 = vadd.f32 %v3072, %v3349
      %v3432 = vadd.f32 %v3073, %v3354
      %v3433 = vadd.f32 %v3074, %v3357
      %v3434 = vadd.f32 %v3075, %v3362
      %v3435 = vadd.f32 %v3076, %v3365
      %v3436 = vadd.f32 %v3077, %v3370
      %v3437 = vadd.f32 %v3078, %v3373
      %v3438 = vadd.f32 %v3079, %v3378
      %v3439 = vadd.f32 %v3080, %v3381
      %v3440 = vadd.f32 %v3081, %v3386
      %v3441 = vadd.f32 %v3082, %v3389
      %v3442 = vadd.f32 %v3083, %v3394
      %v3443 = vadd.f32 %v3084, %v3397
      %v3444 = vadd.f32 %v3085, %v3402
      %v3445 = vadd.f32 %v3086, %v3405
      %v3446 = vadd.f32 %v3087, %v3410
      %v3447 = vadd.f32 %v3088, %v3413
      %s3448 = scalar_lea.vmem [#allocation2], 160
      %v3449 = vld [vmem:[%s3448] sm:$0xf]
      %v3450 = vld [vmem:[%s3448 + $0x4] sm:$0xf]
      %v3451 = vld [vmem:[%s3448 + $0x8] sm:$0xf]
      %v3452 = vld [vmem:[%s3448 + $0xc] sm:$0xf]
      %v3453 = vld [vmem:[%s3448 + $0x10] sm:$0xf]
      %v3454 = vld [vmem:[%s3448 + $0x14] sm:$0xf]
      %v3455 = vld [vmem:[%s3448 + $0x18] sm:$0xf]
      %v3456 = vld [vmem:[%s3448 + $0x1c] sm:$0xf]
      %v3457 = vld [vmem:[%s3448 + $0x20] sm:$0xf]
      %v3458 = vld [vmem:[%s3448 + $0x24] sm:$0xf]
      %v3459 = vld [vmem:[%s3448 + $0x28] sm:$0xf]
      %v3460 = vld [vmem:[%s3448 + $0x2c] sm:$0xf]
      %v3461 = vld [vmem:[%s3448 + $0x30] sm:$0xf]
      %v3462 = vld [vmem:[%s3448 + $0x34] sm:$0xf]
      %v3463 = vld [vmem:[%s3448 + $0x38] sm:$0xf]
      %v3464 = vld [vmem:[%s3448 + $0x3c] sm:$0xf]
      %v3465 = vld [vmem:[%s3448 + $0x40] sm:$0xf]
      %v3466 = vld [vmem:[%s3448 + $0x44] sm:$0xf]
      %v3467 = vld [vmem:[%s3448 + $0x48] sm:$0xf]
      %v3468 = vld [vmem:[%s3448 + $0x4c] sm:$0xf]
      %v3469 = vld [vmem:[%s3448 + $0x50] sm:$0xf]
      %v3470 = vld [vmem:[%s3448 + $0x54] sm:$0xf]
      %v3471 = vld [vmem:[%s3448 + $0x58] sm:$0xf]
      %v3472 = vld [vmem:[%s3448 + $0x5c] sm:$0xf]
      %v3473 = vld [vmem:[%s3448 + $0x60] sm:$0xf]
      %v3474 = vld [vmem:[%s3448 + $0x64] sm:$0xf]
      %v3475 = vld [vmem:[%s3448 + $0x68] sm:$0xf]
      %v3476 = vld [vmem:[%s3448 + $0x6c] sm:$0xf]
      %v3477 = vld [vmem:[%s3448 + $0x70] sm:$0xf]
      %v3478 = vld [vmem:[%s3448 + $0x74] sm:$0xf]
      %v3479 = vld [vmem:[%s3448 + $0x78] sm:$0xf]
      %v3480 = vld [vmem:[%s3448 + $0x7c] sm:$0xf]
      %s3481 = scalar_lea.vmem %s1, 14
      %v3482 = vld [vmem:[%s3481] sm:$0x3]
      %v3515 = vunpack.c.l.b16 %v3449
      %v3516 = vunpack.c.l.b16 %v3450
      %v3517 = vunpack.c.l.b16 %v3451
      %v3518 = vunpack.c.l.b16 %v3452
      %v3519 = vunpack.c.l.b16 %v3453
      %v3520 = vunpack.c.l.b16 %v3454
      %v3521 = vunpack.c.l.b16 %v3455
      %v3522 = vunpack.c.l.b16 %v3456
      %v3523 = vunpack.c.l.b16 %v3457
      %v3524 = vunpack.c.l.b16 %v3458
      %v3525 = vunpack.c.l.b16 %v3459
      %v3526 = vunpack.c.l.b16 %v3460
      %v3527 = vunpack.c.l.b16 %v3461
      %v3528 = vunpack.c.l.b16 %v3462
      %v3529 = vunpack.c.l.b16 %v3463
      %v3530 = vunpack.c.l.b16 %v3464
      %v3531 = vunpack.c.l.b16 %v3465
      %v3532 = vunpack.c.l.b16 %v3466
      %v3533 = vunpack.c.l.b16 %v3467
      %v3534 = vunpack.c.l.b16 %v3468
      %v3535 = vunpack.c.l.b16 %v3469
      %v3536 = vunpack.c.l.b16 %v3470
      %v3537 = vunpack.c.l.b16 %v3471
      %v3538 = vunpack.c.l.b16 %v3472
      %v3539 = vunpack.c.l.b16 %v3473
      %v3540 = vunpack.c.l.b16 %v3474
      %v3541 = vunpack.c.l.b16 %v3475
      %v3542 = vunpack.c.l.b16 %v3476
      %v3543 = vunpack.c.l.b16 %v3477
      %v3544 = vunpack.c.l.b16 %v3478
      %v3545 = vunpack.c.l.b16 %v3479
      %v3546 = vunpack.c.l.b16 %v3480
      %v3547 = vpack.c.b16 %v3516, %v3515
      %v3548 = vpack.c.b16 %v3518, %v3517
      %v3549 = vpack.c.b16 %v3520, %v3519
      %v3550 = vpack.c.b16 %v3522, %v3521
      %v3551 = vpack.c.b16 %v3524, %v3523
      %v3552 = vpack.c.b16 %v3526, %v3525
      %v3553 = vpack.c.b16 %v3528, %v3527
      %v3554 = vpack.c.b16 %v3530, %v3529
      %v3555 = vpack.c.b16 %v3532, %v3531
      %v3556 = vpack.c.b16 %v3534, %v3533
      %v3557 = vpack.c.b16 %v3536, %v3535
      %v3558 = vpack.c.b16 %v3538, %v3537
      %v3559 = vpack.c.b16 %v3540, %v3539
      %v3560 = vpack.c.b16 %v3542, %v3541
      %v3561 = vpack.c.b16 %v3544, %v3543
      %v3562 = vpack.c.b16 %v3546, %v3545
      %v3564 = vsel %vm1151, %v3547, 0
      %v3567 = vsel %vm1151, %v3548, 0
      %v3570 = vsel %vm1151, %v3549, 0
      %v3573 = vsel %vm1151, %v3550, 0
      %v3576 = vsel %vm1151, %v3551, 0
      %v3579 = vsel %vm1151, %v3552, 0
      %v3582 = vsel %vm1151, %v3553, 0
      %v3585 = vsel %vm1151, %v3554, 0
      %v3588 = vsel %vm1151, %v3555, 0
      %v3591 = vsel %vm1151, %v3556, 0
      %v3594 = vsel %vm1151, %v3557, 0
      %v3597 = vsel %vm1151, %v3558, 0
      %v3600 = vsel %vm1151, %v3559, 0
      %v3603 = vsel %vm1151, %v3560, 0
      %v3606 = vsel %vm1151, %v3561, 0
      %v3609 = vsel %vm1151, %v3562, 0
      %v3612 = vsel %vm1200, %v3482, 0
      %3614 = vmatprep.subr.bf16.mxu0 0
      %3615 = vmatpush1.bf16.msra.mxu0 0
      %3616 = vmatprep.subr.bf16.mxu0 0
      %3617 = vmatpush1.bf16.msra.mxu0 0
      %3618 = vmatprep.subr.bf16.mxu0 0
      %3619 = vmatpush1.bf16.msra.mxu0 0
      %3620 = vmatprep.subr.bf16.mxu0 0
      %3621 = vmatpush1.bf16.msra.mxu0 0
      %3622 = vmatprep.subr.bf16.mxu0 0
      %3623 = vmatpush1.bf16.msra.mxu0 0
      %3624 = vmatprep.subr.bf16.mxu0 0
      %3625 = vmatpush1.bf16.msra.mxu0 0
      %3626 = vmatprep.subr.bf16.mxu0 0
      %3627 = vmatpush1.bf16.msra.mxu0 0
      %3628 = vmatprep.subr.bf16.mxu0 0
      %3629 = vmatpush1.bf16.msra.mxu0 %v3612
      %3630 = vmatprep.subr.bf16.mxu0 0
      %3631 = vmatpush2.bf16.msra.mxu0 0
      %3632 = vmatprep.subr.bf16.mxu0 0
      %3633 = vmatpush2.bf16.msra.mxu0 0
      %3634 = vmatprep.subr.bf16.mxu0 0
      %3635 = vmatpush2.bf16.msra.mxu0 0
      %3636 = vmatprep.subr.bf16.mxu0 0
      %3637 = vmatpush2.bf16.msra.mxu0 0
      %3638 = vmatprep.subr.bf16.mxu0 0
      %3639 = vmatpush2.bf16.msra.mxu0 0
      %3640 = vmatprep.subr.bf16.mxu0 0
      %3641 = vmatpush2.bf16.msra.mxu0 0
      %3642 = vmatprep.subr.bf16.mxu0 0
      %3643 = vmatpush2.bf16.msra.mxu0 0
      %3644 = vmatprep.subr.bf16.mxu0 0
      %3645 = vmatpush2.bf16.msra.mxu0 0
      %3646 = vmatprep.mubr.bf16.mxu0 0
      %3647 = vmatmul.mubr.bf16.gmra.mxu0 %v3564
      %v3648 = vpop.f32.mrf.mxu0
      %v3649 = vadd.f32 0.0, %v3648
      %v3650 = vpop.f32.mrf.mxu0
      %v3651 = vpop.f32.mrf.mxu0
      %v3652 = vadd.f32 0.0, %v3651
      %v3653 = vpop.f32.mrf.mxu0
      %3654 = vmatprep.mubr.bf16.mxu0 0
      %3655 = vmatmul.mubr.bf16.gmra.mxu0 %v3567
      %v3656 = vpop.f32.mrf.mxu0
      %v3657 = vadd.f32 0.0, %v3656
      %v3658 = vpop.f32.mrf.mxu0
      %v3659 = vpop.f32.mrf.mxu0
      %v3660 = vadd.f32 0.0, %v3659
      %v3661 = vpop.f32.mrf.mxu0
      %3662 = vmatprep.mubr.bf16.mxu0 0
      %3663 = vmatmul.mubr.bf16.gmra.mxu0 %v3570
      %v3664 = vpop.f32.mrf.mxu0
      %v3665 = vadd.f32 0.0, %v3664
      %v3666 = vpop.f32.mrf.mxu0
      %v3667 = vpop.f32.mrf.mxu0
      %v3668 = vadd.f32 0.0, %v3667
      %v3669 = vpop.f32.mrf.mxu0
      %3670 = vmatprep.mubr.bf16.mxu0 0
      %3671 = vmatmul.mubr.bf16.gmra.mxu0 %v3573
      %v3672 = vpop.f32.mrf.mxu0
      %v3673 = vadd.f32 0.0, %v3672
      %v3674 = vpop.f32.mrf.mxu0
      %v3675 = vpop.f32.mrf.mxu0
      %v3676 = vadd.f32 0.0, %v3675
      %v3677 = vpop.f32.mrf.mxu0
      %3678 = vmatprep.mubr.bf16.mxu0 0
      %3679 = vmatmul.mubr.bf16.gmra.mxu0 %v3576
      %v3680 = vpop.f32.mrf.mxu0
      %v3681 = vadd.f32 0.0, %v3680
      %v3682 = vpop.f32.mrf.mxu0
      %v3683 = vpop.f32.mrf.mxu0
      %v3684 = vadd.f32 0.0, %v3683
      %v3685 = vpop.f32.mrf.mxu0
      %3686 = vmatprep.mubr.bf16.mxu0 0
      %3687 = vmatmul.mubr.bf16.gmra.mxu0 %v3579
      %v3688 = vpop.f32.mrf.mxu0
      %v3689 = vadd.f32 0.0, %v3688
      %v3690 = vpop.f32.mrf.mxu0
      %v3691 = vpop.f32.mrf.mxu0
      %v3692 = vadd.f32 0.0, %v3691
      %v3693 = vpop.f32.mrf.mxu0
      %3694 = vmatprep.mubr.bf16.mxu0 0
      %3695 = vmatmul.mubr.bf16.gmra.mxu0 %v3582
      %v3696 = vpop.f32.mrf.mxu0
      %v3697 = vadd.f32 0.0, %v3696
      %v3698 = vpop.f32.mrf.mxu0
      %v3699 = vpop.f32.mrf.mxu0
      %v3700 = vadd.f32 0.0, %v3699
      %v3701 = vpop.f32.mrf.mxu0
      %3702 = vmatprep.mubr.bf16.mxu0 0
      %3703 = vmatmul.mubr.bf16.gmra.mxu0 %v3585
      %v3704 = vpop.f32.mrf.mxu0
      %v3705 = vadd.f32 0.0, %v3704
      %v3706 = vpop.f32.mrf.mxu0
      %v3707 = vpop.f32.mrf.mxu0
      %v3708 = vadd.f32 0.0, %v3707
      %v3709 = vpop.f32.mrf.mxu0
      %3710 = vmatprep.mubr.bf16.mxu0 0
      %3711 = vmatmul.mubr.bf16.gmra.mxu0 %v3588
      %v3712 = vpop.f32.mrf.mxu0
      %v3713 = vadd.f32 0.0, %v3712
      %v3714 = vpop.f32.mrf.mxu0
      %v3715 = vpop.f32.mrf.mxu0
      %v3716 = vadd.f32 0.0, %v3715
      %v3717 = vpop.f32.mrf.mxu0
      %3718 = vmatprep.mubr.bf16.mxu0 0
      %3719 = vmatmul.mubr.bf16.gmra.mxu0 %v3591
      %v3720 = vpop.f32.mrf.mxu0
      %v3721 = vadd.f32 0.0, %v3720
      %v3722 = vpop.f32.mrf.mxu0
      %v3723 = vpop.f32.mrf.mxu0
      %v3724 = vadd.f32 0.0, %v3723
      %v3725 = vpop.f32.mrf.mxu0
      %3726 = vmatprep.mubr.bf16.mxu0 0
      %3727 = vmatmul.mubr.bf16.gmra.mxu0 %v3594
      %v3728 = vpop.f32.mrf.mxu0
      %v3729 = vadd.f32 0.0, %v3728
      %v3730 = vpop.f32.mrf.mxu0
      %v3731 = vpop.f32.mrf.mxu0
      %v3732 = vadd.f32 0.0, %v3731
      %v3733 = vpop.f32.mrf.mxu0
      %3734 = vmatprep.mubr.bf16.mxu0 0
      %3735 = vmatmul.mubr.bf16.gmra.mxu0 %v3597
      %v3736 = vpop.f32.mrf.mxu0
      %v3737 = vadd.f32 0.0, %v3736
      %v3738 = vpop.f32.mrf.mxu0
      %v3739 = vpop.f32.mrf.mxu0
      %v3740 = vadd.f32 0.0, %v3739
      %v3741 = vpop.f32.mrf.mxu0
      %3742 = vmatprep.mubr.bf16.mxu0 0
      %3743 = vmatmul.mubr.bf16.gmra.mxu0 %v3600
      %v3744 = vpop.f32.mrf.mxu0
      %v3745 = vadd.f32 0.0, %v3744
      %v3746 = vpop.f32.mrf.mxu0
      %v3747 = vpop.f32.mrf.mxu0
      %v3748 = vadd.f32 0.0, %v3747
      %v3749 = vpop.f32.mrf.mxu0
      %3750 = vmatprep.mubr.bf16.mxu0 0
      %3751 = vmatmul.mubr.bf16.gmra.mxu0 %v3603
      %v3752 = vpop.f32.mrf.mxu0
      %v3753 = vadd.f32 0.0, %v3752
      %v3754 = vpop.f32.mrf.mxu0
      %v3755 = vpop.f32.mrf.mxu0
      %v3756 = vadd.f32 0.0, %v3755
      %v3757 = vpop.f32.mrf.mxu0
      %3758 = vmatprep.mubr.bf16.mxu0 0
      %3759 = vmatmul.mubr.bf16.gmra.mxu0 %v3606
      %v3760 = vpop.f32.mrf.mxu0
      %v3761 = vadd.f32 0.0, %v3760
      %v3762 = vpop.f32.mrf.mxu0
      %v3763 = vpop.f32.mrf.mxu0
      %v3764 = vadd.f32 0.0, %v3763
      %v3765 = vpop.f32.mrf.mxu0
      %3766 = vmatprep.mubr.bf16.mxu0 0
      %3767 = vmatmul.mubr.bf16.gmra.mxu0 %v3609
      %v3768 = vpop.f32.mrf.mxu0
      %v3769 = vadd.f32 0.0, %v3768
      %v3770 = vpop.f32.mrf.mxu0
      %v3771 = vpop.f32.mrf.mxu0
      %v3772 = vadd.f32 0.0, %v3771
      %v3773 = vpop.f32.mrf.mxu0
      %3774 = vdwg.mxu0
      %v3775 = vadd.f32 %v3416, %v3649
      %v3776 = vadd.f32 %v3417, %v3652
      %v3777 = vadd.f32 %v3418, %v3657
      %v3778 = vadd.f32 %v3419, %v3660
      %v3779 = vadd.f32 %v3420, %v3665
      %v3780 = vadd.f32 %v3421, %v3668
      %v3781 = vadd.f32 %v3422, %v3673
      %v3782 = vadd.f32 %v3423, %v3676
      %v3783 = vadd.f32 %v3424, %v3681
      %v3784 = vadd.f32 %v3425, %v3684
      %v3785 = vadd.f32 %v3426, %v3689
      %v3786 = vadd.f32 %v3427, %v3692
      %v3787 = vadd.f32 %v3428, %v3697
      %v3788 = vadd.f32 %v3429, %v3700
      %v3789 = vadd.f32 %v3430, %v3705
      %v3790 = vadd.f32 %v3431, %v3708
      %v3791 = vadd.f32 %v3432, %v3713
      %v3792 = vadd.f32 %v3433, %v3716
      %v3793 = vadd.f32 %v3434, %v3721
      %v3794 = vadd.f32 %v3435, %v3724
      %v3795 = vadd.f32 %v3436, %v3729
      %v3796 = vadd.f32 %v3437, %v3732
      %v3797 = vadd.f32 %v3438, %v3737
      %v3798 = vadd.f32 %v3439, %v3740
      %v3799 = vadd.f32 %v3440, %v3745
      %v3800 = vadd.f32 %v3441, %v3748
      %v3801 = vadd.f32 %v3442, %v3753
      %v3802 = vadd.f32 %v3443, %v3756
      %v3803 = vadd.f32 %v3444, %v3761
      %v3804 = vadd.f32 %v3445, %v3764
      %v3805 = vadd.f32 %v3446, %v3769
      %v3806 = vadd.f32 %v3447, %v3772
      %s3807 = scalar_lea.vmem [#allocation2], 304
      %v3808 = vld [vmem:[%s3807] sm:$0xf]
      %v3809 = vld [vmem:[%s3807 + $0x4] sm:$0xf]
      %v3810 = vld [vmem:[%s3807 + $0x8] sm:$0xf]
      %v3811 = vld [vmem:[%s3807 + $0xc] sm:$0xf]
      %v3812 = vld [vmem:[%s3807 + $0x10] sm:$0xf]
      %v3813 = vld [vmem:[%s3807 + $0x14] sm:$0xf]
      %v3814 = vld [vmem:[%s3807 + $0x18] sm:$0xf]
      %v3815 = vld [vmem:[%s3807 + $0x1c] sm:$0xf]
      %v3816 = vld [vmem:[%s3807 + $0x20] sm:$0xf]
      %v3817 = vld [vmem:[%s3807 + $0x24] sm:$0xf]
      %v3818 = vld [vmem:[%s3807 + $0x28] sm:$0xf]
      %v3819 = vld [vmem:[%s3807 + $0x2c] sm:$0xf]
      %v3820 = vld [vmem:[%s3807 + $0x30] sm:$0xf]
      %v3821 = vld [vmem:[%s3807 + $0x34] sm:$0xf]
      %v3822 = vld [vmem:[%s3807 + $0x38] sm:$0xf]
      %v3823 = vld [vmem:[%s3807 + $0x3c] sm:$0xf]
      %v3824 = vld [vmem:[%s3807 + $0x40] sm:$0xf]
      %v3825 = vld [vmem:[%s3807 + $0x44] sm:$0xf]
      %v3826 = vld [vmem:[%s3807 + $0x48] sm:$0xf]
      %v3827 = vld [vmem:[%s3807 + $0x4c] sm:$0xf]
      %v3828 = vld [vmem:[%s3807 + $0x50] sm:$0xf]
      %v3829 = vld [vmem:[%s3807 + $0x54] sm:$0xf]
      %v3830 = vld [vmem:[%s3807 + $0x58] sm:$0xf]
      %v3831 = vld [vmem:[%s3807 + $0x5c] sm:$0xf]
      %v3832 = vld [vmem:[%s3807 + $0x60] sm:$0xf]
      %v3833 = vld [vmem:[%s3807 + $0x64] sm:$0xf]
      %v3834 = vld [vmem:[%s3807 + $0x68] sm:$0xf]
      %v3835 = vld [vmem:[%s3807 + $0x6c] sm:$0xf]
      %v3836 = vld [vmem:[%s3807 + $0x70] sm:$0xf]
      %v3837 = vld [vmem:[%s3807 + $0x74] sm:$0xf]
      %v3838 = vld [vmem:[%s3807 + $0x78] sm:$0xf]
      %v3839 = vld [vmem:[%s3807 + $0x7c] sm:$0xf]
      %s3840 = scalar_lea.vmem %s1, 16
      %v3841 = vld [vmem:[%s3840] sm:$0x3]
      %v3874 = vunpack.c.l.b16 %v3808
      %v3875 = vunpack.c.l.b16 %v3809
      %v3876 = vunpack.c.l.b16 %v3810
      %v3877 = vunpack.c.l.b16 %v3811
      %v3878 = vunpack.c.l.b16 %v3812
      %v3879 = vunpack.c.l.b16 %v3813
      %v3880 = vunpack.c.l.b16 %v3814
      %v3881 = vunpack.c.l.b16 %v3815
      %v3882 = vunpack.c.l.b16 %v3816
      %v3883 = vunpack.c.l.b16 %v3817
      %v3884 = vunpack.c.l.b16 %v3818
      %v3885 = vunpack.c.l.b16 %v3819
      %v3886 = vunpack.c.l.b16 %v3820
      %v3887 = vunpack.c.l.b16 %v3821
      %v3888 = vunpack.c.l.b16 %v3822
      %v3889 = vunpack.c.l.b16 %v3823
      %v3890 = vunpack.c.l.b16 %v3824
      %v3891 = vunpack.c.l.b16 %v3825
      %v3892 = vunpack.c.l.b16 %v3826
      %v3893 = vunpack.c.l.b16 %v3827
      %v3894 = vunpack.c.l.b16 %v3828
      %v3895 = vunpack.c.l.b16 %v3829
      %v3896 = vunpack.c.l.b16 %v3830
      %v3897 = vunpack.c.l.b16 %v3831
      %v3898 = vunpack.c.l.b16 %v3832
      %v3899 = vunpack.c.l.b16 %v3833
      %v3900 = vunpack.c.l.b16 %v3834
      %v3901 = vunpack.c.l.b16 %v3835
      %v3902 = vunpack.c.l.b16 %v3836
      %v3903 = vunpack.c.l.b16 %v3837
      %v3904 = vunpack.c.l.b16 %v3838
      %v3905 = vunpack.c.l.b16 %v3839
      %v3906 = vpack.c.b16 %v3875, %v3874
      %v3907 = vpack.c.b16 %v3877, %v3876
      %v3908 = vpack.c.b16 %v3879, %v3878
      %v3909 = vpack.c.b16 %v3881, %v3880
      %v3910 = vpack.c.b16 %v3883, %v3882
      %v3911 = vpack.c.b16 %v3885, %v3884
      %v3912 = vpack.c.b16 %v3887, %v3886
      %v3913 = vpack.c.b16 %v3889, %v3888
      %v3914 = vpack.c.b16 %v3891, %v3890
      %v3915 = vpack.c.b16 %v3893, %v3892
      %v3916 = vpack.c.b16 %v3895, %v3894
      %v3917 = vpack.c.b16 %v3897, %v3896
      %v3918 = vpack.c.b16 %v3899, %v3898
      %v3919 = vpack.c.b16 %v3901, %v3900
      %v3920 = vpack.c.b16 %v3903, %v3902
      %v3921 = vpack.c.b16 %v3905, %v3904
      %v3923 = vsel %vm1151, %v3906, 0
      %v3926 = vsel %vm1151, %v3907, 0
      %v3929 = vsel %vm1151, %v3908, 0
      %v3932 = vsel %vm1151, %v3909, 0
      %v3935 = vsel %vm1151, %v3910, 0
      %v3938 = vsel %vm1151, %v3911, 0
      %v3941 = vsel %vm1151, %v3912, 0
      %v3944 = vsel %vm1151, %v3913, 0
      %v3947 = vsel %vm1151, %v3914, 0
      %v3950 = vsel %vm1151, %v3915, 0
      %v3953 = vsel %vm1151, %v3916, 0
      %v3956 = vsel %vm1151, %v3917, 0
      %v3959 = vsel %vm1151, %v3918, 0
      %v3962 = vsel %vm1151, %v3919, 0
      %v3965 = vsel %vm1151, %v3920, 0
      %v3968 = vsel %vm1151, %v3921, 0
      %v3971 = vsel %vm1200, %v3841, 0
      %3973 = vmatprep.subr.bf16.mxu0 0
      %3974 = vmatpush1.bf16.msra.mxu0 0
      %3975 = vmatprep.subr.bf16.mxu0 0
      %3976 = vmatpush1.bf16.msra.mxu0 0
      %3977 = vmatprep.subr.bf16.mxu0 0
      %3978 = vmatpush1.bf16.msra.mxu0 0
      %3979 = vmatprep.subr.bf16.mxu0 0
      %3980 = vmatpush1.bf16.msra.mxu0 0
      %3981 = vmatprep.subr.bf16.mxu0 0
      %3982 = vmatpush1.bf16.msra.mxu0 0
      %3983 = vmatprep.subr.bf16.mxu0 0
      %3984 = vmatpush1.bf16.msra.mxu0 0
      %3985 = vmatprep.subr.bf16.mxu0 0
      %3986 = vmatpush1.bf16.msra.mxu0 0
      %3987 = vmatprep.subr.bf16.mxu0 0
      %3988 = vmatpush1.bf16.msra.mxu0 %v3971
      %3989 = vmatprep.subr.bf16.mxu0 0
      %3990 = vmatpush2.bf16.msra.mxu0 0
      %3991 = vmatprep.subr.bf16.mxu0 0
      %3992 = vmatpush2.bf16.msra.mxu0 0
      %3993 = vmatprep.subr.bf16.mxu0 0
      %3994 = vmatpush2.bf16.msra.mxu0 0
      %3995 = vmatprep.subr.bf16.mxu0 0
      %3996 = vmatpush2.bf16.msra.mxu0 0
      %3997 = vmatprep.subr.bf16.mxu0 0
      %3998 = vmatpush2.bf16.msra.mxu0 0
      %3999 = vmatprep.subr.bf16.mxu0 0
      %4000 = vmatpush2.bf16.msra.mxu0 0
      %4001 = vmatprep.subr.bf16.mxu0 0
      %4002 = vmatpush2.bf16.msra.mxu0 0
      %4003 = vmatprep.subr.bf16.mxu0 0
      %4004 = vmatpush2.bf16.msra.mxu0 0
      %4005 = vmatprep.mubr.bf16.mxu0 0
      %4006 = vmatmul.mubr.bf16.gmra.mxu0 %v3923
      %v4007 = vpop.f32.mrf.mxu0
      %v4008 = vadd.f32 0.0, %v4007
      %v4009 = vpop.f32.mrf.mxu0
      %v4010 = vpop.f32.mrf.mxu0
      %v4011 = vadd.f32 0.0, %v4010
      %v4012 = vpop.f32.mrf.mxu0
      %4013 = vmatprep.mubr.bf16.mxu0 0
      %4014 = vmatmul.mubr.bf16.gmra.mxu0 %v3926
      %v4015 = vpop.f32.mrf.mxu0
      %v4016 = vadd.f32 0.0, %v4015
      %v4017 = vpop.f32.mrf.mxu0
      %v4018 = vpop.f32.mrf.mxu0
      %v4019 = vadd.f32 0.0, %v4018
      %v4020 = vpop.f32.mrf.mxu0
      %4021 = vmatprep.mubr.bf16.mxu0 0
      %4022 = vmatmul.mubr.bf16.gmra.mxu0 %v3929
      %v4023 = vpop.f32.mrf.mxu0
      %v4024 = vadd.f32 0.0, %v4023
      %v4025 = vpop.f32.mrf.mxu0
      %v4026 = vpop.f32.mrf.mxu0
      %v4027 = vadd.f32 0.0, %v4026
      %v4028 = vpop.f32.mrf.mxu0
      %4029 = vmatprep.mubr.bf16.mxu0 0
      %4030 = vmatmul.mubr.bf16.gmra.mxu0 %v3932
      %v4031 = vpop.f32.mrf.mxu0
      %v4032 = vadd.f32 0.0, %v4031
      %v4033 = vpop.f32.mrf.mxu0
      %v4034 = vpop.f32.mrf.mxu0
      %v4035 = vadd.f32 0.0, %v4034
      %v4036 = vpop.f32.mrf.mxu0
      %4037 = vmatprep.mubr.bf16.mxu0 0
      %4038 = vmatmul.mubr.bf16.gmra.mxu0 %v3935
      %v4039 = vpop.f32.mrf.mxu0
      %v4040 = vadd.f32 0.0, %v4039
      %v4041 = vpop.f32.mrf.mxu0
      %v4042 = vpop.f32.mrf.mxu0
      %v4043 = vadd.f32 0.0, %v4042
      %v4044 = vpop.f32.mrf.mxu0
      %4045 = vmatprep.mubr.bf16.mxu0 0
      %4046 = vmatmul.mubr.bf16.gmra.mxu0 %v3938
      %v4047 = vpop.f32.mrf.mxu0
      %v4048 = vadd.f32 0.0, %v4047
      %v4049 = vpop.f32.mrf.mxu0
      %v4050 = vpop.f32.mrf.mxu0
      %v4051 = vadd.f32 0.0, %v4050
      %v4052 = vpop.f32.mrf.mxu0
      %4053 = vmatprep.mubr.bf16.mxu0 0
      %4054 = vmatmul.mubr.bf16.gmra.mxu0 %v3941
      %v4055 = vpop.f32.mrf.mxu0
      %v4056 = vadd.f32 0.0, %v4055
      %v4057 = vpop.f32.mrf.mxu0
      %v4058 = vpop.f32.mrf.mxu0
      %v4059 = vadd.f32 0.0, %v4058
      %v4060 = vpop.f32.mrf.mxu0
      %4061 = vmatprep.mubr.bf16.mxu0 0
      %4062 = vmatmul.mubr.bf16.gmra.mxu0 %v3944
      %v4063 = vpop.f32.mrf.mxu0
      %v4064 = vadd.f32 0.0, %v4063
      %v4065 = vpop.f32.mrf.mxu0
      %v4066 = vpop.f32.mrf.mxu0
      %v4067 = vadd.f32 0.0, %v4066
      %v4068 = vpop.f32.mrf.mxu0
      %4069 = vmatprep.mubr.bf16.mxu0 0
      %4070 = vmatmul.mubr.bf16.gmra.mxu0 %v3947
      %v4071 = vpop.f32.mrf.mxu0
      %v4072 = vadd.f32 0.0, %v4071
      %v4073 = vpop.f32.mrf.mxu0
      %v4074 = vpop.f32.mrf.mxu0
      %v4075 = vadd.f32 0.0, %v4074
      %v4076 = vpop.f32.mrf.mxu0
      %4077 = vmatprep.mubr.bf16.mxu0 0
      %4078 = vmatmul.mubr.bf16.gmra.mxu0 %v3950
      %v4079 = vpop.f32.mrf.mxu0
      %v4080 = vadd.f32 0.0, %v4079
      %v4081 = vpop.f32.mrf.mxu0
      %v4082 = vpop.f32.mrf.mxu0
      %v4083 = vadd.f32 0.0, %v4082
      %v4084 = vpop.f32.mrf.mxu0
      %4085 = vmatprep.mubr.bf16.mxu0 0
      %4086 = vmatmul.mubr.bf16.gmra.mxu0 %v3953
      %v4087 = vpop.f32.mrf.mxu0
      %v4088 = vadd.f32 0.0, %v4087
      %v4089 = vpop.f32.mrf.mxu0
      %v4090 = vpop.f32.mrf.mxu0
      %v4091 = vadd.f32 0.0, %v4090
      %v4092 = vpop.f32.mrf.mxu0
      %4093 = vmatprep.mubr.bf16.mxu0 0
      %4094 = vmatmul.mubr.bf16.gmra.mxu0 %v3956
      %v4095 = vpop.f32.mrf.mxu0
      %v4096 = vadd.f32 0.0, %v4095
      %v4097 = vpop.f32.mrf.mxu0
      %v4098 = vpop.f32.mrf.mxu0
      %v4099 = vadd.f32 0.0, %v4098
      %v4100 = vpop.f32.mrf.mxu0
      %4101 = vmatprep.mubr.bf16.mxu0 0
      %4102 = vmatmul.mubr.bf16.gmra.mxu0 %v3959
      %v4103 = vpop.f32.mrf.mxu0
      %v4104 = vadd.f32 0.0, %v4103
      %v4105 = vpop.f32.mrf.mxu0
      %v4106 = vpop.f32.mrf.mxu0
      %v4107 = vadd.f32 0.0, %v4106
      %v4108 = vpop.f32.mrf.mxu0
      %4109 = vmatprep.mubr.bf16.mxu0 0
      %4110 = vmatmul.mubr.bf16.gmra.mxu0 %v3962
      %v4111 = vpop.f32.mrf.mxu0
      %v4112 = vadd.f32 0.0, %v4111
      %v4113 = vpop.f32.mrf.mxu0
      %v4114 = vpop.f32.mrf.mxu0
      %v4115 = vadd.f32 0.0, %v4114
      %v4116 = vpop.f32.mrf.mxu0
      %4117 = vmatprep.mubr.bf16.mxu0 0
      %4118 = vmatmul.mubr.bf16.gmra.mxu0 %v3965
      %v4119 = vpop.f32.mrf.mxu0
      %v4120 = vadd.f32 0.0, %v4119
      %v4121 = vpop.f32.mrf.mxu0
      %v4122 = vpop.f32.mrf.mxu0
      %v4123 = vadd.f32 0.0, %v4122
      %v4124 = vpop.f32.mrf.mxu0
      %4125 = vmatprep.mubr.bf16.mxu0 0
      %4126 = vmatmul.mubr.bf16.gmra.mxu0 %v3968
      %v4127 = vpop.f32.mrf.mxu0
      %v4128 = vadd.f32 0.0, %v4127
      %v4129 = vpop.f32.mrf.mxu0
      %v4130 = vpop.f32.mrf.mxu0
      %v4131 = vadd.f32 0.0, %v4130
      %v4132 = vpop.f32.mrf.mxu0
      %4133 = vdwg.mxu0
      %v4134 = vadd.f32 %v3775, %v4008
      %v4135 = vadd.f32 %v3776, %v4011
      %v4136 = vadd.f32 %v3777, %v4016
      %v4137 = vadd.f32 %v3778, %v4019
      %v4138 = vadd.f32 %v3779, %v4024
      %v4139 = vadd.f32 %v3780, %v4027
      %v4140 = vadd.f32 %v3781, %v4032
      %v4141 = vadd.f32 %v3782, %v4035
      %v4142 = vadd.f32 %v3783, %v4040
      %v4143 = vadd.f32 %v3784, %v4043
      %v4144 = vadd.f32 %v3785, %v4048
      %v4145 = vadd.f32 %v3786, %v4051
      %v4146 = vadd.f32 %v3787, %v4056
      %v4147 = vadd.f32 %v3788, %v4059
      %v4148 = vadd.f32 %v3789, %v4064
      %v4149 = vadd.f32 %v3790, %v4067
      %v4150 = vadd.f32 %v3791, %v4072
      %v4151 = vadd.f32 %v3792, %v4075
      %v4152 = vadd.f32 %v3793, %v4080
      %v4153 = vadd.f32 %v3794, %v4083
      %v4154 = vadd.f32 %v3795, %v4088
      %v4155 = vadd.f32 %v3796, %v4091
      %v4156 = vadd.f32 %v3797, %v4096
      %v4157 = vadd.f32 %v3798, %v4099
      %v4158 = vadd.f32 %v3799, %v4104
      %v4159 = vadd.f32 %v3800, %v4107
      %v4160 = vadd.f32 %v3801, %v4112
      %v4161 = vadd.f32 %v3802, %v4115
      %v4162 = vadd.f32 %v3803, %v4120
      %v4163 = vadd.f32 %v3804, %v4123
      %v4164 = vadd.f32 %v3805, %v4128
      %v4165 = vadd.f32 %v3806, %v4131
      %v4166 = vsel %vm1151, %v4134, 0.0
      %v4167 = vsel %vm1151, %v4135, 0.0
      %v4168 = vadd.f32 %v4166, %v4167
      %v4169 = vsel %vm1151, %v4136, 0.0
      %v4170 = vadd.f32 %v4168, %v4169
      %v4171 = vsel %vm1151, %v4137, 0.0
      %v4172 = vadd.f32 %v4170, %v4171
      %v4173 = vsel %vm1151, %v4138, 0.0
      %v4174 = vadd.f32 %v4172, %v4173
      %v4175 = vsel %vm1151, %v4139, 0.0
      %v4176 = vadd.f32 %v4174, %v4175
      %v4177 = vsel %vm1151, %v4140, 0.0
      %v4178 = vadd.f32 %v4176, %v4177
      %v4179 = vsel %vm1151, %v4141, 0.0
      %v4180 = vadd.f32 %v4178, %v4179
      %v4181 = vsel %vm1151, %v4142, 0.0
      %v4182 = vadd.f32 %v4180, %v4181
      %v4183 = vsel %vm1151, %v4143, 0.0
      %v4184 = vadd.f32 %v4182, %v4183
      %v4185 = vsel %vm1151, %v4144, 0.0
      %v4186 = vadd.f32 %v4184, %v4185
      %v4187 = vsel %vm1151, %v4145, 0.0
      %v4188 = vadd.f32 %v4186, %v4187
      %v4189 = vsel %vm1151, %v4146, 0.0
      %v4190 = vadd.f32 %v4188, %v4189
      %v4191 = vsel %vm1151, %v4147, 0.0
      %v4192 = vadd.f32 %v4190, %v4191
      %v4193 = vsel %vm1151, %v4148, 0.0
      %v4194 = vadd.f32 %v4192, %v4193
      %v4195 = vsel %vm1151, %v4149, 0.0
      %v4196 = vadd.f32 %v4194, %v4195
      %v4197 = vsel %vm1151, %v4150, 0.0
      %v4198 = vadd.f32 %v4196, %v4197
      %v4199 = vsel %vm1151, %v4151, 0.0
      %v4200 = vadd.f32 %v4198, %v4199
      %v4201 = vsel %vm1151, %v4152, 0.0
      %v4202 = vadd.f32 %v4200, %v4201
      %v4203 = vsel %vm1151, %v4153, 0.0
      %v4204 = vadd.f32 %v4202, %v4203
      %v4205 = vsel %vm1151, %v4154, 0.0
      %v4206 = vadd.f32 %v4204, %v4205
      %v4207 = vsel %vm1151, %v4155, 0.0
      %v4208 = vadd.f32 %v4206, %v4207
      %v4209 = vsel %vm1151, %v4156, 0.0
      %v4210 = vadd.f32 %v4208, %v4209
      %v4211 = vsel %vm1151, %v4157, 0.0
      %v4212 = vadd.f32 %v4210, %v4211
      %v4213 = vsel %vm1151, %v4158, 0.0
      %v4214 = vadd.f32 %v4212, %v4213
      %v4215 = vsel %vm1151, %v4159, 0.0
      %v4216 = vadd.f32 %v4214, %v4215
      %v4217 = vsel %vm1151, %v4160, 0.0
      %v4218 = vadd.f32 %v4216, %v4217
      %v4219 = vsel %vm1151, %v4161, 0.0
      %v4220 = vadd.f32 %v4218, %v4219
      %v4221 = vsel %vm1151, %v4162, 0.0
      %v4222 = vadd.f32 %v4220, %v4221
      %v4223 = vsel %vm1151, %v4163, 0.0
      %v4224 = vadd.f32 %v4222, %v4223
      %v4225 = vsel %vm1151, %v4164, 0.0
      %v4226 = vadd.f32 %v4224, %v4225
      %v4227 = vsel %vm1151, %v4165, 0.0
      %v4228 = vadd.f32 %v4226, %v4227
      %v4229 = vrot.slane %v4228, 4
      %v4230 = vadd.f32 %v4228, %v4229
      %v4231 = vrot.slane %v4230, 2
      %v4232 = vadd.f32 %v4230, %v4231
      %v4233 = vrot.slane %v4232, 1
      %v4234 = vadd.f32 %v4232, %v4233
      %vm4235 = vcmask 24576
      %4236 = vst.msk [vmem:[%s211] sm:$0x1] %vm4235, %v4234
      %v4237 = vmul.f32 %v4134, %v4134
      %v4238 = vmul.f32 %v4135, %v4135
      %v4239 = vmul.f32 %v4136, %v4136
      %v4240 = vmul.f32 %v4137, %v4137
      %v4241 = vmul.f32 %v4138, %v4138
      %v4242 = vmul.f32 %v4139, %v4139
      %v4243 = vmul.f32 %v4140, %v4140
      %v4244 = vmul.f32 %v4141, %v4141
      %v4245 = vmul.f32 %v4142, %v4142
      %v4246 = vmul.f32 %v4143, %v4143
      %v4247 = vmul.f32 %v4144, %v4144
      %v4248 = vmul.f32 %v4145, %v4145
      %v4249 = vmul.f32 %v4146, %v4146
      %v4250 = vmul.f32 %v4147, %v4147
      %v4251 = vmul.f32 %v4148, %v4148
      %v4252 = vmul.f32 %v4149, %v4149
      %v4253 = vmul.f32 %v4150, %v4150
      %v4254 = vmul.f32 %v4151, %v4151
      %v4255 = vmul.f32 %v4152, %v4152
      %v4256 = vmul.f32 %v4153, %v4153
      %v4257 = vmul.f32 %v4154, %v4154
      %v4258 = vmul.f32 %v4155, %v4155
      %v4259 = vmul.f32 %v4156, %v4156
      %v4260 = vmul.f32 %v4157, %v4157
      %v4261 = vmul.f32 %v4158, %v4158
      %v4262 = vmul.f32 %v4159, %v4159
      %v4263 = vmul.f32 %v4160, %v4160
      %v4264 = vmul.f32 %v4161, %v4161
      %v4265 = vmul.f32 %v4162, %v4162
      %v4266 = vmul.f32 %v4163, %v4163
      %v4267 = vmul.f32 %v4164, %v4164
      %v4268 = vmul.f32 %v4165, %v4165
      %v4269 = vsel %vm1151, %v4237, 0.0
      %v4270 = vsel %vm1151, %v4238, 0.0
      %v4271 = vadd.f32 %v4269, %v4270
      %v4272 = vsel %vm1151, %v4239, 0.0
      %v4273 = vadd.f32 %v4271, %v4272
      %v4274 = vsel %vm1151, %v4240, 0.0
      %v4275 = vadd.f32 %v4273, %v4274
      %v4276 = vsel %vm1151, %v4241, 0.0
      %v4277 = vadd.f32 %v4275, %v4276
      %v4278 = vsel %vm1151, %v4242, 0.0
      %v4279 = vadd.f32 %v4277, %v4278
      %v4280 = vsel %vm1151, %v4243, 0.0
      %v4281 = vadd.f32 %v4279, %v4280
      %v4282 = vsel %vm1151, %v4244, 0.0
      %v4283 = vadd.f32 %v4281, %v4282
      %v4284 = vsel %vm1151, %v4245, 0.0
      %v4285 = vadd.f32 %v4283, %v4284
      %v4286 = vsel %vm1151, %v4246, 0.0
      %v4287 = vadd.f32 %v4285, %v4286
      %v4288 = vsel %vm1151, %v4247, 0.0
      %v4289 = vadd.f32 %v4287, %v4288
      %v4290 = vsel %vm1151, %v4248, 0.0
      %v4291 = vadd.f32 %v4289, %v4290
      %v4292 = vsel %vm1151, %v4249, 0.0
      %v4293 = vadd.f32 %v4291, %v4292
      %v4294 = vsel %vm1151, %v4250, 0.0
      %v4295 = vadd.f32 %v4293, %v4294
      %v4296 = vsel %vm1151, %v4251, 0.0
      %v4297 = vadd.f32 %v4295, %v4296
      %v4298 = vsel %vm1151, %v4252, 0.0
      %v4299 = vadd.f32 %v4297, %v4298
      %v4300 = vsel %vm1151, %v4253, 0.0
      %v4301 = vadd.f32 %v4299, %v4300
      %v4302 = vsel %vm1151, %v4254, 0.0
      %v4303 = vadd.f32 %v4301, %v4302
      %v4304 = vsel %vm1151, %v4255, 0.0
      %v4305 = vadd.f32 %v4303, %v4304
      %v4306 = vsel %vm1151, %v4256, 0.0
      %v4307 = vadd.f32 %v4305, %v4306
      %v4308 = vsel %vm1151, %v4257, 0.0
      %v4309 = vadd.f32 %v4307, %v4308
      %v4310 = vsel %vm1151, %v4258, 0.0
      %v4311 = vadd.f32 %v4309, %v4310
      %v4312 = vsel %vm1151, %v4259, 0.0
      %v4313 = vadd.f32 %v4311, %v4312
      %v4314 = vsel %vm1151, %v4260, 0.0
      %v4315 = vadd.f32 %v4313, %v4314
      %v4316 = vsel %vm1151, %v4261, 0.0
      %v4317 = vadd.f32 %v4315, %v4316
      %v4318 = vsel %vm1151, %v4262, 0.0
      %v4319 = vadd.f32 %v4317, %v4318
      %v4320 = vsel %vm1151, %v4263, 0.0
      %v4321 = vadd.f32 %v4319, %v4320
      %v4322 = vsel %vm1151, %v4264, 0.0
      %v4323 = vadd.f32 %v4321, %v4322
      %v4324 = vsel %vm1151, %v4265, 0.0
      %v4325 = vadd.f32 %v4323, %v4324
      %v4326 = vsel %vm1151, %v4266, 0.0
      %v4327 = vadd.f32 %v4325, %v4326
      %v4328 = vsel %vm1151, %v4267, 0.0
      %v4329 = vadd.f32 %v4327, %v4328
      %v4330 = vsel %vm1151, %v4268, 0.0
      %v4331 = vadd.f32 %v4329, %v4330
      %v4332 = vrot.slane %v4331, 4
      %v4333 = vadd.f32 %v4331, %v4332
      %v4334 = vrot.slane %v4333, 2
      %v4335 = vadd.f32 %v4333, %v4334
      %v4336 = vrot.slane %v4335, 1
      %v4337 = vadd.f32 %v4335, %v4336
      %4338 = vst.msk [vmem:[%s214] sm:$0x1] %vm4235, %v4337
      %v4339 = vpack.c.bf16 %v4135, %v4134
      %v4340 = vpack.c.bf16 %v4137, %v4136
      %v4341 = vpack.c.bf16 %v4139, %v4138
      %v4342 = vpack.c.bf16 %v4141, %v4140
      %v4343 = vpack.c.bf16 %v4143, %v4142
      %v4344 = vpack.c.bf16 %v4145, %v4144
      %v4345 = vpack.c.bf16 %v4147, %v4146
      %v4346 = vpack.c.bf16 %v4149, %v4148
      %v4347 = vpack.c.bf16 %v4151, %v4150
      %v4348 = vpack.c.bf16 %v4153, %v4152
      %v4349 = vpack.c.bf16 %v4155, %v4154
      %v4350 = vpack.c.bf16 %v4157, %v4156
      %v4351 = vpack.c.bf16 %v4159, %v4158
      %v4352 = vpack.c.bf16 %v4161, %v4160
      %v4353 = vpack.c.bf16 %v4163, %v4162
      %v4354 = vpack.c.bf16 %v4165, %v4164
      %v4371 = vunpack.c.l.b16 %v4339
      %v4372 = vunpack.c.h.b16 %v4339
      %v4373 = vunpack.c.l.b16 %v4340
      %v4374 = vunpack.c.h.b16 %v4340
      %v4375 = vunpack.c.l.b16 %v4341
      %v4376 = vunpack.c.h.b16 %v4341
      %v4377 = vunpack.c.l.b16 %v4342
      %v4378 = vunpack.c.h.b16 %v4342
      %v4379 = vunpack.c.l.b16 %v4343
      %v4380 = vunpack.c.h.b16 %v4343
      %v4381 = vunpack.c.l.b16 %v4344
      %v4382 = vunpack.c.h.b16 %v4344
      %v4383 = vunpack.c.l.b16 %v4345
      %v4384 = vunpack.c.h.b16 %v4345
      %v4385 = vunpack.c.l.b16 %v4346
      %v4386 = vunpack.c.h.b16 %v4346
      %v4387 = vunpack.c.l.b16 %v4347
      %v4388 = vunpack.c.h.b16 %v4347
      %v4389 = vunpack.c.l.b16 %v4348
      %v4390 = vunpack.c.h.b16 %v4348
      %v4391 = vunpack.c.l.b16 %v4349
      %v4392 = vunpack.c.h.b16 %v4349
      %v4393 = vunpack.c.l.b16 %v4350
      %v4394 = vunpack.c.h.b16 %v4350
      %v4395 = vunpack.c.l.b16 %v4351
      %v4396 = vunpack.c.h.b16 %v4351
      %v4397 = vunpack.c.l.b16 %v4352
      %v4398 = vunpack.c.h.b16 %v4352
      %v4399 = vunpack.c.l.b16 %v4353
      %v4400 = vunpack.c.h.b16 %v4353
      %v4401 = vunpack.c.l.b16 %v4354
      %v4402 = vunpack.c.h.b16 %v4354
      %v4403 = vpack.c.b16 %v4371, %v4371
      %v4404 = vpack.c.b16 %v4372, %v4372
      %v4405 = vpack.c.b16 %v4373, %v4373
      %v4406 = vpack.c.b16 %v4374, %v4374
      %v4407 = vpack.c.b16 %v4375, %v4375
      %v4408 = vpack.c.b16 %v4376, %v4376
      %v4409 = vpack.c.b16 %v4377, %v4377
      %v4410 = vpack.c.b16 %v4378, %v4378
      %v4411 = vpack.c.b16 %v4379, %v4379
      %v4412 = vpack.c.b16 %v4380, %v4380
      %v4413 = vpack.c.b16 %v4381, %v4381
      %v4414 = vpack.c.b16 %v4382, %v4382
      %v4415 = vpack.c.b16 %v4383, %v4383
      %v4416 = vpack.c.b16 %v4384, %v4384
      %v4417 = vpack.c.b16 %v4385, %v4385
      %v4418 = vpack.c.b16 %v4386, %v4386
      %v4419 = vpack.c.b16 %v4387, %v4387
      %v4420 = vpack.c.b16 %v4388, %v4388
      %v4421 = vpack.c.b16 %v4389, %v4389
      %v4422 = vpack.c.b16 %v4390, %v4390
      %v4423 = vpack.c.b16 %v4391, %v4391
      %v4424 = vpack.c.b16 %v4392, %v4392
      %v4425 = vpack.c.b16 %v4393, %v4393
      %v4426 = vpack.c.b16 %v4394, %v4394
      %v4427 = vpack.c.b16 %v4395, %v4395
      %v4428 = vpack.c.b16 %v4396, %v4396
      %v4429 = vpack.c.b16 %v4397, %v4397
      %v4430 = vpack.c.b16 %v4398, %v4398
      %v4431 = vpack.c.b16 %v4399, %v4399
      %v4432 = vpack.c.b16 %v4400, %v4400
      %v4433 = vpack.c.b16 %v4401, %v4401
      %v4434 = vpack.c.b16 %v4402, %v4402
      %4467 = vst.msk [vmem:[%s208] sm:$0xf] %vm248, %v4403
      %4468 = vst.msk [vmem:[%s208 + $0x4] sm:$0xf] %vm248, %v4404
      %4469 = vst.msk [vmem:[%s208 + $0x8] sm:$0xf] %vm248, %v4405
      %4470 = vst.msk [vmem:[%s208 + $0xc] sm:$0xf] %vm248, %v4406
      %4471 = vst.msk [vmem:[%s208 + $0x10] sm:$0xf] %vm248, %v4407
      %4472 = vst.msk [vmem:[%s208 + $0x14] sm:$0xf] %vm248, %v4408
      %4473 = vst.msk [vmem:[%s208 + $0x18] sm:$0xf] %vm248, %v4409
      %4474 = vst.msk [vmem:[%s208 + $0x1c] sm:$0xf] %vm248, %v4410
      %4475 = vst.msk [vmem:[%s208 + $0x20] sm:$0xf] %vm248, %v4411
      %4476 = vst.msk [vmem:[%s208 + $0x24] sm:$0xf] %vm248, %v4412
      %4477 = vst.msk [vmem:[%s208 + $0x28] sm:$0xf] %vm248, %v4413
      %4478 = vst.msk [vmem:[%s208 + $0x2c] sm:$0xf] %vm248, %v4414
      %4479 = vst.msk [vmem:[%s208 + $0x30] sm:$0xf] %vm248, %v4415
      %4480 = vst.msk [vmem:[%s208 + $0x34] sm:$0xf] %vm248, %v4416
      %4481 = vst.msk [vmem:[%s208 + $0x38] sm:$0xf] %vm248, %v4417
      %4482 = vst.msk [vmem:[%s208 + $0x3c] sm:$0xf] %vm248, %v4418
      %4483 = vst.msk [vmem:[%s208 + $0x40] sm:$0xf] %vm248, %v4419
      %4484 = vst.msk [vmem:[%s208 + $0x44] sm:$0xf] %vm248, %v4420
      %4485 = vst.msk [vmem:[%s208 + $0x48] sm:$0xf] %vm248, %v4421
      %4486 = vst.msk [vmem:[%s208 + $0x4c] sm:$0xf] %vm248, %v4422
      %4487 = vst.msk [vmem:[%s208 + $0x50] sm:$0xf] %vm248, %v4423
      %4488 = vst.msk [vmem:[%s208 + $0x54] sm:$0xf] %vm248, %v4424
      %4489 = vst.msk [vmem:[%s208 + $0x58] sm:$0xf] %vm248, %v4425
      %4490 = vst.msk [vmem:[%s208 + $0x5c] sm:$0xf] %vm248, %v4426
      %4491 = vst.msk [vmem:[%s208 + $0x60] sm:$0xf] %vm248, %v4427
      %4492 = vst.msk [vmem:[%s208 + $0x64] sm:$0xf] %vm248, %v4428
      %4493 = vst.msk [vmem:[%s208 + $0x68] sm:$0xf] %vm248, %v4429
      %4494 = vst.msk [vmem:[%s208 + $0x6c] sm:$0xf] %vm248, %v4430
      %4495 = vst.msk [vmem:[%s208 + $0x70] sm:$0xf] %vm248, %v4431
      %4496 = vst.msk [vmem:[%s208 + $0x74] sm:$0xf] %vm248, %v4432
      %4497 = vst.msk [vmem:[%s208 + $0x78] sm:$0xf] %vm248, %v4433
      %4498 = vst.msk [vmem:[%s208 + $0x7c] sm:$0xf] %vm248, %v4434
      %p4499 = scmp.lt.s32.totalorder %s16, 1
      %s4500 = scalar_select %p4499, %s16, 1
      %s4501 = smul.addr %s4500, 32
      %s4502 = smul.addr %s4501, 4
      %s4503 = scalar_lea.vmem %s2, %s4502
      %p4504 = scmp.lt.s32.totalorder %s16, 1
      %s4505 = scalar_select %p4504, %s16, 1
      %s4506 = scalar_lea.vmem %s3, %s4505
      %p4507 = scmp.lt.s32.totalorder %s16, 1
      %s4508 = scalar_select %p4507, %s16, 1
      %s4509 = scalar_lea.vmem %s4, %s4508
      // Predicated region
      $region29: #{basic_block.3} parent=27 // pred_check
        %p4510 = pneg %p81
      $region30: #{basic_block.3} parent=27 // pred_check_branch
        %4512 = sbr.rel (%p4510) target = $region32
      $region31: #{basic_block.3} parent=27 // pred_region
        _
      $region32: #{basic_block.3} parent=27 // pred_fallthru
        _
      // Predicated region
      $region33: #{basic_block.3} parent=27 // pred_check
        %p4513 = pneg %p107
      $region34: #{basic_block.3} parent=27 // pred_check_branch
        %4515 = sbr.rel (%p4513) target = $region36
      $region35: #{basic_block.3} parent=27 // pred_region
        _
      $region36: #{basic_block.3} parent=27 // pred_fallthru
        _
      // Predicated region
      $region37: #{basic_block.3} parent=27 // pred_check
        %p4516 = pneg %p133
      $region38: #{basic_block.3} parent=27 // pred_check_branch
        %4518 = sbr.rel (%p4516) target = $region40
      $region39: #{basic_block.3} parent=27 // pred_region
        _
      $region40: #{basic_block.3} parent=27 // pred_fallthru
        _
    $region28: #{basic_block.3} parent=5 // pred_fallthru
      _
    %p4519 = scmp.le.s32.totalorder 2, %s11
    // Predicated region
    $region41: #{basic_block.3} parent=5 // pred_check
      %p4520 = pneg %p4519
    $region42: #{basic_block.3} parent=5 // pred_check_branch
      %4522 = sbr.rel (%p4520) target = $region44
    $region43: #{basic_block.3} parent=5 // pred_region
      %s4523 = ssub.s32 %s11, 2
      // Predicated region
      $region45: #{basic_block.3} parent=43 // pred_check
        %p4524 = pneg %p87
      $region46: #{basic_block.3} parent=43 // pred_check_branch
        %4526 = sbr.rel (%p4524) target = $region48
      $region47: #{basic_block.3} parent=43 // pred_region
        %p4527 = scmp.lt.s32.totalorder %s17, 1
        %s4528 = scalar_select %p4527, %s17, 1
        %s4529 = smul.addr %s4528, 32
        %s4530 = smul.addr %s4529, 4
        %s4531 = scalar_lea.vmem %s2, %s4530
      $region48: #{basic_block.3} parent=43 // pred_fallthru
        _
      // Predicated region
      $region49: #{basic_block.3} parent=43 // pred_check
        %p4532 = pneg %p113
      $region50: #{basic_block.3} parent=43 // pred_check_branch
        %4534 = sbr.rel (%p4532) target = $region52
      $region51: #{basic_block.3} parent=43 // pred_region
        %p4535 = scmp.lt.s32.totalorder %s17, 1
        %s4536 = scalar_select %p4535, %s17, 1
        %s4537 = scalar_lea.vmem %s3, %s4536
      $region52: #{basic_block.3} parent=43 // pred_fallthru
        _
      // Predicated region
      $region53: #{basic_block.3} parent=43 // pred_check
        %p4538 = pneg %p139
      $region54: #{basic_block.3} parent=43 // pred_check_branch
        %4540 = sbr.rel (%p4538) target = $region56
      $region55: #{basic_block.3} parent=43 // pred_region
        %p4541 = scmp.lt.s32.totalorder %s17, 1
        %s4542 = scalar_select %p4541, %s17, 1
        %s4543 = scalar_lea.vmem %s4, %s4542
      $region56: #{basic_block.3} parent=43 // pred_fallthru
        _
    $region44: #{basic_block.3} parent=5 // pred_fallthru
      _
  $region6: #{basic_block.3} parent=0 // loop_footer
    %s15 = sadd.s32 1, %s11
  $region7: #{basic_block.3} parent=0 // loop_footer_branch
    %10 = sbr.rel target = $region3
  $region8: #{basic_block.3} parent=0 // loop_exit
    _

// kernel: basic_block.4
$region0: #{basic_block.4}
  #allocation0 [shape = 'u32[]', space=smem, size = 0x4, offset = 0x4, fixed_abs, tag = 'smem constant byte address 0x4 - core index']
  #allocation1 [shape = 'u32[144,128]{1,0:T(1,128)}', space=vmem, size = 0x12000, scoped, tag = 'internal scratch']
  #allocation2 [shape = 'bf16[54,16,4]{2,1,0:T(8,128)(2,1)}', space=vmem, size = 0x36000, scoped, tag = 'scratch operand']
  %s0 = inlined_call_operand.vmem [shape: bf16[2,16,16,4], index: 0, kind: input, shape index: {}]
  %s1 = inlined_call_operand.vmem [shape: bf16[9,4,4], index: 1, kind: input, shape index: {}]
  %s2 = inlined_call_operand.vmem [shape: f32[1,4], index: 2, kind: input, shape index: {}]
  %s3 = inlined_call_operand.vmem [shape: f32[1,4], index: 3, kind: input, shape index: {}]
  %s4 = inlined_call_operand.vmem [shape: bf16[2,16,16,4], index: 4, kind: output, shape index: {0}]
  %s5 = inlined_call_operand.vmem [shape: f32[2,1,4], index: 5, kind: output, shape index: {1}]
  %s6 = inlined_call_operand.vmem [shape: f32[2,1,4], index: 6, kind: output, shape index: {2}]
  %7 = xla_tuple %s4, %s5, %s6
  %s8 = sld [smem:[#allocation0]]
  $region65: #{basic_block.4} parent=0
    _
  %s10 = ssub.s32 1, %s8
  %s11 = scalar_select 0, %s10, %s8
  loop: start=0, step=1, limit=4
  $region2: #{basic_block.4} parent=0 // loop_pre_header
    _
  $region3: #{basic_block.4} parent=0 // loop_header
    %s13 = sphi 0, %s17
    %p14 = scmp.ge.s32.totalorder %s13, 4
    %s23 = sphi 0, %s25
    %s26 = sphi 0, %s23
    %s27 = sphi 0, %s26
    %s43 = sphi 0, %s27
    %s47 = sphi 0, %s47
    %s49 = sphi 0, %s47
    %s50 = sphi 0, %s49
    %s64 = sphi 0, %s50
    %s68 = sphi 0, %s68
    %s70 = sphi 0, %s68
    %s71 = sphi 0, %s70
    %s85 = sphi 0, %s71
    %s89 = sphi 0, %s89
    %s91 = sphi 0, %s89
    %s92 = sphi 0, %s91
    %s106 = sphi 0, %s92
    %s112 = sphi 0, %s114
    %s115 = sphi 0, %s112
    %s116 = sphi 0, %s115
    %s132 = sphi 0, %s116
    %s138 = sphi 0, %s140
    %s141 = sphi 0, %s138
    %s142 = sphi 0, %s141
    %s158 = sphi 0, %s142
    %s164 = sphi 0, %s166
    %s167 = sphi 0, %s164
    %s168 = sphi 0, %s167
    %s184 = sphi 0, %s168
  $region4: #{basic_block.4} parent=0 // loop_header_branch
    %16 = sbr.rel (%p14) target = $region8
  $region5: #{basic_block.4} parent=0 // loop_body
    %s18 = ssub.s32 %s13, 1
    %s19 = ssub.s32 %s13, 2
    %s20 = sadd.s32 %s13, 1
    %s21 = ssub.s32 %s13, %s20
    %p22 = scmp.eq.s32.totalorder %s21, 0
    %s24 = sadd.s32 %s23, 1
    %s25 = scalar_select %p22, %s23, %s24
    %p28 = pneg %p22
    %p29 = scmp.eq.s32.totalorder %s13, 1
    %p30 = por %p28, %p29
    %p31 = scmp.ne.s32.totalorder %s23, %s26
    %p32 = scmp.eq.s32.totalorder %s13, 0
    %p33 = por %p31, %p32
    %p34 = scmp.ne.s32.totalorder %s23, %s26
    %p35 = scmp.eq.s32.totalorder %s18, 1
    %p36 = por %p34, %p35
    %p37 = scmp.ne.s32.totalorder %s26, %s27
    %p38 = scmp.eq.s32.totalorder %s18, 0
    %p39 = por %p37, %p38
    %p40 = scmp.ne.s32.totalorder %s26, %s27
    %p41 = scmp.eq.s32.totalorder %s19, 1
    %p42 = por %p40, %p41
    %p44 = scmp.ne.s32.totalorder %s27, %s43
    %p45 = scmp.eq.s32.totalorder %s19, 0
    %p46 = por %p44, %p45
    %s48 = sadd.s32 %s47, 1
    %p51 = scmp.eq.s32.totalorder %s13, 1
    %p52 = scmp.ne.s32.totalorder %s47, %s49
    %p53 = scmp.eq.s32.totalorder %s13, 0
    %p54 = por %p52, %p53
    %p55 = scmp.ne.s32.totalorder %s47, %s49
    %p56 = scmp.eq.s32.totalorder %s18, 1
    %p57 = por %p55, %p56
    %p58 = scmp.ne.s32.totalorder %s49, %s50
    %p59 = scmp.eq.s32.totalorder %s18, 0
    %p60 = por %p58, %p59
    %p61 = scmp.ne.s32.totalorder %s49, %s50
    %p62 = scmp.eq.s32.totalorder %s19, 1
    %p63 = por %p61, %p62
    %p65 = scmp.ne.s32.totalorder %s50, %s64
    %p66 = scmp.eq.s32.totalorder %s19, 0
    %p67 = por %p65, %p66
    %s69 = sadd.s32 %s68, 1
    %p72 = scmp.eq.s32.totalorder %s13, 1
    %p73 = scmp.ne.s32.totalorder %s68, %s70
    %p74 = scmp.eq.s32.totalorder %s13, 0
    %p75 = por %p73, %p74
    %p76 = scmp.ne.s32.totalorder %s68, %s70
    %p77 = scmp.eq.s32.totalorder %s18, 1
    %p78 = por %p76, %p77
    %p79 = scmp.ne.s32.totalorder %s70, %s71
    %p80 = scmp.eq.s32.totalorder %s18, 0
    %p81 = por %p79, %p80
    %p82 = scmp.ne.s32.totalorder %s70, %s71
    %p83 = scmp.eq.s32.totalorder %s19, 1
    %p84 = por %p82, %p83
    %p86 = scmp.ne.s32.totalorder %s71, %s85
    %p87 = scmp.eq.s32.totalorder %s19, 0
    %p88 = por %p86, %p87
    %s90 = sadd.s32 %s89, 1
    %p93 = scmp.eq.s32.totalorder %s13, 1
    %p94 = scmp.ne.s32.totalorder %s89, %s91
    %p95 = scmp.eq.s32.totalorder %s13, 0
    %p96 = por %p94, %p95
    %p97 = scmp.ne.s32.totalorder %s89, %s91
    %p98 = scmp.eq.s32.totalorder %s18, 1
    %p99 = por %p97, %p98
    %p100 = scmp.ne.s32.totalorder %s91, %s92
    %p101 = scmp.eq.s32.totalorder %s18, 0
    %p102 = por %p100, %p101
    %p103 = scmp.ne.s32.totalorder %s91, %s92
    %p104 = scmp.eq.s32.totalorder %s19, 1
    %p105 = por %p103, %p104
    %p107 = scmp.ne.s32.totalorder %s92, %s106
    %p108 = scmp.eq.s32.totalorder %s19, 0
    %p109 = por %p107, %p108
    %s110 = ssub.s32 %s13, %s20
    %p111 = scmp.eq.s32.totalorder %s110, 0
    %s113 = sadd.s32 %s112, 1
    %s114 = scalar_select %p111, %s112, %s113
    %p117 = pneg %p111
    %p118 = scmp.eq.s32.totalorder %s13, 1
    %p119 = por %p117, %p118
    %p120 = scmp.ne.s32.totalorder %s112, %s115
    %p121 = scmp.eq.s32.totalorder %s13, 0
    %p122 = por %p120, %p121
    %p123 = scmp.ne.s32.totalorder %s112, %s115
    %p124 = scmp.eq.s32.totalorder %s18, 1
    %p125 = por %p123, %p124
    %p126 = scmp.ne.s32.totalorder %s115, %s116
    %p127 = scmp.eq.s32.totalorder %s18, 0
    %p128 = por %p126, %p127
    %p129 = scmp.ne.s32.totalorder %s115, %s116
    %p130 = scmp.eq.s32.totalorder %s19, 1
    %p131 = por %p129, %p130
    %p133 = scmp.ne.s32.totalorder %s116, %s132
    %p134 = scmp.eq.s32.totalorder %s19, 0
    %p135 = por %p133, %p134
    %s136 = ssub.s32 %s13, %s20
    %p137 = scmp.eq.s32.totalorder %s136, 0
    %s139 = sadd.s32 %s138, 1
    %s140 = scalar_select %p137, %s138, %s139
    %p143 = pneg %p137
    %p144 = scmp.eq.s32.totalorder %s13, 1
    %p145 = por %p143, %p144
    %p146 = scmp.ne.s32.totalorder %s138, %s141
    %p147 = scmp.eq.s32.totalorder %s13, 0
    %p148 = por %p146, %p147
    %p149 = scmp.ne.s32.totalorder %s138, %s141
    %p150 = scmp.eq.s32.totalorder %s18, 1
    %p151 = por %p149, %p150
    %p152 = scmp.ne.s32.totalorder %s141, %s142
    %p153 = scmp.eq.s32.totalorder %s18, 0
    %p154 = por %p152, %p153
    %p155 = scmp.ne.s32.totalorder %s141, %s142
    %p156 = scmp.eq.s32.totalorder %s19, 1
    %p157 = por %p155, %p156
    %p159 = scmp.ne.s32.totalorder %s142, %s158
    %p160 = scmp.eq.s32.totalorder %s19, 0
    %p161 = por %p159, %p160
    %s162 = ssub.s32 %s13, %s20
    %p163 = scmp.eq.s32.totalorder %s162, 0
    %s165 = sadd.s32 %s164, 1
    %s166 = scalar_select %p163, %s164, %s165
    %p169 = pneg %p163
    %p170 = scmp.eq.s32.totalorder %s13, 1
    %p171 = por %p169, %p170
    %p172 = scmp.ne.s32.totalorder %s164, %s167
    %p173 = scmp.eq.s32.totalorder %s13, 0
    %p174 = por %p172, %p173
    %p175 = scmp.ne.s32.totalorder %s164, %s167
    %p176 = scmp.eq.s32.totalorder %s18, 1
    %p177 = por %p175, %p176
    %p178 = scmp.ne.s32.totalorder %s167, %s168
    %p179 = scmp.eq.s32.totalorder %s18, 0
    %p180 = por %p178, %p179
    %p181 = scmp.ne.s32.totalorder %s167, %s168
    %p182 = scmp.eq.s32.totalorder %s19, 1
    %p183 = por %p181, %p182
    %p185 = scmp.ne.s32.totalorder %s168, %s184
    %p186 = scmp.eq.s32.totalorder %s19, 0
    %p187 = por %p185, %p186
    %p188 = scmp.le.s32.totalorder 1, %s13
    %p189 = scmp.lt.s32.totalorder %s13, 3
    %p190 = pnand %p188, %p189
    %p191 = pneg %p190
    // Predicated region
    $region9: #{basic_block.4} parent=5 // pred_check
      _
    $region10: #{basic_block.4} parent=5 // pred_check_branch
      %193 = sbr.rel (%p190) target = $region12
    $region11: #{basic_block.4} parent=5 // pred_region
      %s194 = ssub.s32 %s13, 1
      // Predicated region
      $region13: #{basic_block.4} parent=11 // pred_check
        %p195 = pneg %p60
      $region14: #{basic_block.4} parent=11 // pred_check_branch
        %197 = sbr.rel (%p195) target = $region16
      $region15: #{basic_block.4} parent=11 // pred_region
        _
      $region16: #{basic_block.4} parent=11 // pred_fallthru
        _
      // Predicated region
      $region17: #{basic_block.4} parent=11 // pred_check
        %p198 = pneg %p81
      $region18: #{basic_block.4} parent=11 // pred_check_branch
        %200 = sbr.rel (%p198) target = $region20
      $region19: #{basic_block.4} parent=11 // pred_region
        _
      $region20: #{basic_block.4} parent=11 // pred_fallthru
        _
      // Predicated region
      $region21: #{basic_block.4} parent=11 // pred_check
        %p201 = pneg %p102
      $region22: #{basic_block.4} parent=11 // pred_check_branch
        %203 = sbr.rel (%p201) target = $region24
      $region23: #{basic_block.4} parent=11 // pred_region
        _
      $region24: #{basic_block.4} parent=11 // pred_fallthru
        _
    $region12: #{basic_block.4} parent=5 // pred_fallthru
      _
    %p204 = scmp.lt.s32.totalorder %s13, 2
    // Predicated region
    $region25: #{basic_block.4} parent=5 // pred_check
      %p205 = pneg %p204
    $region26: #{basic_block.4} parent=5 // pred_check_branch
      %207 = sbr.rel (%p205) target = $region28
    $region27: #{basic_block.4} parent=5 // pred_region
      // Predicated region
      $region29: #{basic_block.4} parent=27 // pred_check
        %p208 = pneg %p33
      $region30: #{basic_block.4} parent=27 // pred_check_branch
        %210 = sbr.rel (%p208) target = $region32
      $region31: #{basic_block.4} parent=27 // pred_region
        %p211 = scmp.lt.s32.totalorder %s13, 1
        %s212 = scalar_select %p211, %s13, 1
        %s213 = smul.addr %s212, 32
        %s214 = smul.addr %s213, 4
        %s215 = scalar_lea.vmem %s0, %s214
      $region32: #{basic_block.4} parent=27 // pred_fallthru
        _
    $region28: #{basic_block.4} parent=5 // pred_fallthru
      _
    %p216 = scmp.le.s32.totalorder 1, %s13
    %p217 = scmp.lt.s32.totalorder %s13, 3
    %p218 = pnand %p216, %p217
    %p219 = pneg %p218
    // Predicated region
    $region33: #{basic_block.4} parent=5 // pred_check
      _
    $region34: #{basic_block.4} parent=5 // pred_check_branch
      %221 = sbr.rel (%p218) target = $region36
    $region35: #{basic_block.4} parent=5 // pred_region
      %s222 = ssub.s32 %s13, 1
      %p223 = scmp.lt.s32.totalorder %s18, 1
      %s224 = scalar_select %p223, %s18, 1
      %s225 = smul.addr %s224, 32
      %s226 = smul.addr %s225, 4
      %s227 = scalar_lea.vmem %s0, %s226
      %p228 = pneg %p39
      %p229 = pneg %p36
      %p230 = pneg %p60
      %p231 = pneg %p57
      %p232 = pneg %p81
      %p233 = pneg %p78
      %p234 = pneg %p102
      %p235 = pneg %p99
      %p236 = pneg %p128
      %p237 = pneg %p125
      %p238 = scmp.lt.s32.totalorder %s18, 1
      %s239 = scalar_select %p238, %s18, 1
      %s240 = smul.addr %s239, 32
      %s241 = smul.addr %s240, 4
      %s242 = scalar_lea.vmem %s4, %s241
      %p243 = pneg %p154
      %p244 = pneg %p151
      %p245 = scmp.lt.s32.totalorder %s18, 1
      %s246 = scalar_select %p245, %s18, 1
      %s247 = scalar_lea.vmem %s5, %s246
      %p248 = pneg %p180
      %p249 = pneg %p177
      %p250 = scmp.lt.s32.totalorder %s18, 1
      %s251 = scalar_select %p250, %s18, 1
      %s252 = scalar_lea.vmem %s6, %s251
      %p253 = scmp.lt.s32.totalorder %s18, 1
      %s254 = scalar_select %p253, %s18, 1
      %s255 = smul.addr %s254, 32
      %s256 = smul.addr %s255, 4
      %s257 = scalar_lea.vmem %s0, %s256
      %p258 = scmp.lt.s32.totalorder %s18, 1
      %s259 = scalar_select %p258, %s18, 1
      %s260 = smul.addr %s259, 32
      %s261 = smul.addr %s260, 4
      %s262 = scalar_lea.vmem %s4, %s261
      %p263 = scmp.lt.s32.totalorder %s18, 1
      %s264 = scalar_select %p263, %s18, 1
      %s265 = scalar_lea.vmem %s5, %s264
      %p266 = scmp.lt.s32.totalorder %s18, 1
      %s267 = scalar_select %p266, %s18, 1
      %s268 = scalar_lea.vmem %s6, %s267
      %v270 = vld [vmem:[%s257] sm:$0xf]
      %v271 = vld [vmem:[%s257 + $0x4] sm:$0xf]
      %v272 = vld [vmem:[%s257 + $0x8] sm:$0xf]
      %v273 = vld [vmem:[%s257 + $0xc] sm:$0xf]
      %v274 = vld [vmem:[%s257 + $0x10] sm:$0xf]
      %v275 = vld [vmem:[%s257 + $0x14] sm:$0xf]
      %v276 = vld [vmem:[%s257 + $0x18] sm:$0xf]
      %v277 = vld [vmem:[%s257 + $0x1c] sm:$0xf]
      %v278 = vld [vmem:[%s257 + $0x20] sm:$0xf]
      %v279 = vld [vmem:[%s257 + $0x24] sm:$0xf]
      %v280 = vld [vmem:[%s257 + $0x28] sm:$0xf]
      %v281 = vld [vmem:[%s257 + $0x2c] sm:$0xf]
      %v282 = vld [vmem:[%s257 + $0x30] sm:$0xf]
      %v283 = vld [vmem:[%s257 + $0x34] sm:$0xf]
      %v284 = vld [vmem:[%s257 + $0x38] sm:$0xf]
      %v285 = vld [vmem:[%s257 + $0x3c] sm:$0xf]
      %v286 = vld [vmem:[%s257 + $0x40] sm:$0xf]
      %v287 = vld [vmem:[%s257 + $0x44] sm:$0xf]
      %v288 = vld [vmem:[%s257 + $0x48] sm:$0xf]
      %v289 = vld [vmem:[%s257 + $0x4c] sm:$0xf]
      %v290 = vld [vmem:[%s257 + $0x50] sm:$0xf]
      %v291 = vld [vmem:[%s257 + $0x54] sm:$0xf]
      %v292 = vld [vmem:[%s257 + $0x58] sm:$0xf]
      %v293 = vld [vmem:[%s257 + $0x5c] sm:$0xf]
      %v294 = vld [vmem:[%s257 + $0x60] sm:$0xf]
      %v295 = vld [vmem:[%s257 + $0x64] sm:$0xf]
      %v296 = vld [vmem:[%s257 + $0x68] sm:$0xf]
      %v297 = vld [vmem:[%s257 + $0x6c] sm:$0xf]
      %v298 = vld [vmem:[%s257 + $0x70] sm:$0xf]
      %v299 = vld [vmem:[%s257 + $0x74] sm:$0xf]
      %v300 = vld [vmem:[%s257 + $0x78] sm:$0xf]
      %v301 = vld [vmem:[%s257 + $0x7c] sm:$0xf]
      %v302 = vunpack.c.l.bf16 %v270
      %v303 = vunpack.c.l.bf16 %v271
      %v304 = vunpack.c.l.bf16 %v272
      %v305 = vunpack.c.l.bf16 %v273
      %v306 = vunpack.c.l.bf16 %v274
      %v307 = vunpack.c.l.bf16 %v275
      %v308 = vunpack.c.l.bf16 %v276
      %v309 = vunpack.c.l.bf16 %v277
      %v310 = vunpack.c.l.bf16 %v278
      %v311 = vunpack.c.l.bf16 %v279
      %v312 = vunpack.c.l.bf16 %v280
      %v313 = vunpack.c.l.bf16 %v281
      %v314 = vunpack.c.l.bf16 %v282
      %v315 = vunpack.c.l.bf16 %v283
      %v316 = vunpack.c.l.bf16 %v284
      %v317 = vunpack.c.l.bf16 %v285
      %v318 = vunpack.c.l.bf16 %v286
      %v319 = vunpack.c.l.bf16 %v287
      %v320 = vunpack.c.l.bf16 %v288
      %v321 = vunpack.c.l.bf16 %v289
      %v322 = vunpack.c.l.bf16 %v290
      %v323 = vunpack.c.l.bf16 %v291
      %v324 = vunpack.c.l.bf16 %v292
      %v325 = vunpack.c.l.bf16 %v293
      %v326 = vunpack.c.l.bf16 %v294
      %v327 = vunpack.c.l.bf16 %v295
      %v328 = vunpack.c.l.bf16 %v296
      %v329 = vunpack.c.l.bf16 %v297
      %v330 = vunpack.c.l.bf16 %v298
      %v331 = vunpack.c.l.bf16 %v299
      %v332 = vunpack.c.l.bf16 %v300
      %v333 = vunpack.c.l.bf16 %v301
      %v334 = vld [vmem:[%s2] sm:$0x1]
      %v336 = vlaneseq
      %v337 = vshrl.u32 %v336, 7
      %v338 = vsub.s32 0, %v337
      %v339 = vrot.slane %v334, %v338
      %v341 = vmul.f32 %v302, %v339
      %v342 = vmul.f32 %v303, %v339
      %v343 = vmul.f32 %v304, %v339
      %v344 = vmul.f32 %v305, %v339
      %v345 = vmul.f32 %v306, %v339
      %v346 = vmul.f32 %v307, %v339
      %v347 = vmul.f32 %v308, %v339
      %v348 = vmul.f32 %v309, %v339
      %v349 = vmul.f32 %v310, %v339
      %v350 = vmul.f32 %v311, %v339
      %v351 = vmul.f32 %v312, %v339
      %v352 = vmul.f32 %v313, %v339
      %v353 = vmul.f32 %v314, %v339
      %v354 = vmul.f32 %v315, %v339
      %v355 = vmul.f32 %v316, %v339
      %v356 = vmul.f32 %v317, %v339
      %v357 = vmul.f32 %v318, %v339
      %v358 = vmul.f32 %v319, %v339
      %v359 = vmul.f32 %v320, %v339
      %v360 = vmul.f32 %v321, %v339
      %v361 = vmul.f32 %v322, %v339
      %v362 = vmul.f32 %v323, %v339
      %v363 = vmul.f32 %v324, %v339
      %v364 = vmul.f32 %v325, %v339
      %v365 = vmul.f32 %v326, %v339
      %v366 = vmul.f32 %v327, %v339
      %v367 = vmul.f32 %v328, %v339
      %v368 = vmul.f32 %v329, %v339
      %v369 = vmul.f32 %v330, %v339
      %v370 = vmul.f32 %v331, %v339
      %v371 = vmul.f32 %v332, %v339
      %v372 = vmul.f32 %v333, %v339
      %v373 = vld [vmem:[%s3] sm:$0x1]
      %v375 = vlaneseq
      %v376 = vshrl.u32 %v375, 7
      %v377 = vsub.s32 0, %v376
      %v378 = vrot.slane %v373, %v377
      %v380 = vadd.f32 %v341, %v378
      %v381 = vadd.f32 %v342, %v378
      %v382 = vadd.f32 %v343, %v378
      %v383 = vadd.f32 %v344, %v378
      %v384 = vadd.f32 %v345, %v378
      %v385 = vadd.f32 %v346, %v378
      %v386 = vadd.f32 %v347, %v378
      %v387 = vadd.f32 %v348, %v378
      %v388 = vadd.f32 %v349, %v378
      %v389 = vadd.f32 %v350, %v378
      %v390 = vadd.f32 %v351, %v378
      %v391 = vadd.f32 %v352, %v378
      %v392 = vadd.f32 %v353, %v378
      %v393 = vadd.f32 %v354, %v378
      %v394 = vadd.f32 %v355, %v378
      %v395 = vadd.f32 %v356, %v378
      %v396 = vadd.f32 %v357, %v378
      %v397 = vadd.f32 %v358, %v378
      %v398 = vadd.f32 %v359, %v378
      %v399 = vadd.f32 %v360, %v378
      %v400 = vadd.f32 %v361, %v378
      %v401 = vadd.f32 %v362, %v378
      %v402 = vadd.f32 %v363, %v378
      %v403 = vadd.f32 %v364, %v378
      %v404 = vadd.f32 %v365, %v378
      %v405 = vadd.f32 %v366, %v378
      %v406 = vadd.f32 %v367, %v378
      %v407 = vadd.f32 %v368, %v378
      %v408 = vadd.f32 %v369, %v378
      %v409 = vadd.f32 %v370, %v378
      %v410 = vadd.f32 %v371, %v378
      %v411 = vadd.f32 %v372, %v378
      %v412 = vmax.f32 %v380, 0.0
      %v413 = vmax.f32 %v381, 0.0
      %v414 = vmax.f32 %v382, 0.0
      %v415 = vmax.f32 %v383, 0.0
      %v416 = vmax.f32 %v384, 0.0
      %v417 = vmax.f32 %v385, 0.0
      %v418 = vmax.f32 %v386, 0.0
      %v419 = vmax.f32 %v387, 0.0
      %v420 = vmax.f32 %v388, 0.0
      %v421 = vmax.f32 %v389, 0.0
      %v422 = vmax.f32 %v390, 0.0
      %v423 = vmax.f32 %v391, 0.0
      %v424 = vmax.f32 %v392, 0.0
      %v425 = vmax.f32 %v393, 0.0
      %v426 = vmax.f32 %v394, 0.0
      %v427 = vmax.f32 %v395, 0.0
      %v428 = vmax.f32 %v396, 0.0
      %v429 = vmax.f32 %v397, 0.0
      %v430 = vmax.f32 %v398, 0.0
      %v431 = vmax.f32 %v399, 0.0
      %v432 = vmax.f32 %v400, 0.0
      %v433 = vmax.f32 %v401, 0.0
      %v434 = vmax.f32 %v402, 0.0
      %v435 = vmax.f32 %v403, 0.0
      %v436 = vmax.f32 %v404, 0.0
      %v437 = vmax.f32 %v405, 0.0
      %v438 = vmax.f32 %v406, 0.0
      %v439 = vmax.f32 %v407, 0.0
      %v440 = vmax.f32 %v408, 0.0
      %v441 = vmax.f32 %v409, 0.0
      %v442 = vmax.f32 %v410, 0.0
      %v443 = vmax.f32 %v411, 0.0
      %v444 = vpack.c.bf16 %v413, %v412
      %v445 = vpack.c.bf16 %v415, %v414
      %v446 = vpack.c.bf16 %v417, %v416
      %v447 = vpack.c.bf16 %v419, %v418
      %v448 = vpack.c.bf16 %v421, %v420
      %v449 = vpack.c.bf16 %v423, %v422
      %v450 = vpack.c.bf16 %v425, %v424
      %v451 = vpack.c.bf16 %v427, %v426
      %v452 = vpack.c.bf16 %v429, %v428
      %v453 = vpack.c.bf16 %v431, %v430
      %v454 = vpack.c.bf16 %v433, %v432
      %v455 = vpack.c.bf16 %v435, %v434
      %v456 = vpack.c.bf16 %v437, %v436
      %v457 = vpack.c.bf16 %v439, %v438
      %v458 = vpack.c.bf16 %v441, %v440
      %v459 = vpack.c.bf16 %v443, %v442
      %vm460 = vcmask 27648
      %461 = vst.msk [vmem:[#allocation2] sm:$0xf] %vm460, 0
      %462 = vst.msk [vmem:[#allocation2 + $0x4] sm:$0xf] %vm460, 0
      %s463 = scalar_lea.vmem [#allocation2], 136
      %464 = vst.msk [vmem:[%s463] sm:$0xf] %vm460, 0
      %465 = vst.msk [vmem:[%s463 + $0x4] sm:$0xf] %vm460, 0
      %s466 = scalar_lea.vmem [#allocation2], 144
      %467 = vst.msk [vmem:[%s466] sm:$0xf] %vm460, 0
      %468 = vst.msk [vmem:[%s466 + $0x4] sm:$0xf] %vm460, 0
      %s469 = scalar_lea.vmem [#allocation2], 280
      %470 = vst.msk [vmem:[%s469] sm:$0xf] %vm460, 0
      %471 = vst.msk [vmem:[%s469 + $0x4] sm:$0xf] %vm460, 0
      %s472 = scalar_lea.vmem [#allocation2], 288
      %473 = vst.msk [vmem:[%s472] sm:$0xf] %vm460, 0
      %474 = vst.msk [vmem:[%s472 + $0x4] sm:$0xf] %vm460, 0
      %s475 = scalar_lea.vmem [#allocation2], 424
      %476 = vst.msk [vmem:[%s475] sm:$0xf] %vm460, 0
      %477 = vst.msk [vmem:[%s475 + $0x4] sm:$0xf] %vm460, 0
      %s478 = scalar_lea.vmem [#allocation2], 8
      %vm479 = vcmask 24576
      %vm480 = vsmask.f32 256
      %vm481 = vmand %vm479, %vm480
      %v482 = vld [vmem:[%s478] sm:$0x1]
      %v483 = vsel %vm481, 0, %v482
      %484 = vst [vmem:[%s478] sm:$0x1] %v483
      %v485 = vld [vmem:[%s478 + $0x8] sm:$0x1]
      %v486 = vsel %vm481, 0, %v485
      %487 = vst [vmem:[%s478 + $0x8] sm:$0x1] %v486
      %v488 = vld [vmem:[%s478 + $0x10] sm:$0x1]
      %v489 = vsel %vm481, 0, %v488
      %490 = vst [vmem:[%s478 + $0x10] sm:$0x1] %v489
      %v491 = vld [vmem:[%s478 + $0x18] sm:$0x1]
      %v492 = vsel %vm481, 0, %v491
      %493 = vst [vmem:[%s478 + $0x18] sm:$0x1] %v492
      %v494 = vld [vmem:[%s478 + $0x20] sm:$0x1]
      %v495 = vsel %vm481, 0, %v494
      %496 = vst [vmem:[%s478 + $0x20] sm:$0x1] %v495
      %v497 = vld [vmem:[%s478 + $0x28] sm:$0x1]
      %v498 = vsel %vm481, 0, %v497
      %499 = vst [vmem:[%s478 + $0x28] sm:$0x1] %v498
      %v500 = vld [vmem:[%s478 + $0x30] sm:$0x1]
      %v501 = vsel %vm481, 0, %v500
      %502 = vst [vmem:[%s478 + $0x30] sm:$0x1] %v501
      %v503 = vld [vmem:[%s478 + $0x38] sm:$0x1]
      %v504 = vsel %vm481, 0, %v503
      %505 = vst [vmem:[%s478 + $0x38] sm:$0x1] %v504
      %v506 = vld [vmem:[%s478 + $0x40] sm:$0x1]
      %v507 = vsel %vm481, 0, %v506
      %508 = vst [vmem:[%s478 + $0x40] sm:$0x1] %v507
      %v509 = vld [vmem:[%s478 + $0x48] sm:$0x1]
      %v510 = vsel %vm481, 0, %v509
      %511 = vst [vmem:[%s478 + $0x48] sm:$0x1] %v510
      %v512 = vld [vmem:[%s478 + $0x50] sm:$0x1]
      %v513 = vsel %vm481, 0, %v512
      %514 = vst [vmem:[%s478 + $0x50] sm:$0x1] %v513
      %v515 = vld [vmem:[%s478 + $0x58] sm:$0x1]
      %v516 = vsel %vm481, 0, %v515
      %517 = vst [vmem:[%s478 + $0x58] sm:$0x1] %v516
      %v518 = vld [vmem:[%s478 + $0x60] sm:$0x1]
      %v519 = vsel %vm481, 0, %v518
      %520 = vst [vmem:[%s478 + $0x60] sm:$0x1] %v519
      %v521 = vld [vmem:[%s478 + $0x68] sm:$0x1]
      %v522 = vsel %vm481, 0, %v521
      %523 = vst [vmem:[%s478 + $0x68] sm:$0x1] %v522
      %v524 = vld [vmem:[%s478 + $0x70] sm:$0x1]
      %v525 = vsel %vm481, 0, %v524
      %526 = vst [vmem:[%s478 + $0x70] sm:$0x1] %v525
      %v527 = vld [vmem:[%s478 + $0x78] sm:$0x1]
      %v528 = vsel %vm481, 0, %v527
      %529 = vst [vmem:[%s478 + $0x78] sm:$0x1] %v528
      %v546 = vunpack.c.l.b16 %v444
      %v547 = vunpack.c.h.b16 %v444
      %v548 = vunpack.c.l.b16 %v445
      %v549 = vunpack.c.h.b16 %v445
      %v550 = vunpack.c.l.b16 %v446
      %v551 = vunpack.c.h.b16 %v446
      %v552 = vunpack.c.l.b16 %v447
      %v553 = vunpack.c.h.b16 %v447
      %v554 = vunpack.c.l.b16 %v448
      %v555 = vunpack.c.h.b16 %v448
      %v556 = vunpack.c.l.b16 %v449
      %v557 = vunpack.c.h.b16 %v449
      %v558 = vunpack.c.l.b16 %v450
      %v559 = vunpack.c.h.b16 %v450
      %v560 = vunpack.c.l.b16 %v451
      %v561 = vunpack.c.h.b16 %v451
      %v562 = vunpack.c.l.b16 %v452
      %v563 = vunpack.c.h.b16 %v452
      %v564 = vunpack.c.l.b16 %v453
      %v565 = vunpack.c.h.b16 %v453
      %v566 = vunpack.c.l.b16 %v454
      %v567 = vunpack.c.h.b16 %v454
      %v568 = vunpack.c.l.b16 %v455
      %v569 = vunpack.c.h.b16 %v455
      %v570 = vunpack.c.l.b16 %v456
      %v571 = vunpack.c.h.b16 %v456
      %v572 = vunpack.c.l.b16 %v457
      %v573 = vunpack.c.h.b16 %v457
      %v574 = vunpack.c.l.b16 %v458
      %v575 = vunpack.c.h.b16 %v458
      %v576 = vunpack.c.l.b16 %v459
      %v577 = vunpack.c.h.b16 %v459
      %v578 = vpack.c.b16 %v546, %v546
      %v579 = vpack.c.b16 %v547, %v547
      %v580 = vpack.c.b16 %v548, %v548
      %v581 = vpack.c.b16 %v549, %v549
      %v582 = vpack.c.b16 %v550, %v550
      %v583 = vpack.c.b16 %v551, %v551
      %v584 = vpack.c.b16 %v552, %v552
      %v585 = vpack.c.b16 %v553, %v553
      %v586 = vpack.c.b16 %v554, %v554
      %v587 = vpack.c.b16 %v555, %v555
      %v588 = vpack.c.b16 %v556, %v556
      %v589 = vpack.c.b16 %v557, %v557
      %v590 = vpack.c.b16 %v558, %v558
      %v591 = vpack.c.b16 %v559, %v559
      %v592 = vpack.c.b16 %v560, %v560
      %v593 = vpack.c.b16 %v561, %v561
      %v594 = vpack.c.b16 %v562, %v562
      %v595 = vpack.c.b16 %v563, %v563
      %v596 = vpack.c.b16 %v564, %v564
      %v597 = vpack.c.b16 %v565, %v565
      %v598 = vpack.c.b16 %v566, %v566
      %v599 = vpack.c.b16 %v567, %v567
      %v600 = vpack.c.b16 %v568, %v568
      %v601 = vpack.c.b16 %v569, %v569
      %v602 = vpack.c.b16 %v570, %v570
      %v603 = vpack.c.b16 %v571, %v571
      %v604 = vpack.c.b16 %v572, %v572
      %v605 = vpack.c.b16 %v573, %v573
      %v606 = vpack.c.b16 %v574, %v574
      %v607 = vpack.c.b16 %v575, %v575
      %v608 = vpack.c.b16 %v576, %v576
      %v609 = vpack.c.b16 %v577, %v577
      %vm610 = vsmask.f32 4368
      %vm611 = vmor %vm480, %vm610
      %v613 = vshrl.u32 %v578, 16
      %v615 = vrot.slane %v613, 7
      %v616 = vshll.u32 %v578, 16
      %v618 = vor.u32 %v615, %v616
      %v619 = vrot.slane %v615, 4
      %v621 = vshrl.u32 %v579, 16
      %v623 = vrot.slane %v621, 7
      %v624 = vshll.u32 %v579, 16
      %v626 = vor.u32 %v623, %v624
      %v627 = vsel %vm611, %v619, %v626
      %v629 = vshrl.u32 %v580, 16
      %v631 = vrot.slane %v629, 7
      %v632 = vshll.u32 %v580, 16
      %v634 = vor.u32 %v631, %v632
      %v635 = vrot.slane %v631, 4
      %v637 = vshrl.u32 %v581, 16
      %v639 = vrot.slane %v637, 7
      %v640 = vshll.u32 %v581, 16
      %v642 = vor.u32 %v639, %v640
      %v643 = vsel %vm611, %v635, %v642
      %v645 = vshrl.u32 %v582, 16
      %v647 = vrot.slane %v645, 7
      %v648 = vshll.u32 %v582, 16
      %v650 = vor.u32 %v647, %v648
      %v651 = vrot.slane %v647, 4
      %v653 = vshrl.u32 %v583, 16
      %v655 = vrot.slane %v653, 7
      %v656 = vshll.u32 %v583, 16
      %v658 = vor.u32 %v655, %v656
      %v659 = vsel %vm611, %v651, %v658
      %v661 = vshrl.u32 %v584, 16
      %v663 = vrot.slane %v661, 7
      %v664 = vshll.u32 %v584, 16
      %v666 = vor.u32 %v663, %v664
      %v667 = vrot.slane %v663, 4
      %v669 = vshrl.u32 %v585, 16
      %v671 = vrot.slane %v669, 7
      %v672 = vshll.u32 %v585, 16
      %v674 = vor.u32 %v671, %v672
      %v675 = vsel %vm611, %v667, %v674
      %v677 = vshrl.u32 %v586, 16
      %v679 = vrot.slane %v677, 7
      %v680 = vshll.u32 %v586, 16
      %v682 = vor.u32 %v679, %v680
      %v683 = vrot.slane %v679, 4
      %v685 = vshrl.u32 %v587, 16
      %v687 = vrot.slane %v685, 7
      %v688 = vshll.u32 %v587, 16
      %v690 = vor.u32 %v687, %v688
      %v691 = vsel %vm611, %v683, %v690
      %v693 = vshrl.u32 %v588, 16
      %v695 = vrot.slane %v693, 7
      %v696 = vshll.u32 %v588, 16
      %v698 = vor.u32 %v695, %v696
      %v699 = vrot.slane %v695, 4
      %v701 = vshrl.u32 %v589, 16
      %v703 = vrot.slane %v701, 7
      %v704 = vshll.u32 %v589, 16
      %v706 = vor.u32 %v703, %v704
      %v707 = vsel %vm611, %v699, %v706
      %v709 = vshrl.u32 %v590, 16
      %v711 = vrot.slane %v709, 7
      %v712 = vshll.u32 %v590, 16
      %v714 = vor.u32 %v711, %v712
      %v715 = vrot.slane %v711, 4
      %v717 = vshrl.u32 %v591, 16
      %v719 = vrot.slane %v717, 7
      %v720 = vshll.u32 %v591, 16
      %v722 = vor.u32 %v719, %v720
      %v723 = vsel %vm611, %v715, %v722
      %v725 = vshrl.u32 %v592, 16
      %v727 = vrot.slane %v725, 7
      %v728 = vshll.u32 %v592, 16
      %v730 = vor.u32 %v727, %v728
      %v731 = vrot.slane %v727, 4
      %v733 = vshrl.u32 %v593, 16
      %v735 = vrot.slane %v733, 7
      %v736 = vshll.u32 %v593, 16
      %v738 = vor.u32 %v735, %v736
      %v739 = vsel %vm611, %v731, %v738
      %v741 = vshrl.u32 %v594, 16
      %v743 = vrot.slane %v741, 7
      %v744 = vshll.u32 %v594, 16
      %v746 = vor.u32 %v743, %v744
      %v747 = vrot.slane %v743, 4
      %v749 = vshrl.u32 %v595, 16
      %v751 = vrot.slane %v749, 7
      %v752 = vshll.u32 %v595, 16
      %v754 = vor.u32 %v751, %v752
      %v755 = vsel %vm611, %v747, %v754
      %v757 = vshrl.u32 %v596, 16
      %v759 = vrot.slane %v757, 7
      %v760 = vshll.u32 %v596, 16
      %v762 = vor.u32 %v759, %v760
      %v763 = vrot.slane %v759, 4
      %v765 = vshrl.u32 %v597, 16
      %v767 = vrot.slane %v765, 7
      %v768 = vshll.u32 %v597, 16
      %v770 = vor.u32 %v767, %v768
      %v771 = vsel %vm611, %v763, %v770
      %v773 = vshrl.u32 %v598, 16
      %v775 = vrot.slane %v773, 7
      %v776 = vshll.u32 %v598, 16
      %v778 = vor.u32 %v775, %v776
      %v779 = vrot.slane %v775, 4
      %v781 = vshrl.u32 %v599, 16
      %v783 = vrot.slane %v781, 7
      %v784 = vshll.u32 %v599, 16
      %v786 = vor.u32 %v783, %v784
      %v787 = vsel %vm611, %v779, %v786
      %v789 = vshrl.u32 %v600, 16
      %v791 = vrot.slane %v789, 7
      %v792 = vshll.u32 %v600, 16
      %v794 = vor.u32 %v791, %v792
      %v795 = vrot.slane %v791, 4
      %v797 = vshrl.u32 %v601, 16
      %v799 = vrot.slane %v797, 7
      %v800 = vshll.u32 %v601, 16
      %v802 = vor.u32 %v799, %v800
      %v803 = vsel %vm611, %v795, %v802
      %v805 = vshrl.u32 %v602, 16
      %v807 = vrot.slane %v805, 7
      %v808 = vshll.u32 %v602, 16
      %v810 = vor.u32 %v807, %v808
      %v811 = vrot.slane %v807, 4
      %v813 = vshrl.u32 %v603, 16
      %v815 = vrot.slane %v813, 7
      %v816 = vshll.u32 %v603, 16
      %v818 = vor.u32 %v815, %v816
      %v819 = vsel %vm611, %v811, %v818
      %v821 = vshrl.u32 %v604, 16
      %v823 = vrot.slane %v821, 7
      %v824 = vshll.u32 %v604, 16
      %v826 = vor.u32 %v823, %v824
      %v827 = vrot.slane %v823, 4
      %v829 = vshrl.u32 %v605, 16
      %v831 = vrot.slane %v829, 7
      %v832 = vshll.u32 %v605, 16
      %v834 = vor.u32 %v831, %v832
      %v835 = vsel %vm611, %v827, %v834
      %v837 = vshrl.u32 %v606, 16
      %v839 = vrot.slane %v837, 7
      %v840 = vshll.u32 %v606, 16
      %v842 = vor.u32 %v839, %v840
      %v843 = vrot.slane %v839, 4
      %v845 = vshrl.u32 %v607, 16
      %v847 = vrot.slane %v845, 7
      %v848 = vshll.u32 %v607, 16
      %v850 = vor.u32 %v847, %v848
      %v851 = vsel %vm611, %v843, %v850
      %v853 = vshrl.u32 %v608, 16
      %v855 = vrot.slane %v853, 7
      %v856 = vshll.u32 %v608, 16
      %v858 = vor.u32 %v855, %v856
      %v859 = vrot.slane %v855, 4
      %v861 = vshrl.u32 %v609, 16
      %v863 = vrot.slane %v861, 7
      %v864 = vshll.u32 %v609, 16
      %v866 = vor.u32 %v863, %v864
      %v867 = vsel %vm611, %v859, %v866
      %vm900 = vcmask 27648
      %vm901 = vsmask.f32 7938
      %vm902 = vmand %vm900, %vm901
      %v903 = vld [vmem:[%s478] sm:$0xf]
      %v904 = vsel %vm902, %v618, %v903
      %905 = vst [vmem:[%s478] sm:$0xf] %v904
      %906 = vst.msk [vmem:[%s478 + $0x4] sm:$0xf] %vm460, %v627
      %v907 = vld [vmem:[%s478 + $0x8] sm:$0xf]
      %v908 = vsel %vm902, %v634, %v907
      %909 = vst [vmem:[%s478 + $0x8] sm:$0xf] %v908
      %910 = vst.msk [vmem:[%s478 + $0xc] sm:$0xf] %vm460, %v643
      %v911 = vld [vmem:[%s478 + $0x10] sm:$0xf]
      %v912 = vsel %vm902, %v650, %v911
      %913 = vst [vmem:[%s478 + $0x10] sm:$0xf] %v912
      %914 = vst.msk [vmem:[%s478 + $0x14] sm:$0xf] %vm460, %v659
      %v915 = vld [vmem:[%s478 + $0x18] sm:$0xf]
      %v916 = vsel %vm902, %v666, %v915
      %917 = vst [vmem:[%s478 + $0x18] sm:$0xf] %v916
      %918 = vst.msk [vmem:[%s478 + $0x1c] sm:$0xf] %vm460, %v675
      %v919 = vld [vmem:[%s478 + $0x20] sm:$0xf]
      %v920 = vsel %vm902, %v682, %v919
      %921 = vst [vmem:[%s478 + $0x20] sm:$0xf] %v920
      %922 = vst.msk [vmem:[%s478 + $0x24] sm:$0xf] %vm460, %v691
      %v923 = vld [vmem:[%s478 + $0x28] sm:$0xf]
      %v924 = vsel %vm902, %v698, %v923
      %925 = vst [vmem:[%s478 + $0x28] sm:$0xf] %v924
      %926 = vst.msk [vmem:[%s478 + $0x2c] sm:$0xf] %vm460, %v707
      %v927 = vld [vmem:[%s478 + $0x30] sm:$0xf]
      %v928 = vsel %vm902, %v714, %v927
      %929 = vst [vmem:[%s478 + $0x30] sm:$0xf] %v928
      %930 = vst.msk [vmem:[%s478 + $0x34] sm:$0xf] %vm460, %v723
      %v931 = vld [vmem:[%s478 + $0x38] sm:$0xf]
      %v932 = vsel %vm902, %v730, %v931
      %933 = vst [vmem:[%s478 + $0x38] sm:$0xf] %v932
      %934 = vst.msk [vmem:[%s478 + $0x3c] sm:$0xf] %vm460, %v739
      %v935 = vld [vmem:[%s478 + $0x40] sm:$0xf]
      %v936 = vsel %vm902, %v746, %v935
      %937 = vst [vmem:[%s478 + $0x40] sm:$0xf] %v936
      %938 = vst.msk [vmem:[%s478 + $0x44] sm:$0xf] %vm460, %v755
      %v939 = vld [vmem:[%s478 + $0x48] sm:$0xf]
      %v940 = vsel %vm902, %v762, %v939
      %941 = vst [vmem:[%s478 + $0x48] sm:$0xf] %v940
      %942 = vst.msk [vmem:[%s478 + $0x4c] sm:$0xf] %vm460, %v771
      %v943 = vld [vmem:[%s478 + $0x50] sm:$0xf]
      %v944 = vsel %vm902, %v778, %v943
      %945 = vst [vmem:[%s478 + $0x50] sm:$0xf] %v944
      %946 = vst.msk [vmem:[%s478 + $0x54] sm:$0xf] %vm460, %v787
      %v947 = vld [vmem:[%s478 + $0x58] sm:$0xf]
      %v948 = vsel %vm902, %v794, %v947
      %949 = vst [vmem:[%s478 + $0x58] sm:$0xf] %v948
      %950 = vst.msk [vmem:[%s478 + $0x5c] sm:$0xf] %vm460, %v803
      %v951 = vld [vmem:[%s478 + $0x60] sm:$0xf]
      %v952 = vsel %vm902, %v810, %v951
      %953 = vst [vmem:[%s478 + $0x60] sm:$0xf] %v952
      %954 = vst.msk [vmem:[%s478 + $0x64] sm:$0xf] %vm460, %v819
      %v955 = vld [vmem:[%s478 + $0x68] sm:$0xf]
      %v956 = vsel %vm902, %v826, %v955
      %957 = vst [vmem:[%s478 + $0x68] sm:$0xf] %v956
      %958 = vst.msk [vmem:[%s478 + $0x6c] sm:$0xf] %vm460, %v835
      %v959 = vld [vmem:[%s478 + $0x70] sm:$0xf]
      %v960 = vsel %vm902, %v842, %v959
      %961 = vst [vmem:[%s478 + $0x70] sm:$0xf] %v960
      %962 = vst.msk [vmem:[%s478 + $0x74] sm:$0xf] %vm460, %v851
      %v963 = vld [vmem:[%s478 + $0x78] sm:$0xf]
      %v964 = vsel %vm902, %v858, %v963
      %965 = vst [vmem:[%s478 + $0x78] sm:$0xf] %v964
      %966 = vst.msk [vmem:[%s478 + $0x7c] sm:$0xf] %vm460, %v867
      %s999 = scalar_lea.vmem [#allocation2], 152
      %1000 = vst.msk [vmem:[%s999] sm:$0xf] %vm460, %v578
      %1001 = vst.msk [vmem:[%s999 + $0x4] sm:$0xf] %vm460, %v579
      %1002 = vst.msk [vmem:[%s999 + $0x8] sm:$0xf] %vm460, %v580
      %1003 = vst.msk [vmem:[%s999 + $0xc] sm:$0xf] %vm460, %v581
      %1004 = vst.msk [vmem:[%s999 + $0x10] sm:$0xf] %vm460, %v582
      %1005 = vst.msk [vmem:[%s999 + $0x14] sm:$0xf] %vm460, %v583
      %1006 = vst.msk [vmem:[%s999 + $0x18] sm:$0xf] %vm460, %v584
      %1007 = vst.msk [vmem:[%s999 + $0x1c] sm:$0xf] %vm460, %v585
      %1008 = vst.msk [vmem:[%s999 + $0x20] sm:$0xf] %vm460, %v586
      %1009 = vst.msk [vmem:[%s999 + $0x24] sm:$0xf] %vm460, %v587
      %1010 = vst.msk [vmem:[%s999 + $0x28] sm:$0xf] %vm460, %v588
      %1011 = vst.msk [vmem:[%s999 + $0x2c] sm:$0xf] %vm460, %v589
      %1012 = vst.msk [vmem:[%s999 + $0x30] sm:$0xf] %vm460, %v590
      %1013 = vst.msk [vmem:[%s999 + $0x34] sm:$0xf] %vm460, %v591
      %1014 = vst.msk [vmem:[%s999 + $0x38] sm:$0xf] %vm460, %v592
      %1015 = vst.msk [vmem:[%s999 + $0x3c] sm:$0xf] %vm460, %v593
      %1016 = vst.msk [vmem:[%s999 + $0x40] sm:$0xf] %vm460, %v594
      %1017 = vst.msk [vmem:[%s999 + $0x44] sm:$0xf] %vm460, %v595
      %1018 = vst.msk [vmem:[%s999 + $0x48] sm:$0xf] %vm460, %v596
      %1019 = vst.msk [vmem:[%s999 + $0x4c] sm:$0xf] %vm460, %v597
      %1020 = vst.msk [vmem:[%s999 + $0x50] sm:$0xf] %vm460, %v598
      %1021 = vst.msk [vmem:[%s999 + $0x54] sm:$0xf] %vm460, %v599
      %1022 = vst.msk [vmem:[%s999 + $0x58] sm:$0xf] %vm460, %v600
      %1023 = vst.msk [vmem:[%s999 + $0x5c] sm:$0xf] %vm460, %v601
      %1024 = vst.msk [vmem:[%s999 + $0x60] sm:$0xf] %vm460, %v602
      %1025 = vst.msk [vmem:[%s999 + $0x64] sm:$0xf] %vm460, %v603
      %1026 = vst.msk [vmem:[%s999 + $0x68] sm:$0xf] %vm460, %v604
      %1027 = vst.msk [vmem:[%s999 + $0x6c] sm:$0xf] %vm460, %v605
      %1028 = vst.msk [vmem:[%s999 + $0x70] sm:$0xf] %vm460, %v606
      %1029 = vst.msk [vmem:[%s999 + $0x74] sm:$0xf] %vm460, %v607
      %1030 = vst.msk [vmem:[%s999 + $0x78] sm:$0xf] %vm460, %v608
      %1031 = vst.msk [vmem:[%s999 + $0x7c] sm:$0xf] %vm460, %v609
      %vm1032 = vsmask.f32 3328
      %vm1033 = vsmask.f32 7440
      %vm1034 = vmor %vm1032, %vm1033
      %v1035 = vrot.slane %v613, 4
      %v1036 = vrot.slane %v616, 5
      %v1037 = vor.u32 %v1035, %v1036
      %v1038 = vrot.slane %v1037, 4
      %v1039 = vrot.slane %v624, 5
      %v1040 = vsel %vm1034, %v1038, %v1039
      %v1041 = vrot.slane %v621, 4
      %v1042 = vor.u32 %v1041, %v1039
      %v1043 = vrot.slane %v1042, 4
      %v1044 = vrot.slane %v629, 4
      %v1045 = vrot.slane %v632, 5
      %v1046 = vor.u32 %v1044, %v1045
      %v1047 = vrot.slane %v1046, 4
      %v1048 = vrot.slane %v640, 5
      %v1049 = vsel %vm1034, %v1047, %v1048
      %v1050 = vrot.slane %v637, 4
      %v1051 = vor.u32 %v1050, %v1048
      %v1052 = vrot.slane %v1051, 4
      %v1053 = vrot.slane %v645, 4
      %v1054 = vrot.slane %v648, 5
      %v1055 = vor.u32 %v1053, %v1054
      %v1056 = vrot.slane %v1055, 4
      %v1057 = vrot.slane %v656, 5
      %v1058 = vsel %vm1034, %v1056, %v1057
      %v1059 = vrot.slane %v653, 4
      %v1060 = vor.u32 %v1059, %v1057
      %v1061 = vrot.slane %v1060, 4
      %v1062 = vrot.slane %v661, 4
      %v1063 = vrot.slane %v664, 5
      %v1064 = vor.u32 %v1062, %v1063
      %v1065 = vrot.slane %v1064, 4
      %v1066 = vrot.slane %v672, 5
      %v1067 = vsel %vm1034, %v1065, %v1066
      %v1068 = vrot.slane %v669, 4
      %v1069 = vor.u32 %v1068, %v1066
      %v1070 = vrot.slane %v1069, 4
      %v1071 = vrot.slane %v677, 4
      %v1072 = vrot.slane %v680, 5
      %v1073 = vor.u32 %v1071, %v1072
      %v1074 = vrot.slane %v1073, 4
      %v1075 = vrot.slane %v688, 5
      %v1076 = vsel %vm1034, %v1074, %v1075
      %v1077 = vrot.slane %v685, 4
      %v1078 = vor.u32 %v1077, %v1075
      %v1079 = vrot.slane %v1078, 4
      %v1080 = vrot.slane %v693, 4
      %v1081 = vrot.slane %v696, 5
      %v1082 = vor.u32 %v1080, %v1081
      %v1083 = vrot.slane %v1082, 4
      %v1084 = vrot.slane %v704, 5
      %v1085 = vsel %vm1034, %v1083, %v1084
      %v1086 = vrot.slane %v701, 4
      %v1087 = vor.u32 %v1086, %v1084
      %v1088 = vrot.slane %v1087, 4
      %v1089 = vrot.slane %v709, 4
      %v1090 = vrot.slane %v712, 5
      %v1091 = vor.u32 %v1089, %v1090
      %v1092 = vrot.slane %v1091, 4
      %v1093 = vrot.slane %v720, 5
      %v1094 = vsel %vm1034, %v1092, %v1093
      %v1095 = vrot.slane %v717, 4
      %v1096 = vor.u32 %v1095, %v1093
      %v1097 = vrot.slane %v1096, 4
      %v1098 = vrot.slane %v725, 4
      %v1099 = vrot.slane %v728, 5
      %v1100 = vor.u32 %v1098, %v1099
      %v1101 = vrot.slane %v1100, 4
      %v1102 = vrot.slane %v736, 5
      %v1103 = vsel %vm1034, %v1101, %v1102
      %v1104 = vrot.slane %v733, 4
      %v1105 = vor.u32 %v1104, %v1102
      %v1106 = vrot.slane %v1105, 4
      %v1107 = vrot.slane %v741, 4
      %v1108 = vrot.slane %v744, 5
      %v1109 = vor.u32 %v1107, %v1108
      %v1110 = vrot.slane %v1109, 4
      %v1111 = vrot.slane %v752, 5
      %v1112 = vsel %vm1034, %v1110, %v1111
      %v1113 = vrot.slane %v749, 4
      %v1114 = vor.u32 %v1113, %v1111
      %v1115 = vrot.slane %v1114, 4
      %v1116 = vrot.slane %v757, 4
      %v1117 = vrot.slane %v760, 5
      %v1118 = vor.u32 %v1116, %v1117
      %v1119 = vrot.slane %v1118, 4
      %v1120 = vrot.slane %v768, 5
      %v1121 = vsel %vm1034, %v1119, %v1120
      %v1122 = vrot.slane %v765, 4
      %v1123 = vor.u32 %v1122, %v1120
      %v1124 = vrot.slane %v1123, 4
      %v1125 = vrot.slane %v773, 4
      %v1126 = vrot.slane %v776, 5
      %v1127 = vor.u32 %v1125, %v1126
      %v1128 = vrot.slane %v1127, 4
      %v1129 = vrot.slane %v784, 5
      %v1130 = vsel %vm1034, %v1128, %v1129
      %v1131 = vrot.slane %v781, 4
      %v1132 = vor.u32 %v1131, %v1129
      %v1133 = vrot.slane %v1132, 4
      %v1134 = vrot.slane %v789, 4
      %v1135 = vrot.slane %v792, 5
      %v1136 = vor.u32 %v1134, %v1135
      %v1137 = vrot.slane %v1136, 4
      %v1138 = vrot.slane %v800, 5
      %v1139 = vsel %vm1034, %v1137, %v1138
      %v1140 = vrot.slane %v797, 4
      %v1141 = vor.u32 %v1140, %v1138
      %v1142 = vrot.slane %v1141, 4
      %v1143 = vrot.slane %v805, 4
      %v1144 = vrot.slane %v808, 5
      %v1145 = vor.u32 %v1143, %v1144
      %v1146 = vrot.slane %v1145, 4
      %v1147 = vrot.slane %v816, 5
      %v1148 = vsel %vm1034, %v1146, %v1147
      %v1149 = vrot.slane %v813, 4
      %v1150 = vor.u32 %v1149, %v1147
      %v1151 = vrot.slane %v1150, 4
      %v1152 = vrot.slane %v821, 4
      %v1153 = vrot.slane %v824, 5
      %v1154 = vor.u32 %v1152, %v1153
      %v1155 = vrot.slane %v1154, 4
      %v1156 = vrot.slane %v832, 5
      %v1157 = vsel %vm1034, %v1155, %v1156
      %v1158 = vrot.slane %v829, 4
      %v1159 = vor.u32 %v1158, %v1156
      %v1160 = vrot.slane %v1159, 4
      %v1161 = vrot.slane %v837, 4
      %v1162 = vrot.slane %v840, 5
      %v1163 = vor.u32 %v1161, %v1162
      %v1164 = vrot.slane %v1163, 4
      %v1165 = vrot.slane %v848, 5
      %v1166 = vsel %vm1034, %v1164, %v1165
      %v1167 = vrot.slane %v845, 4
      %v1168 = vor.u32 %v1167, %v1165
      %v1169 = vrot.slane %v1168, 4
      %v1170 = vrot.slane %v853, 4
      %v1171 = vrot.slane %v856, 5
      %v1172 = vor.u32 %v1170, %v1171
      %v1173 = vrot.slane %v1172, 4
      %v1174 = vrot.slane %v864, 5
      %v1175 = vsel %vm1034, %v1173, %v1174
      %v1176 = vrot.slane %v861, 4
      %v1177 = vor.u32 %v1176, %v1174
      %v1178 = vrot.slane %v1177, 4
      %s1211 = scalar_lea.vmem [#allocation2], 296
      %1212 = vst.msk [vmem:[%s1211] sm:$0xf] %vm460, %v1040
      %vm1213 = vmand %vm900, %vm1032
      %v1214 = vld [vmem:[%s1211 + $0x4] sm:$0xf]
      %v1215 = vsel %vm1213, %v1043, %v1214
      %1216 = vst [vmem:[%s1211 + $0x4] sm:$0xf] %v1215
      %1217 = vst.msk [vmem:[%s1211 + $0x8] sm:$0xf] %vm460, %v1049
      %v1218 = vld [vmem:[%s1211 + $0xc] sm:$0xf]
      %v1219 = vsel %vm1213, %v1052, %v1218
      %1220 = vst [vmem:[%s1211 + $0xc] sm:$0xf] %v1219
      %1221 = vst.msk [vmem:[%s1211 + $0x10] sm:$0xf] %vm460, %v1058
      %v1222 = vld [vmem:[%s1211 + $0x14] sm:$0xf]
      %v1223 = vsel %vm1213, %v1061, %v1222
      %1224 = vst [vmem:[%s1211 + $0x14] sm:$0xf] %v1223
      %1225 = vst.msk [vmem:[%s1211 + $0x18] sm:$0xf] %vm460, %v1067
      %v1226 = vld [vmem:[%s1211 + $0x1c] sm:$0xf]
      %v1227 = vsel %vm1213, %v1070, %v1226
      %1228 = vst [vmem:[%s1211 + $0x1c] sm:$0xf] %v1227
      %1229 = vst.msk [vmem:[%s1211 + $0x20] sm:$0xf] %vm460, %v1076
      %v1230 = vld [vmem:[%s1211 + $0x24] sm:$0xf]
      %v1231 = vsel %vm1213, %v1079, %v1230
      %1232 = vst [vmem:[%s1211 + $0x24] sm:$0xf] %v1231
      %1233 = vst.msk [vmem:[%s1211 + $0x28] sm:$0xf] %vm460, %v1085
      %v1234 = vld [vmem:[%s1211 + $0x2c] sm:$0xf]
      %v1235 = vsel %vm1213, %v1088, %v1234
      %1236 = vst [vmem:[%s1211 + $0x2c] sm:$0xf] %v1235
      %1237 = vst.msk [vmem:[%s1211 + $0x30] sm:$0xf] %vm460, %v1094
      %v1238 = vld [vmem:[%s1211 + $0x34] sm:$0xf]
      %v1239 = vsel %vm1213, %v1097, %v1238
      %1240 = vst [vmem:[%s1211 + $0x34] sm:$0xf] %v1239
      %1241 = vst.msk [vmem:[%s1211 + $0x38] sm:$0xf] %vm460, %v1103
      %v1242 = vld [vmem:[%s1211 + $0x3c] sm:$0xf]
      %v1243 = vsel %vm1213, %v1106, %v1242
      %1244 = vst [vmem:[%s1211 + $0x3c] sm:$0xf] %v1243
      %1245 = vst.msk [vmem:[%s1211 + $0x40] sm:$0xf] %vm460, %v1112
      %v1246 = vld [vmem:[%s1211 + $0x44] sm:$0xf]
      %v1247 = vsel %vm1213, %v1115, %v1246
      %1248 = vst [vmem:[%s1211 + $0x44] sm:$0xf] %v1247
      %1249 = vst.msk [vmem:[%s1211 + $0x48] sm:$0xf] %vm460, %v1121
      %v1250 = vld [vmem:[%s1211 + $0x4c] sm:$0xf]
      %v1251 = vsel %vm1213, %v1124, %v1250
      %1252 = vst [vmem:[%s1211 + $0x4c] sm:$0xf] %v1251
      %1253 = vst.msk [vmem:[%s1211 + $0x50] sm:$0xf] %vm460, %v1130
      %v1254 = vld [vmem:[%s1211 + $0x54] sm:$0xf]
      %v1255 = vsel %vm1213, %v1133, %v1254
      %1256 = vst [vmem:[%s1211 + $0x54] sm:$0xf] %v1255
      %1257 = vst.msk [vmem:[%s1211 + $0x58] sm:$0xf] %vm460, %v1139
      %v1258 = vld [vmem:[%s1211 + $0x5c] sm:$0xf]
      %v1259 = vsel %vm1213, %v1142, %v1258
      %1260 = vst [vmem:[%s1211 + $0x5c] sm:$0xf] %v1259
      %1261 = vst.msk [vmem:[%s1211 + $0x60] sm:$0xf] %vm460, %v1148
      %v1262 = vld [vmem:[%s1211 + $0x64] sm:$0xf]
      %v1263 = vsel %vm1213, %v1151, %v1262
      %1264 = vst [vmem:[%s1211 + $0x64] sm:$0xf] %v1263
      %1265 = vst.msk [vmem:[%s1211 + $0x68] sm:$0xf] %vm460, %v1157
      %v1266 = vld [vmem:[%s1211 + $0x6c] sm:$0xf]
      %v1267 = vsel %vm1213, %v1160, %v1266
      %1268 = vst [vmem:[%s1211 + $0x6c] sm:$0xf] %v1267
      %1269 = vst.msk [vmem:[%s1211 + $0x70] sm:$0xf] %vm460, %v1166
      %v1270 = vld [vmem:[%s1211 + $0x74] sm:$0xf]
      %v1271 = vsel %vm1213, %v1169, %v1270
      %1272 = vst [vmem:[%s1211 + $0x74] sm:$0xf] %v1271
      %1273 = vst.msk [vmem:[%s1211 + $0x78] sm:$0xf] %vm460, %v1175
      %v1274 = vld [vmem:[%s1211 + $0x7c] sm:$0xf]
      %v1275 = vsel %vm1213, %v1178, %v1274
      %1276 = vst [vmem:[%s1211 + $0x7c] sm:$0xf] %v1275
      %vm1277 = vcmask 27651
      %vm1278 = vsmask.f32 7950
      %vm1279 = vmand %vm1277, %vm1278
      %v1280 = vld [vmem:[%s1211 + $0x4] sm:$0x8]
      %v1281 = vsel %vm1279, 0, %v1280
      %1282 = vst [vmem:[%s1211 + $0x4] sm:$0x8] %v1281
      %v1283 = vld [vmem:[%s1211 + $0xc] sm:$0x8]
      %v1284 = vsel %vm1279, 0, %v1283
      %1285 = vst [vmem:[%s1211 + $0xc] sm:$0x8] %v1284
      %v1286 = vld [vmem:[%s1211 + $0x14] sm:$0x8]
      %v1287 = vsel %vm1279, 0, %v1286
      %1288 = vst [vmem:[%s1211 + $0x14] sm:$0x8] %v1287
      %v1289 = vld [vmem:[%s1211 + $0x1c] sm:$0x8]
      %v1290 = vsel %vm1279, 0, %v1289
      %1291 = vst [vmem:[%s1211 + $0x1c] sm:$0x8] %v1290
      %v1292 = vld [vmem:[%s1211 + $0x24] sm:$0x8]
      %v1293 = vsel %vm1279, 0, %v1292
      %1294 = vst [vmem:[%s1211 + $0x24] sm:$0x8] %v1293
      %v1295 = vld [vmem:[%s1211 + $0x2c] sm:$0x8]
      %v1296 = vsel %vm1279, 0, %v1295
      %1297 = vst [vmem:[%s1211 + $0x2c] sm:$0x8] %v1296
      %v1298 = vld [vmem:[%s1211 + $0x34] sm:$0x8]
      %v1299 = vsel %vm1279, 0, %v1298
      %1300 = vst [vmem:[%s1211 + $0x34] sm:$0x8] %v1299
      %v1301 = vld [vmem:[%s1211 + $0x3c] sm:$0x8]
      %v1302 = vsel %vm1279, 0, %v1301
      %1303 = vst [vmem:[%s1211 + $0x3c] sm:$0x8] %v1302
      %v1304 = vld [vmem:[%s1211 + $0x44] sm:$0x8]
      %v1305 = vsel %vm1279, 0, %v1304
      %1306 = vst [vmem:[%s1211 + $0x44] sm:$0x8] %v1305
      %v1307 = vld [vmem:[%s1211 + $0x4c] sm:$0x8]
      %v1308 = vsel %vm1279, 0, %v1307
      %1309 = vst [vmem:[%s1211 + $0x4c] sm:$0x8] %v1308
      %v1310 = vld [vmem:[%s1211 + $0x54] sm:$0x8]
      %v1311 = vsel %vm1279, 0, %v1310
      %1312 = vst [vmem:[%s1211 + $0x54] sm:$0x8] %v1311
      %v1313 = vld [vmem:[%s1211 + $0x5c] sm:$0x8]
      %v1314 = vsel %vm1279, 0, %v1313
      %1315 = vst [vmem:[%s1211 + $0x5c] sm:$0x8] %v1314
      %v1316 = vld [vmem:[%s1211 + $0x64] sm:$0x8]
      %v1317 = vsel %vm1279, 0, %v1316
      %1318 = vst [vmem:[%s1211 + $0x64] sm:$0x8] %v1317
      %v1319 = vld [vmem:[%s1211 + $0x6c] sm:$0x8]
      %v1320 = vsel %vm1279, 0, %v1319
      %1321 = vst [vmem:[%s1211 + $0x6c] sm:$0x8] %v1320
      %v1322 = vld [vmem:[%s1211 + $0x74] sm:$0x8]
      %v1323 = vsel %vm1279, 0, %v1322
      %1324 = vst [vmem:[%s1211 + $0x74] sm:$0x8] %v1323
      %v1325 = vld [vmem:[%s1211 + $0x7c] sm:$0x8]
      %v1326 = vsel %vm1279, 0, %v1325
      %1327 = vst [vmem:[%s1211 + $0x7c] sm:$0x8] %v1326
      %v1328 = vld [vmem:[#allocation2] sm:$0xf]
      %v1329 = vld [vmem:[#allocation2 + $0x4] sm:$0xf]
      %v1330 = vld [vmem:[#allocation2 + $0x8] sm:$0xf]
      %v1331 = vld [vmem:[#allocation2 + $0xc] sm:$0xf]
      %v1332 = vld [vmem:[#allocation2 + $0x10] sm:$0xf]
      %v1333 = vld [vmem:[#allocation2 + $0x14] sm:$0xf]
      %v1334 = vld [vmem:[#allocation2 + $0x18] sm:$0xf]
      %v1335 = vld [vmem:[#allocation2 + $0x1c] sm:$0xf]
      %v1336 = vld [vmem:[#allocation2 + $0x20] sm:$0xf]
      %v1337 = vld [vmem:[#allocation2 + $0x24] sm:$0xf]
      %v1338 = vld [vmem:[#allocation2 + $0x28] sm:$0xf]
      %v1339 = vld [vmem:[#allocation2 + $0x2c] sm:$0xf]
      %v1340 = vld [vmem:[#allocation2 + $0x30] sm:$0xf]
      %v1341 = vld [vmem:[#allocation2 + $0x34] sm:$0xf]
      %v1342 = vld [vmem:[#allocation2 + $0x38] sm:$0xf]
      %v1343 = vld [vmem:[#allocation2 + $0x3c] sm:$0xf]
      %v1344 = vld [vmem:[#allocation2 + $0x40] sm:$0xf]
      %v1345 = vld [vmem:[#allocation2 + $0x44] sm:$0xf]
      %v1346 = vld [vmem:[#allocation2 + $0x48] sm:$0xf]
      %v1347 = vld [vmem:[#allocation2 + $0x4c] sm:$0xf]
      %v1348 = vld [vmem:[#allocation2 + $0x50] sm:$0xf]
      %v1349 = vld [vmem:[#allocation2 + $0x54] sm:$0xf]
      %v1350 = vld [vmem:[#allocation2 + $0x58] sm:$0xf]
      %v1351 = vld [vmem:[#allocation2 + $0x5c] sm:$0xf]
      %v1352 = vld [vmem:[#allocation2 + $0x60] sm:$0xf]
      %v1353 = vld [vmem:[#allocation2 + $0x64] sm:$0xf]
      %v1354 = vld [vmem:[#allocation2 + $0x68] sm:$0xf]
      %v1355 = vld [vmem:[#allocation2 + $0x6c] sm:$0xf]
      %v1356 = vld [vmem:[#allocation2 + $0x70] sm:$0xf]
      %v1357 = vld [vmem:[#allocation2 + $0x74] sm:$0xf]
      %v1358 = vld [vmem:[#allocation2 + $0x78] sm:$0xf]
      %v1359 = vld [vmem:[#allocation2 + $0x7c] sm:$0xf]
      %v1360 = vld [vmem:[%s1] sm:$0x3]
      %v1361 = vld [vmem:[%s466] sm:$0xf]
      %v1362 = vld [vmem:[%s466 + $0x4] sm:$0xf]
      %v1363 = vld [vmem:[%s466 + $0x8] sm:$0xf]
      %v1364 = vld [vmem:[%s466 + $0xc] sm:$0xf]
      %v1365 = vld [vmem:[%s466 + $0x10] sm:$0xf]
      %v1366 = vld [vmem:[%s466 + $0x14] sm:$0xf]
      %v1367 = vld [vmem:[%s466 + $0x18] sm:$0xf]
      %v1368 = vld [vmem:[%s466 + $0x1c] sm:$0xf]
      %v1369 = vld [vmem:[%s466 + $0x20] sm:$0xf]
      %v1370 = vld [vmem:[%s466 + $0x24] sm:$0xf]
      %v1371 = vld [vmem:[%s466 + $0x28] sm:$0xf]
      %v1372 = vld [vmem:[%s466 + $0x2c] sm:$0xf]
      %v1373 = vld [vmem:[%s466 + $0x30] sm:$0xf]
      %v1374 = vld [vmem:[%s466 + $0x34] sm:$0xf]
      %v1375 = vld [vmem:[%s466 + $0x38] sm:$0xf]
      %v1376 = vld [vmem:[%s466 + $0x3c] sm:$0xf]
      %v1377 = vld [vmem:[%s466 + $0x40] sm:$0xf]
      %v1378 = vld [vmem:[%s466 + $0x44] sm:$0xf]
      %v1379 = vld [vmem:[%s466 + $0x48] sm:$0xf]
      %v1380 = vld [vmem:[%s466 + $0x4c] sm:$0xf]
      %v1381 = vld [vmem:[%s466 + $0x50] sm:$0xf]
      %v1382 = vld [vmem:[%s466 + $0x54] sm:$0xf]
      %v1383 = vld [vmem:[%s466 + $0x58] sm:$0xf]
      %v1384 = vld [vmem:[%s466 + $0x5c] sm:$0xf]
      %v1385 = vld [vmem:[%s466 + $0x60] sm:$0xf]
      %v1386 = vld [vmem:[%s466 + $0x64] sm:$0xf]
      %v1387 = vld [vmem:[%s466 + $0x68] sm:$0xf]
      %v1388 = vld [vmem:[%s466 + $0x6c] sm:$0xf]
      %v1389 = vld [vmem:[%s466 + $0x70] sm:$0xf]
      %v1390 = vld [vmem:[%s466 + $0x74] sm:$0xf]
      %v1391 = vld [vmem:[%s466 + $0x78] sm:$0xf]
      %v1392 = vld [vmem:[%s466 + $0x7c] sm:$0xf]
      %s1393 = scalar_lea.vmem %s1, 2
      %v1394 = vld [vmem:[%s1393] sm:$0x3]
      %v1427 = vunpack.c.l.b16 %v1361
      %v1428 = vunpack.c.l.b16 %v1362
      %v1429 = vunpack.c.l.b16 %v1363
      %v1430 = vunpack.c.l.b16 %v1364
      %v1431 = vunpack.c.l.b16 %v1365
      %v1432 = vunpack.c.l.b16 %v1366
      %v1433 = vunpack.c.l.b16 %v1367
      %v1434 = vunpack.c.l.b16 %v1368
      %v1435 = vunpack.c.l.b16 %v1369
      %v1436 = vunpack.c.l.b16 %v1370
      %v1437 = vunpack.c.l.b16 %v1371
      %v1438 = vunpack.c.l.b16 %v1372
      %v1439 = vunpack.c.l.b16 %v1373
      %v1440 = vunpack.c.l.b16 %v1374
      %v1441 = vunpack.c.l.b16 %v1375
      %v1442 = vunpack.c.l.b16 %v1376
      %v1443 = vunpack.c.l.b16 %v1377
      %v1444 = vunpack.c.l.b16 %v1378
      %v1445 = vunpack.c.l.b16 %v1379
      %v1446 = vunpack.c.l.b16 %v1380
      %v1447 = vunpack.c.l.b16 %v1381
      %v1448 = vunpack.c.l.b16 %v1382
      %v1449 = vunpack.c.l.b16 %v1383
      %v1450 = vunpack.c.l.b16 %v1384
      %v1451 = vunpack.c.l.b16 %v1385
      %v1452 = vunpack.c.l.b16 %v1386
      %v1453 = vunpack.c.l.b16 %v1387
      %v1454 = vunpack.c.l.b16 %v1388
      %v1455 = vunpack.c.l.b16 %v1389
      %v1456 = vunpack.c.l.b16 %v1390
      %v1457 = vunpack.c.l.b16 %v1391
      %v1458 = vunpack.c.l.b16 %v1392
      %v1459 = vpack.c.b16 %v1428, %v1427
      %v1460 = vpack.c.b16 %v1430, %v1429
      %v1461 = vpack.c.b16 %v1432, %v1431
      %v1462 = vpack.c.b16 %v1434, %v1433
      %v1463 = vpack.c.b16 %v1436, %v1435
      %v1464 = vpack.c.b16 %v1438, %v1437
      %v1465 = vpack.c.b16 %v1440, %v1439
      %v1466 = vpack.c.b16 %v1442, %v1441
      %v1467 = vpack.c.b16 %v1444, %v1443
      %v1468 = vpack.c.b16 %v1446, %v1445
      %v1469 = vpack.c.b16 %v1448, %v1447
      %v1470 = vpack.c.b16 %v1450, %v1449
      %v1471 = vpack.c.b16 %v1452, %v1451
      %v1472 = vpack.c.b16 %v1454, %v1453
      %v1473 = vpack.c.b16 %v1456, %v1455
      %v1474 = vpack.c.b16 %v1458, %v1457
      %vm1475 = vcmask 31744
      %v1477 = vsel %vm1475, %v1459, 0
      %v1480 = vsel %vm1475, %v1460, 0
      %v1483 = vsel %vm1475, %v1461, 0
      %v1486 = vsel %vm1475, %v1462, 0
      %v1489 = vsel %vm1475, %v1463, 0
      %v1492 = vsel %vm1475, %v1464, 0
      %v1495 = vsel %vm1475, %v1465, 0
      %v1498 = vsel %vm1475, %v1466, 0
      %v1501 = vsel %vm1475, %v1467, 0
      %v1504 = vsel %vm1475, %v1468, 0
      %v1507 = vsel %vm1475, %v1469, 0
      %v1510 = vsel %vm1475, %v1470, 0
      %v1513 = vsel %vm1475, %v1471, 0
      %v1516 = vsel %vm1475, %v1472, 0
      %v1519 = vsel %vm1475, %v1473, 0
      %v1522 = vsel %vm1475, %v1474, 0
      %vm1524 = vcmask 1041408
      %v1526 = vsel %vm1524, %v1394, 0
      %1528 = vmatprep.subr.bf16.mxu0 0
      %1529 = vmatpush1.bf16.msra.mxu0 0
      %1530 = vmatprep.subr.bf16.mxu0 0
      %1531 = vmatpush1.bf16.msra.mxu0 0
      %1532 = vmatprep.subr.bf16.mxu0 0
      %1533 = vmatpush1.bf16.msra.mxu0 0
      %1534 = vmatprep.subr.bf16.mxu0 0
      %1535 = vmatpush1.bf16.msra.mxu0 0
      %1536 = vmatprep.subr.bf16.mxu0 0
      %1537 = vmatpush1.bf16.msra.mxu0 0
      %1538 = vmatprep.subr.bf16.mxu0 0
      %1539 = vmatpush1.bf16.msra.mxu0 0
      %1540 = vmatprep.subr.bf16.mxu0 0
      %1541 = vmatpush1.bf16.msra.mxu0 0
      %1542 = vmatprep.subr.bf16.mxu0 0
      %1543 = vmatpush1.bf16.msra.mxu0 %v1526
      %1544 = vmatprep.subr.bf16.mxu0 0
      %1545 = vmatpush2.bf16.msra.mxu0 0
      %1546 = vmatprep.subr.bf16.mxu0 0
      %1547 = vmatpush2.bf16.msra.mxu0 0
      %1548 = vmatprep.subr.bf16.mxu0 0
      %1549 = vmatpush2.bf16.msra.mxu0 0
      %1550 = vmatprep.subr.bf16.mxu0 0
      %1551 = vmatpush2.bf16.msra.mxu0 0
      %1552 = vmatprep.subr.bf16.mxu0 0
      %1553 = vmatpush2.bf16.msra.mxu0 0
      %1554 = vmatprep.subr.bf16.mxu0 0
      %1555 = vmatpush2.bf16.msra.mxu0 0
      %1556 = vmatprep.subr.bf16.mxu0 0
      %1557 = vmatpush2.bf16.msra.mxu0 0
      %1558 = vmatprep.subr.bf16.mxu0 0
      %1559 = vmatpush2.bf16.msra.mxu0 0
      %1560 = vmatprep.mubr.bf16.mxu0 0
      %1561 = vmatmul.mubr.bf16.gmra.mxu0 %v1477
      %v1562 = vpop.f32.mrf.mxu0
      %v1563 = vadd.f32 0.0, %v1562
      %v1564 = vpop.f32.mrf.mxu0
      %v1565 = vpop.f32.mrf.mxu0
      %v1566 = vadd.f32 0.0, %v1565
      %v1567 = vpop.f32.mrf.mxu0
      %1568 = vmatprep.mubr.bf16.mxu0 0
      %1569 = vmatmul.mubr.bf16.gmra.mxu0 %v1480
      %v1570 = vpop.f32.mrf.mxu0
      %v1571 = vadd.f32 0.0, %v1570
      %v1572 = vpop.f32.mrf.mxu0
      %v1573 = vpop.f32.mrf.mxu0
      %v1574 = vadd.f32 0.0, %v1573
      %v1575 = vpop.f32.mrf.mxu0
      %1576 = vmatprep.mubr.bf16.mxu0 0
      %1577 = vmatmul.mubr.bf16.gmra.mxu0 %v1483
      %v1578 = vpop.f32.mrf.mxu0
      %v1579 = vadd.f32 0.0, %v1578
      %v1580 = vpop.f32.mrf.mxu0
      %v1581 = vpop.f32.mrf.mxu0
      %v1582 = vadd.f32 0.0, %v1581
      %v1583 = vpop.f32.mrf.mxu0
      %1584 = vmatprep.mubr.bf16.mxu0 0
      %1585 = vmatmul.mubr.bf16.gmra.mxu0 %v1486
      %v1586 = vpop.f32.mrf.mxu0
      %v1587 = vadd.f32 0.0, %v1586
      %v1588 = vpop.f32.mrf.mxu0
      %v1589 = vpop.f32.mrf.mxu0
      %v1590 = vadd.f32 0.0, %v1589
      %v1591 = vpop.f32.mrf.mxu0
      %1592 = vmatprep.mubr.bf16.mxu0 0
      %1593 = vmatmul.mubr.bf16.gmra.mxu0 %v1489
      %v1594 = vpop.f32.mrf.mxu0
      %v1595 = vadd.f32 0.0, %v1594
      %v1596 = vpop.f32.mrf.mxu0
      %v1597 = vpop.f32.mrf.mxu0
      %v1598 = vadd.f32 0.0, %v1597
      %v1599 = vpop.f32.mrf.mxu0
      %1600 = vmatprep.mubr.bf16.mxu0 0
      %1601 = vmatmul.mubr.bf16.gmra.mxu0 %v1492
      %v1602 = vpop.f32.mrf.mxu0
      %v1603 = vadd.f32 0.0, %v1602
      %v1604 = vpop.f32.mrf.mxu0
      %v1605 = vpop.f32.mrf.mxu0
      %v1606 = vadd.f32 0.0, %v1605
      %v1607 = vpop.f32.mrf.mxu0
      %1608 = vmatprep.mubr.bf16.mxu0 0
      %1609 = vmatmul.mubr.bf16.gmra.mxu0 %v1495
      %v1610 = vpop.f32.mrf.mxu0
      %v1611 = vadd.f32 0.0, %v1610
      %v1612 = vpop.f32.mrf.mxu0
      %v1613 = vpop.f32.mrf.mxu0
      %v1614 = vadd.f32 0.0, %v1613
      %v1615 = vpop.f32.mrf.mxu0
      %1616 = vmatprep.mubr.bf16.mxu0 0
      %1617 = vmatmul.mubr.bf16.gmra.mxu0 %v1498
      %v1618 = vpop.f32.mrf.mxu0
      %v1619 = vadd.f32 0.0, %v1618
      %v1620 = vpop.f32.mrf.mxu0
      %v1621 = vpop.f32.mrf.mxu0
      %v1622 = vadd.f32 0.0, %v1621
      %v1623 = vpop.f32.mrf.mxu0
      %1624 = vmatprep.mubr.bf16.mxu0 0
      %1625 = vmatmul.mubr.bf16.gmra.mxu0 %v1501
      %v1626 = vpop.f32.mrf.mxu0
      %v1627 = vadd.f32 0.0, %v1626
      %v1628 = vpop.f32.mrf.mxu0
      %v1629 = vpop.f32.mrf.mxu0
      %v1630 = vadd.f32 0.0, %v1629
      %v1631 = vpop.f32.mrf.mxu0
      %1632 = vmatprep.mubr.bf16.mxu0 0
      %1633 = vmatmul.mubr.bf16.gmra.mxu0 %v1504
      %v1634 = vpop.f32.mrf.mxu0
      %v1635 = vadd.f32 0.0, %v1634
      %v1636 = vpop.f32.mrf.mxu0
      %v1637 = vpop.f32.mrf.mxu0
      %v1638 = vadd.f32 0.0, %v1637
      %v1639 = vpop.f32.mrf.mxu0
      %1640 = vmatprep.mubr.bf16.mxu0 0
      %1641 = vmatmul.mubr.bf16.gmra.mxu0 %v1507
      %v1642 = vpop.f32.mrf.mxu0
      %v1643 = vadd.f32 0.0, %v1642
      %v1644 = vpop.f32.mrf.mxu0
      %v1645 = vpop.f32.mrf.mxu0
      %v1646 = vadd.f32 0.0, %v1645
      %v1647 = vpop.f32.mrf.mxu0
      %1648 = vmatprep.mubr.bf16.mxu0 0
      %1649 = vmatmul.mubr.bf16.gmra.mxu0 %v1510
      %v1650 = vpop.f32.mrf.mxu0
      %v1651 = vadd.f32 0.0, %v1650
      %v1652 = vpop.f32.mrf.mxu0
      %v1653 = vpop.f32.mrf.mxu0
      %v1654 = vadd.f32 0.0, %v1653
      %v1655 = vpop.f32.mrf.mxu0
      %1656 = vmatprep.mubr.bf16.mxu0 0
      %1657 = vmatmul.mubr.bf16.gmra.mxu0 %v1513
      %v1658 = vpop.f32.mrf.mxu0
      %v1659 = vadd.f32 0.0, %v1658
      %v1660 = vpop.f32.mrf.mxu0
      %v1661 = vpop.f32.mrf.mxu0
      %v1662 = vadd.f32 0.0, %v1661
      %v1663 = vpop.f32.mrf.mxu0
      %1664 = vmatprep.mubr.bf16.mxu0 0
      %1665 = vmatmul.mubr.bf16.gmra.mxu0 %v1516
      %v1666 = vpop.f32.mrf.mxu0
      %v1667 = vadd.f32 0.0, %v1666
      %v1668 = vpop.f32.mrf.mxu0
      %v1669 = vpop.f32.mrf.mxu0
      %v1670 = vadd.f32 0.0, %v1669
      %v1671 = vpop.f32.mrf.mxu0
      %1672 = vmatprep.mubr.bf16.mxu0 0
      %1673 = vmatmul.mubr.bf16.gmra.mxu0 %v1519
      %v1674 = vpop.f32.mrf.mxu0
      %v1675 = vadd.f32 0.0, %v1674
      %v1676 = vpop.f32.mrf.mxu0
      %v1677 = vpop.f32.mrf.mxu0
      %v1678 = vadd.f32 0.0, %v1677
      %v1679 = vpop.f32.mrf.mxu0
      %1680 = vmatprep.mubr.bf16.mxu0 0
      %1681 = vmatmul.mubr.bf16.gmra.mxu0 %v1522
      %v1682 = vpop.f32.mrf.mxu0
      %v1683 = vadd.f32 0.0, %v1682
      %v1684 = vpop.f32.mrf.mxu0
      %v1685 = vpop.f32.mrf.mxu0
      %v1686 = vadd.f32 0.0, %v1685
      %v1687 = vpop.f32.mrf.mxu0
      %1688 = vdwg.mxu0
      %v1721 = vunpack.c.l.b16 %v1328
      %v1722 = vunpack.c.l.b16 %v1329
      %v1723 = vunpack.c.l.b16 %v1330
      %v1724 = vunpack.c.l.b16 %v1331
      %v1725 = vunpack.c.l.b16 %v1332
      %v1726 = vunpack.c.l.b16 %v1333
      %v1727 = vunpack.c.l.b16 %v1334
      %v1728 = vunpack.c.l.b16 %v1335
      %v1729 = vunpack.c.l.b16 %v1336
      %v1730 = vunpack.c.l.b16 %v1337
      %v1731 = vunpack.c.l.b16 %v1338
      %v1732 = vunpack.c.l.b16 %v1339
      %v1733 = vunpack.c.l.b16 %v1340
      %v1734 = vunpack.c.l.b16 %v1341
      %v1735 = vunpack.c.l.b16 %v1342
      %v1736 = vunpack.c.l.b16 %v1343
      %v1737 = vunpack.c.l.b16 %v1344
      %v1738 = vunpack.c.l.b16 %v1345
      %v1739 = vunpack.c.l.b16 %v1346
      %v1740 = vunpack.c.l.b16 %v1347
      %v1741 = vunpack.c.l.b16 %v1348
      %v1742 = vunpack.c.l.b16 %v1349
      %v1743 = vunpack.c.l.b16 %v1350
      %v1744 = vunpack.c.l.b16 %v1351
      %v1745 = vunpack.c.l.b16 %v1352
      %v1746 = vunpack.c.l.b16 %v1353
      %v1747 = vunpack.c.l.b16 %v1354
      %v1748 = vunpack.c.l.b16 %v1355
      %v1749 = vunpack.c.l.b16 %v1356
      %v1750 = vunpack.c.l.b16 %v1357
      %v1751 = vunpack.c.l.b16 %v1358
      %v1752 = vunpack.c.l.b16 %v1359
      %v1753 = vpack.c.b16 %v1722, %v1721
      %v1754 = vpack.c.b16 %v1724, %v1723
      %v1755 = vpack.c.b16 %v1726, %v1725
      %v1756 = vpack.c.b16 %v1728, %v1727
      %v1757 = vpack.c.b16 %v1730, %v1729
      %v1758 = vpack.c.b16 %v1732, %v1731
      %v1759 = vpack.c.b16 %v1734, %v1733
      %v1760 = vpack.c.b16 %v1736, %v1735
      %v1761 = vpack.c.b16 %v1738, %v1737
      %v1762 = vpack.c.b16 %v1740, %v1739
      %v1763 = vpack.c.b16 %v1742, %v1741
      %v1764 = vpack.c.b16 %v1744, %v1743
      %v1765 = vpack.c.b16 %v1746, %v1745
      %v1766 = vpack.c.b16 %v1748, %v1747
      %v1767 = vpack.c.b16 %v1750, %v1749
      %v1768 = vpack.c.b16 %v1752, %v1751
      %v1770 = vsel %vm1475, %v1753, 0
      %v1773 = vsel %vm1475, %v1754, 0
      %v1776 = vsel %vm1475, %v1755, 0
      %v1779 = vsel %vm1475, %v1756, 0
      %v1782 = vsel %vm1475, %v1757, 0
      %v1785 = vsel %vm1475, %v1758, 0
      %v1788 = vsel %vm1475, %v1759, 0
      %v1791 = vsel %vm1475, %v1760, 0
      %v1794 = vsel %vm1475, %v1761, 0
      %v1797 = vsel %vm1475, %v1762, 0
      %v1800 = vsel %vm1475, %v1763, 0
      %v1803 = vsel %vm1475, %v1764, 0
      %v1806 = vsel %vm1475, %v1765, 0
      %v1809 = vsel %vm1475, %v1766, 0
      %v1812 = vsel %vm1475, %v1767, 0
      %v1815 = vsel %vm1475, %v1768, 0
      %v1818 = vsel %vm1524, %v1360, 0
      %1820 = vmatprep.subr.bf16.mxu0 0
      %1821 = vmatpush1.bf16.msra.mxu0 0
      %1822 = vmatprep.subr.bf16.mxu0 0
      %1823 = vmatpush1.bf16.msra.mxu0 0
      %1824 = vmatprep.subr.bf16.mxu0 0
      %1825 = vmatpush1.bf16.msra.mxu0 0
      %1826 = vmatprep.subr.bf16.mxu0 0
      %1827 = vmatpush1.bf16.msra.mxu0 0
      %1828 = vmatprep.subr.bf16.mxu0 0
      %1829 = vmatpush1.bf16.msra.mxu0 0
      %1830 = vmatprep.subr.bf16.mxu0 0
      %1831 = vmatpush1.bf16.msra.mxu0 0
      %1832 = vmatprep.subr.bf16.mxu0 0
      %1833 = vmatpush1.bf16.msra.mxu0 0
      %1834 = vmatprep.subr.bf16.mxu0 0
      %1835 = vmatpush1.bf16.msra.mxu0 %v1818
      %1836 = vmatprep.subr.bf16.mxu0 0
      %1837 = vmatpush2.bf16.msra.mxu0 0
      %1838 = vmatprep.subr.bf16.mxu0 0
      %1839 = vmatpush2.bf16.msra.mxu0 0
      %1840 = vmatprep.subr.bf16.mxu0 0
      %1841 = vmatpush2.bf16.msra.mxu0 0
      %1842 = vmatprep.subr.bf16.mxu0 0
      %1843 = vmatpush2.bf16.msra.mxu0 0
      %1844 = vmatprep.subr.bf16.mxu0 0
      %1845 = vmatpush2.bf16.msra.mxu0 0
      %1846 = vmatprep.subr.bf16.mxu0 0
      %1847 = vmatpush2.bf16.msra.mxu0 0
      %1848 = vmatprep.subr.bf16.mxu0 0
      %1849 = vmatpush2.bf16.msra.mxu0 0
      %1850 = vmatprep.subr.bf16.mxu0 0
      %1851 = vmatpush2.bf16.msra.mxu0 0
      %1852 = vmatprep.mubr.bf16.mxu0 0
      %1853 = vmatmul.mubr.bf16.gmra.mxu0 %v1770
      %v1854 = vpop.f32.mrf.mxu0
      %v1855 = vadd.f32 %v1563, %v1854
      %v1856 = vpop.f32.mrf.mxu0
      %v1857 = vpop.f32.mrf.mxu0
      %v1858 = vadd.f32 %v1566, %v1857
      %v1859 = vpop.f32.mrf.mxu0
      %1860 = vmatprep.mubr.bf16.mxu0 0
      %1861 = vmatmul.mubr.bf16.gmra.mxu0 %v1773
      %v1862 = vpop.f32.mrf.mxu0
      %v1863 = vadd.f32 %v1571, %v1862
      %v1864 = vpop.f32.mrf.mxu0
      %v1865 = vpop.f32.mrf.mxu0
      %v1866 = vadd.f32 %v1574, %v1865
      %v1867 = vpop.f32.mrf.mxu0
      %1868 = vmatprep.mubr.bf16.mxu0 0
      %1869 = vmatmul.mubr.bf16.gmra.mxu0 %v1776
      %v1870 = vpop.f32.mrf.mxu0
      %v1871 = vadd.f32 %v1579, %v1870
      %v1872 = vpop.f32.mrf.mxu0
      %v1873 = vpop.f32.mrf.mxu0
      %v1874 = vadd.f32 %v1582, %v1873
      %v1875 = vpop.f32.mrf.mxu0
      %1876 = vmatprep.mubr.bf16.mxu0 0
      %1877 = vmatmul.mubr.bf16.gmra.mxu0 %v1779
      %v1878 = vpop.f32.mrf.mxu0
      %v1879 = vadd.f32 %v1587, %v1878
      %v1880 = vpop.f32.mrf.mxu0
      %v1881 = vpop.f32.mrf.mxu0
      %v1882 = vadd.f32 %v1590, %v1881
      %v1883 = vpop.f32.mrf.mxu0
      %1884 = vmatprep.mubr.bf16.mxu0 0
      %1885 = vmatmul.mubr.bf16.gmra.mxu0 %v1782
      %v1886 = vpop.f32.mrf.mxu0
      %v1887 = vadd.f32 %v1595, %v1886
      %v1888 = vpop.f32.mrf.mxu0
      %v1889 = vpop.f32.mrf.mxu0
      %v1890 = vadd.f32 %v1598, %v1889
      %v1891 = vpop.f32.mrf.mxu0
      %1892 = vmatprep.mubr.bf16.mxu0 0
      %1893 = vmatmul.mubr.bf16.gmra.mxu0 %v1785
      %v1894 = vpop.f32.mrf.mxu0
      %v1895 = vadd.f32 %v1603, %v1894
      %v1896 = vpop.f32.mrf.mxu0
      %v1897 = vpop.f32.mrf.mxu0
      %v1898 = vadd.f32 %v1606, %v1897
      %v1899 = vpop.f32.mrf.mxu0
      %1900 = vmatprep.mubr.bf16.mxu0 0
      %1901 = vmatmul.mubr.bf16.gmra.mxu0 %v1788
      %v1902 = vpop.f32.mrf.mxu0
      %v1903 = vadd.f32 %v1611, %v1902
      %v1904 = vpop.f32.mrf.mxu0
      %v1905 = vpop.f32.mrf.mxu0
      %v1906 = vadd.f32 %v1614, %v1905
      %v1907 = vpop.f32.mrf.mxu0
      %1908 = vmatprep.mubr.bf16.mxu0 0
      %1909 = vmatmul.mubr.bf16.gmra.mxu0 %v1791
      %v1910 = vpop.f32.mrf.mxu0
      %v1911 = vadd.f32 %v1619, %v1910
      %v1912 = vpop.f32.mrf.mxu0
      %v1913 = vpop.f32.mrf.mxu0
      %v1914 = vadd.f32 %v1622, %v1913
      %v1915 = vpop.f32.mrf.mxu0
      %1916 = vmatprep.mubr.bf16.mxu0 0
      %1917 = vmatmul.mubr.bf16.gmra.mxu0 %v1794
      %v1918 = vpop.f32.mrf.mxu0
      %v1919 = vadd.f32 %v1627, %v1918
      %v1920 = vpop.f32.mrf.mxu0
      %v1921 = vpop.f32.mrf.mxu0
      %v1922 = vadd.f32 %v1630, %v1921
      %v1923 = vpop.f32.mrf.mxu0
      %1924 = vmatprep.mubr.bf16.mxu0 0
      %1925 = vmatmul.mubr.bf16.gmra.mxu0 %v1797
      %v1926 = vpop.f32.mrf.mxu0
      %v1927 = vadd.f32 %v1635, %v1926
      %v1928 = vpop.f32.mrf.mxu0
      %v1929 = vpop.f32.mrf.mxu0
      %v1930 = vadd.f32 %v1638, %v1929
      %v1931 = vpop.f32.mrf.mxu0
      %1932 = vmatprep.mubr.bf16.mxu0 0
      %1933 = vmatmul.mubr.bf16.gmra.mxu0 %v1800
      %v1934 = vpop.f32.mrf.mxu0
      %v1935 = vadd.f32 %v1643, %v1934
      %v1936 = vpop.f32.mrf.mxu0
      %v1937 = vpop.f32.mrf.mxu0
      %v1938 = vadd.f32 %v1646, %v1937
      %v1939 = vpop.f32.mrf.mxu0
      %1940 = vmatprep.mubr.bf16.mxu0 0
      %1941 = vmatmul.mubr.bf16.gmra.mxu0 %v1803
      %v1942 = vpop.f32.mrf.mxu0
      %v1943 = vadd.f32 %v1651, %v1942
      %v1944 = vpop.f32.mrf.mxu0
      %v1945 = vpop.f32.mrf.mxu0
      %v1946 = vadd.f32 %v1654, %v1945
      %v1947 = vpop.f32.mrf.mxu0
      %1948 = vmatprep.mubr.bf16.mxu0 0
      %1949 = vmatmul.mubr.bf16.gmra.mxu0 %v1806
      %v1950 = vpop.f32.mrf.mxu0
      %v1951 = vadd.f32 %v1659, %v1950
      %v1952 = vpop.f32.mrf.mxu0
      %v1953 = vpop.f32.mrf.mxu0
      %v1954 = vadd.f32 %v1662, %v1953
      %v1955 = vpop.f32.mrf.mxu0
      %1956 = vmatprep.mubr.bf16.mxu0 0
      %1957 = vmatmul.mubr.bf16.gmra.mxu0 %v1809
      %v1958 = vpop.f32.mrf.mxu0
      %v1959 = vadd.f32 %v1667, %v1958
      %v1960 = vpop.f32.mrf.mxu0
      %v1961 = vpop.f32.mrf.mxu0
      %v1962 = vadd.f32 %v1670, %v1961
      %v1963 = vpop.f32.mrf.mxu0
      %1964 = vmatprep.mubr.bf16.mxu0 0
      %1965 = vmatmul.mubr.bf16.gmra.mxu0 %v1812
      %v1966 = vpop.f32.mrf.mxu0
      %v1967 = vadd.f32 %v1675, %v1966
      %v1968 = vpop.f32.mrf.mxu0
      %v1969 = vpop.f32.mrf.mxu0
      %v1970 = vadd.f32 %v1678, %v1969
      %v1971 = vpop.f32.mrf.mxu0
      %1972 = vmatprep.mubr.bf16.mxu0 0
      %1973 = vmatmul.mubr.bf16.gmra.mxu0 %v1815
      %v1974 = vpop.f32.mrf.mxu0
      %v1975 = vadd.f32 %v1683, %v1974
      %v1976 = vpop.f32.mrf.mxu0
      %v1977 = vpop.f32.mrf.mxu0
      %v1978 = vadd.f32 %v1686, %v1977
      %v1979 = vpop.f32.mrf.mxu0
      %1980 = vdwg.mxu0
      %v1981 = vld [vmem:[%s472] sm:$0xf]
      %v1982 = vld [vmem:[%s472 + $0x4] sm:$0xf]
      %v1983 = vld [vmem:[%s472 + $0x8] sm:$0xf]
      %v1984 = vld [vmem:[%s472 + $0xc] sm:$0xf]
      %v1985 = vld [vmem:[%s472 + $0x10] sm:$0xf]
      %v1986 = vld [vmem:[%s472 + $0x14] sm:$0xf]
      %v1987 = vld [vmem:[%s472 + $0x18] sm:$0xf]
      %v1988 = vld [vmem:[%s472 + $0x1c] sm:$0xf]
      %v1989 = vld [vmem:[%s472 + $0x20] sm:$0xf]
      %v1990 = vld [vmem:[%s472 + $0x24] sm:$0xf]
      %v1991 = vld [vmem:[%s472 + $0x28] sm:$0xf]
      %v1992 = vld [vmem:[%s472 + $0x2c] sm:$0xf]
      %v1993 = vld [vmem:[%s472 + $0x30] sm:$0xf]
      %v1994 = vld [vmem:[%s472 + $0x34] sm:$0xf]
      %v1995 = vld [vmem:[%s472 + $0x38] sm:$0xf]
      %v1996 = vld [vmem:[%s472 + $0x3c] sm:$0xf]
      %v1997 = vld [vmem:[%s472 + $0x40] sm:$0xf]
      %v1998 = vld [vmem:[%s472 + $0x44] sm:$0xf]
      %v1999 = vld [vmem:[%s472 + $0x48] sm:$0xf]
      %v2000 = vld [vmem:[%s472 + $0x4c] sm:$0xf]
      %v2001 = vld [vmem:[%s472 + $0x50] sm:$0xf]
      %v2002 = vld [vmem:[%s472 + $0x54] sm:$0xf]
      %v2003 = vld [vmem:[%s472 + $0x58] sm:$0xf]
      %v2004 = vld [vmem:[%s472 + $0x5c] sm:$0xf]
      %v2005 = vld [vmem:[%s472 + $0x60] sm:$0xf]
      %v2006 = vld [vmem:[%s472 + $0x64] sm:$0xf]
      %v2007 = vld [vmem:[%s472 + $0x68] sm:$0xf]
      %v2008 = vld [vmem:[%s472 + $0x6c] sm:$0xf]
      %v2009 = vld [vmem:[%s472 + $0x70] sm:$0xf]
      %v2010 = vld [vmem:[%s472 + $0x74] sm:$0xf]
      %v2011 = vld [vmem:[%s472 + $0x78] sm:$0xf]
      %v2012 = vld [vmem:[%s472 + $0x7c] sm:$0xf]
      %s2013 = scalar_lea.vmem %s1, 4
      %v2014 = vld [vmem:[%s2013] sm:$0x3]
      %v2047 = vunpack.c.l.b16 %v1981
      %v2048 = vunpack.c.l.b16 %v1982
      %v2049 = vunpack.c.l.b16 %v1983
      %v2050 = vunpack.c.l.b16 %v1984
      %v2051 = vunpack.c.l.b16 %v1985
      %v2052 = vunpack.c.l.b16 %v1986
      %v2053 = vunpack.c.l.b16 %v1987
      %v2054 = vunpack.c.l.b16 %v1988
      %v2055 = vunpack.c.l.b16 %v1989
      %v2056 = vunpack.c.l.b16 %v1990
      %v2057 = vunpack.c.l.b16 %v1991
      %v2058 = vunpack.c.l.b16 %v1992
      %v2059 = vunpack.c.l.b16 %v1993
      %v2060 = vunpack.c.l.b16 %v1994
      %v2061 = vunpack.c.l.b16 %v1995
      %v2062 = vunpack.c.l.b16 %v1996
      %v2063 = vunpack.c.l.b16 %v1997
      %v2064 = vunpack.c.l.b16 %v1998
      %v2065 = vunpack.c.l.b16 %v1999
      %v2066 = vunpack.c.l.b16 %v2000
      %v2067 = vunpack.c.l.b16 %v2001
      %v2068 = vunpack.c.l.b16 %v2002
      %v2069 = vunpack.c.l.b16 %v2003
      %v2070 = vunpack.c.l.b16 %v2004
      %v2071 = vunpack.c.l.b16 %v2005
      %v2072 = vunpack.c.l.b16 %v2006
      %v2073 = vunpack.c.l.b16 %v2007
      %v2074 = vunpack.c.l.b16 %v2008
      %v2075 = vunpack.c.l.b16 %v2009
      %v2076 = vunpack.c.l.b16 %v2010
      %v2077 = vunpack.c.l.b16 %v2011
      %v2078 = vunpack.c.l.b16 %v2012
      %v2079 = vpack.c.b16 %v2048, %v2047
      %v2080 = vpack.c.b16 %v2050, %v2049
      %v2081 = vpack.c.b16 %v2052, %v2051
      %v2082 = vpack.c.b16 %v2054, %v2053
      %v2083 = vpack.c.b16 %v2056, %v2055
      %v2084 = vpack.c.b16 %v2058, %v2057
      %v2085 = vpack.c.b16 %v2060, %v2059
      %v2086 = vpack.c.b16 %v2062, %v2061
      %v2087 = vpack.c.b16 %v2064, %v2063
      %v2088 = vpack.c.b16 %v2066, %v2065
      %v2089 = vpack.c.b16 %v2068, %v2067
      %v2090 = vpack.c.b16 %v2070, %v2069
      %v2091 = vpack.c.b16 %v2072, %v2071
      %v2092 = vpack.c.b16 %v2074, %v2073
      %v2093 = vpack.c.b16 %v2076, %v2075
      %v2094 = vpack.c.b16 %v2078, %v2077
      %v2096 = vsel %vm1475, %v2079, 0
      %v2099 = vsel %vm1475, %v2080, 0
      %v2102 = vsel %vm1475, %v2081, 0
      %v2105 = vsel %vm1475, %v2082, 0
      %v2108 = vsel %vm1475, %v2083, 0
      %v2111 = vsel %vm1475, %v2084, 0
      %v2114 = vsel %vm1475, %v2085, 0
      %v2117 = vsel %vm1475, %v2086, 0
      %v2120 = vsel %vm1475, %v2087, 0
      %v2123 = vsel %vm1475, %v2088, 0
      %v2126 = vsel %vm1475, %v2089, 0
      %v2129 = vsel %vm1475, %v2090, 0
      %v2132 = vsel %vm1475, %v2091, 0
      %v2135 = vsel %vm1475, %v2092, 0
      %v2138 = vsel %vm1475, %v2093, 0
      %v2141 = vsel %vm1475, %v2094, 0
      %v2144 = vsel %vm1524, %v2014, 0
      %2146 = vmatprep.subr.bf16.mxu0 0
      %2147 = vmatpush1.bf16.msra.mxu0 0
      %2148 = vmatprep.subr.bf16.mxu0 0
      %2149 = vmatpush1.bf16.msra.mxu0 0
      %2150 = vmatprep.subr.bf16.mxu0 0
      %2151 = vmatpush1.bf16.msra.mxu0 0
      %2152 = vmatprep.subr.bf16.mxu0 0
      %2153 = vmatpush1.bf16.msra.mxu0 0
      %2154 = vmatprep.subr.bf16.mxu0 0
      %2155 = vmatpush1.bf16.msra.mxu0 0
      %2156 = vmatprep.subr.bf16.mxu0 0
      %2157 = vmatpush1.bf16.msra.mxu0 0
      %2158 = vmatprep.subr.bf16.mxu0 0
      %2159 = vmatpush1.bf16.msra.mxu0 0
      %2160 = vmatprep.subr.bf16.mxu0 0
      %2161 = vmatpush1.bf16.msra.mxu0 %v2144
      %2162 = vmatprep.subr.bf16.mxu0 0
      %2163 = vmatpush2.bf16.msra.mxu0 0
      %2164 = vmatprep.subr.bf16.mxu0 0
      %2165 = vmatpush2.bf16.msra.mxu0 0
      %2166 = vmatprep.subr.bf16.mxu0 0
      %2167 = vmatpush2.bf16.msra.mxu0 0
      %2168 = vmatprep.subr.bf16.mxu0 0
      %2169 = vmatpush2.bf16.msra.mxu0 0
      %2170 = vmatprep.subr.bf16.mxu0 0
      %2171 = vmatpush2.bf16.msra.mxu0 0
      %2172 = vmatprep.subr.bf16.mxu0 0
      %2173 = vmatpush2.bf16.msra.mxu0 0
      %2174 = vmatprep.subr.bf16.mxu0 0
      %2175 = vmatpush2.bf16.msra.mxu0 0
      %2176 = vmatprep.subr.bf16.mxu0 0
      %2177 = vmatpush2.bf16.msra.mxu0 0
      %2178 = vmatprep.mubr.bf16.mxu0 0
      %2179 = vmatmul.mubr.bf16.gmra.mxu0 %v2096
      %v2180 = vpop.f32.mrf.mxu0
      %v2181 = vadd.f32 0.0, %v2180
      %v2182 = vpop.f32.mrf.mxu0
      %v2183 = vpop.f32.mrf.mxu0
      %v2184 = vadd.f32 0.0, %v2183
      %v2185 = vpop.f32.mrf.mxu0
      %2186 = vmatprep.mubr.bf16.mxu0 0
      %2187 = vmatmul.mubr.bf16.gmra.mxu0 %v2099
      %v2188 = vpop.f32.mrf.mxu0
      %v2189 = vadd.f32 0.0, %v2188
      %v2190 = vpop.f32.mrf.mxu0
      %v2191 = vpop.f32.mrf.mxu0
      %v2192 = vadd.f32 0.0, %v2191
      %v2193 = vpop.f32.mrf.mxu0
      %2194 = vmatprep.mubr.bf16.mxu0 0
      %2195 = vmatmul.mubr.bf16.gmra.mxu0 %v2102
      %v2196 = vpop.f32.mrf.mxu0
      %v2197 = vadd.f32 0.0, %v2196
      %v2198 = vpop.f32.mrf.mxu0
      %v2199 = vpop.f32.mrf.mxu0
      %v2200 = vadd.f32 0.0, %v2199
      %v2201 = vpop.f32.mrf.mxu0
      %2202 = vmatprep.mubr.bf16.mxu0 0
      %2203 = vmatmul.mubr.bf16.gmra.mxu0 %v2105
      %v2204 = vpop.f32.mrf.mxu0
      %v2205 = vadd.f32 0.0, %v2204
      %v2206 = vpop.f32.mrf.mxu0
      %v2207 = vpop.f32.mrf.mxu0
      %v2208 = vadd.f32 0.0, %v2207
      %v2209 = vpop.f32.mrf.mxu0
      %2210 = vmatprep.mubr.bf16.mxu0 0
      %2211 = vmatmul.mubr.bf16.gmra.mxu0 %v2108
      %v2212 = vpop.f32.mrf.mxu0
      %v2213 = vadd.f32 0.0, %v2212
      %v2214 = vpop.f32.mrf.mxu0
      %v2215 = vpop.f32.mrf.mxu0
      %v2216 = vadd.f32 0.0, %v2215
      %v2217 = vpop.f32.mrf.mxu0
      %2218 = vmatprep.mubr.bf16.mxu0 0
      %2219 = vmatmul.mubr.bf16.gmra.mxu0 %v2111
      %v2220 = vpop.f32.mrf.mxu0
      %v2221 = vadd.f32 0.0, %v2220
      %v2222 = vpop.f32.mrf.mxu0
      %v2223 = vpop.f32.mrf.mxu0
      %v2224 = vadd.f32 0.0, %v2223
      %v2225 = vpop.f32.mrf.mxu0
      %2226 = vmatprep.mubr.bf16.mxu0 0
      %2227 = vmatmul.mubr.bf16.gmra.mxu0 %v2114
      %v2228 = vpop.f32.mrf.mxu0
      %v2229 = vadd.f32 0.0, %v2228
      %v2230 = vpop.f32.mrf.mxu0
      %v2231 = vpop.f32.mrf.mxu0
      %v2232 = vadd.f32 0.0, %v2231
      %v2233 = vpop.f32.mrf.mxu0
      %2234 = vmatprep.mubr.bf16.mxu0 0
      %2235 = vmatmul.mubr.bf16.gmra.mxu0 %v2117
      %v2236 = vpop.f32.mrf.mxu0
      %v2237 = vadd.f32 0.0, %v2236
      %v2238 = vpop.f32.mrf.mxu0
      %v2239 = vpop.f32.mrf.mxu0
      %v2240 = vadd.f32 0.0, %v2239
      %v2241 = vpop.f32.mrf.mxu0
      %2242 = vmatprep.mubr.bf16.mxu0 0
      %2243 = vmatmul.mubr.bf16.gmra.mxu0 %v2120
      %v2244 = vpop.f32.mrf.mxu0
      %v2245 = vadd.f32 0.0, %v2244
      %v2246 = vpop.f32.mrf.mxu0
      %v2247 = vpop.f32.mrf.mxu0
      %v2248 = vadd.f32 0.0, %v2247
      %v2249 = vpop.f32.mrf.mxu0
      %2250 = vmatprep.mubr.bf16.mxu0 0
      %2251 = vmatmul.mubr.bf16.gmra.mxu0 %v2123
      %v2252 = vpop.f32.mrf.mxu0
      %v2253 = vadd.f32 0.0, %v2252
      %v2254 = vpop.f32.mrf.mxu0
      %v2255 = vpop.f32.mrf.mxu0
      %v2256 = vadd.f32 0.0, %v2255
      %v2257 = vpop.f32.mrf.mxu0
      %2258 = vmatprep.mubr.bf16.mxu0 0
      %2259 = vmatmul.mubr.bf16.gmra.mxu0 %v2126
      %v2260 = vpop.f32.mrf.mxu0
      %v2261 = vadd.f32 0.0, %v2260
      %v2262 = vpop.f32.mrf.mxu0
      %v2263 = vpop.f32.mrf.mxu0
      %v2264 = vadd.f32 0.0, %v2263
      %v2265 = vpop.f32.mrf.mxu0
      %2266 = vmatprep.mubr.bf16.mxu0 0
      %2267 = vmatmul.mubr.bf16.gmra.mxu0 %v2129
      %v2268 = vpop.f32.mrf.mxu0
      %v2269 = vadd.f32 0.0, %v2268
      %v2270 = vpop.f32.mrf.mxu0
      %v2271 = vpop.f32.mrf.mxu0
      %v2272 = vadd.f32 0.0, %v2271
      %v2273 = vpop.f32.mrf.mxu0
      %2274 = vmatprep.mubr.bf16.mxu0 0
      %2275 = vmatmul.mubr.bf16.gmra.mxu0 %v2132
      %v2276 = vpop.f32.mrf.mxu0
      %v2277 = vadd.f32 0.0, %v2276
      %v2278 = vpop.f32.mrf.mxu0
      %v2279 = vpop.f32.mrf.mxu0
      %v2280 = vadd.f32 0.0, %v2279
      %v2281 = vpop.f32.mrf.mxu0
      %2282 = vmatprep.mubr.bf16.mxu0 0
      %2283 = vmatmul.mubr.bf16.gmra.mxu0 %v2135
      %v2284 = vpop.f32.mrf.mxu0
      %v2285 = vadd.f32 0.0, %v2284
      %v2286 = vpop.f32.mrf.mxu0
      %v2287 = vpop.f32.mrf.mxu0
      %v2288 = vadd.f32 0.0, %v2287
      %v2289 = vpop.f32.mrf.mxu0
      %2290 = vmatprep.mubr.bf16.mxu0 0
      %2291 = vmatmul.mubr.bf16.gmra.mxu0 %v2138
      %v2292 = vpop.f32.mrf.mxu0
      %v2293 = vadd.f32 0.0, %v2292
      %v2294 = vpop.f32.mrf.mxu0
      %v2295 = vpop.f32.mrf.mxu0
      %v2296 = vadd.f32 0.0, %v2295
      %v2297 = vpop.f32.mrf.mxu0
      %2298 = vmatprep.mubr.bf16.mxu0 0
      %2299 = vmatmul.mubr.bf16.gmra.mxu0 %v2141
      %v2300 = vpop.f32.mrf.mxu0
      %v2301 = vadd.f32 0.0, %v2300
      %v2302 = vpop.f32.mrf.mxu0
      %v2303 = vpop.f32.mrf.mxu0
      %v2304 = vadd.f32 0.0, %v2303
      %v2305 = vpop.f32.mrf.mxu0
      %2306 = vdwg.mxu0
      %v2307 = vadd.f32 %v1855, %v2181
      %v2308 = vadd.f32 %v1858, %v2184
      %v2309 = vadd.f32 %v1863, %v2189
      %v2310 = vadd.f32 %v1866, %v2192
      %v2311 = vadd.f32 %v1871, %v2197
      %v2312 = vadd.f32 %v1874, %v2200
      %v2313 = vadd.f32 %v1879, %v2205
      %v2314 = vadd.f32 %v1882, %v2208
      %v2315 = vadd.f32 %v1887, %v2213
      %v2316 = vadd.f32 %v1890, %v2216
      %v2317 = vadd.f32 %v1895, %v2221
      %v2318 = vadd.f32 %v1898, %v2224
      %v2319 = vadd.f32 %v1903, %v2229
      %v2320 = vadd.f32 %v1906, %v2232
      %v2321 = vadd.f32 %v1911, %v2237
      %v2322 = vadd.f32 %v1914, %v2240
      %v2323 = vadd.f32 %v1919, %v2245
      %v2324 = vadd.f32 %v1922, %v2248
      %v2325 = vadd.f32 %v1927, %v2253
      %v2326 = vadd.f32 %v1930, %v2256
      %v2327 = vadd.f32 %v1935, %v2261
      %v2328 = vadd.f32 %v1938, %v2264
      %v2329 = vadd.f32 %v1943, %v2269
      %v2330 = vadd.f32 %v1946, %v2272
      %v2331 = vadd.f32 %v1951, %v2277
      %v2332 = vadd.f32 %v1954, %v2280
      %v2333 = vadd.f32 %v1959, %v2285
      %v2334 = vadd.f32 %v1962, %v2288
      %v2335 = vadd.f32 %v1967, %v2293
      %v2336 = vadd.f32 %v1970, %v2296
      %v2337 = vadd.f32 %v1975, %v2301
      %v2338 = vadd.f32 %v1978, %v2304
      %v2339 = vld [vmem:[%s478] sm:$0xf]
      %v2340 = vld [vmem:[%s478 + $0x4] sm:$0xf]
      %v2341 = vld [vmem:[%s478 + $0x8] sm:$0xf]
      %v2342 = vld [vmem:[%s478 + $0xc] sm:$0xf]
      %v2343 = vld [vmem:[%s478 + $0x10] sm:$0xf]
      %v2344 = vld [vmem:[%s478 + $0x14] sm:$0xf]
      %v2345 = vld [vmem:[%s478 + $0x18] sm:$0xf]
      %v2346 = vld [vmem:[%s478 + $0x1c] sm:$0xf]
      %v2347 = vld [vmem:[%s478 + $0x20] sm:$0xf]
      %v2348 = vld [vmem:[%s478 + $0x24] sm:$0xf]
      %v2349 = vld [vmem:[%s478 + $0x28] sm:$0xf]
      %v2350 = vld [vmem:[%s478 + $0x2c] sm:$0xf]
      %v2351 = vld [vmem:[%s478 + $0x30] sm:$0xf]
      %v2352 = vld [vmem:[%s478 + $0x34] sm:$0xf]
      %v2353 = vld [vmem:[%s478 + $0x38] sm:$0xf]
      %v2354 = vld [vmem:[%s478 + $0x3c] sm:$0xf]
      %v2355 = vld [vmem:[%s478 + $0x40] sm:$0xf]
      %v2356 = vld [vmem:[%s478 + $0x44] sm:$0xf]
      %v2357 = vld [vmem:[%s478 + $0x48] sm:$0xf]
      %v2358 = vld [vmem:[%s478 + $0x4c] sm:$0xf]
      %v2359 = vld [vmem:[%s478 + $0x50] sm:$0xf]
      %v2360 = vld [vmem:[%s478 + $0x54] sm:$0xf]
      %v2361 = vld [vmem:[%s478 + $0x58] sm:$0xf]
      %v2362 = vld [vmem:[%s478 + $0x5c] sm:$0xf]
      %v2363 = vld [vmem:[%s478 + $0x60] sm:$0xf]
      %v2364 = vld [vmem:[%s478 + $0x64] sm:$0xf]
      %v2365 = vld [vmem:[%s478 + $0x68] sm:$0xf]
      %v2366 = vld [vmem:[%s478 + $0x6c] sm:$0xf]
      %v2367 = vld [vmem:[%s478 + $0x70] sm:$0xf]
      %v2368 = vld [vmem:[%s478 + $0x74] sm:$0xf]
      %v2369 = vld [vmem:[%s478 + $0x78] sm:$0xf]
      %v2370 = vld [vmem:[%s478 + $0x7c] sm:$0xf]
      %s2371 = scalar_lea.vmem %s1, 6
      %v2372 = vld [vmem:[%s2371] sm:$0x3]
      %v2405 = vunpack.c.l.b16 %v2339
      %v2406 = vunpack.c.l.b16 %v2340
      %v2407 = vunpack.c.l.b16 %v2341
      %v2408 = vunpack.c.l.b16 %v2342
      %v2409 = vunpack.c.l.b16 %v2343
      %v2410 = vunpack.c.l.b16 %v2344
      %v2411 = vunpack.c.l.b16 %v2345
      %v2412 = vunpack.c.l.b16 %v2346
      %v2413 = vunpack.c.l.b16 %v2347
      %v2414 = vunpack.c.l.b16 %v2348
      %v2415 = vunpack.c.l.b16 %v2349
      %v2416 = vunpack.c.l.b16 %v2350
      %v2417 = vunpack.c.l.b16 %v2351
      %v2418 = vunpack.c.l.b16 %v2352
      %v2419 = vunpack.c.l.b16 %v2353
      %v2420 = vunpack.c.l.b16 %v2354
      %v2421 = vunpack.c.l.b16 %v2355
      %v2422 = vunpack.c.l.b16 %v2356
      %v2423 = vunpack.c.l.b16 %v2357
      %v2424 = vunpack.c.l.b16 %v2358
      %v2425 = vunpack.c.l.b16 %v2359
      %v2426 = vunpack.c.l.b16 %v2360
      %v2427 = vunpack.c.l.b16 %v2361
      %v2428 = vunpack.c.l.b16 %v2362
      %v2429 = vunpack.c.l.b16 %v2363
      %v2430 = vunpack.c.l.b16 %v2364
      %v2431 = vunpack.c.l.b16 %v2365
      %v2432 = vunpack.c.l.b16 %v2366
      %v2433 = vunpack.c.l.b16 %v2367
      %v2434 = vunpack.c.l.b16 %v2368
      %v2435 = vunpack.c.l.b16 %v2369
      %v2436 = vunpack.c.l.b16 %v2370
      %v2437 = vpack.c.b16 %v2406, %v2405
      %v2438 = vpack.c.b16 %v2408, %v2407
      %v2439 = vpack.c.b16 %v2410, %v2409
      %v2440 = vpack.c.b16 %v2412, %v2411
      %v2441 = vpack.c.b16 %v2414, %v2413
      %v2442 = vpack.c.b16 %v2416, %v2415
      %v2443 = vpack.c.b16 %v2418, %v2417
      %v2444 = vpack.c.b16 %v2420, %v2419
      %v2445 = vpack.c.b16 %v2422, %v2421
      %v2446 = vpack.c.b16 %v2424, %v2423
      %v2447 = vpack.c.b16 %v2426, %v2425
      %v2448 = vpack.c.b16 %v2428, %v2427
      %v2449 = vpack.c.b16 %v2430, %v2429
      %v2450 = vpack.c.b16 %v2432, %v2431
      %v2451 = vpack.c.b16 %v2434, %v2433
      %v2452 = vpack.c.b16 %v2436, %v2435
      %v2454 = vsel %vm1475, %v2437, 0
      %v2457 = vsel %vm1475, %v2438, 0
      %v2460 = vsel %vm1475, %v2439, 0
      %v2463 = vsel %vm1475, %v2440, 0
      %v2466 = vsel %vm1475, %v2441, 0
      %v2469 = vsel %vm1475, %v2442, 0
      %v2472 = vsel %vm1475, %v2443, 0
      %v2475 = vsel %vm1475, %v2444, 0
      %v2478 = vsel %vm1475, %v2445, 0
      %v2481 = vsel %vm1475, %v2446, 0
      %v2484 = vsel %vm1475, %v2447, 0
      %v2487 = vsel %vm1475, %v2448, 0
      %v2490 = vsel %vm1475, %v2449, 0
      %v2493 = vsel %vm1475, %v2450, 0
      %v2496 = vsel %vm1475, %v2451, 0
      %v2499 = vsel %vm1475, %v2452, 0
      %v2502 = vsel %vm1524, %v2372, 0
      %2504 = vmatprep.subr.bf16.mxu0 0
      %2505 = vmatpush1.bf16.msra.mxu0 0
      %2506 = vmatprep.subr.bf16.mxu0 0
      %2507 = vmatpush1.bf16.msra.mxu0 0
      %2508 = vmatprep.subr.bf16.mxu0 0
      %2509 = vmatpush1.bf16.msra.mxu0 0
      %2510 = vmatprep.subr.bf16.mxu0 0
      %2511 = vmatpush1.bf16.msra.mxu0 0
      %2512 = vmatprep.subr.bf16.mxu0 0
      %2513 = vmatpush1.bf16.msra.mxu0 0
      %2514 = vmatprep.subr.bf16.mxu0 0
      %2515 = vmatpush1.bf16.msra.mxu0 0
      %2516 = vmatprep.subr.bf16.mxu0 0
      %2517 = vmatpush1.bf16.msra.mxu0 0
      %2518 = vmatprep.subr.bf16.mxu0 0
      %2519 = vmatpush1.bf16.msra.mxu0 %v2502
      %2520 = vmatprep.subr.bf16.mxu0 0
      %2521 = vmatpush2.bf16.msra.mxu0 0
      %2522 = vmatprep.subr.bf16.mxu0 0
      %2523 = vmatpush2.bf16.msra.mxu0 0
      %2524 = vmatprep.subr.bf16.mxu0 0
      %2525 = vmatpush2.bf16.msra.mxu0 0
      %2526 = vmatprep.subr.bf16.mxu0 0
      %2527 = vmatpush2.bf16.msra.mxu0 0
      %2528 = vmatprep.subr.bf16.mxu0 0
      %2529 = vmatpush2.bf16.msra.mxu0 0
      %2530 = vmatprep.subr.bf16.mxu0 0
      %2531 = vmatpush2.bf16.msra.mxu0 0
      %2532 = vmatprep.subr.bf16.mxu0 0
      %2533 = vmatpush2.bf16.msra.mxu0 0
      %2534 = vmatprep.subr.bf16.mxu0 0
      %2535 = vmatpush2.bf16.msra.mxu0 0
      %2536 = vmatprep.mubr.bf16.mxu0 0
      %2537 = vmatmul.mubr.bf16.gmra.mxu0 %v2454
      %v2538 = vpop.f32.mrf.mxu0
      %v2539 = vadd.f32 0.0, %v2538
      %v2540 = vpop.f32.mrf.mxu0
      %v2541 = vpop.f32.mrf.mxu0
      %v2542 = vadd.f32 0.0, %v2541
      %v2543 = vpop.f32.mrf.mxu0
      %2544 = vmatprep.mubr.bf16.mxu0 0
      %2545 = vmatmul.mubr.bf16.gmra.mxu0 %v2457
      %v2546 = vpop.f32.mrf.mxu0
      %v2547 = vadd.f32 0.0, %v2546
      %v2548 = vpop.f32.mrf.mxu0
      %v2549 = vpop.f32.mrf.mxu0
      %v2550 = vadd.f32 0.0, %v2549
      %v2551 = vpop.f32.mrf.mxu0
      %2552 = vmatprep.mubr.bf16.mxu0 0
      %2553 = vmatmul.mubr.bf16.gmra.mxu0 %v2460
      %v2554 = vpop.f32.mrf.mxu0
      %v2555 = vadd.f32 0.0, %v2554
      %v2556 = vpop.f32.mrf.mxu0
      %v2557 = vpop.f32.mrf.mxu0
      %v2558 = vadd.f32 0.0, %v2557
      %v2559 = vpop.f32.mrf.mxu0
      %2560 = vmatprep.mubr.bf16.mxu0 0
      %2561 = vmatmul.mubr.bf16.gmra.mxu0 %v2463
      %v2562 = vpop.f32.mrf.mxu0
      %v2563 = vadd.f32 0.0, %v2562
      %v2564 = vpop.f32.mrf.mxu0
      %v2565 = vpop.f32.mrf.mxu0
      %v2566 = vadd.f32 0.0, %v2565
      %v2567 = vpop.f32.mrf.mxu0
      %2568 = vmatprep.mubr.bf16.mxu0 0
      %2569 = vmatmul.mubr.bf16.gmra.mxu0 %v2466
      %v2570 = vpop.f32.mrf.mxu0
      %v2571 = vadd.f32 0.0, %v2570
      %v2572 = vpop.f32.mrf.mxu0
      %v2573 = vpop.f32.mrf.mxu0
      %v2574 = vadd.f32 0.0, %v2573
      %v2575 = vpop.f32.mrf.mxu0
      %2576 = vmatprep.mubr.bf16.mxu0 0
      %2577 = vmatmul.mubr.bf16.gmra.mxu0 %v2469
      %v2578 = vpop.f32.mrf.mxu0
      %v2579 = vadd.f32 0.0, %v2578
      %v2580 = vpop.f32.mrf.mxu0
      %v2581 = vpop.f32.mrf.mxu0
      %v2582 = vadd.f32 0.0, %v2581
      %v2583 = vpop.f32.mrf.mxu0
      %2584 = vmatprep.mubr.bf16.mxu0 0
      %2585 = vmatmul.mubr.bf16.gmra.mxu0 %v2472
      %v2586 = vpop.f32.mrf.mxu0
      %v2587 = vadd.f32 0.0, %v2586
      %v2588 = vpop.f32.mrf.mxu0
      %v2589 = vpop.f32.mrf.mxu0
      %v2590 = vadd.f32 0.0, %v2589
      %v2591 = vpop.f32.mrf.mxu0
      %2592 = vmatprep.mubr.bf16.mxu0 0
      %2593 = vmatmul.mubr.bf16.gmra.mxu0 %v2475
      %v2594 = vpop.f32.mrf.mxu0
      %v2595 = vadd.f32 0.0, %v2594
      %v2596 = vpop.f32.mrf.mxu0
      %v2597 = vpop.f32.mrf.mxu0
      %v2598 = vadd.f32 0.0, %v2597
      %v2599 = vpop.f32.mrf.mxu0
      %2600 = vmatprep.mubr.bf16.mxu0 0
      %2601 = vmatmul.mubr.bf16.gmra.mxu0 %v2478
      %v2602 = vpop.f32.mrf.mxu0
      %v2603 = vadd.f32 0.0, %v2602
      %v2604 = vpop.f32.mrf.mxu0
      %v2605 = vpop.f32.mrf.mxu0
      %v2606 = vadd.f32 0.0, %v2605
      %v2607 = vpop.f32.mrf.mxu0
      %2608 = vmatprep.mubr.bf16.mxu0 0
      %2609 = vmatmul.mubr.bf16.gmra.mxu0 %v2481
      %v2610 = vpop.f32.mrf.mxu0
      %v2611 = vadd.f32 0.0, %v2610
      %v2612 = vpop.f32.mrf.mxu0
      %v2613 = vpop.f32.mrf.mxu0
      %v2614 = vadd.f32 0.0, %v2613
      %v2615 = vpop.f32.mrf.mxu0
      %2616 = vmatprep.mubr.bf16.mxu0 0
      %2617 = vmatmul.mubr.bf16.gmra.mxu0 %v2484
      %v2618 = vpop.f32.mrf.mxu0
      %v2619 = vadd.f32 0.0, %v2618
      %v2620 = vpop.f32.mrf.mxu0
      %v2621 = vpop.f32.mrf.mxu0
      %v2622 = vadd.f32 0.0, %v2621
      %v2623 = vpop.f32.mrf.mxu0
      %2624 = vmatprep.mubr.bf16.mxu0 0
      %2625 = vmatmul.mubr.bf16.gmra.mxu0 %v2487
      %v2626 = vpop.f32.mrf.mxu0
      %v2627 = vadd.f32 0.0, %v2626
      %v2628 = vpop.f32.mrf.mxu0
      %v2629 = vpop.f32.mrf.mxu0
      %v2630 = vadd.f32 0.0, %v2629
      %v2631 = vpop.f32.mrf.mxu0
      %2632 = vmatprep.mubr.bf16.mxu0 0
      %2633 = vmatmul.mubr.bf16.gmra.mxu0 %v2490
      %v2634 = vpop.f32.mrf.mxu0
      %v2635 = vadd.f32 0.0, %v2634
      %v2636 = vpop.f32.mrf.mxu0
      %v2637 = vpop.f32.mrf.mxu0
      %v2638 = vadd.f32 0.0, %v2637
      %v2639 = vpop.f32.mrf.mxu0
      %2640 = vmatprep.mubr.bf16.mxu0 0
      %2641 = vmatmul.mubr.bf16.gmra.mxu0 %v2493
      %v2642 = vpop.f32.mrf.mxu0
      %v2643 = vadd.f32 0.0, %v2642
      %v2644 = vpop.f32.mrf.mxu0
      %v2645 = vpop.f32.mrf.mxu0
      %v2646 = vadd.f32 0.0, %v2645
      %v2647 = vpop.f32.mrf.mxu0
      %2648 = vmatprep.mubr.bf16.mxu0 0
      %2649 = vmatmul.mubr.bf16.gmra.mxu0 %v2496
      %v2650 = vpop.f32.mrf.mxu0
      %v2651 = vadd.f32 0.0, %v2650
      %v2652 = vpop.f32.mrf.mxu0
      %v2653 = vpop.f32.mrf.mxu0
      %v2654 = vadd.f32 0.0, %v2653
      %v2655 = vpop.f32.mrf.mxu0
      %2656 = vmatprep.mubr.bf16.mxu0 0
      %2657 = vmatmul.mubr.bf16.gmra.mxu0 %v2499
      %v2658 = vpop.f32.mrf.mxu0
      %v2659 = vadd.f32 0.0, %v2658
      %v2660 = vpop.f32.mrf.mxu0
      %v2661 = vpop.f32.mrf.mxu0
      %v2662 = vadd.f32 0.0, %v2661
      %v2663 = vpop.f32.mrf.mxu0
      %2664 = vdwg.mxu0
      %v2665 = vadd.f32 %v2307, %v2539
      %v2666 = vadd.f32 %v2308, %v2542
      %v2667 = vadd.f32 %v2309, %v2547
      %v2668 = vadd.f32 %v2310, %v2550
      %v2669 = vadd.f32 %v2311, %v2555
      %v2670 = vadd.f32 %v2312, %v2558
      %v2671 = vadd.f32 %v2313, %v2563
      %v2672 = vadd.f32 %v2314, %v2566
      %v2673 = vadd.f32 %v2315, %v2571
      %v2674 = vadd.f32 %v2316, %v2574
      %v2675 = vadd.f32 %v2317, %v2579
      %v2676 = vadd.f32 %v2318, %v2582
      %v2677 = vadd.f32 %v2319, %v2587
      %v2678 = vadd.f32 %v2320, %v2590
      %v2679 = vadd.f32 %v2321, %v2595
      %v2680 = vadd.f32 %v2322, %v2598
      %v2681 = vadd.f32 %v2323, %v2603
      %v2682 = vadd.f32 %v2324, %v2606
      %v2683 = vadd.f32 %v2325, %v2611
      %v2684 = vadd.f32 %v2326, %v2614
      %v2685 = vadd.f32 %v2327, %v2619
      %v2686 = vadd.f32 %v2328, %v2622
      %v2687 = vadd.f32 %v2329, %v2627
      %v2688 = vadd.f32 %v2330, %v2630
      %v2689 = vadd.f32 %v2331, %v2635
      %v2690 = vadd.f32 %v2332, %v2638
      %v2691 = vadd.f32 %v2333, %v2643
      %v2692 = vadd.f32 %v2334, %v2646
      %v2693 = vadd.f32 %v2335, %v2651
      %v2694 = vadd.f32 %v2336, %v2654
      %v2695 = vadd.f32 %v2337, %v2659
      %v2696 = vadd.f32 %v2338, %v2662
      %v2697 = vld [vmem:[%s999] sm:$0xf]
      %v2698 = vld [vmem:[%s999 + $0x4] sm:$0xf]
      %v2699 = vld [vmem:[%s999 + $0x8] sm:$0xf]
      %v2700 = vld [vmem:[%s999 + $0xc] sm:$0xf]
      %v2701 = vld [vmem:[%s999 + $0x10] sm:$0xf]
      %v2702 = vld [vmem:[%s999 + $0x14] sm:$0xf]
      %v2703 = vld [vmem:[%s999 + $0x18] sm:$0xf]
      %v2704 = vld [vmem:[%s999 + $0x1c] sm:$0xf]
      %v2705 = vld [vmem:[%s999 + $0x20] sm:$0xf]
      %v2706 = vld [vmem:[%s999 + $0x24] sm:$0xf]
      %v2707 = vld [vmem:[%s999 + $0x28] sm:$0xf]
      %v2708 = vld [vmem:[%s999 + $0x2c] sm:$0xf]
      %v2709 = vld [vmem:[%s999 + $0x30] sm:$0xf]
      %v2710 = vld [vmem:[%s999 + $0x34] sm:$0xf]
      %v2711 = vld [vmem:[%s999 + $0x38] sm:$0xf]
      %v2712 = vld [vmem:[%s999 + $0x3c] sm:$0xf]
      %v2713 = vld [vmem:[%s999 + $0x40] sm:$0xf]
      %v2714 = vld [vmem:[%s999 + $0x44] sm:$0xf]
      %v2715 = vld [vmem:[%s999 + $0x48] sm:$0xf]
      %v2716 = vld [vmem:[%s999 + $0x4c] sm:$0xf]
      %v2717 = vld [vmem:[%s999 + $0x50] sm:$0xf]
      %v2718 = vld [vmem:[%s999 + $0x54] sm:$0xf]
      %v2719 = vld [vmem:[%s999 + $0x58] sm:$0xf]
      %v2720 = vld [vmem:[%s999 + $0x5c] sm:$0xf]
      %v2721 = vld [vmem:[%s999 + $0x60] sm:$0xf]
      %v2722 = vld [vmem:[%s999 + $0x64] sm:$0xf]
      %v2723 = vld [vmem:[%s999 + $0x68] sm:$0xf]
      %v2724 = vld [vmem:[%s999 + $0x6c] sm:$0xf]
      %v2725 = vld [vmem:[%s999 + $0x70] sm:$0xf]
      %v2726 = vld [vmem:[%s999 + $0x74] sm:$0xf]
      %v2727 = vld [vmem:[%s999 + $0x78] sm:$0xf]
      %v2728 = vld [vmem:[%s999 + $0x7c] sm:$0xf]
      %s2729 = scalar_lea.vmem %s1, 8
      %v2730 = vld [vmem:[%s2729] sm:$0x3]
      %v2763 = vunpack.c.l.b16 %v2697
      %v2764 = vunpack.c.l.b16 %v2698
      %v2765 = vunpack.c.l.b16 %v2699
      %v2766 = vunpack.c.l.b16 %v2700
      %v2767 = vunpack.c.l.b16 %v2701
      %v2768 = vunpack.c.l.b16 %v2702
      %v2769 = vunpack.c.l.b16 %v2703
      %v2770 = vunpack.c.l.b16 %v2704
      %v2771 = vunpack.c.l.b16 %v2705
      %v2772 = vunpack.c.l.b16 %v2706
      %v2773 = vunpack.c.l.b16 %v2707
      %v2774 = vunpack.c.l.b16 %v2708
      %v2775 = vunpack.c.l.b16 %v2709
      %v2776 = vunpack.c.l.b16 %v2710
      %v2777 = vunpack.c.l.b16 %v2711
      %v2778 = vunpack.c.l.b16 %v2712
      %v2779 = vunpack.c.l.b16 %v2713
      %v2780 = vunpack.c.l.b16 %v2714
      %v2781 = vunpack.c.l.b16 %v2715
      %v2782 = vunpack.c.l.b16 %v2716
      %v2783 = vunpack.c.l.b16 %v2717
      %v2784 = vunpack.c.l.b16 %v2718
      %v2785 = vunpack.c.l.b16 %v2719
      %v2786 = vunpack.c.l.b16 %v2720
      %v2787 = vunpack.c.l.b16 %v2721
      %v2788 = vunpack.c.l.b16 %v2722
      %v2789 = vunpack.c.l.b16 %v2723
      %v2790 = vunpack.c.l.b16 %v2724
      %v2791 = vunpack.c.l.b16 %v2725
      %v2792 = vunpack.c.l.b16 %v2726
      %v2793 = vunpack.c.l.b16 %v2727
      %v2794 = vunpack.c.l.b16 %v2728
      %v2795 = vpack.c.b16 %v2764, %v2763
      %v2796 = vpack.c.b16 %v2766, %v2765
      %v2797 = vpack.c.b16 %v2768, %v2767
      %v2798 = vpack.c.b16 %v2770, %v2769
      %v2799 = vpack.c.b16 %v2772, %v2771
      %v2800 = vpack.c.b16 %v2774, %v2773
      %v2801 = vpack.c.b16 %v2776, %v2775
      %v2802 = vpack.c.b16 %v2778, %v2777
      %v2803 = vpack.c.b16 %v2780, %v2779
      %v2804 = vpack.c.b16 %v2782, %v2781
      %v2805 = vpack.c.b16 %v2784, %v2783
      %v2806 = vpack.c.b16 %v2786, %v2785
      %v2807 = vpack.c.b16 %v2788, %v2787
      %v2808 = vpack.c.b16 %v2790, %v2789
      %v2809 = vpack.c.b16 %v2792, %v2791
      %v2810 = vpack.c.b16 %v2794, %v2793
      %v2812 = vsel %vm1475, %v2795, 0
      %v2815 = vsel %vm1475, %v2796, 0
      %v2818 = vsel %vm1475, %v2797, 0
      %v2821 = vsel %vm1475, %v2798, 0
      %v2824 = vsel %vm1475, %v2799, 0
      %v2827 = vsel %vm1475, %v2800, 0
      %v2830 = vsel %vm1475, %v2801, 0
      %v2833 = vsel %vm1475, %v2802, 0
      %v2836 = vsel %vm1475, %v2803, 0
      %v2839 = vsel %vm1475, %v2804, 0
      %v2842 = vsel %vm1475, %v2805, 0
      %v2845 = vsel %vm1475, %v2806, 0
      %v2848 = vsel %vm1475, %v2807, 0
      %v2851 = vsel %vm1475, %v2808, 0
      %v2854 = vsel %vm1475, %v2809, 0
      %v2857 = vsel %vm1475, %v2810, 0
      %v2860 = vsel %vm1524, %v2730, 0
      %2862 = vmatprep.subr.bf16.mxu0 0
      %2863 = vmatpush1.bf16.msra.mxu0 0
      %2864 = vmatprep.subr.bf16.mxu0 0
      %2865 = vmatpush1.bf16.msra.mxu0 0
      %2866 = vmatprep.subr.bf16.mxu0 0
      %2867 = vmatpush1.bf16.msra.mxu0 0
      %2868 = vmatprep.subr.bf16.mxu0 0
      %2869 = vmatpush1.bf16.msra.mxu0 0
      %2870 = vmatprep.subr.bf16.mxu0 0
      %2871 = vmatpush1.bf16.msra.mxu0 0
      %2872 = vmatprep.subr.bf16.mxu0 0
      %2873 = vmatpush1.bf16.msra.mxu0 0
      %2874 = vmatprep.subr.bf16.mxu0 0
      %2875 = vmatpush1.bf16.msra.mxu0 0
      %2876 = vmatprep.subr.bf16.mxu0 0
      %2877 = vmatpush1.bf16.msra.mxu0 %v2860
      %2878 = vmatprep.subr.bf16.mxu0 0
      %2879 = vmatpush2.bf16.msra.mxu0 0
      %2880 = vmatprep.subr.bf16.mxu0 0
      %2881 = vmatpush2.bf16.msra.mxu0 0
      %2882 = vmatprep.subr.bf16.mxu0 0
      %2883 = vmatpush2.bf16.msra.mxu0 0
      %2884 = vmatprep.subr.bf16.mxu0 0
      %2885 = vmatpush2.bf16.msra.mxu0 0
      %2886 = vmatprep.subr.bf16.mxu0 0
      %2887 = vmatpush2.bf16.msra.mxu0 0
      %2888 = vmatprep.subr.bf16.mxu0 0
      %2889 = vmatpush2.bf16.msra.mxu0 0
      %2890 = vmatprep.subr.bf16.mxu0 0
      %2891 = vmatpush2.bf16.msra.mxu0 0
      %2892 = vmatprep.subr.bf16.mxu0 0
      %2893 = vmatpush2.bf16.msra.mxu0 0
      %2894 = vmatprep.mubr.bf16.mxu0 0
      %2895 = vmatmul.mubr.bf16.gmra.mxu0 %v2812
      %v2896 = vpop.f32.mrf.mxu0
      %v2897 = vadd.f32 0.0, %v2896
      %v2898 = vpop.f32.mrf.mxu0
      %v2899 = vpop.f32.mrf.mxu0
      %v2900 = vadd.f32 0.0, %v2899
      %v2901 = vpop.f32.mrf.mxu0
      %2902 = vmatprep.mubr.bf16.mxu0 0
      %2903 = vmatmul.mubr.bf16.gmra.mxu0 %v2815
      %v2904 = vpop.f32.mrf.mxu0
      %v2905 = vadd.f32 0.0, %v2904
      %v2906 = vpop.f32.mrf.mxu0
      %v2907 = vpop.f32.mrf.mxu0
      %v2908 = vadd.f32 0.0, %v2907
      %v2909 = vpop.f32.mrf.mxu0
      %2910 = vmatprep.mubr.bf16.mxu0 0
      %2911 = vmatmul.mubr.bf16.gmra.mxu0 %v2818
      %v2912 = vpop.f32.mrf.mxu0
      %v2913 = vadd.f32 0.0, %v2912
      %v2914 = vpop.f32.mrf.mxu0
      %v2915 = vpop.f32.mrf.mxu0
      %v2916 = vadd.f32 0.0, %v2915
      %v2917 = vpop.f32.mrf.mxu0
      %2918 = vmatprep.mubr.bf16.mxu0 0
      %2919 = vmatmul.mubr.bf16.gmra.mxu0 %v2821
      %v2920 = vpop.f32.mrf.mxu0
      %v2921 = vadd.f32 0.0, %v2920
      %v2922 = vpop.f32.mrf.mxu0
      %v2923 = vpop.f32.mrf.mxu0
      %v2924 = vadd.f32 0.0, %v2923
      %v2925 = vpop.f32.mrf.mxu0
      %2926 = vmatprep.mubr.bf16.mxu0 0
      %2927 = vmatmul.mubr.bf16.gmra.mxu0 %v2824
      %v2928 = vpop.f32.mrf.mxu0
      %v2929 = vadd.f32 0.0, %v2928
      %v2930 = vpop.f32.mrf.mxu0
      %v2931 = vpop.f32.mrf.mxu0
      %v2932 = vadd.f32 0.0, %v2931
      %v2933 = vpop.f32.mrf.mxu0
      %2934 = vmatprep.mubr.bf16.mxu0 0
      %2935 = vmatmul.mubr.bf16.gmra.mxu0 %v2827
      %v2936 = vpop.f32.mrf.mxu0
      %v2937 = vadd.f32 0.0, %v2936
      %v2938 = vpop.f32.mrf.mxu0
      %v2939 = vpop.f32.mrf.mxu0
      %v2940 = vadd.f32 0.0, %v2939
      %v2941 = vpop.f32.mrf.mxu0
      %2942 = vmatprep.mubr.bf16.mxu0 0
      %2943 = vmatmul.mubr.bf16.gmra.mxu0 %v2830
      %v2944 = vpop.f32.mrf.mxu0
      %v2945 = vadd.f32 0.0, %v2944
      %v2946 = vpop.f32.mrf.mxu0
      %v2947 = vpop.f32.mrf.mxu0
      %v2948 = vadd.f32 0.0, %v2947
      %v2949 = vpop.f32.mrf.mxu0
      %2950 = vmatprep.mubr.bf16.mxu0 0
      %2951 = vmatmul.mubr.bf16.gmra.mxu0 %v2833
      %v2952 = vpop.f32.mrf.mxu0
      %v2953 = vadd.f32 0.0, %v2952
      %v2954 = vpop.f32.mrf.mxu0
      %v2955 = vpop.f32.mrf.mxu0
      %v2956 = vadd.f32 0.0, %v2955
      %v2957 = vpop.f32.mrf.mxu0
      %2958 = vmatprep.mubr.bf16.mxu0 0
      %2959 = vmatmul.mubr.bf16.gmra.mxu0 %v2836
      %v2960 = vpop.f32.mrf.mxu0
      %v2961 = vadd.f32 0.0, %v2960
      %v2962 = vpop.f32.mrf.mxu0
      %v2963 = vpop.f32.mrf.mxu0
      %v2964 = vadd.f32 0.0, %v2963
      %v2965 = vpop.f32.mrf.mxu0
      %2966 = vmatprep.mubr.bf16.mxu0 0
      %2967 = vmatmul.mubr.bf16.gmra.mxu0 %v2839
      %v2968 = vpop.f32.mrf.mxu0
      %v2969 = vadd.f32 0.0, %v2968
      %v2970 = vpop.f32.mrf.mxu0
      %v2971 = vpop.f32.mrf.mxu0
      %v2972 = vadd.f32 0.0, %v2971
      %v2973 = vpop.f32.mrf.mxu0
      %2974 = vmatprep.mubr.bf16.mxu0 0
      %2975 = vmatmul.mubr.bf16.gmra.mxu0 %v2842
      %v2976 = vpop.f32.mrf.mxu0
      %v2977 = vadd.f32 0.0, %v2976
      %v2978 = vpop.f32.mrf.mxu0
      %v2979 = vpop.f32.mrf.mxu0
      %v2980 = vadd.f32 0.0, %v2979
      %v2981 = vpop.f32.mrf.mxu0
      %2982 = vmatprep.mubr.bf16.mxu0 0
      %2983 = vmatmul.mubr.bf16.gmra.mxu0 %v2845
      %v2984 = vpop.f32.mrf.mxu0
      %v2985 = vadd.f32 0.0, %v2984
      %v2986 = vpop.f32.mrf.mxu0
      %v2987 = vpop.f32.mrf.mxu0
      %v2988 = vadd.f32 0.0, %v2987
      %v2989 = vpop.f32.mrf.mxu0
      %2990 = vmatprep.mubr.bf16.mxu0 0
      %2991 = vmatmul.mubr.bf16.gmra.mxu0 %v2848
      %v2992 = vpop.f32.mrf.mxu0
      %v2993 = vadd.f32 0.0, %v2992
      %v2994 = vpop.f32.mrf.mxu0
      %v2995 = vpop.f32.mrf.mxu0
      %v2996 = vadd.f32 0.0, %v2995
      %v2997 = vpop.f32.mrf.mxu0
      %2998 = vmatprep.mubr.bf16.mxu0 0
      %2999 = vmatmul.mubr.bf16.gmra.mxu0 %v2851
      %v3000 = vpop.f32.mrf.mxu0
      %v3001 = vadd.f32 0.0, %v3000
      %v3002 = vpop.f32.mrf.mxu0
      %v3003 = vpop.f32.mrf.mxu0
      %v3004 = vadd.f32 0.0, %v3003
      %v3005 = vpop.f32.mrf.mxu0
      %3006 = vmatprep.mubr.bf16.mxu0 0
      %3007 = vmatmul.mubr.bf16.gmra.mxu0 %v2854
      %v3008 = vpop.f32.mrf.mxu0
      %v3009 = vadd.f32 0.0, %v3008
      %v3010 = vpop.f32.mrf.mxu0
      %v3011 = vpop.f32.mrf.mxu0
      %v3012 = vadd.f32 0.0, %v3011
      %v3013 = vpop.f32.mrf.mxu0
      %3014 = vmatprep.mubr.bf16.mxu0 0
      %3015 = vmatmul.mubr.bf16.gmra.mxu0 %v2857
      %v3016 = vpop.f32.mrf.mxu0
      %v3017 = vadd.f32 0.0, %v3016
      %v3018 = vpop.f32.mrf.mxu0
      %v3019 = vpop.f32.mrf.mxu0
      %v3020 = vadd.f32 0.0, %v3019
      %v3021 = vpop.f32.mrf.mxu0
      %3022 = vdwg.mxu0
      %v3023 = vadd.f32 %v2665, %v2897
      %v3024 = vadd.f32 %v2666, %v2900
      %v3025 = vadd.f32 %v2667, %v2905
      %v3026 = vadd.f32 %v2668, %v2908
      %v3027 = vadd.f32 %v2669, %v2913
      %v3028 = vadd.f32 %v2670, %v2916
      %v3029 = vadd.f32 %v2671, %v2921
      %v3030 = vadd.f32 %v2672, %v2924
      %v3031 = vadd.f32 %v2673, %v2929
      %v3032 = vadd.f32 %v2674, %v2932
      %v3033 = vadd.f32 %v2675, %v2937
      %v3034 = vadd.f32 %v2676, %v2940
      %v3035 = vadd.f32 %v2677, %v2945
      %v3036 = vadd.f32 %v2678, %v2948
      %v3037 = vadd.f32 %v2679, %v2953
      %v3038 = vadd.f32 %v2680, %v2956
      %v3039 = vadd.f32 %v2681, %v2961
      %v3040 = vadd.f32 %v2682, %v2964
      %v3041 = vadd.f32 %v2683, %v2969
      %v3042 = vadd.f32 %v2684, %v2972
      %v3043 = vadd.f32 %v2685, %v2977
      %v3044 = vadd.f32 %v2686, %v2980
      %v3045 = vadd.f32 %v2687, %v2985
      %v3046 = vadd.f32 %v2688, %v2988
      %v3047 = vadd.f32 %v2689, %v2993
      %v3048 = vadd.f32 %v2690, %v2996
      %v3049 = vadd.f32 %v2691, %v3001
      %v3050 = vadd.f32 %v2692, %v3004
      %v3051 = vadd.f32 %v2693, %v3009
      %v3052 = vadd.f32 %v2694, %v3012
      %v3053 = vadd.f32 %v2695, %v3017
      %v3054 = vadd.f32 %v2696, %v3020
      %v3055 = vld [vmem:[%s1211] sm:$0xf]
      %v3056 = vld [vmem:[%s1211 + $0x4] sm:$0xf]
      %v3057 = vld [vmem:[%s1211 + $0x8] sm:$0xf]
      %v3058 = vld [vmem:[%s1211 + $0xc] sm:$0xf]
      %v3059 = vld [vmem:[%s1211 + $0x10] sm:$0xf]
      %v3060 = vld [vmem:[%s1211 + $0x14] sm:$0xf]
      %v3061 = vld [vmem:[%s1211 + $0x18] sm:$0xf]
      %v3062 = vld [vmem:[%s1211 + $0x1c] sm:$0xf]
      %v3063 = vld [vmem:[%s1211 + $0x20] sm:$0xf]
      %v3064 = vld [vmem:[%s1211 + $0x24] sm:$0xf]
      %v3065 = vld [vmem:[%s1211 + $0x28] sm:$0xf]
      %v3066 = vld [vmem:[%s1211 + $0x2c] sm:$0xf]
      %v3067 = vld [vmem:[%s1211 + $0x30] sm:$0xf]
      %v3068 = vld [vmem:[%s1211 + $0x34] sm:$0xf]
      %v3069 = vld [vmem:[%s1211 + $0x38] sm:$0xf]
      %v3070 = vld [vmem:[%s1211 + $0x3c] sm:$0xf]
      %v3071 = vld [vmem:[%s1211 + $0x40] sm:$0xf]
      %v3072 = vld [vmem:[%s1211 + $0x44] sm:$0xf]
      %v3073 = vld [vmem:[%s1211 + $0x48] sm:$0xf]
      %v3074 = vld [vmem:[%s1211 + $0x4c] sm:$0xf]
      %v3075 = vld [vmem:[%s1211 + $0x50] sm:$0xf]
      %v3076 = vld [vmem:[%s1211 + $0x54] sm:$0xf]
      %v3077 = vld [vmem:[%s1211 + $0x58] sm:$0xf]
      %v3078 = vld [vmem:[%s1211 + $0x5c] sm:$0xf]
      %v3079 = vld [vmem:[%s1211 + $0x60] sm:$0xf]
      %v3080 = vld [vmem:[%s1211 + $0x64] sm:$0xf]
      %v3081 = vld [vmem:[%s1211 + $0x68] sm:$0xf]
      %v3082 = vld [vmem:[%s1211 + $0x6c] sm:$0xf]
      %v3083 = vld [vmem:[%s1211 + $0x70] sm:$0xf]
      %v3084 = vld [vmem:[%s1211 + $0x74] sm:$0xf]
      %v3085 = vld [vmem:[%s1211 + $0x78] sm:$0xf]
      %v3086 = vld [vmem:[%s1211 + $0x7c] sm:$0xf]
      %s3087 = scalar_lea.vmem %s1, 10
      %v3088 = vld [vmem:[%s3087] sm:$0x3]
      %v3121 = vunpack.c.l.b16 %v3055
      %v3122 = vunpack.c.l.b16 %v3056
      %v3123 = vunpack.c.l.b16 %v3057
      %v3124 = vunpack.c.l.b16 %v3058
      %v3125 = vunpack.c.l.b16 %v3059
      %v3126 = vunpack.c.l.b16 %v3060
      %v3127 = vunpack.c.l.b16 %v3061
      %v3128 = vunpack.c.l.b16 %v3062
      %v3129 = vunpack.c.l.b16 %v3063
      %v3130 = vunpack.c.l.b16 %v3064
      %v3131 = vunpack.c.l.b16 %v3065
      %v3132 = vunpack.c.l.b16 %v3066
      %v3133 = vunpack.c.l.b16 %v3067
      %v3134 = vunpack.c.l.b16 %v3068
      %v3135 = vunpack.c.l.b16 %v3069
      %v3136 = vunpack.c.l.b16 %v3070
      %v3137 = vunpack.c.l.b16 %v3071
      %v3138 = vunpack.c.l.b16 %v3072
      %v3139 = vunpack.c.l.b16 %v3073
      %v3140 = vunpack.c.l.b16 %v3074
      %v3141 = vunpack.c.l.b16 %v3075
      %v3142 = vunpack.c.l.b16 %v3076
      %v3143 = vunpack.c.l.b16 %v3077
      %v3144 = vunpack.c.l.b16 %v3078
      %v3145 = vunpack.c.l.b16 %v3079
      %v3146 = vunpack.c.l.b16 %v3080
      %v3147 = vunpack.c.l.b16 %v3081
      %v3148 = vunpack.c.l.b16 %v3082
      %v3149 = vunpack.c.l.b16 %v3083
      %v3150 = vunpack.c.l.b16 %v3084
      %v3151 = vunpack.c.l.b16 %v3085
      %v3152 = vunpack.c.l.b16 %v3086
      %v3153 = vpack.c.b16 %v3122, %v3121
      %v3154 = vpack.c.b16 %v3124, %v3123
      %v3155 = vpack.c.b16 %v3126, %v3125
      %v3156 = vpack.c.b16 %v3128, %v3127
      %v3157 = vpack.c.b16 %v3130, %v3129
      %v3158 = vpack.c.b16 %v3132, %v3131
      %v3159 = vpack.c.b16 %v3134, %v3133
      %v3160 = vpack.c.b16 %v3136, %v3135
      %v3161 = vpack.c.b16 %v3138, %v3137
      %v3162 = vpack.c.b16 %v3140, %v3139
      %v3163 = vpack.c.b16 %v3142, %v3141
      %v3164 = vpack.c.b16 %v3144, %v3143
      %v3165 = vpack.c.b16 %v3146, %v3145
      %v3166 = vpack.c.b16 %v3148, %v3147
      %v3167 = vpack.c.b16 %v3150, %v3149
      %v3168 = vpack.c.b16 %v3152, %v3151
      %v3170 = vsel %vm1475, %v3153, 0
      %v3173 = vsel %vm1475, %v3154, 0
      %v3176 = vsel %vm1475, %v3155, 0
      %v3179 = vsel %vm1475, %v3156, 0
      %v3182 = vsel %vm1475, %v3157, 0
      %v3185 = vsel %vm1475, %v3158, 0
      %v3188 = vsel %vm1475, %v3159, 0
      %v3191 = vsel %vm1475, %v3160, 0
      %v3194 = vsel %vm1475, %v3161, 0
      %v3197 = vsel %vm1475, %v3162, 0
      %v3200 = vsel %vm1475, %v3163, 0
      %v3203 = vsel %vm1475, %v3164, 0
      %v3206 = vsel %vm1475, %v3165, 0
      %v3209 = vsel %vm1475, %v3166, 0
      %v3212 = vsel %vm1475, %v3167, 0
      %v3215 = vsel %vm1475, %v3168, 0
      %v3218 = vsel %vm1524, %v3088, 0
      %3220 = vmatprep.subr.bf16.mxu0 0
      %3221 = vmatpush1.bf16.msra.mxu0 0
      %3222 = vmatprep.subr.bf16.mxu0 0
      %3223 = vmatpush1.bf16.msra.mxu0 0
      %3224 = vmatprep.subr.bf16.mxu0 0
      %3225 = vmatpush1.bf16.msra.mxu0 0
      %3226 = vmatprep.subr.bf16.mxu0 0
      %3227 = vmatpush1.bf16.msra.mxu0 0
      %3228 = vmatprep.subr.bf16.mxu0 0
      %3229 = vmatpush1.bf16.msra.mxu0 0
      %3230 = vmatprep.subr.bf16.mxu0 0
      %3231 = vmatpush1.bf16.msra.mxu0 0
      %3232 = vmatprep.subr.bf16.mxu0 0
      %3233 = vmatpush1.bf16.msra.mxu0 0
      %3234 = vmatprep.subr.bf16.mxu0 0
      %3235 = vmatpush1.bf16.msra.mxu0 %v3218
      %3236 = vmatprep.subr.bf16.mxu0 0
      %3237 = vmatpush2.bf16.msra.mxu0 0
      %3238 = vmatprep.subr.bf16.mxu0 0
      %3239 = vmatpush2.bf16.msra.mxu0 0
      %3240 = vmatprep.subr.bf16.mxu0 0
      %3241 = vmatpush2.bf16.msra.mxu0 0
      %3242 = vmatprep.subr.bf16.mxu0 0
      %3243 = vmatpush2.bf16.msra.mxu0 0
      %3244 = vmatprep.subr.bf16.mxu0 0
      %3245 = vmatpush2.bf16.msra.mxu0 0
      %3246 = vmatprep.subr.bf16.mxu0 0
      %3247 = vmatpush2.bf16.msra.mxu0 0
      %3248 = vmatprep.subr.bf16.mxu0 0
      %3249 = vmatpush2.bf16.msra.mxu0 0
      %3250 = vmatprep.subr.bf16.mxu0 0
      %3251 = vmatpush2.bf16.msra.mxu0 0
      %3252 = vmatprep.mubr.bf16.mxu0 0
      %3253 = vmatmul.mubr.bf16.gmra.mxu0 %v3170
      %v3254 = vpop.f32.mrf.mxu0
      %v3255 = vadd.f32 0.0, %v3254
      %v3256 = vpop.f32.mrf.mxu0
      %v3257 = vpop.f32.mrf.mxu0
      %v3258 = vadd.f32 0.0, %v3257
      %v3259 = vpop.f32.mrf.mxu0
      %3260 = vmatprep.mubr.bf16.mxu0 0
      %3261 = vmatmul.mubr.bf16.gmra.mxu0 %v3173
      %v3262 = vpop.f32.mrf.mxu0
      %v3263 = vadd.f32 0.0, %v3262
      %v3264 = vpop.f32.mrf.mxu0
      %v3265 = vpop.f32.mrf.mxu0
      %v3266 = vadd.f32 0.0, %v3265
      %v3267 = vpop.f32.mrf.mxu0
      %3268 = vmatprep.mubr.bf16.mxu0 0
      %3269 = vmatmul.mubr.bf16.gmra.mxu0 %v3176
      %v3270 = vpop.f32.mrf.mxu0
      %v3271 = vadd.f32 0.0, %v3270
      %v3272 = vpop.f32.mrf.mxu0
      %v3273 = vpop.f32.mrf.mxu0
      %v3274 = vadd.f32 0.0, %v3273
      %v3275 = vpop.f32.mrf.mxu0
      %3276 = vmatprep.mubr.bf16.mxu0 0
      %3277 = vmatmul.mubr.bf16.gmra.mxu0 %v3179
      %v3278 = vpop.f32.mrf.mxu0
      %v3279 = vadd.f32 0.0, %v3278
      %v3280 = vpop.f32.mrf.mxu0
      %v3281 = vpop.f32.mrf.mxu0
      %v3282 = vadd.f32 0.0, %v3281
      %v3283 = vpop.f32.mrf.mxu0
      %3284 = vmatprep.mubr.bf16.mxu0 0
      %3285 = vmatmul.mubr.bf16.gmra.mxu0 %v3182
      %v3286 = vpop.f32.mrf.mxu0
      %v3287 = vadd.f32 0.0, %v3286
      %v3288 = vpop.f32.mrf.mxu0
      %v3289 = vpop.f32.mrf.mxu0
      %v3290 = vadd.f32 0.0, %v3289
      %v3291 = vpop.f32.mrf.mxu0
      %3292 = vmatprep.mubr.bf16.mxu0 0
      %3293 = vmatmul.mubr.bf16.gmra.mxu0 %v3185
      %v3294 = vpop.f32.mrf.mxu0
      %v3295 = vadd.f32 0.0, %v3294
      %v3296 = vpop.f32.mrf.mxu0
      %v3297 = vpop.f32.mrf.mxu0
      %v3298 = vadd.f32 0.0, %v3297
      %v3299 = vpop.f32.mrf.mxu0
      %3300 = vmatprep.mubr.bf16.mxu0 0
      %3301 = vmatmul.mubr.bf16.gmra.mxu0 %v3188
      %v3302 = vpop.f32.mrf.mxu0
      %v3303 = vadd.f32 0.0, %v3302
      %v3304 = vpop.f32.mrf.mxu0
      %v3305 = vpop.f32.mrf.mxu0
      %v3306 = vadd.f32 0.0, %v3305
      %v3307 = vpop.f32.mrf.mxu0
      %3308 = vmatprep.mubr.bf16.mxu0 0
      %3309 = vmatmul.mubr.bf16.gmra.mxu0 %v3191
      %v3310 = vpop.f32.mrf.mxu0
      %v3311 = vadd.f32 0.0, %v3310
      %v3312 = vpop.f32.mrf.mxu0
      %v3313 = vpop.f32.mrf.mxu0
      %v3314 = vadd.f32 0.0, %v3313
      %v3315 = vpop.f32.mrf.mxu0
      %3316 = vmatprep.mubr.bf16.mxu0 0
      %3317 = vmatmul.mubr.bf16.gmra.mxu0 %v3194
      %v3318 = vpop.f32.mrf.mxu0
      %v3319 = vadd.f32 0.0, %v3318
      %v3320 = vpop.f32.mrf.mxu0
      %v3321 = vpop.f32.mrf.mxu0
      %v3322 = vadd.f32 0.0, %v3321
      %v3323 = vpop.f32.mrf.mxu0
      %3324 = vmatprep.mubr.bf16.mxu0 0
      %3325 = vmatmul.mubr.bf16.gmra.mxu0 %v3197
      %v3326 = vpop.f32.mrf.mxu0
      %v3327 = vadd.f32 0.0, %v3326
      %v3328 = vpop.f32.mrf.mxu0
      %v3329 = vpop.f32.mrf.mxu0
      %v3330 = vadd.f32 0.0, %v3329
      %v3331 = vpop.f32.mrf.mxu0
      %3332 = vmatprep.mubr.bf16.mxu0 0
      %3333 = vmatmul.mubr.bf16.gmra.mxu0 %v3200
      %v3334 = vpop.f32.mrf.mxu0
      %v3335 = vadd.f32 0.0, %v3334
      %v3336 = vpop.f32.mrf.mxu0
      %v3337 = vpop.f32.mrf.mxu0
      %v3338 = vadd.f32 0.0, %v3337
      %v3339 = vpop.f32.mrf.mxu0
      %3340 = vmatprep.mubr.bf16.mxu0 0
      %3341 = vmatmul.mubr.bf16.gmra.mxu0 %v3203
      %v3342 = vpop.f32.mrf.mxu0
      %v3343 = vadd.f32 0.0, %v3342
      %v3344 = vpop.f32.mrf.mxu0
      %v3345 = vpop.f32.mrf.mxu0
      %v3346 = vadd.f32 0.0, %v3345
      %v3347 = vpop.f32.mrf.mxu0
      %3348 = vmatprep.mubr.bf16.mxu0 0
      %3349 = vmatmul.mubr.bf16.gmra.mxu0 %v3206
      %v3350 = vpop.f32.mrf.mxu0
      %v3351 = vadd.f32 0.0, %v3350
      %v3352 = vpop.f32.mrf.mxu0
      %v3353 = vpop.f32.mrf.mxu0
      %v3354 = vadd.f32 0.0, %v3353
      %v3355 = vpop.f32.mrf.mxu0
      %3356 = vmatprep.mubr.bf16.mxu0 0
      %3357 = vmatmul.mubr.bf16.gmra.mxu0 %v3209
      %v3358 = vpop.f32.mrf.mxu0
      %v3359 = vadd.f32 0.0, %v3358
      %v3360 = vpop.f32.mrf.mxu0
      %v3361 = vpop.f32.mrf.mxu0
      %v3362 = vadd.f32 0.0, %v3361
      %v3363 = vpop.f32.mrf.mxu0
      %3364 = vmatprep.mubr.bf16.mxu0 0
      %3365 = vmatmul.mubr.bf16.gmra.mxu0 %v3212
      %v3366 = vpop.f32.mrf.mxu0
      %v3367 = vadd.f32 0.0, %v3366
      %v3368 = vpop.f32.mrf.mxu0
      %v3369 = vpop.f32.mrf.mxu0
      %v3370 = vadd.f32 0.0, %v3369
      %v3371 = vpop.f32.mrf.mxu0
      %3372 = vmatprep.mubr.bf16.mxu0 0
      %3373 = vmatmul.mubr.bf16.gmra.mxu0 %v3215
      %v3374 = vpop.f32.mrf.mxu0
      %v3375 = vadd.f32 0.0, %v3374
      %v3376 = vpop.f32.mrf.mxu0
      %v3377 = vpop.f32.mrf.mxu0
      %v3378 = vadd.f32 0.0, %v3377
      %v3379 = vpop.f32.mrf.mxu0
      %3380 = vdwg.mxu0
      %v3381 = vadd.f32 %v3023, %v3255
      %v3382 = vadd.f32 %v3024, %v3258
      %v3383 = vadd.f32 %v3025, %v3263
      %v3384 = vadd.f32 %v3026, %v3266
      %v3385 = vadd.f32 %v3027, %v3271
      %v3386 = vadd.f32 %v3028, %v3274
      %v3387 = vadd.f32 %v3029, %v3279
      %v3388 = vadd.f32 %v3030, %v3282
      %v3389 = vadd.f32 %v3031, %v3287
      %v3390 = vadd.f32 %v3032, %v3290
      %v3391 = vadd.f32 %v3033, %v3295
      %v3392 = vadd.f32 %v3034, %v3298
      %v3393 = vadd.f32 %v3035, %v3303
      %v3394 = vadd.f32 %v3036, %v3306
      %v3395 = vadd.f32 %v3037, %v3311
      %v3396 = vadd.f32 %v3038, %v3314
      %v3397 = vadd.f32 %v3039, %v3319
      %v3398 = vadd.f32 %v3040, %v3322
      %v3399 = vadd.f32 %v3041, %v3327
      %v3400 = vadd.f32 %v3042, %v3330
      %v3401 = vadd.f32 %v3043, %v3335
      %v3402 = vadd.f32 %v3044, %v3338
      %v3403 = vadd.f32 %v3045, %v3343
      %v3404 = vadd.f32 %v3046, %v3346
      %v3405 = vadd.f32 %v3047, %v3351
      %v3406 = vadd.f32 %v3048, %v3354
      %v3407 = vadd.f32 %v3049, %v3359
      %v3408 = vadd.f32 %v3050, %v3362
      %v3409 = vadd.f32 %v3051, %v3367
      %v3410 = vadd.f32 %v3052, %v3370
      %v3411 = vadd.f32 %v3053, %v3375
      %v3412 = vadd.f32 %v3054, %v3378
      %s3413 = scalar_lea.vmem [#allocation2], 16
      %v3414 = vld [vmem:[%s3413] sm:$0xf]
      %v3415 = vld [vmem:[%s3413 + $0x4] sm:$0xf]
      %v3416 = vld [vmem:[%s3413 + $0x8] sm:$0xf]
      %v3417 = vld [vmem:[%s3413 + $0xc] sm:$0xf]
      %v3418 = vld [vmem:[%s3413 + $0x10] sm:$0xf]
      %v3419 = vld [vmem:[%s3413 + $0x14] sm:$0xf]
      %v3420 = vld [vmem:[%s3413 + $0x18] sm:$0xf]
      %v3421 = vld [vmem:[%s3413 + $0x1c] sm:$0xf]
      %v3422 = vld [vmem:[%s3413 + $0x20] sm:$0xf]
      %v3423 = vld [vmem:[%s3413 + $0x24] sm:$0xf]
      %v3424 = vld [vmem:[%s3413 + $0x28] sm:$0xf]
      %v3425 = vld [vmem:[%s3413 + $0x2c] sm:$0xf]
      %v3426 = vld [vmem:[%s3413 + $0x30] sm:$0xf]
      %v3427 = vld [vmem:[%s3413 + $0x34] sm:$0xf]
      %v3428 = vld [vmem:[%s3413 + $0x38] sm:$0xf]
      %v3429 = vld [vmem:[%s3413 + $0x3c] sm:$0xf]
      %v3430 = vld [vmem:[%s3413 + $0x40] sm:$0xf]
      %v3431 = vld [vmem:[%s3413 + $0x44] sm:$0xf]
      %v3432 = vld [vmem:[%s3413 + $0x48] sm:$0xf]
      %v3433 = vld [vmem:[%s3413 + $0x4c] sm:$0xf]
      %v3434 = vld [vmem:[%s3413 + $0x50] sm:$0xf]
      %v3435 = vld [vmem:[%s3413 + $0x54] sm:$0xf]
      %v3436 = vld [vmem:[%s3413 + $0x58] sm:$0xf]
      %v3437 = vld [vmem:[%s3413 + $0x5c] sm:$0xf]
      %v3438 = vld [vmem:[%s3413 + $0x60] sm:$0xf]
      %v3439 = vld [vmem:[%s3413 + $0x64] sm:$0xf]
      %v3440 = vld [vmem:[%s3413 + $0x68] sm:$0xf]
      %v3441 = vld [vmem:[%s3413 + $0x6c] sm:$0xf]
      %v3442 = vld [vmem:[%s3413 + $0x70] sm:$0xf]
      %v3443 = vld [vmem:[%s3413 + $0x74] sm:$0xf]
      %v3444 = vld [vmem:[%s3413 + $0x78] sm:$0xf]
      %v3445 = vld [vmem:[%s3413 + $0x7c] sm:$0xf]
      %s3446 = scalar_lea.vmem %s1, 12
      %v3447 = vld [vmem:[%s3446] sm:$0x3]
      %v3480 = vunpack.c.l.b16 %v3414
      %v3481 = vunpack.c.l.b16 %v3415
      %v3482 = vunpack.c.l.b16 %v3416
      %v3483 = vunpack.c.l.b16 %v3417
      %v3484 = vunpack.c.l.b16 %v3418
      %v3485 = vunpack.c.l.b16 %v3419
      %v3486 = vunpack.c.l.b16 %v3420
      %v3487 = vunpack.c.l.b16 %v3421
      %v3488 = vunpack.c.l.b16 %v3422
      %v3489 = vunpack.c.l.b16 %v3423
      %v3490 = vunpack.c.l.b16 %v3424
      %v3491 = vunpack.c.l.b16 %v3425
      %v3492 = vunpack.c.l.b16 %v3426
      %v3493 = vunpack.c.l.b16 %v3427
      %v3494 = vunpack.c.l.b16 %v3428
      %v3495 = vunpack.c.l.b16 %v3429
      %v3496 = vunpack.c.l.b16 %v3430
      %v3497 = vunpack.c.l.b16 %v3431
      %v3498 = vunpack.c.l.b16 %v3432
      %v3499 = vunpack.c.l.b16 %v3433
      %v3500 = vunpack.c.l.b16 %v3434
      %v3501 = vunpack.c.l.b16 %v3435
      %v3502 = vunpack.c.l.b16 %v3436
      %v3503 = vunpack.c.l.b16 %v3437
      %v3504 = vunpack.c.l.b16 %v3438
      %v3505 = vunpack.c.l.b16 %v3439
      %v3506 = vunpack.c.l.b16 %v3440
      %v3507 = vunpack.c.l.b16 %v3441
      %v3508 = vunpack.c.l.b16 %v3442
      %v3509 = vunpack.c.l.b16 %v3443
      %v3510 = vunpack.c.l.b16 %v3444
      %v3511 = vunpack.c.l.b16 %v3445
      %v3512 = vpack.c.b16 %v3481, %v3480
      %v3513 = vpack.c.b16 %v3483, %v3482
      %v3514 = vpack.c.b16 %v3485, %v3484
      %v3515 = vpack.c.b16 %v3487, %v3486
      %v3516 = vpack.c.b16 %v3489, %v3488
      %v3517 = vpack.c.b16 %v3491, %v3490
      %v3518 = vpack.c.b16 %v3493, %v3492
      %v3519 = vpack.c.b16 %v3495, %v3494
      %v3520 = vpack.c.b16 %v3497, %v3496
      %v3521 = vpack.c.b16 %v3499, %v3498
      %v3522 = vpack.c.b16 %v3501, %v3500
      %v3523 = vpack.c.b16 %v3503, %v3502
      %v3524 = vpack.c.b16 %v3505, %v3504
      %v3525 = vpack.c.b16 %v3507, %v3506
      %v3526 = vpack.c.b16 %v3509, %v3508
      %v3527 = vpack.c.b16 %v3511, %v3510
      %v3529 = vsel %vm1475, %v3512, 0
      %v3532 = vsel %vm1475, %v3513, 0
      %v3535 = vsel %vm1475, %v3514, 0
      %v3538 = vsel %vm1475, %v3515, 0
      %v3541 = vsel %vm1475, %v3516, 0
      %v3544 = vsel %vm1475, %v3517, 0
      %v3547 = vsel %vm1475, %v3518, 0
      %v3550 = vsel %vm1475, %v3519, 0
      %v3553 = vsel %vm1475, %v3520, 0
      %v3556 = vsel %vm1475, %v3521, 0
      %v3559 = vsel %vm1475, %v3522, 0
      %v3562 = vsel %vm1475, %v3523, 0
      %v3565 = vsel %vm1475, %v3524, 0
      %v3568 = vsel %vm1475, %v3525, 0
      %v3571 = vsel %vm1475, %v3526, 0
      %v3574 = vsel %vm1475, %v3527, 0
      %v3577 = vsel %vm1524, %v3447, 0
      %3579 = vmatprep.subr.bf16.mxu0 0
      %3580 = vmatpush1.bf16.msra.mxu0 0
      %3581 = vmatprep.subr.bf16.mxu0 0
      %3582 = vmatpush1.bf16.msra.mxu0 0
      %3583 = vmatprep.subr.bf16.mxu0 0
      %3584 = vmatpush1.bf16.msra.mxu0 0
      %3585 = vmatprep.subr.bf16.mxu0 0
      %3586 = vmatpush1.bf16.msra.mxu0 0
      %3587 = vmatprep.subr.bf16.mxu0 0
      %3588 = vmatpush1.bf16.msra.mxu0 0
      %3589 = vmatprep.subr.bf16.mxu0 0
      %3590 = vmatpush1.bf16.msra.mxu0 0
      %3591 = vmatprep.subr.bf16.mxu0 0
      %3592 = vmatpush1.bf16.msra.mxu0 0
      %3593 = vmatprep.subr.bf16.mxu0 0
      %3594 = vmatpush1.bf16.msra.mxu0 %v3577
      %3595 = vmatprep.subr.bf16.mxu0 0
      %3596 = vmatpush2.bf16.msra.mxu0 0
      %3597 = vmatprep.subr.bf16.mxu0 0
      %3598 = vmatpush2.bf16.msra.mxu0 0
      %3599 = vmatprep.subr.bf16.mxu0 0
      %3600 = vmatpush2.bf16.msra.mxu0 0
      %3601 = vmatprep.subr.bf16.mxu0 0
      %3602 = vmatpush2.bf16.msra.mxu0 0
      %3603 = vmatprep.subr.bf16.mxu0 0
      %3604 = vmatpush2.bf16.msra.mxu0 0
      %3605 = vmatprep.subr.bf16.mxu0 0
      %3606 = vmatpush2.bf16.msra.mxu0 0
      %3607 = vmatprep.subr.bf16.mxu0 0
      %3608 = vmatpush2.bf16.msra.mxu0 0
      %3609 = vmatprep.subr.bf16.mxu0 0
      %3610 = vmatpush2.bf16.msra.mxu0 0
      %3611 = vmatprep.mubr.bf16.mxu0 0
      %3612 = vmatmul.mubr.bf16.gmra.mxu0 %v3529
      %v3613 = vpop.f32.mrf.mxu0
      %v3614 = vadd.f32 0.0, %v3613
      %v3615 = vpop.f32.mrf.mxu0
      %v3616 = vpop.f32.mrf.mxu0
      %v3617 = vadd.f32 0.0, %v3616
      %v3618 = vpop.f32.mrf.mxu0
      %3619 = vmatprep.mubr.bf16.mxu0 0
      %3620 = vmatmul.mubr.bf16.gmra.mxu0 %v3532
      %v3621 = vpop.f32.mrf.mxu0
      %v3622 = vadd.f32 0.0, %v3621
      %v3623 = vpop.f32.mrf.mxu0
      %v3624 = vpop.f32.mrf.mxu0
      %v3625 = vadd.f32 0.0, %v3624
      %v3626 = vpop.f32.mrf.mxu0
      %3627 = vmatprep.mubr.bf16.mxu0 0
      %3628 = vmatmul.mubr.bf16.gmra.mxu0 %v3535
      %v3629 = vpop.f32.mrf.mxu0
      %v3630 = vadd.f32 0.0, %v3629
      %v3631 = vpop.f32.mrf.mxu0
      %v3632 = vpop.f32.mrf.mxu0
      %v3633 = vadd.f32 0.0, %v3632
      %v3634 = vpop.f32.mrf.mxu0
      %3635 = vmatprep.mubr.bf16.mxu0 0
      %3636 = vmatmul.mubr.bf16.gmra.mxu0 %v3538
      %v3637 = vpop.f32.mrf.mxu0
      %v3638 = vadd.f32 0.0, %v3637
      %v3639 = vpop.f32.mrf.mxu0
      %v3640 = vpop.f32.mrf.mxu0
      %v3641 = vadd.f32 0.0, %v3640
      %v3642 = vpop.f32.mrf.mxu0
      %3643 = vmatprep.mubr.bf16.mxu0 0
      %3644 = vmatmul.mubr.bf16.gmra.mxu0 %v3541
      %v3645 = vpop.f32.mrf.mxu0
      %v3646 = vadd.f32 0.0, %v3645
      %v3647 = vpop.f32.mrf.mxu0
      %v3648 = vpop.f32.mrf.mxu0
      %v3649 = vadd.f32 0.0, %v3648
      %v3650 = vpop.f32.mrf.mxu0
      %3651 = vmatprep.mubr.bf16.mxu0 0
      %3652 = vmatmul.mubr.bf16.gmra.mxu0 %v3544
      %v3653 = vpop.f32.mrf.mxu0
      %v3654 = vadd.f32 0.0, %v3653
      %v3655 = vpop.f32.mrf.mxu0
      %v3656 = vpop.f32.mrf.mxu0
      %v3657 = vadd.f32 0.0, %v3656
      %v3658 = vpop.f32.mrf.mxu0
      %3659 = vmatprep.mubr.bf16.mxu0 0
      %3660 = vmatmul.mubr.bf16.gmra.mxu0 %v3547
      %v3661 = vpop.f32.mrf.mxu0
      %v3662 = vadd.f32 0.0, %v3661
      %v3663 = vpop.f32.mrf.mxu0
      %v3664 = vpop.f32.mrf.mxu0
      %v3665 = vadd.f32 0.0, %v3664
      %v3666 = vpop.f32.mrf.mxu0
      %3667 = vmatprep.mubr.bf16.mxu0 0
      %3668 = vmatmul.mubr.bf16.gmra.mxu0 %v3550
      %v3669 = vpop.f32.mrf.mxu0
      %v3670 = vadd.f32 0.0, %v3669
      %v3671 = vpop.f32.mrf.mxu0
      %v3672 = vpop.f32.mrf.mxu0
      %v3673 = vadd.f32 0.0, %v3672
      %v3674 = vpop.f32.mrf.mxu0
      %3675 = vmatprep.mubr.bf16.mxu0 0
      %3676 = vmatmul.mubr.bf16.gmra.mxu0 %v3553
      %v3677 = vpop.f32.mrf.mxu0
      %v3678 = vadd.f32 0.0, %v3677
      %v3679 = vpop.f32.mrf.mxu0
      %v3680 = vpop.f32.mrf.mxu0
      %v3681 = vadd.f32 0.0, %v3680
      %v3682 = vpop.f32.mrf.mxu0
      %3683 = vmatprep.mubr.bf16.mxu0 0
      %3684 = vmatmul.mubr.bf16.gmra.mxu0 %v3556
      %v3685 = vpop.f32.mrf.mxu0
      %v3686 = vadd.f32 0.0, %v3685
      %v3687 = vpop.f32.mrf.mxu0
      %v3688 = vpop.f32.mrf.mxu0
      %v3689 = vadd.f32 0.0, %v3688
      %v3690 = vpop.f32.mrf.mxu0
      %3691 = vmatprep.mubr.bf16.mxu0 0
      %3692 = vmatmul.mubr.bf16.gmra.mxu0 %v3559
      %v3693 = vpop.f32.mrf.mxu0
      %v3694 = vadd.f32 0.0, %v3693
      %v3695 = vpop.f32.mrf.mxu0
      %v3696 = vpop.f32.mrf.mxu0
      %v3697 = vadd.f32 0.0, %v3696
      %v3698 = vpop.f32.mrf.mxu0
      %3699 = vmatprep.mubr.bf16.mxu0 0
      %3700 = vmatmul.mubr.bf16.gmra.mxu0 %v3562
      %v3701 = vpop.f32.mrf.mxu0
      %v3702 = vadd.f32 0.0, %v3701
      %v3703 = vpop.f32.mrf.mxu0
      %v3704 = vpop.f32.mrf.mxu0
      %v3705 = vadd.f32 0.0, %v3704
      %v3706 = vpop.f32.mrf.mxu0
      %3707 = vmatprep.mubr.bf16.mxu0 0
      %3708 = vmatmul.mubr.bf16.gmra.mxu0 %v3565
      %v3709 = vpop.f32.mrf.mxu0
      %v3710 = vadd.f32 0.0, %v3709
      %v3711 = vpop.f32.mrf.mxu0
      %v3712 = vpop.f32.mrf.mxu0
      %v3713 = vadd.f32 0.0, %v3712
      %v3714 = vpop.f32.mrf.mxu0
      %3715 = vmatprep.mubr.bf16.mxu0 0
      %3716 = vmatmul.mubr.bf16.gmra.mxu0 %v3568
      %v3717 = vpop.f32.mrf.mxu0
      %v3718 = vadd.f32 0.0, %v3717
      %v3719 = vpop.f32.mrf.mxu0
      %v3720 = vpop.f32.mrf.mxu0
      %v3721 = vadd.f32 0.0, %v3720
      %v3722 = vpop.f32.mrf.mxu0
      %3723 = vmatprep.mubr.bf16.mxu0 0
      %3724 = vmatmul.mubr.bf16.gmra.mxu0 %v3571
      %v3725 = vpop.f32.mrf.mxu0
      %v3726 = vadd.f32 0.0, %v3725
      %v3727 = vpop.f32.mrf.mxu0
      %v3728 = vpop.f32.mrf.mxu0
      %v3729 = vadd.f32 0.0, %v3728
      %v3730 = vpop.f32.mrf.mxu0
      %3731 = vmatprep.mubr.bf16.mxu0 0
      %3732 = vmatmul.mubr.bf16.gmra.mxu0 %v3574
      %v3733 = vpop.f32.mrf.mxu0
      %v3734 = vadd.f32 0.0, %v3733
      %v3735 = vpop.f32.mrf.mxu0
      %v3736 = vpop.f32.mrf.mxu0
      %v3737 = vadd.f32 0.0, %v3736
      %v3738 = vpop.f32.mrf.mxu0
      %3739 = vdwg.mxu0
      %v3740 = vadd.f32 %v3381, %v3614
      %v3741 = vadd.f32 %v3382, %v3617
      %v3742 = vadd.f32 %v3383, %v3622
      %v3743 = vadd.f32 %v3384, %v3625
      %v3744 = vadd.f32 %v3385, %v3630
      %v3745 = vadd.f32 %v3386, %v3633
      %v3746 = vadd.f32 %v3387, %v3638
      %v3747 = vadd.f32 %v3388, %v3641
      %v3748 = vadd.f32 %v3389, %v3646
      %v3749 = vadd.f32 %v3390, %v3649
      %v3750 = vadd.f32 %v3391, %v3654
      %v3751 = vadd.f32 %v3392, %v3657
      %v3752 = vadd.f32 %v3393, %v3662
      %v3753 = vadd.f32 %v3394, %v3665
      %v3754 = vadd.f32 %v3395, %v3670
      %v3755 = vadd.f32 %v3396, %v3673
      %v3756 = vadd.f32 %v3397, %v3678
      %v3757 = vadd.f32 %v3398, %v3681
      %v3758 = vadd.f32 %v3399, %v3686
      %v3759 = vadd.f32 %v3400, %v3689
      %v3760 = vadd.f32 %v3401, %v3694
      %v3761 = vadd.f32 %v3402, %v3697
      %v3762 = vadd.f32 %v3403, %v3702
      %v3763 = vadd.f32 %v3404, %v3705
      %v3764 = vadd.f32 %v3405, %v3710
      %v3765 = vadd.f32 %v3406, %v3713
      %v3766 = vadd.f32 %v3407, %v3718
      %v3767 = vadd.f32 %v3408, %v3721
      %v3768 = vadd.f32 %v3409, %v3726
      %v3769 = vadd.f32 %v3410, %v3729
      %v3770 = vadd.f32 %v3411, %v3734
      %v3771 = vadd.f32 %v3412, %v3737
      %s3772 = scalar_lea.vmem [#allocation2], 160
      %v3773 = vld [vmem:[%s3772] sm:$0xf]
      %v3774 = vld [vmem:[%s3772 + $0x4] sm:$0xf]
      %v3775 = vld [vmem:[%s3772 + $0x8] sm:$0xf]
      %v3776 = vld [vmem:[%s3772 + $0xc] sm:$0xf]
      %v3777 = vld [vmem:[%s3772 + $0x10] sm:$0xf]
      %v3778 = vld [vmem:[%s3772 + $0x14] sm:$0xf]
      %v3779 = vld [vmem:[%s3772 + $0x18] sm:$0xf]
      %v3780 = vld [vmem:[%s3772 + $0x1c] sm:$0xf]
      %v3781 = vld [vmem:[%s3772 + $0x20] sm:$0xf]
      %v3782 = vld [vmem:[%s3772 + $0x24] sm:$0xf]
      %v3783 = vld [vmem:[%s3772 + $0x28] sm:$0xf]
      %v3784 = vld [vmem:[%s3772 + $0x2c] sm:$0xf]
      %v3785 = vld [vmem:[%s3772 + $0x30] sm:$0xf]
      %v3786 = vld [vmem:[%s3772 + $0x34] sm:$0xf]
      %v3787 = vld [vmem:[%s3772 + $0x38] sm:$0xf]
      %v3788 = vld [vmem:[%s3772 + $0x3c] sm:$0xf]
      %v3789 = vld [vmem:[%s3772 + $0x40] sm:$0xf]
      %v3790 = vld [vmem:[%s3772 + $0x44] sm:$0xf]
      %v3791 = vld [vmem:[%s3772 + $0x48] sm:$0xf]
      %v3792 = vld [vmem:[%s3772 + $0x4c] sm:$0xf]
      %v3793 = vld [vmem:[%s3772 + $0x50] sm:$0xf]
      %v3794 = vld [vmem:[%s3772 + $0x54] sm:$0xf]
      %v3795 = vld [vmem:[%s3772 + $0x58] sm:$0xf]
      %v3796 = vld [vmem:[%s3772 + $0x5c] sm:$0xf]
      %v3797 = vld [vmem:[%s3772 + $0x60] sm:$0xf]
      %v3798 = vld [vmem:[%s3772 + $0x64] sm:$0xf]
      %v3799 = vld [vmem:[%s3772 + $0x68] sm:$0xf]
      %v3800 = vld [vmem:[%s3772 + $0x6c] sm:$0xf]
      %v3801 = vld [vmem:[%s3772 + $0x70] sm:$0xf]
      %v3802 = vld [vmem:[%s3772 + $0x74] sm:$0xf]
      %v3803 = vld [vmem:[%s3772 + $0x78] sm:$0xf]
      %v3804 = vld [vmem:[%s3772 + $0x7c] sm:$0xf]
      %s3805 = scalar_lea.vmem %s1, 14
      %v3806 = vld [vmem:[%s3805] sm:$0x3]
      %v3839 = vunpack.c.l.b16 %v3773
      %v3840 = vunpack.c.l.b16 %v3774
      %v3841 = vunpack.c.l.b16 %v3775
      %v3842 = vunpack.c.l.b16 %v3776
      %v3843 = vunpack.c.l.b16 %v3777
      %v3844 = vunpack.c.l.b16 %v3778
      %v3845 = vunpack.c.l.b16 %v3779
      %v3846 = vunpack.c.l.b16 %v3780
      %v3847 = vunpack.c.l.b16 %v3781
      %v3848 = vunpack.c.l.b16 %v3782
      %v3849 = vunpack.c.l.b16 %v3783
      %v3850 = vunpack.c.l.b16 %v3784
      %v3851 = vunpack.c.l.b16 %v3785
      %v3852 = vunpack.c.l.b16 %v3786
      %v3853 = vunpack.c.l.b16 %v3787
      %v3854 = vunpack.c.l.b16 %v3788
      %v3855 = vunpack.c.l.b16 %v3789
      %v3856 = vunpack.c.l.b16 %v3790
      %v3857 = vunpack.c.l.b16 %v3791
      %v3858 = vunpack.c.l.b16 %v3792
      %v3859 = vunpack.c.l.b16 %v3793
      %v3860 = vunpack.c.l.b16 %v3794
      %v3861 = vunpack.c.l.b16 %v3795
      %v3862 = vunpack.c.l.b16 %v3796
      %v3863 = vunpack.c.l.b16 %v3797
      %v3864 = vunpack.c.l.b16 %v3798
      %v3865 = vunpack.c.l.b16 %v3799
      %v3866 = vunpack.c.l.b16 %v3800
      %v3867 = vunpack.c.l.b16 %v3801
      %v3868 = vunpack.c.l.b16 %v3802
      %v3869 = vunpack.c.l.b16 %v3803
      %v3870 = vunpack.c.l.b16 %v3804
      %v3871 = vpack.c.b16 %v3840, %v3839
      %v3872 = vpack.c.b16 %v3842, %v3841
      %v3873 = vpack.c.b16 %v3844, %v3843
      %v3874 = vpack.c.b16 %v3846, %v3845
      %v3875 = vpack.c.b16 %v3848, %v3847
      %v3876 = vpack.c.b16 %v3850, %v3849
      %v3877 = vpack.c.b16 %v3852, %v3851
      %v3878 = vpack.c.b16 %v3854, %v3853
      %v3879 = vpack.c.b16 %v3856, %v3855
      %v3880 = vpack.c.b16 %v3858, %v3857
      %v3881 = vpack.c.b16 %v3860, %v3859
      %v3882 = vpack.c.b16 %v3862, %v3861
      %v3883 = vpack.c.b16 %v3864, %v3863
      %v3884 = vpack.c.b16 %v3866, %v3865
      %v3885 = vpack.c.b16 %v3868, %v3867
      %v3886 = vpack.c.b16 %v3870, %v3869
      %v3888 = vsel %vm1475, %v3871, 0
      %v3891 = vsel %vm1475, %v3872, 0
      %v3894 = vsel %vm1475, %v3873, 0
      %v3897 = vsel %vm1475, %v3874, 0
      %v3900 = vsel %vm1475, %v3875, 0
      %v3903 = vsel %vm1475, %v3876, 0
      %v3906 = vsel %vm1475, %v3877, 0
      %v3909 = vsel %vm1475, %v3878, 0
      %v3912 = vsel %vm1475, %v3879, 0
      %v3915 = vsel %vm1475, %v3880, 0
      %v3918 = vsel %vm1475, %v3881, 0
      %v3921 = vsel %vm1475, %v3882, 0
      %v3924 = vsel %vm1475, %v3883, 0
      %v3927 = vsel %vm1475, %v3884, 0
      %v3930 = vsel %vm1475, %v3885, 0
      %v3933 = vsel %vm1475, %v3886, 0
      %v3936 = vsel %vm1524, %v3806, 0
      %3938 = vmatprep.subr.bf16.mxu0 0
      %3939 = vmatpush1.bf16.msra.mxu0 0
      %3940 = vmatprep.subr.bf16.mxu0 0
      %3941 = vmatpush1.bf16.msra.mxu0 0
      %3942 = vmatprep.subr.bf16.mxu0 0
      %3943 = vmatpush1.bf16.msra.mxu0 0
      %3944 = vmatprep.subr.bf16.mxu0 0
      %3945 = vmatpush1.bf16.msra.mxu0 0
      %3946 = vmatprep.subr.bf16.mxu0 0
      %3947 = vmatpush1.bf16.msra.mxu0 0
      %3948 = vmatprep.subr.bf16.mxu0 0
      %3949 = vmatpush1.bf16.msra.mxu0 0
      %3950 = vmatprep.subr.bf16.mxu0 0
      %3951 = vmatpush1.bf16.msra.mxu0 0
      %3952 = vmatprep.subr.bf16.mxu0 0
      %3953 = vmatpush1.bf16.msra.mxu0 %v3936
      %3954 = vmatprep.subr.bf16.mxu0 0
      %3955 = vmatpush2.bf16.msra.mxu0 0
      %3956 = vmatprep.subr.bf16.mxu0 0
      %3957 = vmatpush2.bf16.msra.mxu0 0
      %3958 = vmatprep.subr.bf16.mxu0 0
      %3959 = vmatpush2.bf16.msra.mxu0 0
      %3960 = vmatprep.subr.bf16.mxu0 0
      %3961 = vmatpush2.bf16.msra.mxu0 0
      %3962 = vmatprep.subr.bf16.mxu0 0
      %3963 = vmatpush2.bf16.msra.mxu0 0
      %3964 = vmatprep.subr.bf16.mxu0 0
      %3965 = vmatpush2.bf16.msra.mxu0 0
      %3966 = vmatprep.subr.bf16.mxu0 0
      %3967 = vmatpush2.bf16.msra.mxu0 0
      %3968 = vmatprep.subr.bf16.mxu0 0
      %3969 = vmatpush2.bf16.msra.mxu0 0
      %3970 = vmatprep.mubr.bf16.mxu0 0
      %3971 = vmatmul.mubr.bf16.gmra.mxu0 %v3888
      %v3972 = vpop.f32.mrf.mxu0
      %v3973 = vadd.f32 0.0, %v3972
      %v3974 = vpop.f32.mrf.mxu0
      %v3975 = vpop.f32.mrf.mxu0
      %v3976 = vadd.f32 0.0, %v3975
      %v3977 = vpop.f32.mrf.mxu0
      %3978 = vmatprep.mubr.bf16.mxu0 0
      %3979 = vmatmul.mubr.bf16.gmra.mxu0 %v3891
      %v3980 = vpop.f32.mrf.mxu0
      %v3981 = vadd.f32 0.0, %v3980
      %v3982 = vpop.f32.mrf.mxu0
      %v3983 = vpop.f32.mrf.mxu0
      %v3984 = vadd.f32 0.0, %v3983
      %v3985 = vpop.f32.mrf.mxu0
      %3986 = vmatprep.mubr.bf16.mxu0 0
      %3987 = vmatmul.mubr.bf16.gmra.mxu0 %v3894
      %v3988 = vpop.f32.mrf.mxu0
      %v3989 = vadd.f32 0.0, %v3988
      %v3990 = vpop.f32.mrf.mxu0
      %v3991 = vpop.f32.mrf.mxu0
      %v3992 = vadd.f32 0.0, %v3991
      %v3993 = vpop.f32.mrf.mxu0
      %3994 = vmatprep.mubr.bf16.mxu0 0
      %3995 = vmatmul.mubr.bf16.gmra.mxu0 %v3897
      %v3996 = vpop.f32.mrf.mxu0
      %v3997 = vadd.f32 0.0, %v3996
      %v3998 = vpop.f32.mrf.mxu0
      %v3999 = vpop.f32.mrf.mxu0
      %v4000 = vadd.f32 0.0, %v3999
      %v4001 = vpop.f32.mrf.mxu0
      %4002 = vmatprep.mubr.bf16.mxu0 0
      %4003 = vmatmul.mubr.bf16.gmra.mxu0 %v3900
      %v4004 = vpop.f32.mrf.mxu0
      %v4005 = vadd.f32 0.0, %v4004
      %v4006 = vpop.f32.mrf.mxu0
      %v4007 = vpop.f32.mrf.mxu0
      %v4008 = vadd.f32 0.0, %v4007
      %v4009 = vpop.f32.mrf.mxu0
      %4010 = vmatprep.mubr.bf16.mxu0 0
      %4011 = vmatmul.mubr.bf16.gmra.mxu0 %v3903
      %v4012 = vpop.f32.mrf.mxu0
      %v4013 = vadd.f32 0.0, %v4012
      %v4014 = vpop.f32.mrf.mxu0
      %v4015 = vpop.f32.mrf.mxu0
      %v4016 = vadd.f32 0.0, %v4015
      %v4017 = vpop.f32.mrf.mxu0
      %4018 = vmatprep.mubr.bf16.mxu0 0
      %4019 = vmatmul.mubr.bf16.gmra.mxu0 %v3906
      %v4020 = vpop.f32.mrf.mxu0
      %v4021 = vadd.f32 0.0, %v4020
      %v4022 = vpop.f32.mrf.mxu0
      %v4023 = vpop.f32.mrf.mxu0
      %v4024 = vadd.f32 0.0, %v4023
      %v4025 = vpop.f32.mrf.mxu0
      %4026 = vmatprep.mubr.bf16.mxu0 0
      %4027 = vmatmul.mubr.bf16.gmra.mxu0 %v3909
      %v4028 = vpop.f32.mrf.mxu0
      %v4029 = vadd.f32 0.0, %v4028
      %v4030 = vpop.f32.mrf.mxu0
      %v4031 = vpop.f32.mrf.mxu0
      %v4032 = vadd.f32 0.0, %v4031
      %v4033 = vpop.f32.mrf.mxu0
      %4034 = vmatprep.mubr.bf16.mxu0 0
      %4035 = vmatmul.mubr.bf16.gmra.mxu0 %v3912
      %v4036 = vpop.f32.mrf.mxu0
      %v4037 = vadd.f32 0.0, %v4036
      %v4038 = vpop.f32.mrf.mxu0
      %v4039 = vpop.f32.mrf.mxu0
      %v4040 = vadd.f32 0.0, %v4039
      %v4041 = vpop.f32.mrf.mxu0
      %4042 = vmatprep.mubr.bf16.mxu0 0
      %4043 = vmatmul.mubr.bf16.gmra.mxu0 %v3915
      %v4044 = vpop.f32.mrf.mxu0
      %v4045 = vadd.f32 0.0, %v4044
      %v4046 = vpop.f32.mrf.mxu0
      %v4047 = vpop.f32.mrf.mxu0
      %v4048 = vadd.f32 0.0, %v4047
      %v4049 = vpop.f32.mrf.mxu0
      %4050 = vmatprep.mubr.bf16.mxu0 0
      %4051 = vmatmul.mubr.bf16.gmra.mxu0 %v3918
      %v4052 = vpop.f32.mrf.mxu0
      %v4053 = vadd.f32 0.0, %v4052
      %v4054 = vpop.f32.mrf.mxu0
      %v4055 = vpop.f32.mrf.mxu0
      %v4056 = vadd.f32 0.0, %v4055
      %v4057 = vpop.f32.mrf.mxu0
      %4058 = vmatprep.mubr.bf16.mxu0 0
      %4059 = vmatmul.mubr.bf16.gmra.mxu0 %v3921
      %v4060 = vpop.f32.mrf.mxu0
      %v4061 = vadd.f32 0.0, %v4060
      %v4062 = vpop.f32.mrf.mxu0
      %v4063 = vpop.f32.mrf.mxu0
      %v4064 = vadd.f32 0.0, %v4063
      %v4065 = vpop.f32.mrf.mxu0
      %4066 = vmatprep.mubr.bf16.mxu0 0
      %4067 = vmatmul.mubr.bf16.gmra.mxu0 %v3924
      %v4068 = vpop.f32.mrf.mxu0
      %v4069 = vadd.f32 0.0, %v4068
      %v4070 = vpop.f32.mrf.mxu0
      %v4071 = vpop.f32.mrf.mxu0
      %v4072 = vadd.f32 0.0, %v4071
      %v4073 = vpop.f32.mrf.mxu0
      %4074 = vmatprep.mubr.bf16.mxu0 0
      %4075 = vmatmul.mubr.bf16.gmra.mxu0 %v3927
      %v4076 = vpop.f32.mrf.mxu0
      %v4077 = vadd.f32 0.0, %v4076
      %v4078 = vpop.f32.mrf.mxu0
      %v4079 = vpop.f32.mrf.mxu0
      %v4080 = vadd.f32 0.0, %v4079
      %v4081 = vpop.f32.mrf.mxu0
      %4082 = vmatprep.mubr.bf16.mxu0 0
      %4083 = vmatmul.mubr.bf16.gmra.mxu0 %v3930
      %v4084 = vpop.f32.mrf.mxu0
      %v4085 = vadd.f32 0.0, %v4084
      %v4086 = vpop.f32.mrf.mxu0
      %v4087 = vpop.f32.mrf.mxu0
      %v4088 = vadd.f32 0.0, %v4087
      %v4089 = vpop.f32.mrf.mxu0
      %4090 = vmatprep.mubr.bf16.mxu0 0
      %4091 = vmatmul.mubr.bf16.gmra.mxu0 %v3933
      %v4092 = vpop.f32.mrf.mxu0
      %v4093 = vadd.f32 0.0, %v4092
      %v4094 = vpop.f32.mrf.mxu0
      %v4095 = vpop.f32.mrf.mxu0
      %v4096 = vadd.f32 0.0, %v4095
      %v4097 = vpop.f32.mrf.mxu0
      %4098 = vdwg.mxu0
      %v4099 = vadd.f32 %v3740, %v3973
      %v4100 = vadd.f32 %v3741, %v3976
      %v4101 = vadd.f32 %v3742, %v3981
      %v4102 = vadd.f32 %v3743, %v3984
      %v4103 = vadd.f32 %v3744, %v3989
      %v4104 = vadd.f32 %v3745, %v3992
      %v4105 = vadd.f32 %v3746, %v3997
      %v4106 = vadd.f32 %v3747, %v4000
      %v4107 = vadd.f32 %v3748, %v4005
      %v4108 = vadd.f32 %v3749, %v4008
      %v4109 = vadd.f32 %v3750, %v4013
      %v4110 = vadd.f32 %v3751, %v4016
      %v4111 = vadd.f32 %v3752, %v4021
      %v4112 = vadd.f32 %v3753, %v4024
      %v4113 = vadd.f32 %v3754, %v4029
      %v4114 = vadd.f32 %v3755, %v4032
      %v4115 = vadd.f32 %v3756, %v4037
      %v4116 = vadd.f32 %v3757, %v4040
      %v4117 = vadd.f32 %v3758, %v4045
      %v4118 = vadd.f32 %v3759, %v4048
      %v4119 = vadd.f32 %v3760, %v4053
      %v4120 = vadd.f32 %v3761, %v4056
      %v4121 = vadd.f32 %v3762, %v4061
      %v4122 = vadd.f32 %v3763, %v4064
      %v4123 = vadd.f32 %v3764, %v4069
      %v4124 = vadd.f32 %v3765, %v4072
      %v4125 = vadd.f32 %v3766, %v4077
      %v4126 = vadd.f32 %v3767, %v4080
      %v4127 = vadd.f32 %v3768, %v4085
      %v4128 = vadd.f32 %v3769, %v4088
      %v4129 = vadd.f32 %v3770, %v4093
      %v4130 = vadd.f32 %v3771, %v4096
      %s4131 = scalar_lea.vmem [#allocation2], 304
      %v4132 = vld [vmem:[%s4131] sm:$0xf]
      %v4133 = vld [vmem:[%s4131 + $0x4] sm:$0xf]
      %v4134 = vld [vmem:[%s4131 + $0x8] sm:$0xf]
      %v4135 = vld [vmem:[%s4131 + $0xc] sm:$0xf]
      %v4136 = vld [vmem:[%s4131 + $0x10] sm:$0xf]
      %v4137 = vld [vmem:[%s4131 + $0x14] sm:$0xf]
      %v4138 = vld [vmem:[%s4131 + $0x18] sm:$0xf]
      %v4139 = vld [vmem:[%s4131 + $0x1c] sm:$0xf]
      %v4140 = vld [vmem:[%s4131 + $0x20] sm:$0xf]
      %v4141 = vld [vmem:[%s4131 + $0x24] sm:$0xf]
      %v4142 = vld [vmem:[%s4131 + $0x28] sm:$0xf]
      %v4143 = vld [vmem:[%s4131 + $0x2c] sm:$0xf]
      %v4144 = vld [vmem:[%s4131 + $0x30] sm:$0xf]
      %v4145 = vld [vmem:[%s4131 + $0x34] sm:$0xf]
      %v4146 = vld [vmem:[%s4131 + $0x38] sm:$0xf]
      %v4147 = vld [vmem:[%s4131 + $0x3c] sm:$0xf]
      %v4148 = vld [vmem:[%s4131 + $0x40] sm:$0xf]
      %v4149 = vld [vmem:[%s4131 + $0x44] sm:$0xf]
      %v4150 = vld [vmem:[%s4131 + $0x48] sm:$0xf]
      %v4151 = vld [vmem:[%s4131 + $0x4c] sm:$0xf]
      %v4152 = vld [vmem:[%s4131 + $0x50] sm:$0xf]
      %v4153 = vld [vmem:[%s4131 + $0x54] sm:$0xf]
      %v4154 = vld [vmem:[%s4131 + $0x58] sm:$0xf]
      %v4155 = vld [vmem:[%s4131 + $0x5c] sm:$0xf]
      %v4156 = vld [vmem:[%s4131 + $0x60] sm:$0xf]
      %v4157 = vld [vmem:[%s4131 + $0x64] sm:$0xf]
      %v4158 = vld [vmem:[%s4131 + $0x68] sm:$0xf]
      %v4159 = vld [vmem:[%s4131 + $0x6c] sm:$0xf]
      %v4160 = vld [vmem:[%s4131 + $0x70] sm:$0xf]
      %v4161 = vld [vmem:[%s4131 + $0x74] sm:$0xf]
      %v4162 = vld [vmem:[%s4131 + $0x78] sm:$0xf]
      %v4163 = vld [vmem:[%s4131 + $0x7c] sm:$0xf]
      %s4164 = scalar_lea.vmem %s1, 16
      %v4165 = vld [vmem:[%s4164] sm:$0x3]
      %v4198 = vunpack.c.l.b16 %v4132
      %v4199 = vunpack.c.l.b16 %v4133
      %v4200 = vunpack.c.l.b16 %v4134
      %v4201 = vunpack.c.l.b16 %v4135
      %v4202 = vunpack.c.l.b16 %v4136
      %v4203 = vunpack.c.l.b16 %v4137
      %v4204 = vunpack.c.l.b16 %v4138
      %v4205 = vunpack.c.l.b16 %v4139
      %v4206 = vunpack.c.l.b16 %v4140
      %v4207 = vunpack.c.l.b16 %v4141
      %v4208 = vunpack.c.l.b16 %v4142
      %v4209 = vunpack.c.l.b16 %v4143
      %v4210 = vunpack.c.l.b16 %v4144
      %v4211 = vunpack.c.l.b16 %v4145
      %v4212 = vunpack.c.l.b16 %v4146
      %v4213 = vunpack.c.l.b16 %v4147
      %v4214 = vunpack.c.l.b16 %v4148
      %v4215 = vunpack.c.l.b16 %v4149
      %v4216 = vunpack.c.l.b16 %v4150
      %v4217 = vunpack.c.l.b16 %v4151
      %v4218 = vunpack.c.l.b16 %v4152
      %v4219 = vunpack.c.l.b16 %v4153
      %v4220 = vunpack.c.l.b16 %v4154
      %v4221 = vunpack.c.l.b16 %v4155
      %v4222 = vunpack.c.l.b16 %v4156
      %v4223 = vunpack.c.l.b16 %v4157
      %v4224 = vunpack.c.l.b16 %v4158
      %v4225 = vunpack.c.l.b16 %v4159
      %v4226 = vunpack.c.l.b16 %v4160
      %v4227 = vunpack.c.l.b16 %v4161
      %v4228 = vunpack.c.l.b16 %v4162
      %v4229 = vunpack.c.l.b16 %v4163
      %v4230 = vpack.c.b16 %v4199, %v4198
      %v4231 = vpack.c.b16 %v4201, %v4200
      %v4232 = vpack.c.b16 %v4203, %v4202
      %v4233 = vpack.c.b16 %v4205, %v4204
      %v4234 = vpack.c.b16 %v4207, %v4206
      %v4235 = vpack.c.b16 %v4209, %v4208
      %v4236 = vpack.c.b16 %v4211, %v4210
      %v4237 = vpack.c.b16 %v4213, %v4212
      %v4238 = vpack.c.b16 %v4215, %v4214
      %v4239 = vpack.c.b16 %v4217, %v4216
      %v4240 = vpack.c.b16 %v4219, %v4218
      %v4241 = vpack.c.b16 %v4221, %v4220
      %v4242 = vpack.c.b16 %v4223, %v4222
      %v4243 = vpack.c.b16 %v4225, %v4224
      %v4244 = vpack.c.b16 %v4227, %v4226
      %v4245 = vpack.c.b16 %v4229, %v4228
      %v4247 = vsel %vm1475, %v4230, 0
      %v4250 = vsel %vm1475, %v4231, 0
      %v4253 = vsel %vm1475, %v4232, 0
      %v4256 = vsel %vm1475, %v4233, 0
      %v4259 = vsel %vm1475, %v4234, 0
      %v4262 = vsel %vm1475, %v4235, 0
      %v4265 = vsel %vm1475, %v4236, 0
      %v4268 = vsel %vm1475, %v4237, 0
      %v4271 = vsel %vm1475, %v4238, 0
      %v4274 = vsel %vm1475, %v4239, 0
      %v4277 = vsel %vm1475, %v4240, 0
      %v4280 = vsel %vm1475, %v4241, 0
      %v4283 = vsel %vm1475, %v4242, 0
      %v4286 = vsel %vm1475, %v4243, 0
      %v4289 = vsel %vm1475, %v4244, 0
      %v4292 = vsel %vm1475, %v4245, 0
      %v4295 = vsel %vm1524, %v4165, 0
      %4297 = vmatprep.subr.bf16.mxu0 0
      %4298 = vmatpush1.bf16.msra.mxu0 0
      %4299 = vmatprep.subr.bf16.mxu0 0
      %4300 = vmatpush1.bf16.msra.mxu0 0
      %4301 = vmatprep.subr.bf16.mxu0 0
      %4302 = vmatpush1.bf16.msra.mxu0 0
      %4303 = vmatprep.subr.bf16.mxu0 0
      %4304 = vmatpush1.bf16.msra.mxu0 0
      %4305 = vmatprep.subr.bf16.mxu0 0
      %4306 = vmatpush1.bf16.msra.mxu0 0
      %4307 = vmatprep.subr.bf16.mxu0 0
      %4308 = vmatpush1.bf16.msra.mxu0 0
      %4309 = vmatprep.subr.bf16.mxu0 0
      %4310 = vmatpush1.bf16.msra.mxu0 0
      %4311 = vmatprep.subr.bf16.mxu0 0
      %4312 = vmatpush1.bf16.msra.mxu0 %v4295
      %4313 = vmatprep.subr.bf16.mxu0 0
      %4314 = vmatpush2.bf16.msra.mxu0 0
      %4315 = vmatprep.subr.bf16.mxu0 0
      %4316 = vmatpush2.bf16.msra.mxu0 0
      %4317 = vmatprep.subr.bf16.mxu0 0
      %4318 = vmatpush2.bf16.msra.mxu0 0
      %4319 = vmatprep.subr.bf16.mxu0 0
      %4320 = vmatpush2.bf16.msra.mxu0 0
      %4321 = vmatprep.subr.bf16.mxu0 0
      %4322 = vmatpush2.bf16.msra.mxu0 0
      %4323 = vmatprep.subr.bf16.mxu0 0
      %4324 = vmatpush2.bf16.msra.mxu0 0
      %4325 = vmatprep.subr.bf16.mxu0 0
      %4326 = vmatpush2.bf16.msra.mxu0 0
      %4327 = vmatprep.subr.bf16.mxu0 0
      %4328 = vmatpush2.bf16.msra.mxu0 0
      %4329 = vmatprep.mubr.bf16.mxu0 0
      %4330 = vmatmul.mubr.bf16.gmra.mxu0 %v4247
      %v4331 = vpop.f32.mrf.mxu0
      %v4332 = vadd.f32 0.0, %v4331
      %v4333 = vpop.f32.mrf.mxu0
      %v4334 = vpop.f32.mrf.mxu0
      %v4335 = vadd.f32 0.0, %v4334
      %v4336 = vpop.f32.mrf.mxu0
      %4337 = vmatprep.mubr.bf16.mxu0 0
      %4338 = vmatmul.mubr.bf16.gmra.mxu0 %v4250
      %v4339 = vpop.f32.mrf.mxu0
      %v4340 = vadd.f32 0.0, %v4339
      %v4341 = vpop.f32.mrf.mxu0
      %v4342 = vpop.f32.mrf.mxu0
      %v4343 = vadd.f32 0.0, %v4342
      %v4344 = vpop.f32.mrf.mxu0
      %4345 = vmatprep.mubr.bf16.mxu0 0
      %4346 = vmatmul.mubr.bf16.gmra.mxu0 %v4253
      %v4347 = vpop.f32.mrf.mxu0
      %v4348 = vadd.f32 0.0, %v4347
      %v4349 = vpop.f32.mrf.mxu0
      %v4350 = vpop.f32.mrf.mxu0
      %v4351 = vadd.f32 0.0, %v4350
      %v4352 = vpop.f32.mrf.mxu0
      %4353 = vmatprep.mubr.bf16.mxu0 0
      %4354 = vmatmul.mubr.bf16.gmra.mxu0 %v4256
      %v4355 = vpop.f32.mrf.mxu0
      %v4356 = vadd.f32 0.0, %v4355
      %v4357 = vpop.f32.mrf.mxu0
      %v4358 = vpop.f32.mrf.mxu0
      %v4359 = vadd.f32 0.0, %v4358
      %v4360 = vpop.f32.mrf.mxu0
      %4361 = vmatprep.mubr.bf16.mxu0 0
      %4362 = vmatmul.mubr.bf16.gmra.mxu0 %v4259
      %v4363 = vpop.f32.mrf.mxu0
      %v4364 = vadd.f32 0.0, %v4363
      %v4365 = vpop.f32.mrf.mxu0
      %v4366 = vpop.f32.mrf.mxu0
      %v4367 = vadd.f32 0.0, %v4366
      %v4368 = vpop.f32.mrf.mxu0
      %4369 = vmatprep.mubr.bf16.mxu0 0
      %4370 = vmatmul.mubr.bf16.gmra.mxu0 %v4262
      %v4371 = vpop.f32.mrf.mxu0
      %v4372 = vadd.f32 0.0, %v4371
      %v4373 = vpop.f32.mrf.mxu0
      %v4374 = vpop.f32.mrf.mxu0
      %v4375 = vadd.f32 0.0, %v4374
      %v4376 = vpop.f32.mrf.mxu0
      %4377 = vmatprep.mubr.bf16.mxu0 0
      %4378 = vmatmul.mubr.bf16.gmra.mxu0 %v4265
      %v4379 = vpop.f32.mrf.mxu0
      %v4380 = vadd.f32 0.0, %v4379
      %v4381 = vpop.f32.mrf.mxu0
      %v4382 = vpop.f32.mrf.mxu0
      %v4383 = vadd.f32 0.0, %v4382
      %v4384 = vpop.f32.mrf.mxu0
      %4385 = vmatprep.mubr.bf16.mxu0 0
      %4386 = vmatmul.mubr.bf16.gmra.mxu0 %v4268
      %v4387 = vpop.f32.mrf.mxu0
      %v4388 = vadd.f32 0.0, %v4387
      %v4389 = vpop.f32.mrf.mxu0
      %v4390 = vpop.f32.mrf.mxu0
      %v4391 = vadd.f32 0.0, %v4390
      %v4392 = vpop.f32.mrf.mxu0
      %4393 = vmatprep.mubr.bf16.mxu0 0
      %4394 = vmatmul.mubr.bf16.gmra.mxu0 %v4271
      %v4395 = vpop.f32.mrf.mxu0
      %v4396 = vadd.f32 0.0, %v4395
      %v4397 = vpop.f32.mrf.mxu0
      %v4398 = vpop.f32.mrf.mxu0
      %v4399 = vadd.f32 0.0, %v4398
      %v4400 = vpop.f32.mrf.mxu0
      %4401 = vmatprep.mubr.bf16.mxu0 0
      %4402 = vmatmul.mubr.bf16.gmra.mxu0 %v4274
      %v4403 = vpop.f32.mrf.mxu0
      %v4404 = vadd.f32 0.0, %v4403
      %v4405 = vpop.f32.mrf.mxu0
      %v4406 = vpop.f32.mrf.mxu0
      %v4407 = vadd.f32 0.0, %v4406
      %v4408 = vpop.f32.mrf.mxu0
      %4409 = vmatprep.mubr.bf16.mxu0 0
      %4410 = vmatmul.mubr.bf16.gmra.mxu0 %v4277
      %v4411 = vpop.f32.mrf.mxu0
      %v4412 = vadd.f32 0.0, %v4411
      %v4413 = vpop.f32.mrf.mxu0
      %v4414 = vpop.f32.mrf.mxu0
      %v4415 = vadd.f32 0.0, %v4414
      %v4416 = vpop.f32.mrf.mxu0
      %4417 = vmatprep.mubr.bf16.mxu0 0
      %4418 = vmatmul.mubr.bf16.gmra.mxu0 %v4280
      %v4419 = vpop.f32.mrf.mxu0
      %v4420 = vadd.f32 0.0, %v4419
      %v4421 = vpop.f32.mrf.mxu0
      %v4422 = vpop.f32.mrf.mxu0
      %v4423 = vadd.f32 0.0, %v4422
      %v4424 = vpop.f32.mrf.mxu0
      %4425 = vmatprep.mubr.bf16.mxu0 0
      %4426 = vmatmul.mubr.bf16.gmra.mxu0 %v4283
      %v4427 = vpop.f32.mrf.mxu0
      %v4428 = vadd.f32 0.0, %v4427
      %v4429 = vpop.f32.mrf.mxu0
      %v4430 = vpop.f32.mrf.mxu0
      %v4431 = vadd.f32 0.0, %v4430
      %v4432 = vpop.f32.mrf.mxu0
      %4433 = vmatprep.mubr.bf16.mxu0 0
      %4434 = vmatmul.mubr.bf16.gmra.mxu0 %v4286
      %v4435 = vpop.f32.mrf.mxu0
      %v4436 = vadd.f32 0.0, %v4435
      %v4437 = vpop.f32.mrf.mxu0
      %v4438 = vpop.f32.mrf.mxu0
      %v4439 = vadd.f32 0.0, %v4438
      %v4440 = vpop.f32.mrf.mxu0
      %4441 = vmatprep.mubr.bf16.mxu0 0
      %4442 = vmatmul.mubr.bf16.gmra.mxu0 %v4289
      %v4443 = vpop.f32.mrf.mxu0
      %v4444 = vadd.f32 0.0, %v4443
      %v4445 = vpop.f32.mrf.mxu0
      %v4446 = vpop.f32.mrf.mxu0
      %v4447 = vadd.f32 0.0, %v4446
      %v4448 = vpop.f32.mrf.mxu0
      %4449 = vmatprep.mubr.bf16.mxu0 0
      %4450 = vmatmul.mubr.bf16.gmra.mxu0 %v4292
      %v4451 = vpop.f32.mrf.mxu0
      %v4452 = vadd.f32 0.0, %v4451
      %v4453 = vpop.f32.mrf.mxu0
      %v4454 = vpop.f32.mrf.mxu0
      %v4455 = vadd.f32 0.0, %v4454
      %v4456 = vpop.f32.mrf.mxu0
      %4457 = vdwg.mxu0
      %v4458 = vadd.f32 %v4099, %v4332
      %v4459 = vadd.f32 %v4100, %v4335
      %v4460 = vadd.f32 %v4101, %v4340
      %v4461 = vadd.f32 %v4102, %v4343
      %v4462 = vadd.f32 %v4103, %v4348
      %v4463 = vadd.f32 %v4104, %v4351
      %v4464 = vadd.f32 %v4105, %v4356
      %v4465 = vadd.f32 %v4106, %v4359
      %v4466 = vadd.f32 %v4107, %v4364
      %v4467 = vadd.f32 %v4108, %v4367
      %v4468 = vadd.f32 %v4109, %v4372
      %v4469 = vadd.f32 %v4110, %v4375
      %v4470 = vadd.f32 %v4111, %v4380
      %v4471 = vadd.f32 %v4112, %v4383
      %v4472 = vadd.f32 %v4113, %v4388
      %v4473 = vadd.f32 %v4114, %v4391
      %v4474 = vadd.f32 %v4115, %v4396
      %v4475 = vadd.f32 %v4116, %v4399
      %v4476 = vadd.f32 %v4117, %v4404
      %v4477 = vadd.f32 %v4118, %v4407
      %v4478 = vadd.f32 %v4119, %v4412
      %v4479 = vadd.f32 %v4120, %v4415
      %v4480 = vadd.f32 %v4121, %v4420
      %v4481 = vadd.f32 %v4122, %v4423
      %v4482 = vadd.f32 %v4123, %v4428
      %v4483 = vadd.f32 %v4124, %v4431
      %v4484 = vadd.f32 %v4125, %v4436
      %v4485 = vadd.f32 %v4126, %v4439
      %v4486 = vadd.f32 %v4127, %v4444
      %v4487 = vadd.f32 %v4128, %v4447
      %v4488 = vadd.f32 %v4129, %v4452
      %v4489 = vadd.f32 %v4130, %v4455
      %v4490 = vsel %vm1475, %v4458, 0.0
      %v4491 = vsel %vm1475, %v4459, 0.0
      %v4492 = vadd.f32 %v4490, %v4491
      %v4493 = vsel %vm1475, %v4460, 0.0
      %v4494 = vadd.f32 %v4492, %v4493
      %v4495 = vsel %vm1475, %v4461, 0.0
      %v4496 = vadd.f32 %v4494, %v4495
      %v4497 = vsel %vm1475, %v4462, 0.0
      %v4498 = vadd.f32 %v4496, %v4497
      %v4499 = vsel %vm1475, %v4463, 0.0
      %v4500 = vadd.f32 %v4498, %v4499
      %v4501 = vsel %vm1475, %v4464, 0.0
      %v4502 = vadd.f32 %v4500, %v4501
      %v4503 = vsel %vm1475, %v4465, 0.0
      %v4504 = vadd.f32 %v4502, %v4503
      %v4505 = vsel %vm1475, %v4466, 0.0
      %v4506 = vadd.f32 %v4504, %v4505
      %v4507 = vsel %vm1475, %v4467, 0.0
      %v4508 = vadd.f32 %v4506, %v4507
      %v4509 = vsel %vm1475, %v4468, 0.0
      %v4510 = vadd.f32 %v4508, %v4509
      %v4511 = vsel %vm1475, %v4469, 0.0
      %v4512 = vadd.f32 %v4510, %v4511
      %v4513 = vsel %vm1475, %v4470, 0.0
      %v4514 = vadd.f32 %v4512, %v4513
      %v4515 = vsel %vm1475, %v4471, 0.0
      %v4516 = vadd.f32 %v4514, %v4515
      %v4517 = vsel %vm1475, %v4472, 0.0
      %v4518 = vadd.f32 %v4516, %v4517
      %v4519 = vsel %vm1475, %v4473, 0.0
      %v4520 = vadd.f32 %v4518, %v4519
      %v4521 = vsel %vm1475, %v4474, 0.0
      %v4522 = vadd.f32 %v4520, %v4521
      %v4523 = vsel %vm1475, %v4475, 0.0
      %v4524 = vadd.f32 %v4522, %v4523
      %v4525 = vsel %vm1475, %v4476, 0.0
      %v4526 = vadd.f32 %v4524, %v4525
      %v4527 = vsel %vm1475, %v4477, 0.0
      %v4528 = vadd.f32 %v4526, %v4527
      %v4529 = vsel %vm1475, %v4478, 0.0
      %v4530 = vadd.f32 %v4528, %v4529
      %v4531 = vsel %vm1475, %v4479, 0.0
      %v4532 = vadd.f32 %v4530, %v4531
      %v4533 = vsel %vm1475, %v4480, 0.0
      %v4534 = vadd.f32 %v4532, %v4533
      %v4535 = vsel %vm1475, %v4481, 0.0
      %v4536 = vadd.f32 %v4534, %v4535
      %v4537 = vsel %vm1475, %v4482, 0.0
      %v4538 = vadd.f32 %v4536, %v4537
      %v4539 = vsel %vm1475, %v4483, 0.0
      %v4540 = vadd.f32 %v4538, %v4539
      %v4541 = vsel %vm1475, %v4484, 0.0
      %v4542 = vadd.f32 %v4540, %v4541
      %v4543 = vsel %vm1475, %v4485, 0.0
      %v4544 = vadd.f32 %v4542, %v4543
      %v4545 = vsel %vm1475, %v4486, 0.0
      %v4546 = vadd.f32 %v4544, %v4545
      %v4547 = vsel %vm1475, %v4487, 0.0
      %v4548 = vadd.f32 %v4546, %v4547
      %v4549 = vsel %vm1475, %v4488, 0.0
      %v4550 = vadd.f32 %v4548, %v4549
      %v4551 = vsel %vm1475, %v4489, 0.0
      %v4552 = vadd.f32 %v4550, %v4551
      %v4553 = vrot.slane %v4552, 4
      %v4554 = vadd.f32 %v4552, %v4553
      %v4555 = vrot.slane %v4554, 2
      %v4556 = vadd.f32 %v4554, %v4555
      %v4557 = vrot.slane %v4556, 1
      %v4558 = vadd.f32 %v4556, %v4557
      %vm4559 = vcmask 24576
      %4560 = vst.msk [vmem:[%s265] sm:$0x1] %vm4559, %v4558
      %v4561 = vmul.f32 %v4458, %v4458
      %v4562 = vmul.f32 %v4459, %v4459
      %v4563 = vmul.f32 %v4460, %v4460
      %v4564 = vmul.f32 %v4461, %v4461
      %v4565 = vmul.f32 %v4462, %v4462
      %v4566 = vmul.f32 %v4463, %v4463
      %v4567 = vmul.f32 %v4464, %v4464
      %v4568 = vmul.f32 %v4465, %v4465
      %v4569 = vmul.f32 %v4466, %v4466
      %v4570 = vmul.f32 %v4467, %v4467
      %v4571 = vmul.f32 %v4468, %v4468
      %v4572 = vmul.f32 %v4469, %v4469
      %v4573 = vmul.f32 %v4470, %v4470
      %v4574 = vmul.f32 %v4471, %v4471
      %v4575 = vmul.f32 %v4472, %v4472
      %v4576 = vmul.f32 %v4473, %v4473
      %v4577 = vmul.f32 %v4474, %v4474
      %v4578 = vmul.f32 %v4475, %v4475
      %v4579 = vmul.f32 %v4476, %v4476
      %v4580 = vmul.f32 %v4477, %v4477
      %v4581 = vmul.f32 %v4478, %v4478
      %v4582 = vmul.f32 %v4479, %v4479
      %v4583 = vmul.f32 %v4480, %v4480
      %v4584 = vmul.f32 %v4481, %v4481
      %v4585 = vmul.f32 %v4482, %v4482
      %v4586 = vmul.f32 %v4483, %v4483
      %v4587 = vmul.f32 %v4484, %v4484
      %v4588 = vmul.f32 %v4485, %v4485
      %v4589 = vmul.f32 %v4486, %v4486
      %v4590 = vmul.f32 %v4487, %v4487
      %v4591 = vmul.f32 %v4488, %v4488
      %v4592 = vmul.f32 %v4489, %v4489
      %v4593 = vsel %vm1475, %v4561, 0.0
      %v4594 = vsel %vm1475, %v4562, 0.0
      %v4595 = vadd.f32 %v4593, %v4594
      %v4596 = vsel %vm1475, %v4563, 0.0
      %v4597 = vadd.f32 %v4595, %v4596
      %v4598 = vsel %vm1475, %v4564, 0.0
      %v4599 = vadd.f32 %v4597, %v4598
      %v4600 = vsel %vm1475, %v4565, 0.0
      %v4601 = vadd.f32 %v4599, %v4600
      %v4602 = vsel %vm1475, %v4566, 0.0
      %v4603 = vadd.f32 %v4601, %v4602
      %v4604 = vsel %vm1475, %v4567, 0.0
      %v4605 = vadd.f32 %v4603, %v4604
      %v4606 = vsel %vm1475, %v4568, 0.0
      %v4607 = vadd.f32 %v4605, %v4606
      %v4608 = vsel %vm1475, %v4569, 0.0
      %v4609 = vadd.f32 %v4607, %v4608
      %v4610 = vsel %vm1475, %v4570, 0.0
      %v4611 = vadd.f32 %v4609, %v4610
      %v4612 = vsel %vm1475, %v4571, 0.0
      %v4613 = vadd.f32 %v4611, %v4612
      %v4614 = vsel %vm1475, %v4572, 0.0
      %v4615 = vadd.f32 %v4613, %v4614
      %v4616 = vsel %vm1475, %v4573, 0.0
      %v4617 = vadd.f32 %v4615, %v4616
      %v4618 = vsel %vm1475, %v4574, 0.0
      %v4619 = vadd.f32 %v4617, %v4618
      %v4620 = vsel %vm1475, %v4575, 0.0
      %v4621 = vadd.f32 %v4619, %v4620
      %v4622 = vsel %vm1475, %v4576, 0.0
      %v4623 = vadd.f32 %v4621, %v4622
      %v4624 = vsel %vm1475, %v4577, 0.0
      %v4625 = vadd.f32 %v4623, %v4624
      %v4626 = vsel %vm1475, %v4578, 0.0
      %v4627 = vadd.f32 %v4625, %v4626
      %v4628 = vsel %vm1475, %v4579, 0.0
      %v4629 = vadd.f32 %v4627, %v4628
      %v4630 = vsel %vm1475, %v4580, 0.0
      %v4631 = vadd.f32 %v4629, %v4630
      %v4632 = vsel %vm1475, %v4581, 0.0
      %v4633 = vadd.f32 %v4631, %v4632
      %v4634 = vsel %vm1475, %v4582, 0.0
      %v4635 = vadd.f32 %v4633, %v4634
      %v4636 = vsel %vm1475, %v4583, 0.0
      %v4637 = vadd.f32 %v4635, %v4636
      %v4638 = vsel %vm1475, %v4584, 0.0
      %v4639 = vadd.f32 %v4637, %v4638
      %v4640 = vsel %vm1475, %v4585, 0.0
      %v4641 = vadd.f32 %v4639, %v4640
      %v4642 = vsel %vm1475, %v4586, 0.0
      %v4643 = vadd.f32 %v4641, %v4642
      %v4644 = vsel %vm1475, %v4587, 0.0
      %v4645 = vadd.f32 %v4643, %v4644
      %v4646 = vsel %vm1475, %v4588, 0.0
      %v4647 = vadd.f32 %v4645, %v4646
      %v4648 = vsel %vm1475, %v4589, 0.0
      %v4649 = vadd.f32 %v4647, %v4648
      %v4650 = vsel %vm1475, %v4590, 0.0
      %v4651 = vadd.f32 %v4649, %v4650
      %v4652 = vsel %vm1475, %v4591, 0.0
      %v4653 = vadd.f32 %v4651, %v4652
      %v4654 = vsel %vm1475, %v4592, 0.0
      %v4655 = vadd.f32 %v4653, %v4654
      %v4656 = vrot.slane %v4655, 4
      %v4657 = vadd.f32 %v4655, %v4656
      %v4658 = vrot.slane %v4657, 2
      %v4659 = vadd.f32 %v4657, %v4658
      %v4660 = vrot.slane %v4659, 1
      %v4661 = vadd.f32 %v4659, %v4660
      %4662 = vst.msk [vmem:[%s268] sm:$0x1] %vm4559, %v4661
      %v4663 = vpack.c.bf16 %v4459, %v4458
      %v4664 = vpack.c.bf16 %v4461, %v4460
      %v4665 = vpack.c.bf16 %v4463, %v4462
      %v4666 = vpack.c.bf16 %v4465, %v4464
      %v4667 = vpack.c.bf16 %v4467, %v4466
      %v4668 = vpack.c.bf16 %v4469, %v4468
      %v4669 = vpack.c.bf16 %v4471, %v4470
      %v4670 = vpack.c.bf16 %v4473, %v4472
      %v4671 = vpack.c.bf16 %v4475, %v4474
      %v4672 = vpack.c.bf16 %v4477, %v4476
      %v4673 = vpack.c.bf16 %v4479, %v4478
      %v4674 = vpack.c.bf16 %v4481, %v4480
      %v4675 = vpack.c.bf16 %v4483, %v4482
      %v4676 = vpack.c.bf16 %v4485, %v4484
      %v4677 = vpack.c.bf16 %v4487, %v4486
      %v4678 = vpack.c.bf16 %v4489, %v4488
      %v4695 = vunpack.c.l.b16 %v4663
      %v4696 = vunpack.c.h.b16 %v4663
      %v4697 = vunpack.c.l.b16 %v4664
      %v4698 = vunpack.c.h.b16 %v4664
      %v4699 = vunpack.c.l.b16 %v4665
      %v4700 = vunpack.c.h.b16 %v4665
      %v4701 = vunpack.c.l.b16 %v4666
      %v4702 = vunpack.c.h.b16 %v4666
      %v4703 = vunpack.c.l.b16 %v4667
      %v4704 = vunpack.c.h.b16 %v4667
      %v4705 = vunpack.c.l.b16 %v4668
      %v4706 = vunpack.c.h.b16 %v4668
      %v4707 = vunpack.c.l.b16 %v4669
      %v4708 = vunpack.c.h.b16 %v4669
      %v4709 = vunpack.c.l.b16 %v4670
      %v4710 = vunpack.c.h.b16 %v4670
      %v4711 = vunpack.c.l.b16 %v4671
      %v4712 = vunpack.c.h.b16 %v4671
      %v4713 = vunpack.c.l.b16 %v4672
      %v4714 = vunpack.c.h.b16 %v4672
      %v4715 = vunpack.c.l.b16 %v4673
      %v4716 = vunpack.c.h.b16 %v4673
      %v4717 = vunpack.c.l.b16 %v4674
      %v4718 = vunpack.c.h.b16 %v4674
      %v4719 = vunpack.c.l.b16 %v4675
      %v4720 = vunpack.c.h.b16 %v4675
      %v4721 = vunpack.c.l.b16 %v4676
      %v4722 = vunpack.c.h.b16 %v4676
      %v4723 = vunpack.c.l.b16 %v4677
      %v4724 = vunpack.c.h.b16 %v4677
      %v4725 = vunpack.c.l.b16 %v4678
      %v4726 = vunpack.c.h.b16 %v4678
      %v4727 = vpack.c.b16 %v4695, %v4695
      %v4728 = vpack.c.b16 %v4696, %v4696
      %v4729 = vpack.c.b16 %v4697, %v4697
      %v4730 = vpack.c.b16 %v4698, %v4698
      %v4731 = vpack.c.b16 %v4699, %v4699
      %v4732 = vpack.c.b16 %v4700, %v4700
      %v4733 = vpack.c.b16 %v4701, %v4701
      %v4734 = vpack.c.b16 %v4702, %v4702
      %v4735 = vpack.c.b16 %v4703, %v4703
      %v4736 = vpack.c.b16 %v4704, %v4704
      %v4737 = vpack.c.b16 %v4705, %v4705
      %v4738 = vpack.c.b16 %v4706, %v4706
      %v4739 = vpack.c.b16 %v4707, %v4707
      %v4740 = vpack.c.b16 %v4708, %v4708
      %v4741 = vpack.c.b16 %v4709, %v4709
      %v4742 = vpack.c.b16 %v4710, %v4710
      %v4743 = vpack.c.b16 %v4711, %v4711
      %v4744 = vpack.c.b16 %v4712, %v4712
      %v4745 = vpack.c.b16 %v4713, %v4713
      %v4746 = vpack.c.b16 %v4714, %v4714
      %v4747 = vpack.c.b16 %v4715, %v4715
      %v4748 = vpack.c.b16 %v4716, %v4716
      %v4749 = vpack.c.b16 %v4717, %v4717
      %v4750 = vpack.c.b16 %v4718, %v4718
      %v4751 = vpack.c.b16 %v4719, %v4719
      %v4752 = vpack.c.b16 %v4720, %v4720
      %v4753 = vpack.c.b16 %v4721, %v4721
      %v4754 = vpack.c.b16 %v4722, %v4722
      %v4755 = vpack.c.b16 %v4723, %v4723
      %v4756 = vpack.c.b16 %v4724, %v4724
      %v4757 = vpack.c.b16 %v4725, %v4725
      %v4758 = vpack.c.b16 %v4726, %v4726
      %4791 = vst.msk [vmem:[%s262] sm:$0xf] %vm460, %v4727
      %4792 = vst.msk [vmem:[%s262 + $0x4] sm:$0xf] %vm460, %v4728
      %4793 = vst.msk [vmem:[%s262 + $0x8] sm:$0xf] %vm460, %v4729
      %4794 = vst.msk [vmem:[%s262 + $0xc] sm:$0xf] %vm460, %v4730
      %4795 = vst.msk [vmem:[%s262 + $0x10] sm:$0xf] %vm460, %v4731
      %4796 = vst.msk [vmem:[%s262 + $0x14] sm:$0xf] %vm460, %v4732
      %4797 = vst.msk [vmem:[%s262 + $0x18] sm:$0xf] %vm460, %v4733
      %4798 = vst.msk [vmem:[%s262 + $0x1c] sm:$0xf] %vm460, %v4734
      %4799 = vst.msk [vmem:[%s262 + $0x20] sm:$0xf] %vm460, %v4735
      %4800 = vst.msk [vmem:[%s262 + $0x24] sm:$0xf] %vm460, %v4736
      %4801 = vst.msk [vmem:[%s262 + $0x28] sm:$0xf] %vm460, %v4737
      %4802 = vst.msk [vmem:[%s262 + $0x2c] sm:$0xf] %vm460, %v4738
      %4803 = vst.msk [vmem:[%s262 + $0x30] sm:$0xf] %vm460, %v4739
      %4804 = vst.msk [vmem:[%s262 + $0x34] sm:$0xf] %vm460, %v4740
      %4805 = vst.msk [vmem:[%s262 + $0x38] sm:$0xf] %vm460, %v4741
      %4806 = vst.msk [vmem:[%s262 + $0x3c] sm:$0xf] %vm460, %v4742
      %4807 = vst.msk [vmem:[%s262 + $0x40] sm:$0xf] %vm460, %v4743
      %4808 = vst.msk [vmem:[%s262 + $0x44] sm:$0xf] %vm460, %v4744
      %4809 = vst.msk [vmem:[%s262 + $0x48] sm:$0xf] %vm460, %v4745
      %4810 = vst.msk [vmem:[%s262 + $0x4c] sm:$0xf] %vm460, %v4746
      %4811 = vst.msk [vmem:[%s262 + $0x50] sm:$0xf] %vm460, %v4747
      %4812 = vst.msk [vmem:[%s262 + $0x54] sm:$0xf] %vm460, %v4748
      %4813 = vst.msk [vmem:[%s262 + $0x58] sm:$0xf] %vm460, %v4749
      %4814 = vst.msk [vmem:[%s262 + $0x5c] sm:$0xf] %vm460, %v4750
      %4815 = vst.msk [vmem:[%s262 + $0x60] sm:$0xf] %vm460, %v4751
      %4816 = vst.msk [vmem:[%s262 + $0x64] sm:$0xf] %vm460, %v4752
      %4817 = vst.msk [vmem:[%s262 + $0x68] sm:$0xf] %vm460, %v4753
      %4818 = vst.msk [vmem:[%s262 + $0x6c] sm:$0xf] %vm460, %v4754
      %4819 = vst.msk [vmem:[%s262 + $0x70] sm:$0xf] %vm460, %v4755
      %4820 = vst.msk [vmem:[%s262 + $0x74] sm:$0xf] %vm460, %v4756
      %4821 = vst.msk [vmem:[%s262 + $0x78] sm:$0xf] %vm460, %v4757
      %4822 = vst.msk [vmem:[%s262 + $0x7c] sm:$0xf] %vm460, %v4758
      %p4823 = scmp.lt.s32.totalorder %s18, 1
      %s4824 = scalar_select %p4823, %s18, 1
      %s4825 = smul.addr %s4824, 32
      %s4826 = smul.addr %s4825, 4
      %s4827 = scalar_lea.vmem %s4, %s4826
      %p4828 = scmp.lt.s32.totalorder %s18, 1
      %s4829 = scalar_select %p4828, %s18, 1
      %s4830 = scalar_lea.vmem %s5, %s4829
      %p4831 = scmp.lt.s32.totalorder %s18, 1
      %s4832 = scalar_select %p4831, %s18, 1
      %s4833 = scalar_lea.vmem %s6, %s4832
      // Predicated region
      $region37: #{basic_block.4} parent=35 // pred_check
        %p4834 = pneg %p125
      $region38: #{basic_block.4} parent=35 // pred_check_branch
        %4836 = sbr.rel (%p4834) target = $region40
      $region39: #{basic_block.4} parent=35 // pred_region
        _
      $region40: #{basic_block.4} parent=35 // pred_fallthru
        _
      // Predicated region
      $region41: #{basic_block.4} parent=35 // pred_check
        %p4837 = pneg %p151
      $region42: #{basic_block.4} parent=35 // pred_check_branch
        %4839 = sbr.rel (%p4837) target = $region44
      $region43: #{basic_block.4} parent=35 // pred_region
        _
      $region44: #{basic_block.4} parent=35 // pred_fallthru
        _
      // Predicated region
      $region45: #{basic_block.4} parent=35 // pred_check
        %p4840 = pneg %p177
      $region46: #{basic_block.4} parent=35 // pred_check_branch
        %4842 = sbr.rel (%p4840) target = $region48
      $region47: #{basic_block.4} parent=35 // pred_region
        _
      $region48: #{basic_block.4} parent=35 // pred_fallthru
        _
    $region36: #{basic_block.4} parent=5 // pred_fallthru
      _
    %p4843 = scmp.le.s32.totalorder 2, %s13
    // Predicated region
    $region49: #{basic_block.4} parent=5 // pred_check
      %p4844 = pneg %p4843
    $region50: #{basic_block.4} parent=5 // pred_check_branch
      %4846 = sbr.rel (%p4844) target = $region52
    $region51: #{basic_block.4} parent=5 // pred_region
      %s4847 = ssub.s32 %s13, 2
      // Predicated region
      $region53: #{basic_block.4} parent=51 // pred_check
        %p4848 = pneg %p131
      $region54: #{basic_block.4} parent=51 // pred_check_branch
        %4850 = sbr.rel (%p4848) target = $region56
      $region55: #{basic_block.4} parent=51 // pred_region
        %p4851 = scmp.lt.s32.totalorder %s19, 1
        %s4852 = scalar_select %p4851, %s19, 1
        %s4853 = smul.addr %s4852, 32
        %s4854 = smul.addr %s4853, 4
        %s4855 = scalar_lea.vmem %s4, %s4854
      $region56: #{basic_block.4} parent=51 // pred_fallthru
        _
      // Predicated region
      $region57: #{basic_block.4} parent=51 // pred_check
        %p4856 = pneg %p157
      $region58: #{basic_block.4} parent=51 // pred_check_branch
        %4858 = sbr.rel (%p4856) target = $region60
      $region59: #{basic_block.4} parent=51 // pred_region
        %p4859 = scmp.lt.s32.totalorder %s19, 1
        %s4860 = scalar_select %p4859, %s19, 1
        %s4861 = scalar_lea.vmem %s5, %s4860
      $region60: #{basic_block.4} parent=51 // pred_fallthru
        _
      // Predicated region
      $region61: #{basic_block.4} parent=51 // pred_check
        %p4862 = pneg %p183
      $region62: #{basic_block.4} parent=51 // pred_check_branch
        %4864 = sbr.rel (%p4862) target = $region64
      $region63: #{basic_block.4} parent=51 // pred_region
        %p4865 = scmp.lt.s32.totalorder %s19, 1
        %s4866 = scalar_select %p4865, %s19, 1
        %s4867 = scalar_lea.vmem %s6, %s4866
      $region64: #{basic_block.4} parent=51 // pred_fallthru
        _
    $region52: #{basic_block.4} parent=5 // pred_fallthru
      _
  $region6: #{basic_block.4} parent=0 // loop_footer
    %s17 = sadd.s32 1, %s13
  $region7: #{basic_block.4} parent=0 // loop_footer_branch
    %12 = sbr.rel target = $region3
  $region8: #{basic_block.4} parent=0 // loop_exit
    _

</llo_original>
